<compile_context>
chip_gen: v7x
topology: tpu7x:2x2x1
jax: 0.10.0
libtpu: 0.0.40
codegen_flags: <defaults>
</compile_context>

<pallas_src>
import jax
import jax.numpy as jnp
from jax.experimental import pallas as pl
from jax.experimental.pallas import tpu as pltpu


def _make_kplane_kernel(Rs, C, features_mode, n_levels):
    c_per_level = C if features_mode == 'mul' else 3 * C

    def kernel(coords_ref, *refs):
        plane_refs = refs[:n_levels]
        out_ref = refs[n_levels]

        coords = coords_ref[...].astype(jnp.float32)            # (3, TN), points on lanes
        TN = coords.shape[1]
        px = coords[0:1, :]
        py = coords[1:2, :]
        pz = coords[2:3, :]

        for lvl in range(n_levels):
            R = Rs[lvl]
            p_ref = plane_refs[lvl]                              # (3*C*R, R), matmul dtype
            pdt = p_ref.dtype

            # grid_sample(align_corners=True, padding_mode='border') pixel coords.
            gx = jnp.clip(px * (R - 1.0), 0.0, R - 1.0)          # (1, TN)
            gy = jnp.clip(py * (R - 1.0), 0.0, R - 1.0)
            gz = jnp.clip(pz * (R - 1.0), 0.0, R - 1.0)

            idx = jax.lax.broadcasted_iota(jnp.int32, (R, TN), 0).astype(jnp.float32)

            # bilinear hat weights (nonzero only on the two neighbouring texels)
            tx = jnp.maximum(0.0, 1.0 - jnp.abs(gx - idx))       # (R, TN) f32
            ty = jnp.maximum(0.0, 1.0 - jnp.abs(gy - idx))
            tz = jnp.maximum(0.0, 1.0 - jnp.abs(gz - idx))

            # hoisted column-weight casts (tx used by planes 0 & 1, ty by plane 2)
            tx_m = tx.astype(pdt)
            ty_m = ty.astype(pdt)

            # Plane-axis mapping (from TriPlaneVolume.create_subplanes_trivial_base):
            #   plane 0 ('up')   : grid = (x, z) -> col tx, row tz
            #   plane 1 ('front'): grid = (x, y) -> col tx, row ty
            #   plane 2 ('right'): grid = (y, z) -> col ty, row tz
            # Planes 0 & 1 share tx -> one fused MXU matmul (2*C*R rows).
            tmp01 = jnp.dot(p_ref[0:2 * C * R, :], tx_m,
                            preferred_element_type=jnp.float32)  # (2*C*R, TN)
            tmp01 = tmp01.reshape(2 * C, R, TN)                  # R % 8 == 0 -> free
            feat0 = jnp.sum(tmp01[:C] * tz[None, :, :], axis=1)  # (C, TN)
            feat1 = jnp.sum(tmp01[C:] * ty[None, :, :], axis=1)

            tmp2 = jnp.dot(p_ref[2 * C * R:3 * C * R, :], ty_m,
                           preferred_element_type=jnp.float32)   # (C*R, TN)
            tmp2 = tmp2.reshape(C, R, TN)
            feat2 = jnp.sum(tmp2 * tz[None, :, :], axis=1)

            base = lvl * c_per_level
            if features_mode == 'mul':
                out_ref[base:base + C, :] = (feat0 * feat1 * feat2).astype(out_ref.dtype)
            else:   # 'concatination' — torch order: level-major, then plane-major
                out_ref[base:base + 3 * C, :] = jnp.concatenate(
                    [feat0, feat1, feat2], axis=0).astype(out_ref.dtype)

    return kernel


def _vmem_capacity_bytes():
    try:
        return int(pltpu.get_tpu_info().vmem_capacity_bytes)
    except Exception:
        return 64 * 1024 * 1024   # conservative (v7x per-TC) fallback


def kplane_forward_flat(coords, planes_flat, Rs, C, features_mode, *,
                        tile_n=1024, out_layout='nc', single_buffer_planes=True):
    """coords: (N, 3) f32 in [0,1]^3; planes_flat: list of (3*C*R, R) arrays (c-major rows)."""
    assert features_mode in ('mul', 'concatination')
    assert out_layout in ('nc', 'cn')
    n_levels = len(planes_flat)
    c_per_level = C if features_mode == 'mul' else 3 * C
    c_total = n_levels * c_per_level
    N = coords.shape[0]

    if N == 0:   # torch forward's numel()==0 early exit
        z = jnp.zeros((0, c_total), coords.dtype)
        return z if out_layout == 'nc' else z.T

    plane_itemsize = jnp.dtype(planes_flat[0].dtype).itemsize

    # Generation-aware per-TensorCore VMEM budget (the budget is per TC; megacore
    # sharding gives each core its own resident plane copy).
    vmem_cap = _vmem_capacity_bytes()
    budget = max(vmem_cap - 8 * 1024 * 1024, 16 * 1024 * 1024)

    def est(tn, plane_bufs):
        plane_bytes = plane_bufs * sum(3 * C * R * R * plane_itemsize for R in Rs)
        io_bytes = 2 * (3 + c_total) * tn * 4            # double-buffered coords + output blocks
        # per-level temporaries (levels run sequentially -> take the max):
        # f32 tents (3R) + cast tents (2R) + f32 matmul results (3*C*R peak) + feats (3C)
        tmp_bytes = max((3 * R * 4 + 2 * R * plane_itemsize + 3 * C * R * 4 + 3 * C * 4) * tn
                        for R in Rs)
        return plane_bytes + io_bytes + tmp_bytes

    plane_bufs0 = 1 if single_buffer_planes else 2
    tn = max(128, (tile_n // 128) * 128)
    tn = min(tn, max(128, ((N + 127) // 128) * 128))     # don't pad tiny N to a huge tile
    while tn > 128 and est(tn, plane_bufs0) > budget:
        tn = max(128, (tn // 2) // 128 * 128)
    # TODO(synk): if est(128, ...) still exceeds budget (huge R / many levels) a
    # K-blocked / streamed-plane path is required; not implemented here.

    n_pad = (-N) % tn
    coords_p = jnp.pad(coords, ((0, n_pad), (0, 0))) if n_pad else coords
    Np = coords_p.shape[0]
    coords_t = coords_p.T                                # (3, Np), points on lanes

    kernel = _make_kplane_kernel(Rs, C, features_mode, n_levels)

    def build(use_single_buffer):
        plane_bufs = 1 if use_single_buffer else 2
        vmem_limit = int(min(budget, max(2 * est(tn, plane_bufs), 32 * 1024 * 1024)))
        in_specs = [pl.BlockSpec((3, tn), lambda i: (0, i))]
        for R in Rs:
            # Constant index map: plane block never changes, so Pallas keeps it resident.
            if use_single_buffer:
                spec = pl.BlockSpec((3 * C * R, R), lambda i: (0, 0),
                                    pipeline_mode=pl.Buffered(1))
            else:
                spec = pl.BlockSpec((3 * C * R, R), lambda i: (0, 0))
            in_specs.append(spec)
        return pl.pallas_call(
            kernel,
            out_shape=jax.ShapeDtypeStruct((c_total, Np), jnp.float32),
            grid_spec=pltpu.PrefetchScalarGridSpec(
                num_scalar_prefetch=0,
                grid=(Np // tn,),
                in_specs=in_specs,
                out_specs=pl.BlockSpec((c_total, tn), lambda i: (0, i)),
            ),
            compiler_params=pltpu.CompilerParams(
                dimension_semantics=("parallel",),       # N tiles shard across TCs (v7x)
                vmem_limit_bytes=vmem_limit,
            ),
        )

    try:
        out_t = build(single_buffer_planes)(coords_t, *planes_flat)
    except Exception:
        # fall back to default double-buffered planes if Buffered(1) is unsupported
        out_t = build(False)(coords_t, *planes_flat)

    if out_layout == 'cn':
        return out_t[:, :N].astype(coords.dtype)          # lane-dense, no transpose pass
    return out_t[:, :N].T.astype(coords.dtype)            # torch semantics: (N, c_total)


def kplane_forward(coords, planes_list, features_mode, *, tile_n=1024,
                   matmul_dtype=jnp.float32, out_layout='nc'):
    """Convenience wrapper: planes_list entries are (3, C, R, R)."""
    C = int(planes_list[0].shape[1])
    Rs = tuple(int(p.shape[2]) for p in planes_list)
    for R in Rs:
        assert R % 8 == 0, "plane resolution must be a multiple of 8"
    planes_flat = [p.astype(matmul_dtype).reshape(3 * C * R, R)
                   for p, R in zip(planes_list, Rs)]
    return kplane_forward_flat(coords, planes_flat, Rs, C, features_mode,
                               tile_n=tile_n, out_layout=out_layout)


class KPlaneVolumePallas:
    """JAX/Pallas port of KPlaneVolume (inner_multi_res_scale=1, so no wavelet path)."""

    def __init__(self, base_resolution, levels, channels, features_mode,
                 func_init=False, key=None, matmul_dtype=jnp.float32, tile_n=1024):
        assert levels >= 1
        assert features_mode in ('mul', 'concatination')
        if key is None:
            key = jax.random.PRNGKey(0)
        self.features_mode = features_mode
        self.channels = channels
        self.matmul_dtype = matmul_dtype
        self.tile_n = tile_n
        self.planes = []          # canonical f32 parameters, (3, C, R, R)
        self._planes_flat = []    # kernel operands: flattened + cast ONCE, (3*C*R, R)
        self.Rs = []
        keys = jax.random.split(key, levels)
        # TriPlaneVolume uses init_fn=kplanes_init_mul (uniform in [-1,1]) unless
        # features_mode == 'concatination' and func_init == False (0.1 * randn).
        use_mul_init = not (features_mode == 'concatination' and not func_init)
        for lvl in range(levels):
            R = base_resolution * 2 ** lvl
            assert R % 8 == 0, "plane resolution must be a multiple of 8"
            shape = (3, channels, R, R)
            if use_mul_init:
                pf = jax.random.uniform(keys[lvl], shape, jnp.float32, -1.0, 1.0)
            else:
                pf = 0.1 * jax.random.normal(keys[lvl], shape, jnp.float32)
            self.planes.append(pf)
            self._planes_flat.append(pf.astype(matmul_dtype).reshape(3 * channels * R, R))
            self.Rs.append(R)
        self.Rs = tuple(self.Rs)
        self.n_output_dims = levels * channels * (3 if features_mode == 'concatination' else 1)

    def __call__(self, coordinates, bound=None, out_layout='nc'):
        # `bound` cancels in the torch forward ((x*2-1)*b then /b) — unused here.
        return kplane_forward_flat(coordinates, self._planes_flat, self.Rs, self.channels,
                                   self.features_mode, tile_n=self.tile_n,
                                   out_layout=out_layout)


# ----- pure-JAX reference (mirrors F.grid_sample bilinear/border/align_corners) -----
def _ref_level(coords, planes, features_mode):
    R = planes.shape[2]
    pix = jnp.clip(coords * (R - 1.0), 0.0, R - 1.0)  # (N, 3)

    def sample(plane, cx, cy):  # plane (C,R,R); cx -> width, cy -> height
        x0 = jnp.clip(jnp.floor(cx), 0, R - 1).astype(jnp.int32)
        y0 = jnp.clip(jnp.floor(cy), 0, R - 1).astype(jnp.int32)
        x1 = jnp.minimum(x0 + 1, R - 1)
        y1 = jnp.minimum(y0 + 1, R - 1)
        wx = cx - x0.astype(jnp.float32)
        wy = cy - y0.astype(jnp.float32)
        v00 = plane[:, y0, x0]
        v01 = plane[:, y0, x1]
        v10 = plane[:, y1, x0]
        v11 = plane[:, y1, x1]
        val = (v00 * (1 - wy) * (1 - wx) + v01 * (1 - wy) * wx
               + v10 * wy * (1 - wx) + v11 * wy * wx)
        return val.T  # (N, C)

    x, y, z = pix[:, 0], pix[:, 1], pix[:, 2]
    f0 = sample(planes[0], x, z)
    f1 = sample(planes[1], x, y)
    f2 = sample(planes[2], y, z)
    if features_mode == 'mul':
        return f0 * f1 * f2
    return jnp.concatenate([f0, f1, f2], axis=-1)


if __name__ == "__main__":
    key = jax.random.PRNGKey(0)
    k_coords, k_params = jax.random.split(key)

    N = 300   # not a multiple of 128 -> exercises padding
    coords = jax.random.uniform(k_coords, (N, 3), jnp.float32)  # points in unit cube

    # 'mul' mode, 2 levels (R = 16, 32): output (N, levels*channels)
    model = KPlaneVolumePallas(base_resolution=16, levels=2, channels=8,
                               features_mode='mul', key=k_params)
    out = jax.block_until_ready(model(coords))
    assert out.shape == (N, model.n_output_dims)
    ref = jnp.concatenate([_ref_level(coords, pf, 'mul') for pf in model.planes], axis=-1)
    assert jnp.allclose(out, ref, atol=1e-4, rtol=1e-4), float(jnp.abs(out - ref).max())

    # lane-dense (c_total, N) output path (no wrapper transpose)
    out_cn = jax.block_until_ready(model(coords, out_layout='cn'))
    assert out_cn.shape == (model.n_output_dims, N)
    assert jnp.allclose(out_cn.T, ref, atol=1e-4, rtol=1e-4)

    # 'concatination' mode: output (N, levels*3*channels)
    model2 = KPlaneVolumePallas(base_resolution=16, levels=1, channels=8,
                                features_mode='concatination', key=k_params)
    out2 = jax.block_until_ready(model2(coords))
    assert out2.shape == (N, model2.n_output_dims)
    ref2 = jnp.concatenate([_ref_level(coords, pf, 'concatination')
                            for pf in model2.planes], axis=-1)
    assert jnp.allclose(out2, ref2, atol=1e-4, rtol=1e-4), float(jnp.abs(out2 - ref2).max())

    # bf16 planes on the MXU (bf16-native on v5e/v6e/v7x); accumulation stays f32.
    model3 = KPlaneVolumePallas(base_resolution=16, levels=2, channels=8,
                                features_mode='mul', key=k_params,
                                matmul_dtype=jnp.bfloat16)
    out3 = jax.block_until_ready(model3(coords))
    assert out3.shape == (N, model3.n_output_dims)
    assert jnp.allclose(out3, ref, atol=1e-1), float(jnp.abs(out3 - ref).max())

    print("KERNEL_OK")
</pallas_src>

<mosaic_0001>
module attributes {stable_mosaic.version = 11 : i64} {
  func.func @kernel(%arg0: i32, %arg1: memref<3x384xf32, #tpu.memory_space<vmem>>, %arg2: memref<384x16xf32, #tpu.memory_space<vmem>>, %arg3: memref<768x32xf32, #tpu.memory_space<vmem>>, %arg4: memref<16x384xf32, #tpu.memory_space<vmem>>) attributes {dimension_semantics = [#tpu.dimension_semantics<parallel>], iteration_bounds = array<i64: 1>, scalar_prefetch = 0 : i64, scratch_operands = 0 : i64, tpu.core_type = #tpu.core_type<tc>, window_params = [{transform_indices = @transform_0, window_bounds = array<i64: 3, 384>}, {pipeline_mode = #tpu.pipeline_mode<synchronous>, transform_indices = @transform_1, window_bounds = array<i64: 384, 16>}, {pipeline_mode = #tpu.pipeline_mode<synchronous>, transform_indices = @transform_2, window_bounds = array<i64: 768, 32>}, {transform_indices = @transform_3, window_bounds = array<i64: 16, 384>}]} {
    %c0 = arith.constant 0 : index
    %c0_0 = arith.constant 0 : index
    %0 = vector.load %arg1[%c0, %c0_0] : memref<3x384xf32, #tpu.memory_space<vmem>>, vector<3x384xf32>
    %1 = vector.extract_strided_slice %0 {offsets = [0, 0], sizes = [1, 384], strides = [1, 1]} : vector<3x384xf32> to vector<1x384xf32>
    %2 = vector.extract_strided_slice %0 {offsets = [1, 0], sizes = [1, 384], strides = [1, 1]} : vector<3x384xf32> to vector<1x384xf32>
    %3 = vector.extract_strided_slice %0 {offsets = [2, 0], sizes = [1, 384], strides = [1, 1]} : vector<3x384xf32> to vector<1x384xf32>
    %cst = arith.constant 1.500000e+01 : f32
    %4 = vector.broadcast %cst : f32 to vector<1x384xf32>
    %5 = arith.mulf %1, %4 : vector<1x384xf32>
    %cst_1 = arith.constant 0.000000e+00 : f32
    %cst_2 = arith.constant 1.500000e+01 : f32
    %6 = vector.broadcast %cst_1 : f32 to vector<1x384xf32>
    %7 = arith.maximumf %6, %5 : vector<1x384xf32>
    %8 = vector.broadcast %cst_2 : f32 to vector<1x384xf32>
    %9 = arith.minimumf %8, %7 : vector<1x384xf32>
    %cst_3 = arith.constant 1.500000e+01 : f32
    %10 = vector.broadcast %cst_3 : f32 to vector<1x384xf32>
    %11 = arith.mulf %2, %10 : vector<1x384xf32>
    %cst_4 = arith.constant 0.000000e+00 : f32
    %cst_5 = arith.constant 1.500000e+01 : f32
    %12 = vector.broadcast %cst_4 : f32 to vector<1x384xf32>
    %13 = arith.maximumf %12, %11 : vector<1x384xf32>
    %14 = vector.broadcast %cst_5 : f32 to vector<1x384xf32>
    %15 = arith.minimumf %14, %13 : vector<1x384xf32>
    %cst_6 = arith.constant 1.500000e+01 : f32
    %16 = vector.broadcast %cst_6 : f32 to vector<1x384xf32>
    %17 = arith.mulf %3, %16 : vector<1x384xf32>
    %cst_7 = arith.constant 0.000000e+00 : f32
    %cst_8 = arith.constant 1.500000e+01 : f32
    %18 = vector.broadcast %cst_7 : f32 to vector<1x384xf32>
    %19 = arith.maximumf %18, %17 : vector<1x384xf32>
    %20 = vector.broadcast %cst_8 : f32 to vector<1x384xf32>
    %21 = arith.minimumf %20, %19 : vector<1x384xf32>
    %22 = tpu.iota {dimensions = array<i32: 0>} : vector<16x384xi32>
    %23 = arith.sitofp %22 : vector<16x384xi32> to vector<16x384xf32>
    %24 = vector.broadcast %9 : vector<1x384xf32> to vector<16x384xf32>
    %25 = arith.subf %24, %23 : vector<16x384xf32>
    %26 = math.absf %25 : vector<16x384xf32>
    %cst_9 = arith.constant 1.000000e+00 : f32
    %27 = vector.broadcast %cst_9 : f32 to vector<16x384xf32>
    %28 = arith.subf %27, %26 : vector<16x384xf32>
    %cst_10 = arith.constant 0.000000e+00 : f32
    %29 = vector.broadcast %cst_10 : f32 to vector<16x384xf32>
    %30 = arith.maximumf %29, %28 : vector<16x384xf32>
    %31 = vector.broadcast %15 : vector<1x384xf32> to vector<16x384xf32>
    %32 = arith.subf %31, %23 : vector<16x384xf32>
    %33 = math.absf %32 : vector<16x384xf32>
    %cst_11 = arith.constant 1.000000e+00 : f32
    %34 = vector.broadcast %cst_11 : f32 to vector<16x384xf32>
    %35 = arith.subf %34, %33 : vector<16x384xf32>
    %cst_12 = arith.constant 0.000000e+00 : f32
    %36 = vector.broadcast %cst_12 : f32 to vector<16x384xf32>
    %37 = arith.maximumf %36, %35 : vector<16x384xf32>
    %38 = vector.broadcast %21 : vector<1x384xf32> to vector<16x384xf32>
    %39 = arith.subf %38, %23 : vector<16x384xf32>
    %40 = math.absf %39 : vector<16x384xf32>
    %cst_13 = arith.constant 1.000000e+00 : f32
    %41 = vector.broadcast %cst_13 : f32 to vector<16x384xf32>
    %42 = arith.subf %41, %40 : vector<16x384xf32>
    %cst_14 = arith.constant 0.000000e+00 : f32
    %43 = vector.broadcast %cst_14 : f32 to vector<16x384xf32>
    %44 = arith.maximumf %43, %42 : vector<16x384xf32>
    %c0_15 = arith.constant 0 : index
    %c0_16 = arith.constant 0 : index
    %45 = vector.load %arg2[%c0_15, %c0_16] : memref<384x16xf32, #tpu.memory_space<vmem>>, vector<256x16xf32>
    %cst_17 = arith.constant dense<0.000000e+00> : vector<256x384xf32>
    %46 = tpu.matmul %45, %30, %cst_17 {dimension_numbers = #tpu.dot_dimension_numbers<[1], [0], [0], [1], [0, 0, 1, 1], [], []>} : vector<256x16xf32>, vector<16x384xf32>, vector<256x384xf32> -> vector<256x384xf32>
    %47 = vector.shape_cast %46 : vector<256x384xf32> to vector<16x16x384xf32>
    %48 = vector.extract_strided_slice %47 {offsets = [0, 0, 0], sizes = [8, 16, 384], strides = [1, 1, 1]} : vector<16x16x384xf32> to vector<8x16x384xf32>
    %49 = vector.shape_cast %44 : vector<16x384xf32> to vector<1x16x384xf32>
    %50 = vector.broadcast %49 : vector<1x16x384xf32> to vector<8x16x384xf32>
    %51 = arith.mulf %48, %50 : vector<8x16x384xf32>
    %cst_18 = arith.constant dense<0.000000e+00> : vector<8x384xf32>
    %52 = vector.multi_reduction <add>, %51, %cst_18 [1] : vector<8x16x384xf32> to vector<8x384xf32>
    %53 = vector.extract_strided_slice %47 {offsets = [8, 0, 0], sizes = [8, 16, 384], strides = [1, 1, 1]} : vector<16x16x384xf32> to vector<8x16x384xf32>
    %54 = vector.shape_cast %37 : vector<16x384xf32> to vector<1x16x384xf32>
    %55 = vector.broadcast %54 : vector<1x16x384xf32> to vector<8x16x384xf32>
    %56 = arith.mulf %53, %55 : vector<8x16x384xf32>
    %cst_19 = arith.constant dense<0.000000e+00> : vector<8x384xf32>
    %57 = vector.multi_reduction <add>, %56, %cst_19 [1] : vector<8x16x384xf32> to vector<8x384xf32>
    %c256 = arith.constant 256 : index
    %c0_20 = arith.constant 0 : index
    %58 = vector.load %arg2[%c256, %c0_20] : memref<384x16xf32, #tpu.memory_space<vmem>>, vector<128x16xf32>
    %cst_21 = arith.constant dense<0.000000e+00> : vector<128x384xf32>
    %59 = tpu.matmul %58, %37, %cst_21 {dimension_numbers = #tpu.dot_dimension_numbers<[1], [0], [0], [1], [0, 0, 1, 1], [], []>} : vector<128x16xf32>, vector<16x384xf32>, vector<128x384xf32> -> vector<128x384xf32>
    %60 = vector.shape_cast %59 : vector<128x384xf32> to vector<8x16x384xf32>
    %61 = vector.shape_cast %44 : vector<16x384xf32> to vector<1x16x384xf32>
    %62 = vector.broadcast %61 : vector<1x16x384xf32> to vector<8x16x384xf32>
    %63 = arith.mulf %60, %62 : vector<8x16x384xf32>
    %cst_22 = arith.constant dense<0.000000e+00> : vector<8x384xf32>
    %64 = vector.multi_reduction <add>, %63, %cst_22 [1] : vector<8x16x384xf32> to vector<8x384xf32>
    %65 = arith.mulf %52, %57 : vector<8x384xf32>
    %66 = arith.mulf %65, %64 : vector<8x384xf32>
    %c0_23 = arith.constant 0 : index
    %c0_24 = arith.constant 0 : index
    %67 = vector.load %arg4[%c0_23, %c0_24] : memref<16x384xf32, #tpu.memory_space<vmem>>, vector<8x384xf32>
    tpu.vector_store %arg4[%c0_23, %c0_24], %66 {strides = array<i32>} : memref<16x384xf32, #tpu.memory_space<vmem>>, vector<8x384xf32>,
    %cst_25 = arith.constant 3.100000e+01 : f32
    %68 = vector.broadcast %cst_25 : f32 to vector<1x384xf32>
    %69 = arith.mulf %1, %68 : vector<1x384xf32>
    %cst_26 = arith.constant 0.000000e+00 : f32
    %cst_27 = arith.constant 3.100000e+01 : f32
    %70 = vector.broadcast %cst_26 : f32 to vector<1x384xf32>
    %71 = arith.maximumf %70, %69 : vector<1x384xf32>
    %72 = vector.broadcast %cst_27 : f32 to vector<1x384xf32>
    %73 = arith.minimumf %72, %71 : vector<1x384xf32>
    %cst_28 = arith.constant 3.100000e+01 : f32
    %74 = vector.broadcast %cst_28 : f32 to vector<1x384xf32>
    %75 = arith.mulf %2, %74 : vector<1x384xf32>
    %cst_29 = arith.constant 0.000000e+00 : f32
    %cst_30 = arith.constant 3.100000e+01 : f32
    %76 = vector.broadcast %cst_29 : f32 to vector<1x384xf32>
    %77 = arith.maximumf %76, %75 : vector<1x384xf32>
    %78 = vector.broadcast %cst_30 : f32 to vector<1x384xf32>
    %79 = arith.minimumf %78, %77 : vector<1x384xf32>
    %cst_31 = arith.constant 3.100000e+01 : f32
    %80 = vector.broadcast %cst_31 : f32 to vector<1x384xf32>
    %81 = arith.mulf %3, %80 : vector<1x384xf32>
    %cst_32 = arith.constant 0.000000e+00 : f32
    %cst_33 = arith.constant 3.100000e+01 : f32
    %82 = vector.broadcast %cst_32 : f32 to vector<1x384xf32>
    %83 = arith.maximumf %82, %81 : vector<1x384xf32>
    %84 = vector.broadcast %cst_33 : f32 to vector<1x384xf32>
    %85 = arith.minimumf %84, %83 : vector<1x384xf32>
    %86 = tpu.iota {dimensions = array<i32: 0>} : vector<32x384xi32>
    %87 = arith.sitofp %86 : vector<32x384xi32> to vector<32x384xf32>
    %88 = vector.broadcast %73 : vector<1x384xf32> to vector<32x384xf32>
    %89 = arith.subf %88, %87 : vector<32x384xf32>
    %90 = math.absf %89 : vector<32x384xf32>
    %cst_34 = arith.constant 1.000000e+00 : f32
    %91 = vector.broadcast %cst_34 : f32 to vector<32x384xf32>
    %92 = arith.subf %91, %90 : vector<32x384xf32>
    %cst_35 = arith.constant 0.000000e+00 : f32
    %93 = vector.broadcast %cst_35 : f32 to vector<32x384xf32>
    %94 = arith.maximumf %93, %92 : vector<32x384xf32>
    %95 = vector.broadcast %79 : vector<1x384xf32> to vector<32x384xf32>
    %96 = arith.subf %95, %87 : vector<32x384xf32>
    %97 = math.absf %96 : vector<32x384xf32>
    %cst_36 = arith.constant 1.000000e+00 : f32
    %98 = vector.broadcast %cst_36 : f32 to vector<32x384xf32>
    %99 = arith.subf %98, %97 : vector<32x384xf32>
    %cst_37 = arith.constant 0.000000e+00 : f32
    %100 = vector.broadcast %cst_37 : f32 to vector<32x384xf32>
    %101 = arith.maximumf %100, %99 : vector<32x384xf32>
    %102 = vector.broadcast %85 : vector<1x384xf32> to vector<32x384xf32>
    %103 = arith.subf %102, %87 : vector<32x384xf32>
    %104 = math.absf %103 : vector<32x384xf32>
    %cst_38 = arith.constant 1.000000e+00 : f32
    %105 = vector.broadcast %cst_38 : f32 to vector<32x384xf32>
    %106 = arith.subf %105, %104 : vector<32x384xf32>
    %cst_39 = arith.constant 0.000000e+00 : f32
    %107 = vector.broadcast %cst_39 : f32 to vector<32x384xf32>
    %108 = arith.maximumf %107, %106 : vector<32x384xf32>
    %c0_40 = arith.constant 0 : index
    %c0_41 = arith.constant 0 : index
    %109 = vector.load %arg3[%c0_40, %c0_41] : memref<768x32xf32, #tpu.memory_space<vmem>>, vector<512x32xf32>
    %cst_42 = arith.constant dense<0.000000e+00> : vector<512x384xf32>
    %110 = tpu.matmul %109, %94, %cst_42 {dimension_numbers = #tpu.dot_dimension_numbers<[1], [0], [0], [1], [0, 0, 1, 1], [], []>} : vector<512x32xf32>, vector<32x384xf32>, vector<512x384xf32> -> vector<512x384xf32>
    %111 = vector.shape_cast %110 : vector<512x384xf32> to vector<16x32x384xf32>
    %112 = vector.extract_strided_slice %111 {offsets = [0, 0, 0], sizes = [8, 32, 384], strides = [1, 1, 1]} : vector<16x32x384xf32> to vector<8x32x384xf32>
    %113 = vector.shape_cast %108 : vector<32x384xf32> to vector<1x32x384xf32>
    %114 = vector.broadcast %113 : vector<1x32x384xf32> to vector<8x32x384xf32>
    %115 = arith.mulf %112, %114 : vector<8x32x384xf32>
    %cst_43 = arith.constant dense<0.000000e+00> : vector<8x384xf32>
    %116 = vector.multi_reduction <add>, %115, %cst_43 [1] : vector<8x32x384xf32> to vector<8x384xf32>
    %117 = vector.extract_strided_slice %111 {offsets = [8, 0, 0], sizes = [8, 32, 384], strides = [1, 1, 1]} : vector<16x32x384xf32> to vector<8x32x384xf32>
    %118 = vector.shape_cast %101 : vector<32x384xf32> to vector<1x32x384xf32>
    %119 = vector.broadcast %118 : vector<1x32x384xf32> to vector<8x32x384xf32>
    %120 = arith.mulf %117, %119 : vector<8x32x384xf32>
    %cst_44 = arith.constant dense<0.000000e+00> : vector<8x384xf32>
    %121 = vector.multi_reduction <add>, %120, %cst_44 [1] : vector<8x32x384xf32> to vector<8x384xf32>
    %c512 = arith.constant 512 : index
    %c0_45 = arith.constant 0 : index
    %122 = vector.load %arg3[%c512, %c0_45] : memref<768x32xf32, #tpu.memory_space<vmem>>, vector<256x32xf32>
    %cst_46 = arith.constant dense<0.000000e+00> : vector<256x384xf32>
    %123 = tpu.matmul %122, %101, %cst_46 {dimension_numbers = #tpu.dot_dimension_numbers<[1], [0], [0], [1], [0, 0, 1, 1], [], []>} : vector<256x32xf32>, vector<32x384xf32>, vector<256x384xf32> -> vector<256x384xf32>
    %124 = vector.shape_cast %123 : vector<256x384xf32> to vector<8x32x384xf32>
    %125 = vector.shape_cast %108 : vector<32x384xf32> to vector<1x32x384xf32>
    %126 = vector.broadcast %125 : vector<1x32x384xf32> to vector<8x32x384xf32>
    %127 = arith.mulf %124, %126 : vector<8x32x384xf32>
    %cst_47 = arith.constant dense<0.000000e+00> : vector<8x384xf32>
    %128 = vector.multi_reduction <add>, %127, %cst_47 [1] : vector<8x32x384xf32> to vector<8x384xf32>
    %129 = arith.mulf %116, %121 : vector<8x384xf32>
    %130 = arith.mulf %129, %128 : vector<8x384xf32>
    %c8 = arith.constant 8 : index
    %c0_48 = arith.constant 0 : index
    %131 = vector.load %arg4[%c8, %c0_48] : memref<16x384xf32, #tpu.memory_space<vmem>>, vector<8x384xf32>
    tpu.vector_store %arg4[%c8, %c0_48], %130 {strides = array<i32>} : memref<16x384xf32, #tpu.memory_space<vmem>>, vector<8x384xf32>,
    return
  }
  func.func @transform_0(%arg0: i32) -> (i32, i32) {
    %c0_i32 = arith.constant 0 : i32
    %c0_i32_0 = arith.constant 0 : i32
    return %c0_i32, %arg0 : i32, i32
  }
  func.func @transform_1(%arg0: i32) -> (i32, i32) {
    %c0_i32 = arith.constant 0 : i32
    %c0_i32_0 = arith.constant 0 : i32
    %c0_i32_1 = arith.constant 0 : i32
    return %c0_i32, %c0_i32_0 : i32, i32
  }
  func.func @transform_2(%arg0: i32) -> (i32, i32) {
    %c0_i32 = arith.constant 0 : i32
    %c0_i32_0 = arith.constant 0 : i32
    %c0_i32_1 = arith.constant 0 : i32
    return %c0_i32, %c0_i32_0 : i32, i32
  }
  func.func @transform_3(%arg0: i32) -> (i32, i32) {
    %c0_i32 = arith.constant 0 : i32
    %c0_i32_0 = arith.constant 0 : i32
    return %c0_i32, %arg0 : i32, i32
  }
}

module attributes {stable_mosaic.version = 11 : i64} {
  func.func @kernel(%arg0: i32, %arg1: memref<3x384xf32, #tpu.memory_space<vmem>>, %arg2: memref<384x16xf32, #tpu.memory_space<vmem>>, %arg3: memref<768x32xf32, #tpu.memory_space<vmem>>, %arg4: memref<16x384xf32, #tpu.memory_space<vmem>>) attributes {dimension_semantics = [#tpu.dimension_semantics<parallel>], iteration_bounds = array<i64: 1>, scalar_prefetch = 0 : i64, scratch_operands = 0 : i64, tpu.core_type = #tpu.core_type<tc>, window_params = [{transform_indices = @transform_0, window_bounds = array<i64: 3, 384>}, {pipeline_mode = #tpu.pipeline_mode<synchronous>, transform_indices = @transform_1, window_bounds = array<i64: 384, 16>}, {pipeline_mode = #tpu.pipeline_mode<synchronous>, transform_indices = @transform_2, window_bounds = array<i64: 768, 32>}, {transform_indices = @transform_3, window_bounds = array<i64: 16, 384>}]} {
    %c0 = arith.constant 0 : index
    %c0_0 = arith.constant 0 : index
    %0 = vector.load %arg1[%c0, %c0_0] : memref<3x384xf32, #tpu.memory_space<vmem>>, vector<3x384xf32>
    %1 = vector.extract_strided_slice %0 {offsets = [0, 0], sizes = [1, 384], strides = [1, 1]} : vector<3x384xf32> to vector<1x384xf32>
    %2 = vector.extract_strided_slice %0 {offsets = [1, 0], sizes = [1, 384], strides = [1, 1]} : vector<3x384xf32> to vector<1x384xf32>
    %3 = vector.extract_strided_slice %0 {offsets = [2, 0], sizes = [1, 384], strides = [1, 1]} : vector<3x384xf32> to vector<1x384xf32>
    %cst = arith.constant 1.500000e+01 : f32
    %4 = vector.broadcast %cst : f32 to vector<1x384xf32>
    %5 = arith.mulf %1, %4 : vector<1x384xf32>
    %cst_1 = arith.constant 0.000000e+00 : f32
    %cst_2 = arith.constant 1.500000e+01 : f32
    %6 = vector.broadcast %cst_1 : f32 to vector<1x384xf32>
    %7 = arith.maximumf %6, %5 : vector<1x384xf32>
    %8 = vector.broadcast %cst_2 : f32 to vector<1x384xf32>
    %9 = arith.minimumf %8, %7 : vector<1x384xf32>
    %cst_3 = arith.constant 1.500000e+01 : f32
    %10 = vector.broadcast %cst_3 : f32 to vector<1x384xf32>
    %11 = arith.mulf %2, %10 : vector<1x384xf32>
    %cst_4 = arith.constant 0.000000e+00 : f32
    %cst_5 = arith.constant 1.500000e+01 : f32
    %12 = vector.broadcast %cst_4 : f32 to vector<1x384xf32>
    %13 = arith.maximumf %12, %11 : vector<1x384xf32>
    %14 = vector.broadcast %cst_5 : f32 to vector<1x384xf32>
    %15 = arith.minimumf %14, %13 : vector<1x384xf32>
    %cst_6 = arith.constant 1.500000e+01 : f32
    %16 = vector.broadcast %cst_6 : f32 to vector<1x384xf32>
    %17 = arith.mulf %3, %16 : vector<1x384xf32>
    %cst_7 = arith.constant 0.000000e+00 : f32
    %cst_8 = arith.constant 1.500000e+01 : f32
    %18 = vector.broadcast %cst_7 : f32 to vector<1x384xf32>
    %19 = arith.maximumf %18, %17 : vector<1x384xf32>
    %20 = vector.broadcast %cst_8 : f32 to vector<1x384xf32>
    %21 = arith.minimumf %20, %19 : vector<1x384xf32>
    %22 = tpu.iota {dimensions = array<i32: 0>} : vector<16x384xi32>
    %23 = arith.sitofp %22 : vector<16x384xi32> to vector<16x384xf32>
    %24 = vector.broadcast %9 : vector<1x384xf32> to vector<16x384xf32>
    %25 = arith.subf %24, %23 : vector<16x384xf32>
    %26 = math.absf %25 : vector<16x384xf32>
    %cst_9 = arith.constant 1.000000e+00 : f32
    %27 = vector.broadcast %cst_9 : f32 to vector<16x384xf32>
    %28 = arith.subf %27, %26 : vector<16x384xf32>
    %cst_10 = arith.constant 0.000000e+00 : f32
    %29 = vector.broadcast %cst_10 : f32 to vector<16x384xf32>
    %30 = arith.maximumf %29, %28 : vector<16x384xf32>
    %31 = vector.broadcast %15 : vector<1x384xf32> to vector<16x384xf32>
    %32 = arith.subf %31, %23 : vector<16x384xf32>
    %33 = math.absf %32 : vector<16x384xf32>
    %cst_11 = arith.constant 1.000000e+00 : f32
    %34 = vector.broadcast %cst_11 : f32 to vector<16x384xf32>
    %35 = arith.subf %34, %33 : vector<16x384xf32>
    %cst_12 = arith.constant 0.000000e+00 : f32
    %36 = vector.broadcast %cst_12 : f32 to vector<16x384xf32>
    %37 = arith.maximumf %36, %35 : vector<16x384xf32>
    %38 = vector.broadcast %21 : vector<1x384xf32> to vector<16x384xf32>
    %39 = arith.subf %38, %23 : vector<16x384xf32>
    %40 = math.absf %39 : vector<16x384xf32>
    %cst_13 = arith.constant 1.000000e+00 : f32
    %41 = vector.broadcast %cst_13 : f32 to vector<16x384xf32>
    %42 = arith.subf %41, %40 : vector<16x384xf32>
    %cst_14 = arith.constant 0.000000e+00 : f32
    %43 = vector.broadcast %cst_14 : f32 to vector<16x384xf32>
    %44 = arith.maximumf %43, %42 : vector<16x384xf32>
    %c0_15 = arith.constant 0 : index
    %c0_16 = arith.constant 0 : index
    %45 = vector.load %arg2[%c0_15, %c0_16] : memref<384x16xf32, #tpu.memory_space<vmem>>, vector<256x16xf32>
    %cst_17 = arith.constant dense<0.000000e+00> : vector<256x384xf32>
    %46 = tpu.matmul %45, %30, %cst_17 {dimension_numbers = #tpu.dot_dimension_numbers<[1], [0], [0], [1], [0, 0, 1, 1], [], []>} : vector<256x16xf32>, vector<16x384xf32>, vector<256x384xf32> -> vector<256x384xf32>
    %47 = vector.shape_cast %46 : vector<256x384xf32> to vector<16x16x384xf32>
    %48 = vector.extract_strided_slice %47 {offsets = [0, 0, 0], sizes = [8, 16, 384], strides = [1, 1, 1]} : vector<16x16x384xf32> to vector<8x16x384xf32>
    %49 = vector.shape_cast %44 : vector<16x384xf32> to vector<1x16x384xf32>
    %50 = vector.broadcast %49 : vector<1x16x384xf32> to vector<8x16x384xf32>
    %51 = arith.mulf %48, %50 : vector<8x16x384xf32>
    %cst_18 = arith.constant dense<0.000000e+00> : vector<8x384xf32>
    %52 = vector.multi_reduction <add>, %51, %cst_18 [1] : vector<8x16x384xf32> to vector<8x384xf32>
    %53 = vector.extract_strided_slice %47 {offsets = [8, 0, 0], sizes = [8, 16, 384], strides = [1, 1, 1]} : vector<16x16x384xf32> to vector<8x16x384xf32>
    %54 = vector.shape_cast %37 : vector<16x384xf32> to vector<1x16x384xf32>
    %55 = vector.broadcast %54 : vector<1x16x384xf32> to vector<8x16x384xf32>
    %56 = arith.mulf %53, %55 : vector<8x16x384xf32>
    %cst_19 = arith.constant dense<0.000000e+00> : vector<8x384xf32>
    %57 = vector.multi_reduction <add>, %56, %cst_19 [1] : vector<8x16x384xf32> to vector<8x384xf32>
    %c256 = arith.constant 256 : index
    %c0_20 = arith.constant 0 : index
    %58 = vector.load %arg2[%c256, %c0_20] : memref<384x16xf32, #tpu.memory_space<vmem>>, vector<128x16xf32>
    %cst_21 = arith.constant dense<0.000000e+00> : vector<128x384xf32>
    %59 = tpu.matmul %58, %37, %cst_21 {dimension_numbers = #tpu.dot_dimension_numbers<[1], [0], [0], [1], [0, 0, 1, 1], [], []>} : vector<128x16xf32>, vector<16x384xf32>, vector<128x384xf32> -> vector<128x384xf32>
    %60 = vector.shape_cast %59 : vector<128x384xf32> to vector<8x16x384xf32>
    %61 = vector.shape_cast %44 : vector<16x384xf32> to vector<1x16x384xf32>
    %62 = vector.broadcast %61 : vector<1x16x384xf32> to vector<8x16x384xf32>
    %63 = arith.mulf %60, %62 : vector<8x16x384xf32>
    %cst_22 = arith.constant dense<0.000000e+00> : vector<8x384xf32>
    %64 = vector.multi_reduction <add>, %63, %cst_22 [1] : vector<8x16x384xf32> to vector<8x384xf32>
    %65 = arith.mulf %52, %57 : vector<8x384xf32>
    %66 = arith.mulf %65, %64 : vector<8x384xf32>
    %c0_23 = arith.constant 0 : index
    %c0_24 = arith.constant 0 : index
    %67 = vector.load %arg4[%c0_23, %c0_24] : memref<16x384xf32, #tpu.memory_space<vmem>>, vector<8x384xf32>
    tpu.vector_store %arg4[%c0_23, %c0_24], %66 {strides = array<i32>} : memref<16x384xf32, #tpu.memory_space<vmem>>, vector<8x384xf32>,
    %cst_25 = arith.constant 3.100000e+01 : f32
    %68 = vector.broadcast %cst_25 : f32 to vector<1x384xf32>
    %69 = arith.mulf %1, %68 : vector<1x384xf32>
    %cst_26 = arith.constant 0.000000e+00 : f32
    %cst_27 = arith.constant 3.100000e+01 : f32
    %70 = vector.broadcast %cst_26 : f32 to vector<1x384xf32>
    %71 = arith.maximumf %70, %69 : vector<1x384xf32>
    %72 = vector.broadcast %cst_27 : f32 to vector<1x384xf32>
    %73 = arith.minimumf %72, %71 : vector<1x384xf32>
    %cst_28 = arith.constant 3.100000e+01 : f32
    %74 = vector.broadcast %cst_28 : f32 to vector<1x384xf32>
    %75 = arith.mulf %2, %74 : vector<1x384xf32>
    %cst_29 = arith.constant 0.000000e+00 : f32
    %cst_30 = arith.constant 3.100000e+01 : f32
    %76 = vector.broadcast %cst_29 : f32 to vector<1x384xf32>
    %77 = arith.maximumf %76, %75 : vector<1x384xf32>
    %78 = vector.broadcast %cst_30 : f32 to vector<1x384xf32>
    %79 = arith.minimumf %78, %77 : vector<1x384xf32>
    %cst_31 = arith.constant 3.100000e+01 : f32
    %80 = vector.broadcast %cst_31 : f32 to vector<1x384xf32>
    %81 = arith.mulf %3, %80 : vector<1x384xf32>
    %cst_32 = arith.constant 0.000000e+00 : f32
    %cst_33 = arith.constant 3.100000e+01 : f32
    %82 = vector.broadcast %cst_32 : f32 to vector<1x384xf32>
    %83 = arith.maximumf %82, %81 : vector<1x384xf32>
    %84 = vector.broadcast %cst_33 : f32 to vector<1x384xf32>
    %85 = arith.minimumf %84, %83 : vector<1x384xf32>
    %86 = tpu.iota {dimensions = array<i32: 0>} : vector<32x384xi32>
    %87 = arith.sitofp %86 : vector<32x384xi32> to vector<32x384xf32>
    %88 = vector.broadcast %73 : vector<1x384xf32> to vector<32x384xf32>
    %89 = arith.subf %88, %87 : vector<32x384xf32>
    %90 = math.absf %89 : vector<32x384xf32>
    %cst_34 = arith.constant 1.000000e+00 : f32
    %91 = vector.broadcast %cst_34 : f32 to vector<32x384xf32>
    %92 = arith.subf %91, %90 : vector<32x384xf32>
    %cst_35 = arith.constant 0.000000e+00 : f32
    %93 = vector.broadcast %cst_35 : f32 to vector<32x384xf32>
    %94 = arith.maximumf %93, %92 : vector<32x384xf32>
    %95 = vector.broadcast %79 : vector<1x384xf32> to vector<32x384xf32>
    %96 = arith.subf %95, %87 : vector<32x384xf32>
    %97 = math.absf %96 : vector<32x384xf32>
    %cst_36 = arith.constant 1.000000e+00 : f32
    %98 = vector.broadcast %cst_36 : f32 to vector<32x384xf32>
    %99 = arith.subf %98, %97 : vector<32x384xf32>
    %cst_37 = arith.constant 0.000000e+00 : f32
    %100 = vector.broadcast %cst_37 : f32 to vector<32x384xf32>
    %101 = arith.maximumf %100, %99 : vector<32x384xf32>
    %102 = vector.broadcast %85 : vector<1x384xf32> to vector<32x384xf32>
    %103 = arith.subf %102, %87 : vector<32x384xf32>
    %104 = math.absf %103 : vector<32x384xf32>
    %cst_38 = arith.constant 1.000000e+00 : f32
    %105 = vector.broadcast %cst_38 : f32 to vector<32x384xf32>
    %106 = arith.subf %105, %104 : vector<32x384xf32>
    %cst_39 = arith.constant 0.000000e+00 : f32
    %107 = vector.broadcast %cst_39 : f32 to vector<32x384xf32>
    %108 = arith.maximumf %107, %106 : vector<32x384xf32>
    %c0_40 = arith.constant 0 : index
    %c0_41 = arith.constant 0 : index
    %109 = vector.load %arg3[%c0_40, %c0_41] : memref<768x32xf32, #tpu.memory_space<vmem>>, vector<512x32xf32>
    %cst_42 = arith.constant dense<0.000000e+00> : vector<512x384xf32>
    %110 = tpu.matmul %109, %94, %cst_42 {dimension_numbers = #tpu.dot_dimension_numbers<[1], [0], [0], [1], [0, 0, 1, 1], [], []>} : vector<512x32xf32>, vector<32x384xf32>, vector<512x384xf32> -> vector<512x384xf32>
    %111 = vector.shape_cast %110 : vector<512x384xf32> to vector<16x32x384xf32>
    %112 = vector.extract_strided_slice %111 {offsets = [0, 0, 0], sizes = [8, 32, 384], strides = [1, 1, 1]} : vector<16x32x384xf32> to vector<8x32x384xf32>
    %113 = vector.shape_cast %108 : vector<32x384xf32> to vector<1x32x384xf32>
    %114 = vector.broadcast %113 : vector<1x32x384xf32> to vector<8x32x384xf32>
    %115 = arith.mulf %112, %114 : vector<8x32x384xf32>
    %cst_43 = arith.constant dense<0.000000e+00> : vector<8x384xf32>
    %116 = vector.multi_reduction <add>, %115, %cst_43 [1] : vector<8x32x384xf32> to vector<8x384xf32>
    %117 = vector.extract_strided_slice %111 {offsets = [8, 0, 0], sizes = [8, 32, 384], strides = [1, 1, 1]} : vector<16x32x384xf32> to vector<8x32x384xf32>
    %118 = vector.shape_cast %101 : vector<32x384xf32> to vector<1x32x384xf32>
    %119 = vector.broadcast %118 : vector<1x32x384xf32> to vector<8x32x384xf32>
    %120 = arith.mulf %117, %119 : vector<8x32x384xf32>
    %cst_44 = arith.constant dense<0.000000e+00> : vector<8x384xf32>
    %121 = vector.multi_reduction <add>, %120, %cst_44 [1] : vector<8x32x384xf32> to vector<8x384xf32>
    %c512 = arith.constant 512 : index
    %c0_45 = arith.constant 0 : index
    %122 = vector.load %arg3[%c512, %c0_45] : memref<768x32xf32, #tpu.memory_space<vmem>>, vector<256x32xf32>
    %cst_46 = arith.constant dense<0.000000e+00> : vector<256x384xf32>
    %123 = tpu.matmul %122, %101, %cst_46 {dimension_numbers = #tpu.dot_dimension_numbers<[1], [0], [0], [1], [0, 0, 1, 1], [], []>} : vector<256x32xf32>, vector<32x384xf32>, vector<256x384xf32> -> vector<256x384xf32>
    %124 = vector.shape_cast %123 : vector<256x384xf32> to vector<8x32x384xf32>
    %125 = vector.shape_cast %108 : vector<32x384xf32> to vector<1x32x384xf32>
    %126 = vector.broadcast %125 : vector<1x32x384xf32> to vector<8x32x384xf32>
    %127 = arith.mulf %124, %126 : vector<8x32x384xf32>
    %cst_47 = arith.constant dense<0.000000e+00> : vector<8x384xf32>
    %128 = vector.multi_reduction <add>, %127, %cst_47 [1] : vector<8x32x384xf32> to vector<8x384xf32>
    %129 = arith.mulf %116, %121 : vector<8x384xf32>
    %130 = arith.mulf %129, %128 : vector<8x384xf32>
    %c8 = arith.constant 8 : index
    %c0_48 = arith.constant 0 : index
    %131 = vector.load %arg4[%c8, %c0_48] : memref<16x384xf32, #tpu.memory_space<vmem>>, vector<8x384xf32>
    tpu.vector_store %arg4[%c8, %c0_48], %130 {strides = array<i32>} : memref<16x384xf32, #tpu.memory_space<vmem>>, vector<8x384xf32>,
    return
  }
  func.func @transform_0(%arg0: i32) -> (i32, i32) {
    %c0_i32 = arith.constant 0 : i32
    %c0_i32_0 = arith.constant 0 : i32
    return %c0_i32, %arg0 : i32, i32
  }
  func.func @transform_1(%arg0: i32) -> (i32, i32) {
    %c0_i32 = arith.constant 0 : i32
    %c0_i32_0 = arith.constant 0 : i32
    %c0_i32_1 = arith.constant 0 : i32
    return %c0_i32, %c0_i32_0 : i32, i32
  }
  func.func @transform_2(%arg0: i32) -> (i32, i32) {
    %c0_i32 = arith.constant 0 : i32
    %c0_i32_0 = arith.constant 0 : i32
    %c0_i32_1 = arith.constant 0 : i32
    return %c0_i32, %c0_i32_0 : i32, i32
  }
  func.func @transform_3(%arg0: i32) -> (i32, i32) {
    %c0_i32 = arith.constant 0 : i32
    %c0_i32_0 = arith.constant 0 : i32
    return %c0_i32, %arg0 : i32, i32
  }
}

</mosaic_0001>

<llo_original>
// kernel: tpu_custom_call.1
$region0: #{tpu_custom_call.1}
  #allocation0 [shape = 'u32[]', space=smem, size = 0x4, offset = 0x4, fixed_abs, tag = 'smem constant byte address 0x4 - core index']
  #allocation1 [shape = 'u32[144,128]{1,0:T(1,128)}', space=vmem, size = 0x12000, scoped, tag = 'internal scratch']
  %s0 = inlined_call_operand.vmem [shape: f32[3,384], index: 0, kind: input, shape index: {}]
  %s1 = inlined_call_operand.vmem [shape: f32[384,16], index: 1, kind: input, shape index: {}]
  %s2 = inlined_call_operand.vmem [shape: f32[768,32], index: 2, kind: input, shape index: {}]
  %s3 = inlined_call_operand.hbm [shape: f32[16,384], index: 3, kind: output, shape index: {}]
  %s4 = sld [smem:[#allocation0]]
  $region22: #{tpu_custom_call.1} parent=0
    _
  %s6 = ssub.s32 1, %s4
  %s7 = scalar_select 0, %s6, %s4
  $region1: #{tpu_custom_call.1} parent=0
    #allocation2 [shape = 'u8[24576]{0}', space=vmem, size = 0x6000, scoped, tag = 'output window, operand 0, single buffered']
    #allocation3 [shape = 's32[1]{0}', space=sflag, size = 0x4, scoped, tag = 'scoped memory for tpu_custom_call.1']
    %8 = vsyncpa [#allocation3], 0
    // Predicated region
    $region2: #{tpu_custom_call.1} parent=1 // pred_check
      _
    $region3: #{tpu_custom_call.1} parent=1 // pred_check_branch
      %10 = sbr.rel (0) target = $region5
    $region4: #{tpu_custom_call.1} parent=1 // pred_region
      _
    $region5: #{tpu_custom_call.1} parent=1 // pred_fallthru
      _
    // Predicated region
    $region6: #{tpu_custom_call.1} parent=1 // pred_check
      _
    $region7: #{tpu_custom_call.1} parent=1 // pred_check_branch
      %12 = sbr.rel (0) target = $region9
    $region8: #{tpu_custom_call.1} parent=1 // pred_region
      _
    $region9: #{tpu_custom_call.1} parent=1 // pred_fallthru
      _
    // Predicated region
    $region10: #{tpu_custom_call.1} parent=1 // pred_check
      _
    $region11: #{tpu_custom_call.1} parent=1 // pred_check_branch
      %14 = sbr.rel (0) target = $region13
    $region12: #{tpu_custom_call.1} parent=1 // pred_region
      _
    $region13: #{tpu_custom_call.1} parent=1 // pred_fallthru
      _
    %v15 = vld [vmem:[%s0] sm:$0x77]
    %v16 = vld [vmem:[%s0 + $0x8] sm:$0x7]
    %v17 = vmul.f32 %v15, 15.0
    %v18 = vmul.f32 %v16, 15.0
    %v19 = vmax.f32 %v17, 0.0
    %v20 = vmax.f32 %v18, 0.0
    %v21 = vmin.f32 %v19, 15.0
    %v22 = vmin.f32 %v20, 15.0
    %v23 = vlaneseq
    %v24 = vshrl.u32 %v23, 7
    %v25 = vadd.s32 %v24, 8
    %v26 = vcvt.s32.f32 %v24
    %v27 = vcvt.s32.f32 %v25
    %v30 = vlaneseq
    %v31 = vshrl.u32 %v30, 7
    %v32 = vsub.s32 0, %v31
    %v33 = vrot.slane %v21, %v32
    %v34 = vlaneseq
    %v35 = vshrl.u32 %v34, 7
    %v36 = vsub.s32 4, %v35
    %v37 = vrot.slane %v21, %v36
    %v38 = vlaneseq
    %v39 = vshrl.u32 %v38, 7
    %v40 = vsub.s32 0, %v39
    %v41 = vrot.slane %v22, %v40
    %v45 = vlaneseq
    %v46 = vshrl.u32 %v45, 7
    %v47 = vsub.s32 0, %v46
    %v48 = vrot.slane %v33, %v47
    %v49 = vlaneseq
    %v50 = vshrl.u32 %v49, 7
    %v51 = vsub.s32 0, %v50
    %v52 = vrot.slane %v37, %v51
    %v53 = vlaneseq
    %v54 = vshrl.u32 %v53, 7
    %v55 = vsub.s32 0, %v54
    %v56 = vrot.slane %v41, %v55
    %v57 = vsub.f32 %v48, %v26
    %v58 = vsub.f32 %v52, %v26
    %v59 = vsub.f32 %v56, %v26
    %v60 = vsub.f32 %v48, %v27
    %v61 = vsub.f32 %v52, %v27
    %v62 = vsub.f32 %v56, %v27
    %v63 = vand.u32 2147483647, %v57
    %v64 = vand.u32 2147483647, %v58
    %v65 = vand.u32 2147483647, %v59
    %v66 = vand.u32 2147483647, %v60
    %v67 = vand.u32 2147483647, %v61
    %v68 = vand.u32 2147483647, %v62
    %v69 = vsub.f32 1.0, %v63
    %v70 = vsub.f32 1.0, %v64
    %v71 = vsub.f32 1.0, %v65
    %v72 = vsub.f32 1.0, %v66
    %v73 = vsub.f32 1.0, %v67
    %v74 = vsub.f32 1.0, %v68
    %v75 = vmax.f32 %v69, 0.0
    %v76 = vmax.f32 %v70, 0.0
    %v77 = vmax.f32 %v71, 0.0
    %v78 = vmax.f32 %v72, 0.0
    %v79 = vmax.f32 %v73, 0.0
    %v80 = vmax.f32 %v74, 0.0
    %v81 = vlaneseq
    %v82 = vshrl.u32 %v81, 7
    %v83 = vsub.s32 1, %v82
    %v84 = vrot.slane %v21, %v83
    %v85 = vlaneseq
    %v86 = vshrl.u32 %v85, 7
    %v87 = vsub.s32 5, %v86
    %v88 = vrot.slane %v21, %v87
    %v89 = vlaneseq
    %v90 = vshrl.u32 %v89, 7
    %v91 = vsub.s32 1, %v90
    %v92 = vrot.slane %v22, %v91
    %v96 = vlaneseq
    %v97 = vshrl.u32 %v96, 7
    %v98 = vsub.s32 1, %v97
    %v99 = vrot.slane %v84, %v98
    %v100 = vlaneseq
    %v101 = vshrl.u32 %v100, 7
    %v102 = vsub.s32 1, %v101
    %v103 = vrot.slane %v88, %v102
    %v104 = vlaneseq
    %v105 = vshrl.u32 %v104, 7
    %v106 = vsub.s32 1, %v105
    %v107 = vrot.slane %v92, %v106
    %v108 = vsub.f32 %v99, %v26
    %v109 = vsub.f32 %v103, %v26
    %v110 = vsub.f32 %v107, %v26
    %v111 = vsub.f32 %v99, %v27
    %v112 = vsub.f32 %v103, %v27
    %v113 = vsub.f32 %v107, %v27
    %v114 = vand.u32 2147483647, %v108
    %v115 = vand.u32 2147483647, %v109
    %v116 = vand.u32 2147483647, %v110
    %v117 = vand.u32 2147483647, %v111
    %v118 = vand.u32 2147483647, %v112
    %v119 = vand.u32 2147483647, %v113
    %v120 = vsub.f32 1.0, %v114
    %v121 = vsub.f32 1.0, %v115
    %v122 = vsub.f32 1.0, %v116
    %v123 = vsub.f32 1.0, %v117
    %v124 = vsub.f32 1.0, %v118
    %v125 = vsub.f32 1.0, %v119
    %v126 = vmax.f32 %v120, 0.0
    %v127 = vmax.f32 %v121, 0.0
    %v128 = vmax.f32 %v122, 0.0
    %v129 = vmax.f32 %v123, 0.0
    %v130 = vmax.f32 %v124, 0.0
    %v131 = vmax.f32 %v125, 0.0
    %v132 = vlaneseq
    %v133 = vshrl.u32 %v132, 7
    %v134 = vsub.s32 2, %v133
    %v135 = vrot.slane %v21, %v134
    %v136 = vlaneseq
    %v137 = vshrl.u32 %v136, 7
    %v138 = vsub.s32 6, %v137
    %v139 = vrot.slane %v21, %v138
    %v140 = vlaneseq
    %v141 = vshrl.u32 %v140, 7
    %v142 = vsub.s32 2, %v141
    %v143 = vrot.slane %v22, %v142
    %v147 = vlaneseq
    %v148 = vshrl.u32 %v147, 7
    %v149 = vsub.s32 2, %v148
    %v150 = vrot.slane %v135, %v149
    %v151 = vlaneseq
    %v152 = vshrl.u32 %v151, 7
    %v153 = vsub.s32 2, %v152
    %v154 = vrot.slane %v139, %v153
    %v155 = vlaneseq
    %v156 = vshrl.u32 %v155, 7
    %v157 = vsub.s32 2, %v156
    %v158 = vrot.slane %v143, %v157
    %v159 = vsub.f32 %v150, %v26
    %v160 = vsub.f32 %v154, %v26
    %v161 = vsub.f32 %v158, %v26
    %v162 = vsub.f32 %v150, %v27
    %v163 = vsub.f32 %v154, %v27
    %v164 = vsub.f32 %v158, %v27
    %v165 = vand.u32 2147483647, %v159
    %v166 = vand.u32 2147483647, %v160
    %v167 = vand.u32 2147483647, %v161
    %v168 = vand.u32 2147483647, %v162
    %v169 = vand.u32 2147483647, %v163
    %v170 = vand.u32 2147483647, %v164
    %v171 = vsub.f32 1.0, %v165
    %v172 = vsub.f32 1.0, %v166
    %v173 = vsub.f32 1.0, %v167
    %v174 = vsub.f32 1.0, %v168
    %v175 = vsub.f32 1.0, %v169
    %v176 = vsub.f32 1.0, %v170
    %v177 = vmax.f32 %v171, 0.0
    %v178 = vmax.f32 %v172, 0.0
    %v179 = vmax.f32 %v173, 0.0
    %v180 = vmax.f32 %v174, 0.0
    %v181 = vmax.f32 %v175, 0.0
    %v182 = vmax.f32 %v176, 0.0
    %v183 = vld [vmem:[%s1] sm:$0xff]
    %v184 = vld [vmem:[%s1 + $0x8] sm:$0xff]
    %v185 = vld [vmem:[%s1 + $0x10] sm:$0xff]
    %v186 = vld [vmem:[%s1 + $0x18] sm:$0xff]
    %v187 = vld [vmem:[%s1 + $0x20] sm:$0xff]
    %v188 = vld [vmem:[%s1 + $0x28] sm:$0xff]
    %v189 = vld [vmem:[%s1 + $0x30] sm:$0xff]
    %v190 = vld [vmem:[%s1 + $0x38] sm:$0xff]
    %v191 = vld [vmem:[%s1 + $0x40] sm:$0xff]
    %v192 = vld [vmem:[%s1 + $0x48] sm:$0xff]
    %v193 = vld [vmem:[%s1 + $0x50] sm:$0xff]
    %v194 = vld [vmem:[%s1 + $0x58] sm:$0xff]
    %v195 = vld [vmem:[%s1 + $0x60] sm:$0xff]
    %v196 = vld [vmem:[%s1 + $0x68] sm:$0xff]
    %v197 = vld [vmem:[%s1 + $0x70] sm:$0xff]
    %v198 = vld [vmem:[%s1 + $0x78] sm:$0xff]
    %v199 = vld [vmem:[%s1 + $0x80] sm:$0xff]
    %v200 = vld [vmem:[%s1 + $0x88] sm:$0xff]
    %v201 = vld [vmem:[%s1 + $0x90] sm:$0xff]
    %v202 = vld [vmem:[%s1 + $0x98] sm:$0xff]
    %v203 = vld [vmem:[%s1 + $0xa0] sm:$0xff]
    %v204 = vld [vmem:[%s1 + $0xa8] sm:$0xff]
    %v205 = vld [vmem:[%s1 + $0xb0] sm:$0xff]
    %v206 = vld [vmem:[%s1 + $0xb8] sm:$0xff]
    %v207 = vld [vmem:[%s1 + $0xc0] sm:$0xff]
    %v208 = vld [vmem:[%s1 + $0xc8] sm:$0xff]
    %v209 = vld [vmem:[%s1 + $0xd0] sm:$0xff]
    %v210 = vld [vmem:[%s1 + $0xd8] sm:$0xff]
    %v211 = vld [vmem:[%s1 + $0xe0] sm:$0xff]
    %v212 = vld [vmem:[%s1 + $0xe8] sm:$0xff]
    %v213 = vld [vmem:[%s1 + $0xf0] sm:$0xff]
    %v214 = vld [vmem:[%s1 + $0xf8] sm:$0xff]
    %vm215 = vcmask 130048
    %v217 = vsel %vm215, %v183, 0
    %v220 = vsel %vm215, %v184, 0
    %v223 = vsel %vm215, %v185, 0
    %v226 = vsel %vm215, %v186, 0
    %v229 = vsel %vm215, %v187, 0
    %v232 = vsel %vm215, %v188, 0
    %v235 = vsel %vm215, %v189, 0
    %v238 = vsel %vm215, %v190, 0
    %v241 = vsel %vm215, %v191, 0
    %v244 = vsel %vm215, %v192, 0
    %v247 = vsel %vm215, %v193, 0
    %v250 = vsel %vm215, %v194, 0
    %v253 = vsel %vm215, %v195, 0
    %v256 = vsel %vm215, %v196, 0
    %v259 = vsel %vm215, %v197, 0
    %v262 = vsel %vm215, %v198, 0
    %v265 = vsel %vm215, %v199, 0
    %v268 = vsel %vm215, %v200, 0
    %v271 = vsel %vm215, %v201, 0
    %v274 = vsel %vm215, %v202, 0
    %v277 = vsel %vm215, %v203, 0
    %v280 = vsel %vm215, %v204, 0
    %v283 = vsel %vm215, %v205, 0
    %v286 = vsel %vm215, %v206, 0
    %v289 = vsel %vm215, %v207, 0
    %v292 = vsel %vm215, %v208, 0
    %v295 = vsel %vm215, %v209, 0
    %v298 = vsel %vm215, %v210, 0
    %v301 = vsel %vm215, %v211, 0
    %v304 = vsel %vm215, %v212, 0
    %v307 = vsel %vm215, %v213, 0
    %v310 = vsel %vm215, %v214, 0
    %312 = vmatprep.subr.mxu0 %v76
    %313 = vmatpush1.msra.mxu0 %v75
    %314 = vmatprep.subr.mxu0 %v79
    %315 = vmatpush1.msra.mxu0 %v78
    %316 = vmatprep.subr.mxu0 0.0
    %317 = vmatpush1.msra.mxu0 0.0
    %318 = vmatprep.subr.mxu0 0.0
    %319 = vmatpush1.msra.mxu0 0.0
    %320 = vmatprep.subr.mxu0 0.0
    %321 = vmatpush1.msra.mxu0 0.0
    %322 = vmatprep.subr.mxu0 0.0
    %323 = vmatpush1.msra.mxu0 0.0
    %324 = vmatprep.subr.mxu0 0.0
    %325 = vmatpush1.msra.mxu0 0.0
    %326 = vmatprep.subr.mxu0 0.0
    %327 = vmatpush1.msra.mxu0 0.0
    %328 = vmatprep.subr.mxu0 0.0
    %329 = vmatpush1.msra.mxu0 0.0
    %330 = vmatprep.subr.mxu0 0.0
    %331 = vmatpush1.msra.mxu0 0.0
    %332 = vmatprep.subr.mxu0 0.0
    %333 = vmatpush1.msra.mxu0 0.0
    %334 = vmatprep.subr.mxu0 0.0
    %335 = vmatpush1.msra.mxu0 0.0
    %336 = vmatprep.subr.mxu0 0.0
    %337 = vmatpush1.msra.mxu0 0.0
    %338 = vmatprep.subr.mxu0 0.0
    %339 = vmatpush1.msra.mxu0 0.0
    %340 = vmatprep.subr.mxu0 0.0
    %341 = vmatpush1.msra.mxu0 0.0
    %342 = vmatprep.subr.mxu0 0.0
    %343 = vmatpush1.msra.mxu0 0.0
    %344 = vmatprep.subr.mxu0 0.0
    %345 = vmatpush1.msra.mxu0 0.0
    %346 = vmatprep.subr.mxu0 0.0
    %347 = vmatpush1.msra.mxu0 0.0
    %348 = vmatprep.subr.mxu0 0.0
    %349 = vmatpush1.msra.mxu0 0.0
    %350 = vmatprep.subr.mxu0 0.0
    %351 = vmatpush1.msra.mxu0 0.0
    %352 = vmatprep.subr.mxu0 0.0
    %353 = vmatpush1.msra.mxu0 0.0
    %354 = vmatprep.subr.mxu0 0.0
    %355 = vmatpush1.msra.mxu0 0.0
    %356 = vmatprep.subr.mxu0 0.0
    %357 = vmatpush1.msra.mxu0 0.0
    %358 = vmatprep.subr.mxu0 0.0
    %359 = vmatpush1.msra.mxu0 0.0
    %360 = vmatprep.subr.mxu0 0.0
    %361 = vmatpush1.msra.mxu0 0.0
    %362 = vmatprep.subr.mxu0 0.0
    %363 = vmatpush1.msra.mxu0 0.0
    %364 = vmatprep.subr.mxu0 0.0
    %365 = vmatpush1.msra.mxu0 0.0
    %366 = vmatprep.subr.mxu0 0.0
    %367 = vmatpush1.msra.mxu0 0.0
    %368 = vmatprep.subr.mxu0 0.0
    %369 = vmatpush1.msra.mxu0 0.0
    %370 = vmatprep.subr.mxu0 0.0
    %371 = vmatpush1.msra.mxu0 0.0
    %372 = vmatprep.subr.mxu0 0.0
    %373 = vmatpush1.msra.mxu0 0.0
    %374 = vmatprep.subr.mxu0 0.0
    %375 = vmatpush1.msra.mxu0 0.0
    %376 = vmatprep.mubr.f32.mxu0 0.0
    %377 = vmatmul.mubr.f32.gmra.mrb[0].mxu0 %v217
    %v378 = vpop.f32.mrb[0].mxu0
    %v379 = vadd.f32 0.0, %v378
    %v380 = vpop.f32.mrb[0].mxu0
    %v381 = vadd.f32 0.0, %v380
    %382 = vmatprep.mubr.f32.mxu0 0.0
    %383 = vmatmul.mubr.f32.gmra.mrb[0].mxu0 %v220
    %v384 = vpop.f32.mrb[0].mxu0
    %v385 = vadd.f32 0.0, %v384
    %v386 = vpop.f32.mrb[0].mxu0
    %v387 = vadd.f32 0.0, %v386
    %388 = vmatprep.mubr.f32.mxu0 0.0
    %389 = vmatmul.mubr.f32.gmra.mrb[0].mxu0 %v223
    %v390 = vpop.f32.mrb[0].mxu0
    %v391 = vadd.f32 0.0, %v390
    %v392 = vpop.f32.mrb[0].mxu0
    %v393 = vadd.f32 0.0, %v392
    %394 = vmatprep.mubr.f32.mxu0 0.0
    %395 = vmatmul.mubr.f32.gmra.mrb[0].mxu0 %v226
    %v396 = vpop.f32.mrb[0].mxu0
    %v397 = vadd.f32 0.0, %v396
    %v398 = vpop.f32.mrb[0].mxu0
    %v399 = vadd.f32 0.0, %v398
    %400 = vmatprep.mubr.f32.mxu0 0.0
    %401 = vmatmul.mubr.f32.gmra.mrb[0].mxu0 %v229
    %v402 = vpop.f32.mrb[0].mxu0
    %v403 = vadd.f32 0.0, %v402
    %v404 = vpop.f32.mrb[0].mxu0
    %v405 = vadd.f32 0.0, %v404
    %406 = vmatprep.mubr.f32.mxu0 0.0
    %407 = vmatmul.mubr.f32.gmra.mrb[0].mxu0 %v232
    %v408 = vpop.f32.mrb[0].mxu0
    %v409 = vadd.f32 0.0, %v408
    %v410 = vpop.f32.mrb[0].mxu0
    %v411 = vadd.f32 0.0, %v410
    %412 = vmatprep.mubr.f32.mxu0 0.0
    %413 = vmatmul.mubr.f32.gmra.mrb[0].mxu0 %v235
    %v414 = vpop.f32.mrb[0].mxu0
    %v415 = vadd.f32 0.0, %v414
    %v416 = vpop.f32.mrb[0].mxu0
    %v417 = vadd.f32 0.0, %v416
    %418 = vmatprep.mubr.f32.mxu0 0.0
    %419 = vmatmul.mubr.f32.gmra.mrb[0].mxu0 %v238
    %v420 = vpop.f32.mrb[0].mxu0
    %v421 = vadd.f32 0.0, %v420
    %v422 = vpop.f32.mrb[0].mxu0
    %v423 = vadd.f32 0.0, %v422
    %424 = vmatprep.mubr.f32.mxu0 0.0
    %425 = vmatmul.mubr.f32.gmra.mrb[0].mxu0 %v241
    %v426 = vpop.f32.mrb[0].mxu0
    %v427 = vadd.f32 0.0, %v426
    %v428 = vpop.f32.mrb[0].mxu0
    %v429 = vadd.f32 0.0, %v428
    %430 = vmatprep.mubr.f32.mxu0 0.0
    %431 = vmatmul.mubr.f32.gmra.mrb[0].mxu0 %v244
    %v432 = vpop.f32.mrb[0].mxu0
    %v433 = vadd.f32 0.0, %v432
    %v434 = vpop.f32.mrb[0].mxu0
    %v435 = vadd.f32 0.0, %v434
    %436 = vmatprep.mubr.f32.mxu0 0.0
    %437 = vmatmul.mubr.f32.gmra.mrb[0].mxu0 %v247
    %v438 = vpop.f32.mrb[0].mxu0
    %v439 = vadd.f32 0.0, %v438
    %v440 = vpop.f32.mrb[0].mxu0
    %v441 = vadd.f32 0.0, %v440
    %442 = vmatprep.mubr.f32.mxu0 0.0
    %443 = vmatmul.mubr.f32.gmra.mrb[0].mxu0 %v250
    %v444 = vpop.f32.mrb[0].mxu0
    %v445 = vadd.f32 0.0, %v444
    %v446 = vpop.f32.mrb[0].mxu0
    %v447 = vadd.f32 0.0, %v446
    %448 = vmatprep.mubr.f32.mxu0 0.0
    %449 = vmatmul.mubr.f32.gmra.mrb[0].mxu0 %v253
    %v450 = vpop.f32.mrb[0].mxu0
    %v451 = vadd.f32 0.0, %v450
    %v452 = vpop.f32.mrb[0].mxu0
    %v453 = vadd.f32 0.0, %v452
    %454 = vmatprep.mubr.f32.mxu0 0.0
    %455 = vmatmul.mubr.f32.gmra.mrb[0].mxu0 %v256
    %v456 = vpop.f32.mrb[0].mxu0
    %v457 = vadd.f32 0.0, %v456
    %v458 = vpop.f32.mrb[0].mxu0
    %v459 = vadd.f32 0.0, %v458
    %460 = vmatprep.mubr.f32.mxu0 0.0
    %461 = vmatmul.mubr.f32.gmra.mrb[0].mxu0 %v259
    %v462 = vpop.f32.mrb[0].mxu0
    %v463 = vadd.f32 0.0, %v462
    %v464 = vpop.f32.mrb[0].mxu0
    %v465 = vadd.f32 0.0, %v464
    %466 = vmatprep.mubr.f32.mxu0 0.0
    %467 = vmatmul.mubr.f32.gmra.mrb[0].mxu0 %v262
    %v468 = vpop.f32.mrb[0].mxu0
    %v469 = vadd.f32 0.0, %v468
    %v470 = vpop.f32.mrb[0].mxu0
    %v471 = vadd.f32 0.0, %v470
    %472 = vmatprep.mubr.f32.mxu0 0.0
    %473 = vmatmul.mubr.f32.gmra.mrb[0].mxu0 %v265
    %v474 = vpop.f32.mrb[0].mxu0
    %v475 = vadd.f32 0.0, %v474
    %v476 = vpop.f32.mrb[0].mxu0
    %v477 = vadd.f32 0.0, %v476
    %478 = vmatprep.mubr.f32.mxu0 0.0
    %479 = vmatmul.mubr.f32.gmra.mrb[0].mxu0 %v268
    %v480 = vpop.f32.mrb[0].mxu0
    %v481 = vadd.f32 0.0, %v480
    %v482 = vpop.f32.mrb[0].mxu0
    %v483 = vadd.f32 0.0, %v482
    %484 = vmatprep.mubr.f32.mxu0 0.0
    %485 = vmatmul.mubr.f32.gmra.mrb[0].mxu0 %v271
    %v486 = vpop.f32.mrb[0].mxu0
    %v487 = vadd.f32 0.0, %v486
    %v488 = vpop.f32.mrb[0].mxu0
    %v489 = vadd.f32 0.0, %v488
    %490 = vmatprep.mubr.f32.mxu0 0.0
    %491 = vmatmul.mubr.f32.gmra.mrb[0].mxu0 %v274
    %v492 = vpop.f32.mrb[0].mxu0
    %v493 = vadd.f32 0.0, %v492
    %v494 = vpop.f32.mrb[0].mxu0
    %v495 = vadd.f32 0.0, %v494
    %496 = vmatprep.mubr.f32.mxu0 0.0
    %497 = vmatmul.mubr.f32.gmra.mrb[0].mxu0 %v277
    %v498 = vpop.f32.mrb[0].mxu0
    %v499 = vadd.f32 0.0, %v498
    %v500 = vpop.f32.mrb[0].mxu0
    %v501 = vadd.f32 0.0, %v500
    %502 = vmatprep.mubr.f32.mxu0 0.0
    %503 = vmatmul.mubr.f32.gmra.mrb[0].mxu0 %v280
    %v504 = vpop.f32.mrb[0].mxu0
    %v505 = vadd.f32 0.0, %v504
    %v506 = vpop.f32.mrb[0].mxu0
    %v507 = vadd.f32 0.0, %v506
    %508 = vmatprep.mubr.f32.mxu0 0.0
    %509 = vmatmul.mubr.f32.gmra.mrb[0].mxu0 %v283
    %v510 = vpop.f32.mrb[0].mxu0
    %v511 = vadd.f32 0.0, %v510
    %v512 = vpop.f32.mrb[0].mxu0
    %v513 = vadd.f32 0.0, %v512
    %514 = vmatprep.mubr.f32.mxu0 0.0
    %515 = vmatmul.mubr.f32.gmra.mrb[0].mxu0 %v286
    %v516 = vpop.f32.mrb[0].mxu0
    %v517 = vadd.f32 0.0, %v516
    %v518 = vpop.f32.mrb[0].mxu0
    %v519 = vadd.f32 0.0, %v518
    %520 = vmatprep.mubr.f32.mxu0 0.0
    %521 = vmatmul.mubr.f32.gmra.mrb[0].mxu0 %v289
    %v522 = vpop.f32.mrb[0].mxu0
    %v523 = vadd.f32 0.0, %v522
    %v524 = vpop.f32.mrb[0].mxu0
    %v525 = vadd.f32 0.0, %v524
    %526 = vmatprep.mubr.f32.mxu0 0.0
    %527 = vmatmul.mubr.f32.gmra.mrb[0].mxu0 %v292
    %v528 = vpop.f32.mrb[0].mxu0
    %v529 = vadd.f32 0.0, %v528
    %v530 = vpop.f32.mrb[0].mxu0
    %v531 = vadd.f32 0.0, %v530
    %532 = vmatprep.mubr.f32.mxu0 0.0
    %533 = vmatmul.mubr.f32.gmra.mrb[0].mxu0 %v295
    %v534 = vpop.f32.mrb[0].mxu0
    %v535 = vadd.f32 0.0, %v534
    %v536 = vpop.f32.mrb[0].mxu0
    %v537 = vadd.f32 0.0, %v536
    %538 = vmatprep.mubr.f32.mxu0 0.0
    %539 = vmatmul.mubr.f32.gmra.mrb[0].mxu0 %v298
    %v540 = vpop.f32.mrb[0].mxu0
    %v541 = vadd.f32 0.0, %v540
    %v542 = vpop.f32.mrb[0].mxu0
    %v543 = vadd.f32 0.0, %v542
    %544 = vmatprep.mubr.f32.mxu0 0.0
    %545 = vmatmul.mubr.f32.gmra.mrb[0].mxu0 %v301
    %v546 = vpop.f32.mrb[0].mxu0
    %v547 = vadd.f32 0.0, %v546
    %v548 = vpop.f32.mrb[0].mxu0
    %v549 = vadd.f32 0.0, %v548
    %550 = vmatprep.mubr.f32.mxu0 0.0
    %551 = vmatmul.mubr.f32.gmra.mrb[0].mxu0 %v304
    %v552 = vpop.f32.mrb[0].mxu0
    %v553 = vadd.f32 0.0, %v552
    %v554 = vpop.f32.mrb[0].mxu0
    %v555 = vadd.f32 0.0, %v554
    %556 = vmatprep.mubr.f32.mxu0 0.0
    %557 = vmatmul.mubr.f32.gmra.mrb[0].mxu0 %v307
    %v558 = vpop.f32.mrb[0].mxu0
    %v559 = vadd.f32 0.0, %v558
    %v560 = vpop.f32.mrb[0].mxu0
    %v561 = vadd.f32 0.0, %v560
    %562 = vmatprep.mubr.f32.mxu0 0.0
    %563 = vmatmul.mubr.f32.gmra.mrb[0].mxu0 %v310
    %v564 = vpop.f32.mrb[0].mxu0
    %v565 = vadd.f32 0.0, %v564
    %v566 = vpop.f32.mrb[0].mxu0
    %v567 = vadd.f32 0.0, %v566
    %568 = vdwg.mxu0
    %569 = vmatprep.subr.mxu0 0.0
    %570 = vmatpush1.msra.mxu0 %v77
    %571 = vmatprep.subr.mxu0 0.0
    %572 = vmatpush1.msra.mxu0 %v80
    %573 = vmatprep.subr.mxu0 0.0
    %574 = vmatpush1.msra.mxu0 0.0
    %575 = vmatprep.subr.mxu0 0.0
    %576 = vmatpush1.msra.mxu0 0.0
    %577 = vmatprep.subr.mxu0 0.0
    %578 = vmatpush1.msra.mxu0 0.0
    %579 = vmatprep.subr.mxu0 0.0
    %580 = vmatpush1.msra.mxu0 0.0
    %581 = vmatprep.subr.mxu0 0.0
    %582 = vmatpush1.msra.mxu0 0.0
    %583 = vmatprep.subr.mxu0 0.0
    %584 = vmatpush1.msra.mxu0 0.0
    %585 = vmatprep.subr.mxu0 0.0
    %586 = vmatpush1.msra.mxu0 0.0
    %587 = vmatprep.subr.mxu0 0.0
    %588 = vmatpush1.msra.mxu0 0.0
    %589 = vmatprep.subr.mxu0 0.0
    %590 = vmatpush1.msra.mxu0 0.0
    %591 = vmatprep.subr.mxu0 0.0
    %592 = vmatpush1.msra.mxu0 0.0
    %593 = vmatprep.subr.mxu0 0.0
    %594 = vmatpush1.msra.mxu0 0.0
    %595 = vmatprep.subr.mxu0 0.0
    %596 = vmatpush1.msra.mxu0 0.0
    %597 = vmatprep.subr.mxu0 0.0
    %598 = vmatpush1.msra.mxu0 0.0
    %599 = vmatprep.subr.mxu0 0.0
    %600 = vmatpush1.msra.mxu0 0.0
    %601 = vmatprep.subr.mxu0 0.0
    %602 = vmatpush1.msra.mxu0 0.0
    %603 = vmatprep.subr.mxu0 0.0
    %604 = vmatpush1.msra.mxu0 0.0
    %605 = vmatprep.subr.mxu0 0.0
    %606 = vmatpush1.msra.mxu0 0.0
    %607 = vmatprep.subr.mxu0 0.0
    %608 = vmatpush1.msra.mxu0 0.0
    %609 = vmatprep.subr.mxu0 0.0
    %610 = vmatpush1.msra.mxu0 0.0
    %611 = vmatprep.subr.mxu0 0.0
    %612 = vmatpush1.msra.mxu0 0.0
    %613 = vmatprep.subr.mxu0 0.0
    %614 = vmatpush1.msra.mxu0 0.0
    %615 = vmatprep.subr.mxu0 0.0
    %616 = vmatpush1.msra.mxu0 0.0
    %617 = vmatprep.subr.mxu0 0.0
    %618 = vmatpush1.msra.mxu0 0.0
    %619 = vmatprep.subr.mxu0 0.0
    %620 = vmatpush1.msra.mxu0 0.0
    %621 = vmatprep.subr.mxu0 0.0
    %622 = vmatpush1.msra.mxu0 0.0
    %623 = vmatprep.subr.mxu0 0.0
    %624 = vmatpush1.msra.mxu0 0.0
    %625 = vmatprep.subr.mxu0 0.0
    %626 = vmatpush1.msra.mxu0 0.0
    %627 = vmatprep.subr.mxu0 0.0
    %628 = vmatpush1.msra.mxu0 0.0
    %629 = vmatprep.subr.mxu0 0.0
    %630 = vmatpush1.msra.mxu0 0.0
    %631 = vmatprep.subr.mxu0 0.0
    %632 = vmatpush1.msra.mxu0 0.0
    %633 = vmatprep.mubr.f32.mxu0 0.0
    %634 = vmatmul.mubr.f32.gmra.mrb[0].mxu0 %v217
    %v635 = vpop.f32.mrb[0].mxu0
    %v636 = vadd.f32 0.0, %v635
    %v637 = vpop.f32.mrb[0].mxu0
    %638 = vmatprep.mubr.f32.mxu0 0.0
    %639 = vmatmul.mubr.f32.gmra.mrb[0].mxu0 %v220
    %v640 = vpop.f32.mrb[0].mxu0
    %v641 = vadd.f32 0.0, %v640
    %v642 = vpop.f32.mrb[0].mxu0
    %643 = vmatprep.mubr.f32.mxu0 0.0
    %644 = vmatmul.mubr.f32.gmra.mrb[0].mxu0 %v223
    %v645 = vpop.f32.mrb[0].mxu0
    %v646 = vadd.f32 0.0, %v645
    %v647 = vpop.f32.mrb[0].mxu0
    %648 = vmatprep.mubr.f32.mxu0 0.0
    %649 = vmatmul.mubr.f32.gmra.mrb[0].mxu0 %v226
    %v650 = vpop.f32.mrb[0].mxu0
    %v651 = vadd.f32 0.0, %v650
    %v652 = vpop.f32.mrb[0].mxu0
    %653 = vmatprep.mubr.f32.mxu0 0.0
    %654 = vmatmul.mubr.f32.gmra.mrb[0].mxu0 %v229
    %v655 = vpop.f32.mrb[0].mxu0
    %v656 = vadd.f32 0.0, %v655
    %v657 = vpop.f32.mrb[0].mxu0
    %658 = vmatprep.mubr.f32.mxu0 0.0
    %659 = vmatmul.mubr.f32.gmra.mrb[0].mxu0 %v232
    %v660 = vpop.f32.mrb[0].mxu0
    %v661 = vadd.f32 0.0, %v660
    %v662 = vpop.f32.mrb[0].mxu0
    %663 = vmatprep.mubr.f32.mxu0 0.0
    %664 = vmatmul.mubr.f32.gmra.mrb[0].mxu0 %v235
    %v665 = vpop.f32.mrb[0].mxu0
    %v666 = vadd.f32 0.0, %v665
    %v667 = vpop.f32.mrb[0].mxu0
    %668 = vmatprep.mubr.f32.mxu0 0.0
    %669 = vmatmul.mubr.f32.gmra.mrb[0].mxu0 %v238
    %v670 = vpop.f32.mrb[0].mxu0
    %v671 = vadd.f32 0.0, %v670
    %v672 = vpop.f32.mrb[0].mxu0
    %673 = vmatprep.mubr.f32.mxu0 0.0
    %674 = vmatmul.mubr.f32.gmra.mrb[0].mxu0 %v241
    %v675 = vpop.f32.mrb[0].mxu0
    %v676 = vadd.f32 0.0, %v675
    %v677 = vpop.f32.mrb[0].mxu0
    %678 = vmatprep.mubr.f32.mxu0 0.0
    %679 = vmatmul.mubr.f32.gmra.mrb[0].mxu0 %v244
    %v680 = vpop.f32.mrb[0].mxu0
    %v681 = vadd.f32 0.0, %v680
    %v682 = vpop.f32.mrb[0].mxu0
    %683 = vmatprep.mubr.f32.mxu0 0.0
    %684 = vmatmul.mubr.f32.gmra.mrb[0].mxu0 %v247
    %v685 = vpop.f32.mrb[0].mxu0
    %v686 = vadd.f32 0.0, %v685
    %v687 = vpop.f32.mrb[0].mxu0
    %688 = vmatprep.mubr.f32.mxu0 0.0
    %689 = vmatmul.mubr.f32.gmra.mrb[0].mxu0 %v250
    %v690 = vpop.f32.mrb[0].mxu0
    %v691 = vadd.f32 0.0, %v690
    %v692 = vpop.f32.mrb[0].mxu0
    %693 = vmatprep.mubr.f32.mxu0 0.0
    %694 = vmatmul.mubr.f32.gmra.mrb[0].mxu0 %v253
    %v695 = vpop.f32.mrb[0].mxu0
    %v696 = vadd.f32 0.0, %v695
    %v697 = vpop.f32.mrb[0].mxu0
    %698 = vmatprep.mubr.f32.mxu0 0.0
    %699 = vmatmul.mubr.f32.gmra.mrb[0].mxu0 %v256
    %v700 = vpop.f32.mrb[0].mxu0
    %v701 = vadd.f32 0.0, %v700
    %v702 = vpop.f32.mrb[0].mxu0
    %703 = vmatprep.mubr.f32.mxu0 0.0
    %704 = vmatmul.mubr.f32.gmra.mrb[0].mxu0 %v259
    %v705 = vpop.f32.mrb[0].mxu0
    %v706 = vadd.f32 0.0, %v705
    %v707 = vpop.f32.mrb[0].mxu0
    %708 = vmatprep.mubr.f32.mxu0 0.0
    %709 = vmatmul.mubr.f32.gmra.mrb[0].mxu0 %v262
    %v710 = vpop.f32.mrb[0].mxu0
    %v711 = vadd.f32 0.0, %v710
    %v712 = vpop.f32.mrb[0].mxu0
    %713 = vmatprep.mubr.f32.mxu0 0.0
    %714 = vmatmul.mubr.f32.gmra.mrb[0].mxu0 %v265
    %v715 = vpop.f32.mrb[0].mxu0
    %v716 = vadd.f32 0.0, %v715
    %v717 = vpop.f32.mrb[0].mxu0
    %718 = vmatprep.mubr.f32.mxu0 0.0
    %719 = vmatmul.mubr.f32.gmra.mrb[0].mxu0 %v268
    %v720 = vpop.f32.mrb[0].mxu0
    %v721 = vadd.f32 0.0, %v720
    %v722 = vpop.f32.mrb[0].mxu0
    %723 = vmatprep.mubr.f32.mxu0 0.0
    %724 = vmatmul.mubr.f32.gmra.mrb[0].mxu0 %v271
    %v725 = vpop.f32.mrb[0].mxu0
    %v726 = vadd.f32 0.0, %v725
    %v727 = vpop.f32.mrb[0].mxu0
    %728 = vmatprep.mubr.f32.mxu0 0.0
    %729 = vmatmul.mubr.f32.gmra.mrb[0].mxu0 %v274
    %v730 = vpop.f32.mrb[0].mxu0
    %v731 = vadd.f32 0.0, %v730
    %v732 = vpop.f32.mrb[0].mxu0
    %733 = vmatprep.mubr.f32.mxu0 0.0
    %734 = vmatmul.mubr.f32.gmra.mrb[0].mxu0 %v277
    %v735 = vpop.f32.mrb[0].mxu0
    %v736 = vadd.f32 0.0, %v735
    %v737 = vpop.f32.mrb[0].mxu0
    %738 = vmatprep.mubr.f32.mxu0 0.0
    %739 = vmatmul.mubr.f32.gmra.mrb[0].mxu0 %v280
    %v740 = vpop.f32.mrb[0].mxu0
    %v741 = vadd.f32 0.0, %v740
    %v742 = vpop.f32.mrb[0].mxu0
    %743 = vmatprep.mubr.f32.mxu0 0.0
    %744 = vmatmul.mubr.f32.gmra.mrb[0].mxu0 %v283
    %v745 = vpop.f32.mrb[0].mxu0
    %v746 = vadd.f32 0.0, %v745
    %v747 = vpop.f32.mrb[0].mxu0
    %748 = vmatprep.mubr.f32.mxu0 0.0
    %749 = vmatmul.mubr.f32.gmra.mrb[0].mxu0 %v286
    %v750 = vpop.f32.mrb[0].mxu0
    %v751 = vadd.f32 0.0, %v750
    %v752 = vpop.f32.mrb[0].mxu0
    %753 = vmatprep.mubr.f32.mxu0 0.0
    %754 = vmatmul.mubr.f32.gmra.mrb[0].mxu0 %v289
    %v755 = vpop.f32.mrb[0].mxu0
    %v756 = vadd.f32 0.0, %v755
    %v757 = vpop.f32.mrb[0].mxu0
    %758 = vmatprep.mubr.f32.mxu0 0.0
    %759 = vmatmul.mubr.f32.gmra.mrb[0].mxu0 %v292
    %v760 = vpop.f32.mrb[0].mxu0
    %v761 = vadd.f32 0.0, %v760
    %v762 = vpop.f32.mrb[0].mxu0
    %763 = vmatprep.mubr.f32.mxu0 0.0
    %764 = vmatmul.mubr.f32.gmra.mrb[0].mxu0 %v295
    %v765 = vpop.f32.mrb[0].mxu0
    %v766 = vadd.f32 0.0, %v765
    %v767 = vpop.f32.mrb[0].mxu0
    %768 = vmatprep.mubr.f32.mxu0 0.0
    %769 = vmatmul.mubr.f32.gmra.mrb[0].mxu0 %v298
    %v770 = vpop.f32.mrb[0].mxu0
    %v771 = vadd.f32 0.0, %v770
    %v772 = vpop.f32.mrb[0].mxu0
    %773 = vmatprep.mubr.f32.mxu0 0.0
    %774 = vmatmul.mubr.f32.gmra.mrb[0].mxu0 %v301
    %v775 = vpop.f32.mrb[0].mxu0
    %v776 = vadd.f32 0.0, %v775
    %v777 = vpop.f32.mrb[0].mxu0
    %778 = vmatprep.mubr.f32.mxu0 0.0
    %779 = vmatmul.mubr.f32.gmra.mrb[0].mxu0 %v304
    %v780 = vpop.f32.mrb[0].mxu0
    %v781 = vadd.f32 0.0, %v780
    %v782 = vpop.f32.mrb[0].mxu0
    %783 = vmatprep.mubr.f32.mxu0 0.0
    %784 = vmatmul.mubr.f32.gmra.mrb[0].mxu0 %v307
    %v785 = vpop.f32.mrb[0].mxu0
    %v786 = vadd.f32 0.0, %v785
    %v787 = vpop.f32.mrb[0].mxu0
    %788 = vmatprep.mubr.f32.mxu0 0.0
    %789 = vmatmul.mubr.f32.gmra.mrb[0].mxu0 %v310
    %v790 = vpop.f32.mrb[0].mxu0
    %v791 = vadd.f32 0.0, %v790
    %v792 = vpop.f32.mrb[0].mxu0
    %793 = vdwg.mxu0
    %v794 = vmul.f32 %v379, %v177
    %v795 = vmul.f32 %v381, %v178
    %v796 = vmul.f32 %v636, %v179
    %v797 = vmul.f32 %v385, %v180
    %v798 = vmul.f32 %v387, %v181
    %v799 = vmul.f32 %v641, %v182
    %v800 = vmul.f32 %v391, %v177
    %v801 = vmul.f32 %v393, %v178
    %v802 = vmul.f32 %v646, %v179
    %v803 = vmul.f32 %v397, %v180
    %v804 = vmul.f32 %v399, %v181
    %v805 = vmul.f32 %v651, %v182
    %v806 = vmul.f32 %v403, %v177
    %v807 = vmul.f32 %v405, %v178
    %v808 = vmul.f32 %v656, %v179
    %v809 = vmul.f32 %v409, %v180
    %v810 = vmul.f32 %v411, %v181
    %v811 = vmul.f32 %v661, %v182
    %v812 = vmul.f32 %v415, %v177
    %v813 = vmul.f32 %v417, %v178
    %v814 = vmul.f32 %v666, %v179
    %v815 = vmul.f32 %v421, %v180
    %v816 = vmul.f32 %v423, %v181
    %v817 = vmul.f32 %v671, %v182
    %v818 = vmul.f32 %v427, %v177
    %v819 = vmul.f32 %v429, %v178
    %v820 = vmul.f32 %v676, %v179
    %v821 = vmul.f32 %v433, %v180
    %v822 = vmul.f32 %v435, %v181
    %v823 = vmul.f32 %v681, %v182
    %v824 = vmul.f32 %v439, %v177
    %v825 = vmul.f32 %v441, %v178
    %v826 = vmul.f32 %v686, %v179
    %v827 = vmul.f32 %v445, %v180
    %v828 = vmul.f32 %v447, %v181
    %v829 = vmul.f32 %v691, %v182
    %v830 = vmul.f32 %v451, %v177
    %v831 = vmul.f32 %v453, %v178
    %v832 = vmul.f32 %v696, %v179
    %v833 = vmul.f32 %v457, %v180
    %v834 = vmul.f32 %v459, %v181
    %v835 = vmul.f32 %v701, %v182
    %v836 = vmul.f32 %v463, %v177
    %v837 = vmul.f32 %v465, %v178
    %v838 = vmul.f32 %v706, %v179
    %v839 = vmul.f32 %v469, %v180
    %v840 = vmul.f32 %v471, %v181
    %v841 = vmul.f32 %v711, %v182
    %v842 = vadd.f32 %v794, %v797
    %v843 = vrot.slane %v842, 4
    %v844 = vadd.f32 %v842, %v843
    %v845 = vrot.slane %v844, 2
    %v846 = vadd.f32 %v844, %v845
    %v847 = vrot.slane %v846, 1
    %v848 = vadd.f32 %v846, %v847
    %v849 = vadd.f32 %v795, %v798
    %v850 = vrot.slane %v849, 4
    %v851 = vadd.f32 %v849, %v850
    %v852 = vrot.slane %v851, 2
    %v853 = vadd.f32 %v851, %v852
    %v854 = vrot.slane %v853, 1
    %v855 = vadd.f32 %v853, %v854
    %v856 = vadd.f32 %v796, %v799
    %v857 = vrot.slane %v856, 4
    %v858 = vadd.f32 %v856, %v857
    %v859 = vrot.slane %v858, 2
    %v860 = vadd.f32 %v858, %v859
    %v861 = vrot.slane %v860, 1
    %v862 = vadd.f32 %v860, %v861
    %v863 = vadd.f32 %v800, %v803
    %v864 = vrot.slane %v863, 4
    %v865 = vadd.f32 %v863, %v864
    %v866 = vrot.slane %v865, 2
    %v867 = vadd.f32 %v865, %v866
    %v868 = vrot.slane %v867, 1
    %v869 = vadd.f32 %v867, %v868
    %v870 = vadd.f32 %v801, %v804
    %v871 = vrot.slane %v870, 4
    %v872 = vadd.f32 %v870, %v871
    %v873 = vrot.slane %v872, 2
    %v874 = vadd.f32 %v872, %v873
    %v875 = vrot.slane %v874, 1
    %v876 = vadd.f32 %v874, %v875
    %v877 = vadd.f32 %v802, %v805
    %v878 = vrot.slane %v877, 4
    %v879 = vadd.f32 %v877, %v878
    %v880 = vrot.slane %v879, 2
    %v881 = vadd.f32 %v879, %v880
    %v882 = vrot.slane %v881, 1
    %v883 = vadd.f32 %v881, %v882
    %v884 = vadd.f32 %v806, %v809
    %v885 = vrot.slane %v884, 4
    %v886 = vadd.f32 %v884, %v885
    %v887 = vrot.slane %v886, 2
    %v888 = vadd.f32 %v886, %v887
    %v889 = vrot.slane %v888, 1
    %v890 = vadd.f32 %v888, %v889
    %v891 = vadd.f32 %v807, %v810
    %v892 = vrot.slane %v891, 4
    %v893 = vadd.f32 %v891, %v892
    %v894 = vrot.slane %v893, 2
    %v895 = vadd.f32 %v893, %v894
    %v896 = vrot.slane %v895, 1
    %v897 = vadd.f32 %v895, %v896
    %v898 = vadd.f32 %v808, %v811
    %v899 = vrot.slane %v898, 4
    %v900 = vadd.f32 %v898, %v899
    %v901 = vrot.slane %v900, 2
    %v902 = vadd.f32 %v900, %v901
    %v903 = vrot.slane %v902, 1
    %v904 = vadd.f32 %v902, %v903
    %v905 = vadd.f32 %v812, %v815
    %v906 = vrot.slane %v905, 4
    %v907 = vadd.f32 %v905, %v906
    %v908 = vrot.slane %v907, 2
    %v909 = vadd.f32 %v907, %v908
    %v910 = vrot.slane %v909, 1
    %v911 = vadd.f32 %v909, %v910
    %v912 = vadd.f32 %v813, %v816
    %v913 = vrot.slane %v912, 4
    %v914 = vadd.f32 %v912, %v913
    %v915 = vrot.slane %v914, 2
    %v916 = vadd.f32 %v914, %v915
    %v917 = vrot.slane %v916, 1
    %v918 = vadd.f32 %v916, %v917
    %v919 = vadd.f32 %v814, %v817
    %v920 = vrot.slane %v919, 4
    %v921 = vadd.f32 %v919, %v920
    %v922 = vrot.slane %v921, 2
    %v923 = vadd.f32 %v921, %v922
    %v924 = vrot.slane %v923, 1
    %v925 = vadd.f32 %v923, %v924
    %v926 = vadd.f32 %v818, %v821
    %v927 = vrot.slane %v926, 4
    %v928 = vadd.f32 %v926, %v927
    %v929 = vrot.slane %v928, 2
    %v930 = vadd.f32 %v928, %v929
    %v931 = vrot.slane %v930, 1
    %v932 = vadd.f32 %v930, %v931
    %v933 = vadd.f32 %v819, %v822
    %v934 = vrot.slane %v933, 4
    %v935 = vadd.f32 %v933, %v934
    %v936 = vrot.slane %v935, 2
    %v937 = vadd.f32 %v935, %v936
    %v938 = vrot.slane %v937, 1
    %v939 = vadd.f32 %v937, %v938
    %v940 = vadd.f32 %v820, %v823
    %v941 = vrot.slane %v940, 4
    %v942 = vadd.f32 %v940, %v941
    %v943 = vrot.slane %v942, 2
    %v944 = vadd.f32 %v942, %v943
    %v945 = vrot.slane %v944, 1
    %v946 = vadd.f32 %v944, %v945
    %v947 = vadd.f32 %v824, %v827
    %v948 = vrot.slane %v947, 4
    %v949 = vadd.f32 %v947, %v948
    %v950 = vrot.slane %v949, 2
    %v951 = vadd.f32 %v949, %v950
    %v952 = vrot.slane %v951, 1
    %v953 = vadd.f32 %v951, %v952
    %v954 = vadd.f32 %v825, %v828
    %v955 = vrot.slane %v954, 4
    %v956 = vadd.f32 %v954, %v955
    %v957 = vrot.slane %v956, 2
    %v958 = vadd.f32 %v956, %v957
    %v959 = vrot.slane %v958, 1
    %v960 = vadd.f32 %v958, %v959
    %v961 = vadd.f32 %v826, %v829
    %v962 = vrot.slane %v961, 4
    %v963 = vadd.f32 %v961, %v962
    %v964 = vrot.slane %v963, 2
    %v965 = vadd.f32 %v963, %v964
    %v966 = vrot.slane %v965, 1
    %v967 = vadd.f32 %v965, %v966
    %v968 = vadd.f32 %v830, %v833
    %v969 = vrot.slane %v968, 4
    %v970 = vadd.f32 %v968, %v969
    %v971 = vrot.slane %v970, 2
    %v972 = vadd.f32 %v970, %v971
    %v973 = vrot.slane %v972, 1
    %v974 = vadd.f32 %v972, %v973
    %v975 = vadd.f32 %v831, %v834
    %v976 = vrot.slane %v975, 4
    %v977 = vadd.f32 %v975, %v976
    %v978 = vrot.slane %v977, 2
    %v979 = vadd.f32 %v977, %v978
    %v980 = vrot.slane %v979, 1
    %v981 = vadd.f32 %v979, %v980
    %v982 = vadd.f32 %v832, %v835
    %v983 = vrot.slane %v982, 4
    %v984 = vadd.f32 %v982, %v983
    %v985 = vrot.slane %v984, 2
    %v986 = vadd.f32 %v984, %v985
    %v987 = vrot.slane %v986, 1
    %v988 = vadd.f32 %v986, %v987
    %v989 = vadd.f32 %v836, %v839
    %v990 = vrot.slane %v989, 4
    %v991 = vadd.f32 %v989, %v990
    %v992 = vrot.slane %v991, 2
    %v993 = vadd.f32 %v991, %v992
    %v994 = vrot.slane %v993, 1
    %v995 = vadd.f32 %v993, %v994
    %v996 = vadd.f32 %v837, %v840
    %v997 = vrot.slane %v996, 4
    %v998 = vadd.f32 %v996, %v997
    %v999 = vrot.slane %v998, 2
    %v1000 = vadd.f32 %v998, %v999
    %v1001 = vrot.slane %v1000, 1
    %v1002 = vadd.f32 %v1000, %v1001
    %v1003 = vadd.f32 %v838, %v841
    %v1004 = vrot.slane %v1003, 4
    %v1005 = vadd.f32 %v1003, %v1004
    %v1006 = vrot.slane %v1005, 2
    %v1007 = vadd.f32 %v1005, %v1006
    %v1008 = vrot.slane %v1007, 1
    %v1009 = vadd.f32 %v1007, %v1008
    %v1010 = vmul.f32 %v475, %v126
    %v1011 = vmul.f32 %v477, %v127
    %v1012 = vmul.f32 %v716, %v128
    %v1013 = vmul.f32 %v481, %v129
    %v1014 = vmul.f32 %v483, %v130
    %v1015 = vmul.f32 %v721, %v131
    %v1016 = vmul.f32 %v487, %v126
    %v1017 = vmul.f32 %v489, %v127
    %v1018 = vmul.f32 %v726, %v128
    %v1019 = vmul.f32 %v493, %v129
    %v1020 = vmul.f32 %v495, %v130
    %v1021 = vmul.f32 %v731, %v131
    %v1022 = vmul.f32 %v499, %v126
    %v1023 = vmul.f32 %v501, %v127
    %v1024 = vmul.f32 %v736, %v128
    %v1025 = vmul.f32 %v505, %v129
    %v1026 = vmul.f32 %v507, %v130
    %v1027 = vmul.f32 %v741, %v131
    %v1028 = vmul.f32 %v511, %v126
    %v1029 = vmul.f32 %v513, %v127
    %v1030 = vmul.f32 %v746, %v128
    %v1031 = vmul.f32 %v517, %v129
    %v1032 = vmul.f32 %v519, %v130
    %v1033 = vmul.f32 %v751, %v131
    %v1034 = vmul.f32 %v523, %v126
    %v1035 = vmul.f32 %v525, %v127
    %v1036 = vmul.f32 %v756, %v128
    %v1037 = vmul.f32 %v529, %v129
    %v1038 = vmul.f32 %v531, %v130
    %v1039 = vmul.f32 %v761, %v131
    %v1040 = vmul.f32 %v535, %v126
    %v1041 = vmul.f32 %v537, %v127
    %v1042 = vmul.f32 %v766, %v128
    %v1043 = vmul.f32 %v541, %v129
    %v1044 = vmul.f32 %v543, %v130
    %v1045 = vmul.f32 %v771, %v131
    %v1046 = vmul.f32 %v547, %v126
    %v1047 = vmul.f32 %v549, %v127
    %v1048 = vmul.f32 %v776, %v128
    %v1049 = vmul.f32 %v553, %v129
    %v1050 = vmul.f32 %v555, %v130
    %v1051 = vmul.f32 %v781, %v131
    %v1052 = vmul.f32 %v559, %v126
    %v1053 = vmul.f32 %v561, %v127
    %v1054 = vmul.f32 %v786, %v128
    %v1055 = vmul.f32 %v565, %v129
    %v1056 = vmul.f32 %v567, %v130
    %v1057 = vmul.f32 %v791, %v131
    %v1058 = vadd.f32 %v1010, %v1013
    %v1059 = vrot.slane %v1058, 4
    %v1060 = vadd.f32 %v1058, %v1059
    %v1061 = vrot.slane %v1060, 2
    %v1062 = vadd.f32 %v1060, %v1061
    %v1063 = vrot.slane %v1062, 1
    %v1064 = vadd.f32 %v1062, %v1063
    %v1065 = vadd.f32 %v1011, %v1014
    %v1066 = vrot.slane %v1065, 4
    %v1067 = vadd.f32 %v1065, %v1066
    %v1068 = vrot.slane %v1067, 2
    %v1069 = vadd.f32 %v1067, %v1068
    %v1070 = vrot.slane %v1069, 1
    %v1071 = vadd.f32 %v1069, %v1070
    %v1072 = vadd.f32 %v1012, %v1015
    %v1073 = vrot.slane %v1072, 4
    %v1074 = vadd.f32 %v1072, %v1073
    %v1075 = vrot.slane %v1074, 2
    %v1076 = vadd.f32 %v1074, %v1075
    %v1077 = vrot.slane %v1076, 1
    %v1078 = vadd.f32 %v1076, %v1077
    %v1079 = vadd.f32 %v1016, %v1019
    %v1080 = vrot.slane %v1079, 4
    %v1081 = vadd.f32 %v1079, %v1080
    %v1082 = vrot.slane %v1081, 2
    %v1083 = vadd.f32 %v1081, %v1082
    %v1084 = vrot.slane %v1083, 1
    %v1085 = vadd.f32 %v1083, %v1084
    %v1086 = vadd.f32 %v1017, %v1020
    %v1087 = vrot.slane %v1086, 4
    %v1088 = vadd.f32 %v1086, %v1087
    %v1089 = vrot.slane %v1088, 2
    %v1090 = vadd.f32 %v1088, %v1089
    %v1091 = vrot.slane %v1090, 1
    %v1092 = vadd.f32 %v1090, %v1091
    %v1093 = vadd.f32 %v1018, %v1021
    %v1094 = vrot.slane %v1093, 4
    %v1095 = vadd.f32 %v1093, %v1094
    %v1096 = vrot.slane %v1095, 2
    %v1097 = vadd.f32 %v1095, %v1096
    %v1098 = vrot.slane %v1097, 1
    %v1099 = vadd.f32 %v1097, %v1098
    %v1100 = vadd.f32 %v1022, %v1025
    %v1101 = vrot.slane %v1100, 4
    %v1102 = vadd.f32 %v1100, %v1101
    %v1103 = vrot.slane %v1102, 2
    %v1104 = vadd.f32 %v1102, %v1103
    %v1105 = vrot.slane %v1104, 1
    %v1106 = vadd.f32 %v1104, %v1105
    %v1107 = vadd.f32 %v1023, %v1026
    %v1108 = vrot.slane %v1107, 4
    %v1109 = vadd.f32 %v1107, %v1108
    %v1110 = vrot.slane %v1109, 2
    %v1111 = vadd.f32 %v1109, %v1110
    %v1112 = vrot.slane %v1111, 1
    %v1113 = vadd.f32 %v1111, %v1112
    %v1114 = vadd.f32 %v1024, %v1027
    %v1115 = vrot.slane %v1114, 4
    %v1116 = vadd.f32 %v1114, %v1115
    %v1117 = vrot.slane %v1116, 2
    %v1118 = vadd.f32 %v1116, %v1117
    %v1119 = vrot.slane %v1118, 1
    %v1120 = vadd.f32 %v1118, %v1119
    %v1121 = vadd.f32 %v1028, %v1031
    %v1122 = vrot.slane %v1121, 4
    %v1123 = vadd.f32 %v1121, %v1122
    %v1124 = vrot.slane %v1123, 2
    %v1125 = vadd.f32 %v1123, %v1124
    %v1126 = vrot.slane %v1125, 1
    %v1127 = vadd.f32 %v1125, %v1126
    %v1128 = vadd.f32 %v1029, %v1032
    %v1129 = vrot.slane %v1128, 4
    %v1130 = vadd.f32 %v1128, %v1129
    %v1131 = vrot.slane %v1130, 2
    %v1132 = vadd.f32 %v1130, %v1131
    %v1133 = vrot.slane %v1132, 1
    %v1134 = vadd.f32 %v1132, %v1133
    %v1135 = vadd.f32 %v1030, %v1033
    %v1136 = vrot.slane %v1135, 4
    %v1137 = vadd.f32 %v1135, %v1136
    %v1138 = vrot.slane %v1137, 2
    %v1139 = vadd.f32 %v1137, %v1138
    %v1140 = vrot.slane %v1139, 1
    %v1141 = vadd.f32 %v1139, %v1140
    %v1142 = vadd.f32 %v1034, %v1037
    %v1143 = vrot.slane %v1142, 4
    %v1144 = vadd.f32 %v1142, %v1143
    %v1145 = vrot.slane %v1144, 2
    %v1146 = vadd.f32 %v1144, %v1145
    %v1147 = vrot.slane %v1146, 1
    %v1148 = vadd.f32 %v1146, %v1147
    %v1149 = vadd.f32 %v1035, %v1038
    %v1150 = vrot.slane %v1149, 4
    %v1151 = vadd.f32 %v1149, %v1150
    %v1152 = vrot.slane %v1151, 2
    %v1153 = vadd.f32 %v1151, %v1152
    %v1154 = vrot.slane %v1153, 1
    %v1155 = vadd.f32 %v1153, %v1154
    %v1156 = vadd.f32 %v1036, %v1039
    %v1157 = vrot.slane %v1156, 4
    %v1158 = vadd.f32 %v1156, %v1157
    %v1159 = vrot.slane %v1158, 2
    %v1160 = vadd.f32 %v1158, %v1159
    %v1161 = vrot.slane %v1160, 1
    %v1162 = vadd.f32 %v1160, %v1161
    %v1163 = vadd.f32 %v1040, %v1043
    %v1164 = vrot.slane %v1163, 4
    %v1165 = vadd.f32 %v1163, %v1164
    %v1166 = vrot.slane %v1165, 2
    %v1167 = vadd.f32 %v1165, %v1166
    %v1168 = vrot.slane %v1167, 1
    %v1169 = vadd.f32 %v1167, %v1168
    %v1170 = vadd.f32 %v1041, %v1044
    %v1171 = vrot.slane %v1170, 4
    %v1172 = vadd.f32 %v1170, %v1171
    %v1173 = vrot.slane %v1172, 2
    %v1174 = vadd.f32 %v1172, %v1173
    %v1175 = vrot.slane %v1174, 1
    %v1176 = vadd.f32 %v1174, %v1175
    %v1177 = vadd.f32 %v1042, %v1045
    %v1178 = vrot.slane %v1177, 4
    %v1179 = vadd.f32 %v1177, %v1178
    %v1180 = vrot.slane %v1179, 2
    %v1181 = vadd.f32 %v1179, %v1180
    %v1182 = vrot.slane %v1181, 1
    %v1183 = vadd.f32 %v1181, %v1182
    %v1184 = vadd.f32 %v1046, %v1049
    %v1185 = vrot.slane %v1184, 4
    %v1186 = vadd.f32 %v1184, %v1185
    %v1187 = vrot.slane %v1186, 2
    %v1188 = vadd.f32 %v1186, %v1187
    %v1189 = vrot.slane %v1188, 1
    %v1190 = vadd.f32 %v1188, %v1189
    %v1191 = vadd.f32 %v1047, %v1050
    %v1192 = vrot.slane %v1191, 4
    %v1193 = vadd.f32 %v1191, %v1192
    %v1194 = vrot.slane %v1193, 2
    %v1195 = vadd.f32 %v1193, %v1194
    %v1196 = vrot.slane %v1195, 1
    %v1197 = vadd.f32 %v1195, %v1196
    %v1198 = vadd.f32 %v1048, %v1051
    %v1199 = vrot.slane %v1198, 4
    %v1200 = vadd.f32 %v1198, %v1199
    %v1201 = vrot.slane %v1200, 2
    %v1202 = vadd.f32 %v1200, %v1201
    %v1203 = vrot.slane %v1202, 1
    %v1204 = vadd.f32 %v1202, %v1203
    %v1205 = vadd.f32 %v1052, %v1055
    %v1206 = vrot.slane %v1205, 4
    %v1207 = vadd.f32 %v1205, %v1206
    %v1208 = vrot.slane %v1207, 2
    %v1209 = vadd.f32 %v1207, %v1208
    %v1210 = vrot.slane %v1209, 1
    %v1211 = vadd.f32 %v1209, %v1210
    %v1212 = vadd.f32 %v1053, %v1056
    %v1213 = vrot.slane %v1212, 4
    %v1214 = vadd.f32 %v1212, %v1213
    %v1215 = vrot.slane %v1214, 2
    %v1216 = vadd.f32 %v1214, %v1215
    %v1217 = vrot.slane %v1216, 1
    %v1218 = vadd.f32 %v1216, %v1217
    %v1219 = vadd.f32 %v1054, %v1057
    %v1220 = vrot.slane %v1219, 4
    %v1221 = vadd.f32 %v1219, %v1220
    %v1222 = vrot.slane %v1221, 2
    %v1223 = vadd.f32 %v1221, %v1222
    %v1224 = vrot.slane %v1223, 1
    %v1225 = vadd.f32 %v1223, %v1224
    %v1226 = vld [vmem:[%s1 + $0x100] sm:$0xff]
    %v1227 = vld [vmem:[%s1 + $0x108] sm:$0xff]
    %v1228 = vld [vmem:[%s1 + $0x110] sm:$0xff]
    %v1229 = vld [vmem:[%s1 + $0x118] sm:$0xff]
    %v1230 = vld [vmem:[%s1 + $0x120] sm:$0xff]
    %v1231 = vld [vmem:[%s1 + $0x128] sm:$0xff]
    %v1232 = vld [vmem:[%s1 + $0x130] sm:$0xff]
    %v1233 = vld [vmem:[%s1 + $0x138] sm:$0xff]
    %v1234 = vld [vmem:[%s1 + $0x140] sm:$0xff]
    %v1235 = vld [vmem:[%s1 + $0x148] sm:$0xff]
    %v1236 = vld [vmem:[%s1 + $0x150] sm:$0xff]
    %v1237 = vld [vmem:[%s1 + $0x158] sm:$0xff]
    %v1238 = vld [vmem:[%s1 + $0x160] sm:$0xff]
    %v1239 = vld [vmem:[%s1 + $0x168] sm:$0xff]
    %v1240 = vld [vmem:[%s1 + $0x170] sm:$0xff]
    %v1241 = vld [vmem:[%s1 + $0x178] sm:$0xff]
    %v1243 = vsel %vm215, %v1226, 0
    %v1246 = vsel %vm215, %v1227, 0
    %v1249 = vsel %vm215, %v1228, 0
    %v1252 = vsel %vm215, %v1229, 0
    %v1255 = vsel %vm215, %v1230, 0
    %v1258 = vsel %vm215, %v1231, 0
    %v1261 = vsel %vm215, %v1232, 0
    %v1264 = vsel %vm215, %v1233, 0
    %v1267 = vsel %vm215, %v1234, 0
    %v1270 = vsel %vm215, %v1235, 0
    %v1273 = vsel %vm215, %v1236, 0
    %v1276 = vsel %vm215, %v1237, 0
    %v1279 = vsel %vm215, %v1238, 0
    %v1282 = vsel %vm215, %v1239, 0
    %v1285 = vsel %vm215, %v1240, 0
    %v1288 = vsel %vm215, %v1241, 0
    %1290 = vmatprep.subr.mxu0 %v127
    %1291 = vmatpush1.msra.mxu0 %v126
    %1292 = vmatprep.subr.mxu0 %v130
    %1293 = vmatpush1.msra.mxu0 %v129
    %1294 = vmatprep.subr.mxu0 0.0
    %1295 = vmatpush1.msra.mxu0 0.0
    %1296 = vmatprep.subr.mxu0 0.0
    %1297 = vmatpush1.msra.mxu0 0.0
    %1298 = vmatprep.subr.mxu0 0.0
    %1299 = vmatpush1.msra.mxu0 0.0
    %1300 = vmatprep.subr.mxu0 0.0
    %1301 = vmatpush1.msra.mxu0 0.0
    %1302 = vmatprep.subr.mxu0 0.0
    %1303 = vmatpush1.msra.mxu0 0.0
    %1304 = vmatprep.subr.mxu0 0.0
    %1305 = vmatpush1.msra.mxu0 0.0
    %1306 = vmatprep.subr.mxu0 0.0
    %1307 = vmatpush1.msra.mxu0 0.0
    %1308 = vmatprep.subr.mxu0 0.0
    %1309 = vmatpush1.msra.mxu0 0.0
    %1310 = vmatprep.subr.mxu0 0.0
    %1311 = vmatpush1.msra.mxu0 0.0
    %1312 = vmatprep.subr.mxu0 0.0
    %1313 = vmatpush1.msra.mxu0 0.0
    %1314 = vmatprep.subr.mxu0 0.0
    %1315 = vmatpush1.msra.mxu0 0.0
    %1316 = vmatprep.subr.mxu0 0.0
    %1317 = vmatpush1.msra.mxu0 0.0
    %1318 = vmatprep.subr.mxu0 0.0
    %1319 = vmatpush1.msra.mxu0 0.0
    %1320 = vmatprep.subr.mxu0 0.0
    %1321 = vmatpush1.msra.mxu0 0.0
    %1322 = vmatprep.subr.mxu0 0.0
    %1323 = vmatpush1.msra.mxu0 0.0
    %1324 = vmatprep.subr.mxu0 0.0
    %1325 = vmatpush1.msra.mxu0 0.0
    %1326 = vmatprep.subr.mxu0 0.0
    %1327 = vmatpush1.msra.mxu0 0.0
    %1328 = vmatprep.subr.mxu0 0.0
    %1329 = vmatpush1.msra.mxu0 0.0
    %1330 = vmatprep.subr.mxu0 0.0
    %1331 = vmatpush1.msra.mxu0 0.0
    %1332 = vmatprep.subr.mxu0 0.0
    %1333 = vmatpush1.msra.mxu0 0.0
    %1334 = vmatprep.subr.mxu0 0.0
    %1335 = vmatpush1.msra.mxu0 0.0
    %1336 = vmatprep.subr.mxu0 0.0
    %1337 = vmatpush1.msra.mxu0 0.0
    %1338 = vmatprep.subr.mxu0 0.0
    %1339 = vmatpush1.msra.mxu0 0.0
    %1340 = vmatprep.subr.mxu0 0.0
    %1341 = vmatpush1.msra.mxu0 0.0
    %1342 = vmatprep.subr.mxu0 0.0
    %1343 = vmatpush1.msra.mxu0 0.0
    %1344 = vmatprep.subr.mxu0 0.0
    %1345 = vmatpush1.msra.mxu0 0.0
    %1346 = vmatprep.subr.mxu0 0.0
    %1347 = vmatpush1.msra.mxu0 0.0
    %1348 = vmatprep.subr.mxu0 0.0
    %1349 = vmatpush1.msra.mxu0 0.0
    %1350 = vmatprep.subr.mxu0 0.0
    %1351 = vmatpush1.msra.mxu0 0.0
    %1352 = vmatprep.subr.mxu0 0.0
    %1353 = vmatpush1.msra.mxu0 0.0
    %1354 = vmatprep.mubr.f32.mxu0 0.0
    %1355 = vmatmul.mubr.f32.gmra.mrb[0].mxu0 %v1243
    %v1356 = vpop.f32.mrb[0].mxu0
    %v1357 = vadd.f32 0.0, %v1356
    %v1358 = vpop.f32.mrb[0].mxu0
    %v1359 = vadd.f32 0.0, %v1358
    %1360 = vmatprep.mubr.f32.mxu0 0.0
    %1361 = vmatmul.mubr.f32.gmra.mrb[0].mxu0 %v1246
    %v1362 = vpop.f32.mrb[0].mxu0
    %v1363 = vadd.f32 0.0, %v1362
    %v1364 = vpop.f32.mrb[0].mxu0
    %v1365 = vadd.f32 0.0, %v1364
    %1366 = vmatprep.mubr.f32.mxu0 0.0
    %1367 = vmatmul.mubr.f32.gmra.mrb[0].mxu0 %v1249
    %v1368 = vpop.f32.mrb[0].mxu0
    %v1369 = vadd.f32 0.0, %v1368
    %v1370 = vpop.f32.mrb[0].mxu0
    %v1371 = vadd.f32 0.0, %v1370
    %1372 = vmatprep.mubr.f32.mxu0 0.0
    %1373 = vmatmul.mubr.f32.gmra.mrb[0].mxu0 %v1252
    %v1374 = vpop.f32.mrb[0].mxu0
    %v1375 = vadd.f32 0.0, %v1374
    %v1376 = vpop.f32.mrb[0].mxu0
    %v1377 = vadd.f32 0.0, %v1376
    %1378 = vmatprep.mubr.f32.mxu0 0.0
    %1379 = vmatmul.mubr.f32.gmra.mrb[0].mxu0 %v1255
    %v1380 = vpop.f32.mrb[0].mxu0
    %v1381 = vadd.f32 0.0, %v1380
    %v1382 = vpop.f32.mrb[0].mxu0
    %v1383 = vadd.f32 0.0, %v1382
    %1384 = vmatprep.mubr.f32.mxu0 0.0
    %1385 = vmatmul.mubr.f32.gmra.mrb[0].mxu0 %v1258
    %v1386 = vpop.f32.mrb[0].mxu0
    %v1387 = vadd.f32 0.0, %v1386
    %v1388 = vpop.f32.mrb[0].mxu0
    %v1389 = vadd.f32 0.0, %v1388
    %1390 = vmatprep.mubr.f32.mxu0 0.0
    %1391 = vmatmul.mubr.f32.gmra.mrb[0].mxu0 %v1261
    %v1392 = vpop.f32.mrb[0].mxu0
    %v1393 = vadd.f32 0.0, %v1392
    %v1394 = vpop.f32.mrb[0].mxu0
    %v1395 = vadd.f32 0.0, %v1394
    %1396 = vmatprep.mubr.f32.mxu0 0.0
    %1397 = vmatmul.mubr.f32.gmra.mrb[0].mxu0 %v1264
    %v1398 = vpop.f32.mrb[0].mxu0
    %v1399 = vadd.f32 0.0, %v1398
    %v1400 = vpop.f32.mrb[0].mxu0
    %v1401 = vadd.f32 0.0, %v1400
    %1402 = vmatprep.mubr.f32.mxu0 0.0
    %1403 = vmatmul.mubr.f32.gmra.mrb[0].mxu0 %v1267
    %v1404 = vpop.f32.mrb[0].mxu0
    %v1405 = vadd.f32 0.0, %v1404
    %v1406 = vpop.f32.mrb[0].mxu0
    %v1407 = vadd.f32 0.0, %v1406
    %1408 = vmatprep.mubr.f32.mxu0 0.0
    %1409 = vmatmul.mubr.f32.gmra.mrb[0].mxu0 %v1270
    %v1410 = vpop.f32.mrb[0].mxu0
    %v1411 = vadd.f32 0.0, %v1410
    %v1412 = vpop.f32.mrb[0].mxu0
    %v1413 = vadd.f32 0.0, %v1412
    %1414 = vmatprep.mubr.f32.mxu0 0.0
    %1415 = vmatmul.mubr.f32.gmra.mrb[0].mxu0 %v1273
    %v1416 = vpop.f32.mrb[0].mxu0
    %v1417 = vadd.f32 0.0, %v1416
    %v1418 = vpop.f32.mrb[0].mxu0
    %v1419 = vadd.f32 0.0, %v1418
    %1420 = vmatprep.mubr.f32.mxu0 0.0
    %1421 = vmatmul.mubr.f32.gmra.mrb[0].mxu0 %v1276
    %v1422 = vpop.f32.mrb[0].mxu0
    %v1423 = vadd.f32 0.0, %v1422
    %v1424 = vpop.f32.mrb[0].mxu0
    %v1425 = vadd.f32 0.0, %v1424
    %1426 = vmatprep.mubr.f32.mxu0 0.0
    %1427 = vmatmul.mubr.f32.gmra.mrb[0].mxu0 %v1279
    %v1428 = vpop.f32.mrb[0].mxu0
    %v1429 = vadd.f32 0.0, %v1428
    %v1430 = vpop.f32.mrb[0].mxu0
    %v1431 = vadd.f32 0.0, %v1430
    %1432 = vmatprep.mubr.f32.mxu0 0.0
    %1433 = vmatmul.mubr.f32.gmra.mrb[0].mxu0 %v1282
    %v1434 = vpop.f32.mrb[0].mxu0
    %v1435 = vadd.f32 0.0, %v1434
    %v1436 = vpop.f32.mrb[0].mxu0
    %v1437 = vadd.f32 0.0, %v1436
    %1438 = vmatprep.mubr.f32.mxu0 0.0
    %1439 = vmatmul.mubr.f32.gmra.mrb[0].mxu0 %v1285
    %v1440 = vpop.f32.mrb[0].mxu0
    %v1441 = vadd.f32 0.0, %v1440
    %v1442 = vpop.f32.mrb[0].mxu0
    %v1443 = vadd.f32 0.0, %v1442
    %1444 = vmatprep.mubr.f32.mxu0 0.0
    %1445 = vmatmul.mubr.f32.gmra.mrb[0].mxu0 %v1288
    %v1446 = vpop.f32.mrb[0].mxu0
    %v1447 = vadd.f32 0.0, %v1446
    %v1448 = vpop.f32.mrb[0].mxu0
    %v1449 = vadd.f32 0.0, %v1448
    %1450 = vdwg.mxu0
    %1451 = vmatprep.subr.mxu0 0.0
    %1452 = vmatpush1.msra.mxu0 %v128
    %1453 = vmatprep.subr.mxu0 0.0
    %1454 = vmatpush1.msra.mxu0 %v131
    %1455 = vmatprep.subr.mxu0 0.0
    %1456 = vmatpush1.msra.mxu0 0.0
    %1457 = vmatprep.subr.mxu0 0.0
    %1458 = vmatpush1.msra.mxu0 0.0
    %1459 = vmatprep.subr.mxu0 0.0
    %1460 = vmatpush1.msra.mxu0 0.0
    %1461 = vmatprep.subr.mxu0 0.0
    %1462 = vmatpush1.msra.mxu0 0.0
    %1463 = vmatprep.subr.mxu0 0.0
    %1464 = vmatpush1.msra.mxu0 0.0
    %1465 = vmatprep.subr.mxu0 0.0
    %1466 = vmatpush1.msra.mxu0 0.0
    %1467 = vmatprep.subr.mxu0 0.0
    %1468 = vmatpush1.msra.mxu0 0.0
    %1469 = vmatprep.subr.mxu0 0.0
    %1470 = vmatpush1.msra.mxu0 0.0
    %1471 = vmatprep.subr.mxu0 0.0
    %1472 = vmatpush1.msra.mxu0 0.0
    %1473 = vmatprep.subr.mxu0 0.0
    %1474 = vmatpush1.msra.mxu0 0.0
    %1475 = vmatprep.subr.mxu0 0.0
    %1476 = vmatpush1.msra.mxu0 0.0
    %1477 = vmatprep.subr.mxu0 0.0
    %1478 = vmatpush1.msra.mxu0 0.0
    %1479 = vmatprep.subr.mxu0 0.0
    %1480 = vmatpush1.msra.mxu0 0.0
    %1481 = vmatprep.subr.mxu0 0.0
    %1482 = vmatpush1.msra.mxu0 0.0
    %1483 = vmatprep.subr.mxu0 0.0
    %1484 = vmatpush1.msra.mxu0 0.0
    %1485 = vmatprep.subr.mxu0 0.0
    %1486 = vmatpush1.msra.mxu0 0.0
    %1487 = vmatprep.subr.mxu0 0.0
    %1488 = vmatpush1.msra.mxu0 0.0
    %1489 = vmatprep.subr.mxu0 0.0
    %1490 = vmatpush1.msra.mxu0 0.0
    %1491 = vmatprep.subr.mxu0 0.0
    %1492 = vmatpush1.msra.mxu0 0.0
    %1493 = vmatprep.subr.mxu0 0.0
    %1494 = vmatpush1.msra.mxu0 0.0
    %1495 = vmatprep.subr.mxu0 0.0
    %1496 = vmatpush1.msra.mxu0 0.0
    %1497 = vmatprep.subr.mxu0 0.0
    %1498 = vmatpush1.msra.mxu0 0.0
    %1499 = vmatprep.subr.mxu0 0.0
    %1500 = vmatpush1.msra.mxu0 0.0
    %1501 = vmatprep.subr.mxu0 0.0
    %1502 = vmatpush1.msra.mxu0 0.0
    %1503 = vmatprep.subr.mxu0 0.0
    %1504 = vmatpush1.msra.mxu0 0.0
    %1505 = vmatprep.subr.mxu0 0.0
    %1506 = vmatpush1.msra.mxu0 0.0
    %1507 = vmatprep.subr.mxu0 0.0
    %1508 = vmatpush1.msra.mxu0 0.0
    %1509 = vmatprep.subr.mxu0 0.0
    %1510 = vmatpush1.msra.mxu0 0.0
    %1511 = vmatprep.subr.mxu0 0.0
    %1512 = vmatpush1.msra.mxu0 0.0
    %1513 = vmatprep.subr.mxu0 0.0
    %1514 = vmatpush1.msra.mxu0 0.0
    %1515 = vmatprep.mubr.f32.mxu0 0.0
    %1516 = vmatmul.mubr.f32.gmra.mrb[0].mxu0 %v1243
    %v1517 = vpop.f32.mrb[0].mxu0
    %v1518 = vadd.f32 0.0, %v1517
    %v1519 = vpop.f32.mrb[0].mxu0
    %1520 = vmatprep.mubr.f32.mxu0 0.0
    %1521 = vmatmul.mubr.f32.gmra.mrb[0].mxu0 %v1246
    %v1522 = vpop.f32.mrb[0].mxu0
    %v1523 = vadd.f32 0.0, %v1522
    %v1524 = vpop.f32.mrb[0].mxu0
    %1525 = vmatprep.mubr.f32.mxu0 0.0
    %1526 = vmatmul.mubr.f32.gmra.mrb[0].mxu0 %v1249
    %v1527 = vpop.f32.mrb[0].mxu0
    %v1528 = vadd.f32 0.0, %v1527
    %v1529 = vpop.f32.mrb[0].mxu0
    %1530 = vmatprep.mubr.f32.mxu0 0.0
    %1531 = vmatmul.mubr.f32.gmra.mrb[0].mxu0 %v1252
    %v1532 = vpop.f32.mrb[0].mxu0
    %v1533 = vadd.f32 0.0, %v1532
    %v1534 = vpop.f32.mrb[0].mxu0
    %1535 = vmatprep.mubr.f32.mxu0 0.0
    %1536 = vmatmul.mubr.f32.gmra.mrb[0].mxu0 %v1255
    %v1537 = vpop.f32.mrb[0].mxu0
    %v1538 = vadd.f32 0.0, %v1537
    %v1539 = vpop.f32.mrb[0].mxu0
    %1540 = vmatprep.mubr.f32.mxu0 0.0
    %1541 = vmatmul.mubr.f32.gmra.mrb[0].mxu0 %v1258
    %v1542 = vpop.f32.mrb[0].mxu0
    %v1543 = vadd.f32 0.0, %v1542
    %v1544 = vpop.f32.mrb[0].mxu0
    %1545 = vmatprep.mubr.f32.mxu0 0.0
    %1546 = vmatmul.mubr.f32.gmra.mrb[0].mxu0 %v1261
    %v1547 = vpop.f32.mrb[0].mxu0
    %v1548 = vadd.f32 0.0, %v1547
    %v1549 = vpop.f32.mrb[0].mxu0
    %1550 = vmatprep.mubr.f32.mxu0 0.0
    %1551 = vmatmul.mubr.f32.gmra.mrb[0].mxu0 %v1264
    %v1552 = vpop.f32.mrb[0].mxu0
    %v1553 = vadd.f32 0.0, %v1552
    %v1554 = vpop.f32.mrb[0].mxu0
    %1555 = vmatprep.mubr.f32.mxu0 0.0
    %1556 = vmatmul.mubr.f32.gmra.mrb[0].mxu0 %v1267
    %v1557 = vpop.f32.mrb[0].mxu0
    %v1558 = vadd.f32 0.0, %v1557
    %v1559 = vpop.f32.mrb[0].mxu0
    %1560 = vmatprep.mubr.f32.mxu0 0.0
    %1561 = vmatmul.mubr.f32.gmra.mrb[0].mxu0 %v1270
    %v1562 = vpop.f32.mrb[0].mxu0
    %v1563 = vadd.f32 0.0, %v1562
    %v1564 = vpop.f32.mrb[0].mxu0
    %1565 = vmatprep.mubr.f32.mxu0 0.0
    %1566 = vmatmul.mubr.f32.gmra.mrb[0].mxu0 %v1273
    %v1567 = vpop.f32.mrb[0].mxu0
    %v1568 = vadd.f32 0.0, %v1567
    %v1569 = vpop.f32.mrb[0].mxu0
    %1570 = vmatprep.mubr.f32.mxu0 0.0
    %1571 = vmatmul.mubr.f32.gmra.mrb[0].mxu0 %v1276
    %v1572 = vpop.f32.mrb[0].mxu0
    %v1573 = vadd.f32 0.0, %v1572
    %v1574 = vpop.f32.mrb[0].mxu0
    %1575 = vmatprep.mubr.f32.mxu0 0.0
    %1576 = vmatmul.mubr.f32.gmra.mrb[0].mxu0 %v1279
    %v1577 = vpop.f32.mrb[0].mxu0
    %v1578 = vadd.f32 0.0, %v1577
    %v1579 = vpop.f32.mrb[0].mxu0
    %1580 = vmatprep.mubr.f32.mxu0 0.0
    %1581 = vmatmul.mubr.f32.gmra.mrb[0].mxu0 %v1282
    %v1582 = vpop.f32.mrb[0].mxu0
    %v1583 = vadd.f32 0.0, %v1582
    %v1584 = vpop.f32.mrb[0].mxu0
    %1585 = vmatprep.mubr.f32.mxu0 0.0
    %1586 = vmatmul.mubr.f32.gmra.mrb[0].mxu0 %v1285
    %v1587 = vpop.f32.mrb[0].mxu0
    %v1588 = vadd.f32 0.0, %v1587
    %v1589 = vpop.f32.mrb[0].mxu0
    %1590 = vmatprep.mubr.f32.mxu0 0.0
    %1591 = vmatmul.mubr.f32.gmra.mrb[0].mxu0 %v1288
    %v1592 = vpop.f32.mrb[0].mxu0
    %v1593 = vadd.f32 0.0, %v1592
    %v1594 = vpop.f32.mrb[0].mxu0
    %1595 = vdwg.mxu0
    %v1596 = vmul.f32 %v1357, %v177
    %v1597 = vmul.f32 %v1359, %v178
    %v1598 = vmul.f32 %v1518, %v179
    %v1599 = vmul.f32 %v1363, %v180
    %v1600 = vmul.f32 %v1365, %v181
    %v1601 = vmul.f32 %v1523, %v182
    %v1602 = vmul.f32 %v1369, %v177
    %v1603 = vmul.f32 %v1371, %v178
    %v1604 = vmul.f32 %v1528, %v179
    %v1605 = vmul.f32 %v1375, %v180
    %v1606 = vmul.f32 %v1377, %v181
    %v1607 = vmul.f32 %v1533, %v182
    %v1608 = vmul.f32 %v1381, %v177
    %v1609 = vmul.f32 %v1383, %v178
    %v1610 = vmul.f32 %v1538, %v179
    %v1611 = vmul.f32 %v1387, %v180
    %v1612 = vmul.f32 %v1389, %v181
    %v1613 = vmul.f32 %v1543, %v182
    %v1614 = vmul.f32 %v1393, %v177
    %v1615 = vmul.f32 %v1395, %v178
    %v1616 = vmul.f32 %v1548, %v179
    %v1617 = vmul.f32 %v1399, %v180
    %v1618 = vmul.f32 %v1401, %v181
    %v1619 = vmul.f32 %v1553, %v182
    %v1620 = vmul.f32 %v1405, %v177
    %v1621 = vmul.f32 %v1407, %v178
    %v1622 = vmul.f32 %v1558, %v179
    %v1623 = vmul.f32 %v1411, %v180
    %v1624 = vmul.f32 %v1413, %v181
    %v1625 = vmul.f32 %v1563, %v182
    %v1626 = vmul.f32 %v1417, %v177
    %v1627 = vmul.f32 %v1419, %v178
    %v1628 = vmul.f32 %v1568, %v179
    %v1629 = vmul.f32 %v1423, %v180
    %v1630 = vmul.f32 %v1425, %v181
    %v1631 = vmul.f32 %v1573, %v182
    %v1632 = vmul.f32 %v1429, %v177
    %v1633 = vmul.f32 %v1431, %v178
    %v1634 = vmul.f32 %v1578, %v179
    %v1635 = vmul.f32 %v1435, %v180
    %v1636 = vmul.f32 %v1437, %v181
    %v1637 = vmul.f32 %v1583, %v182
    %v1638 = vmul.f32 %v1441, %v177
    %v1639 = vmul.f32 %v1443, %v178
    %v1640 = vmul.f32 %v1588, %v179
    %v1641 = vmul.f32 %v1447, %v180
    %v1642 = vmul.f32 %v1449, %v181
    %v1643 = vmul.f32 %v1593, %v182
    %v1644 = vadd.f32 %v1596, %v1599
    %v1645 = vrot.slane %v1644, 4
    %v1646 = vadd.f32 %v1644, %v1645
    %v1647 = vrot.slane %v1646, 2
    %v1648 = vadd.f32 %v1646, %v1647
    %v1649 = vrot.slane %v1648, 1
    %v1650 = vadd.f32 %v1648, %v1649
    %v1651 = vadd.f32 %v1597, %v1600
    %v1652 = vrot.slane %v1651, 4
    %v1653 = vadd.f32 %v1651, %v1652
    %v1654 = vrot.slane %v1653, 2
    %v1655 = vadd.f32 %v1653, %v1654
    %v1656 = vrot.slane %v1655, 1
    %v1657 = vadd.f32 %v1655, %v1656
    %v1658 = vadd.f32 %v1598, %v1601
    %v1659 = vrot.slane %v1658, 4
    %v1660 = vadd.f32 %v1658, %v1659
    %v1661 = vrot.slane %v1660, 2
    %v1662 = vadd.f32 %v1660, %v1661
    %v1663 = vrot.slane %v1662, 1
    %v1664 = vadd.f32 %v1662, %v1663
    %v1665 = vadd.f32 %v1602, %v1605
    %v1666 = vrot.slane %v1665, 4
    %v1667 = vadd.f32 %v1665, %v1666
    %v1668 = vrot.slane %v1667, 2
    %v1669 = vadd.f32 %v1667, %v1668
    %v1670 = vrot.slane %v1669, 1
    %v1671 = vadd.f32 %v1669, %v1670
    %v1672 = vadd.f32 %v1603, %v1606
    %v1673 = vrot.slane %v1672, 4
    %v1674 = vadd.f32 %v1672, %v1673
    %v1675 = vrot.slane %v1674, 2
    %v1676 = vadd.f32 %v1674, %v1675
    %v1677 = vrot.slane %v1676, 1
    %v1678 = vadd.f32 %v1676, %v1677
    %v1679 = vadd.f32 %v1604, %v1607
    %v1680 = vrot.slane %v1679, 4
    %v1681 = vadd.f32 %v1679, %v1680
    %v1682 = vrot.slane %v1681, 2
    %v1683 = vadd.f32 %v1681, %v1682
    %v1684 = vrot.slane %v1683, 1
    %v1685 = vadd.f32 %v1683, %v1684
    %v1686 = vadd.f32 %v1608, %v1611
    %v1687 = vrot.slane %v1686, 4
    %v1688 = vadd.f32 %v1686, %v1687
    %v1689 = vrot.slane %v1688, 2
    %v1690 = vadd.f32 %v1688, %v1689
    %v1691 = vrot.slane %v1690, 1
    %v1692 = vadd.f32 %v1690, %v1691
    %v1693 = vadd.f32 %v1609, %v1612
    %v1694 = vrot.slane %v1693, 4
    %v1695 = vadd.f32 %v1693, %v1694
    %v1696 = vrot.slane %v1695, 2
    %v1697 = vadd.f32 %v1695, %v1696
    %v1698 = vrot.slane %v1697, 1
    %v1699 = vadd.f32 %v1697, %v1698
    %v1700 = vadd.f32 %v1610, %v1613
    %v1701 = vrot.slane %v1700, 4
    %v1702 = vadd.f32 %v1700, %v1701
    %v1703 = vrot.slane %v1702, 2
    %v1704 = vadd.f32 %v1702, %v1703
    %v1705 = vrot.slane %v1704, 1
    %v1706 = vadd.f32 %v1704, %v1705
    %v1707 = vadd.f32 %v1614, %v1617
    %v1708 = vrot.slane %v1707, 4
    %v1709 = vadd.f32 %v1707, %v1708
    %v1710 = vrot.slane %v1709, 2
    %v1711 = vadd.f32 %v1709, %v1710
    %v1712 = vrot.slane %v1711, 1
    %v1713 = vadd.f32 %v1711, %v1712
    %v1714 = vadd.f32 %v1615, %v1618
    %v1715 = vrot.slane %v1714, 4
    %v1716 = vadd.f32 %v1714, %v1715
    %v1717 = vrot.slane %v1716, 2
    %v1718 = vadd.f32 %v1716, %v1717
    %v1719 = vrot.slane %v1718, 1
    %v1720 = vadd.f32 %v1718, %v1719
    %v1721 = vadd.f32 %v1616, %v1619
    %v1722 = vrot.slane %v1721, 4
    %v1723 = vadd.f32 %v1721, %v1722
    %v1724 = vrot.slane %v1723, 2
    %v1725 = vadd.f32 %v1723, %v1724
    %v1726 = vrot.slane %v1725, 1
    %v1727 = vadd.f32 %v1725, %v1726
    %v1728 = vadd.f32 %v1620, %v1623
    %v1729 = vrot.slane %v1728, 4
    %v1730 = vadd.f32 %v1728, %v1729
    %v1731 = vrot.slane %v1730, 2
    %v1732 = vadd.f32 %v1730, %v1731
    %v1733 = vrot.slane %v1732, 1
    %v1734 = vadd.f32 %v1732, %v1733
    %v1735 = vadd.f32 %v1621, %v1624
    %v1736 = vrot.slane %v1735, 4
    %v1737 = vadd.f32 %v1735, %v1736
    %v1738 = vrot.slane %v1737, 2
    %v1739 = vadd.f32 %v1737, %v1738
    %v1740 = vrot.slane %v1739, 1
    %v1741 = vadd.f32 %v1739, %v1740
    %v1742 = vadd.f32 %v1622, %v1625
    %v1743 = vrot.slane %v1742, 4
    %v1744 = vadd.f32 %v1742, %v1743
    %v1745 = vrot.slane %v1744, 2
    %v1746 = vadd.f32 %v1744, %v1745
    %v1747 = vrot.slane %v1746, 1
    %v1748 = vadd.f32 %v1746, %v1747
    %v1749 = vadd.f32 %v1626, %v1629
    %v1750 = vrot.slane %v1749, 4
    %v1751 = vadd.f32 %v1749, %v1750
    %v1752 = vrot.slane %v1751, 2
    %v1753 = vadd.f32 %v1751, %v1752
    %v1754 = vrot.slane %v1753, 1
    %v1755 = vadd.f32 %v1753, %v1754
    %v1756 = vadd.f32 %v1627, %v1630
    %v1757 = vrot.slane %v1756, 4
    %v1758 = vadd.f32 %v1756, %v1757
    %v1759 = vrot.slane %v1758, 2
    %v1760 = vadd.f32 %v1758, %v1759
    %v1761 = vrot.slane %v1760, 1
    %v1762 = vadd.f32 %v1760, %v1761
    %v1763 = vadd.f32 %v1628, %v1631
    %v1764 = vrot.slane %v1763, 4
    %v1765 = vadd.f32 %v1763, %v1764
    %v1766 = vrot.slane %v1765, 2
    %v1767 = vadd.f32 %v1765, %v1766
    %v1768 = vrot.slane %v1767, 1
    %v1769 = vadd.f32 %v1767, %v1768
    %v1770 = vadd.f32 %v1632, %v1635
    %v1771 = vrot.slane %v1770, 4
    %v1772 = vadd.f32 %v1770, %v1771
    %v1773 = vrot.slane %v1772, 2
    %v1774 = vadd.f32 %v1772, %v1773
    %v1775 = vrot.slane %v1774, 1
    %v1776 = vadd.f32 %v1774, %v1775
    %v1777 = vadd.f32 %v1633, %v1636
    %v1778 = vrot.slane %v1777, 4
    %v1779 = vadd.f32 %v1777, %v1778
    %v1780 = vrot.slane %v1779, 2
    %v1781 = vadd.f32 %v1779, %v1780
    %v1782 = vrot.slane %v1781, 1
    %v1783 = vadd.f32 %v1781, %v1782
    %v1784 = vadd.f32 %v1634, %v1637
    %v1785 = vrot.slane %v1784, 4
    %v1786 = vadd.f32 %v1784, %v1785
    %v1787 = vrot.slane %v1786, 2
    %v1788 = vadd.f32 %v1786, %v1787
    %v1789 = vrot.slane %v1788, 1
    %v1790 = vadd.f32 %v1788, %v1789
    %v1791 = vadd.f32 %v1638, %v1641
    %v1792 = vrot.slane %v1791, 4
    %v1793 = vadd.f32 %v1791, %v1792
    %v1794 = vrot.slane %v1793, 2
    %v1795 = vadd.f32 %v1793, %v1794
    %v1796 = vrot.slane %v1795, 1
    %v1797 = vadd.f32 %v1795, %v1796
    %v1798 = vadd.f32 %v1639, %v1642
    %v1799 = vrot.slane %v1798, 4
    %v1800 = vadd.f32 %v1798, %v1799
    %v1801 = vrot.slane %v1800, 2
    %v1802 = vadd.f32 %v1800, %v1801
    %v1803 = vrot.slane %v1802, 1
    %v1804 = vadd.f32 %v1802, %v1803
    %v1805 = vadd.f32 %v1640, %v1643
    %v1806 = vrot.slane %v1805, 4
    %v1807 = vadd.f32 %v1805, %v1806
    %v1808 = vrot.slane %v1807, 2
    %v1809 = vadd.f32 %v1807, %v1808
    %v1810 = vrot.slane %v1809, 1
    %v1811 = vadd.f32 %v1809, %v1810
    %v1812 = vmul.f32 %v848, %v1064
    %v1813 = vmul.f32 %v855, %v1071
    %v1814 = vmul.f32 %v862, %v1078
    %v1815 = vmul.f32 %v869, %v1085
    %v1816 = vmul.f32 %v876, %v1092
    %v1817 = vmul.f32 %v883, %v1099
    %v1818 = vmul.f32 %v890, %v1106
    %v1819 = vmul.f32 %v897, %v1113
    %v1820 = vmul.f32 %v904, %v1120
    %v1821 = vmul.f32 %v911, %v1127
    %v1822 = vmul.f32 %v918, %v1134
    %v1823 = vmul.f32 %v925, %v1141
    %v1824 = vmul.f32 %v932, %v1148
    %v1825 = vmul.f32 %v939, %v1155
    %v1826 = vmul.f32 %v946, %v1162
    %v1827 = vmul.f32 %v953, %v1169
    %v1828 = vmul.f32 %v960, %v1176
    %v1829 = vmul.f32 %v967, %v1183
    %v1830 = vmul.f32 %v974, %v1190
    %v1831 = vmul.f32 %v981, %v1197
    %v1832 = vmul.f32 %v988, %v1204
    %v1833 = vmul.f32 %v995, %v1211
    %v1834 = vmul.f32 %v1002, %v1218
    %v1835 = vmul.f32 %v1009, %v1225
    %v1836 = vmul.f32 %v1812, %v1650
    %v1837 = vmul.f32 %v1813, %v1657
    %v1838 = vmul.f32 %v1814, %v1664
    %v1839 = vmul.f32 %v1815, %v1671
    %v1840 = vmul.f32 %v1816, %v1678
    %v1841 = vmul.f32 %v1817, %v1685
    %v1842 = vmul.f32 %v1818, %v1692
    %v1843 = vmul.f32 %v1819, %v1699
    %v1844 = vmul.f32 %v1820, %v1706
    %v1845 = vmul.f32 %v1821, %v1713
    %v1846 = vmul.f32 %v1822, %v1720
    %v1847 = vmul.f32 %v1823, %v1727
    %v1848 = vmul.f32 %v1824, %v1734
    %v1849 = vmul.f32 %v1825, %v1741
    %v1850 = vmul.f32 %v1826, %v1748
    %v1851 = vmul.f32 %v1827, %v1755
    %v1852 = vmul.f32 %v1828, %v1762
    %v1853 = vmul.f32 %v1829, %v1769
    %v1854 = vmul.f32 %v1830, %v1776
    %v1855 = vmul.f32 %v1831, %v1783
    %v1856 = vmul.f32 %v1832, %v1790
    %v1857 = vmul.f32 %v1833, %v1797
    %v1858 = vmul.f32 %v1834, %v1804
    %v1859 = vmul.f32 %v1835, %v1811
    %vm1884 = vcmask 1041409
    %v1885 = vsel %vm1884, %v1839, %v1836
    %vm1886 = vcmask 1042434
    %v1887 = vsel %vm1886, %v1842, %v1885
    %vm1888 = vcmask 1043459
    %v1889 = vsel %vm1888, %v1845, %v1887
    %vm1890 = vcmask 1044484
    %v1891 = vsel %vm1890, %v1848, %v1889
    %vm1892 = vcmask 1045509
    %v1893 = vsel %vm1892, %v1851, %v1891
    %vm1894 = vcmask 1046534
    %v1895 = vsel %vm1894, %v1854, %v1893
    %vm1896 = vcmask 1047559
    %v1897 = vsel %vm1896, %v1857, %v1895
    %v1898 = vsel %vm1884, %v1840, %v1837
    %v1899 = vsel %vm1886, %v1843, %v1898
    %v1900 = vsel %vm1888, %v1846, %v1899
    %v1901 = vsel %vm1890, %v1849, %v1900
    %v1902 = vsel %vm1892, %v1852, %v1901
    %v1903 = vsel %vm1894, %v1855, %v1902
    %v1904 = vsel %vm1896, %v1858, %v1903
    %v1905 = vsel %vm1884, %v1841, %v1838
    %v1906 = vsel %vm1886, %v1844, %v1905
    %v1907 = vsel %vm1888, %v1847, %v1906
    %v1908 = vsel %vm1890, %v1850, %v1907
    %v1909 = vsel %vm1892, %v1853, %v1908
    %v1910 = vsel %vm1894, %v1856, %v1909
    %v1911 = vsel %vm1896, %v1859, %v1910
    %1915 = vst [vmem:[#allocation2] sm:$0xff] %v1897
    %1916 = vst [vmem:[#allocation2 + $0x8] sm:$0xff] %v1904
    %1917 = vst [vmem:[#allocation2 + $0x10] sm:$0xff] %v1911
    %v1918 = vmul.f32 %v15, 31.0
    %v1919 = vmul.f32 %v16, 31.0
    %v1920 = vmax.f32 %v1918, 0.0
    %v1921 = vmax.f32 %v1919, 0.0
    %v1922 = vmin.f32 %v1920, 31.0
    %v1923 = vmin.f32 %v1921, 31.0
    %v1924 = vadd.s32 %v24, 16
    %v1925 = vadd.s32 %v24, 24
    %v1926 = vcvt.s32.f32 %v1924
    %v1927 = vcvt.s32.f32 %v1925
    %v1930 = vlaneseq
    %v1931 = vshrl.u32 %v1930, 7
    %v1932 = vsub.s32 0, %v1931
    %v1933 = vrot.slane %v1922, %v1932
    %v1934 = vlaneseq
    %v1935 = vshrl.u32 %v1934, 7
    %v1936 = vsub.s32 4, %v1935
    %v1937 = vrot.slane %v1922, %v1936
    %v1938 = vlaneseq
    %v1939 = vshrl.u32 %v1938, 7
    %v1940 = vsub.s32 0, %v1939
    %v1941 = vrot.slane %v1923, %v1940
    %v1945 = vlaneseq
    %v1946 = vshrl.u32 %v1945, 7
    %v1947 = vsub.s32 0, %v1946
    %v1948 = vrot.slane %v1933, %v1947
    %v1949 = vlaneseq
    %v1950 = vshrl.u32 %v1949, 7
    %v1951 = vsub.s32 0, %v1950
    %v1952 = vrot.slane %v1937, %v1951
    %v1953 = vlaneseq
    %v1954 = vshrl.u32 %v1953, 7
    %v1955 = vsub.s32 0, %v1954
    %v1956 = vrot.slane %v1941, %v1955
    %v1957 = vsub.f32 %v1948, %v26
    %v1958 = vsub.f32 %v1952, %v26
    %v1959 = vsub.f32 %v1956, %v26
    %v1960 = vsub.f32 %v1948, %v27
    %v1961 = vsub.f32 %v1952, %v27
    %v1962 = vsub.f32 %v1956, %v27
    %v1963 = vsub.f32 %v1948, %v1926
    %v1964 = vsub.f32 %v1952, %v1926
    %v1965 = vsub.f32 %v1956, %v1926
    %v1966 = vsub.f32 %v1948, %v1927
    %v1967 = vsub.f32 %v1952, %v1927
    %v1968 = vsub.f32 %v1956, %v1927
    %v1969 = vand.u32 2147483647, %v1957
    %v1970 = vand.u32 2147483647, %v1958
    %v1971 = vand.u32 2147483647, %v1959
    %v1972 = vand.u32 2147483647, %v1960
    %v1973 = vand.u32 2147483647, %v1961
    %v1974 = vand.u32 2147483647, %v1962
    %v1975 = vand.u32 2147483647, %v1963
    %v1976 = vand.u32 2147483647, %v1964
    %v1977 = vand.u32 2147483647, %v1965
    %v1978 = vand.u32 2147483647, %v1966
    %v1979 = vand.u32 2147483647, %v1967
    %v1980 = vand.u32 2147483647, %v1968
    %v1981 = vsub.f32 1.0, %v1969
    %v1982 = vsub.f32 1.0, %v1970
    %v1983 = vsub.f32 1.0, %v1971
    %v1984 = vsub.f32 1.0, %v1972
    %v1985 = vsub.f32 1.0, %v1973
    %v1986 = vsub.f32 1.0, %v1974
    %v1987 = vsub.f32 1.0, %v1975
    %v1988 = vsub.f32 1.0, %v1976
    %v1989 = vsub.f32 1.0, %v1977
    %v1990 = vsub.f32 1.0, %v1978
    %v1991 = vsub.f32 1.0, %v1979
    %v1992 = vsub.f32 1.0, %v1980
    %v1993 = vmax.f32 %v1981, 0.0
    %v1994 = vmax.f32 %v1982, 0.0
    %v1995 = vmax.f32 %v1983, 0.0
    %v1996 = vmax.f32 %v1984, 0.0
    %v1997 = vmax.f32 %v1985, 0.0
    %v1998 = vmax.f32 %v1986, 0.0
    %v1999 = vmax.f32 %v1987, 0.0
    %v2000 = vmax.f32 %v1988, 0.0
    %v2001 = vmax.f32 %v1989, 0.0
    %v2002 = vmax.f32 %v1990, 0.0
    %v2003 = vmax.f32 %v1991, 0.0
    %v2004 = vmax.f32 %v1992, 0.0
    %v2005 = vlaneseq
    %v2006 = vshrl.u32 %v2005, 7
    %v2007 = vsub.s32 1, %v2006
    %v2008 = vrot.slane %v1922, %v2007
    %v2009 = vlaneseq
    %v2010 = vshrl.u32 %v2009, 7
    %v2011 = vsub.s32 5, %v2010
    %v2012 = vrot.slane %v1922, %v2011
    %v2013 = vlaneseq
    %v2014 = vshrl.u32 %v2013, 7
    %v2015 = vsub.s32 1, %v2014
    %v2016 = vrot.slane %v1923, %v2015
    %v2020 = vlaneseq
    %v2021 = vshrl.u32 %v2020, 7
    %v2022 = vsub.s32 1, %v2021
    %v2023 = vrot.slane %v2008, %v2022
    %v2024 = vlaneseq
    %v2025 = vshrl.u32 %v2024, 7
    %v2026 = vsub.s32 1, %v2025
    %v2027 = vrot.slane %v2012, %v2026
    %v2028 = vlaneseq
    %v2029 = vshrl.u32 %v2028, 7
    %v2030 = vsub.s32 1, %v2029
    %v2031 = vrot.slane %v2016, %v2030
    %v2032 = vsub.f32 %v2023, %v26
    %v2033 = vsub.f32 %v2027, %v26
    %v2034 = vsub.f32 %v2031, %v26
    %v2035 = vsub.f32 %v2023, %v27
    %v2036 = vsub.f32 %v2027, %v27
    %v2037 = vsub.f32 %v2031, %v27
    %v2038 = vsub.f32 %v2023, %v1926
    %v2039 = vsub.f32 %v2027, %v1926
    %v2040 = vsub.f32 %v2031, %v1926
    %v2041 = vsub.f32 %v2023, %v1927
    %v2042 = vsub.f32 %v2027, %v1927
    %v2043 = vsub.f32 %v2031, %v1927
    %v2044 = vand.u32 2147483647, %v2032
    %v2045 = vand.u32 2147483647, %v2033
    %v2046 = vand.u32 2147483647, %v2034
    %v2047 = vand.u32 2147483647, %v2035
    %v2048 = vand.u32 2147483647, %v2036
    %v2049 = vand.u32 2147483647, %v2037
    %v2050 = vand.u32 2147483647, %v2038
    %v2051 = vand.u32 2147483647, %v2039
    %v2052 = vand.u32 2147483647, %v2040
    %v2053 = vand.u32 2147483647, %v2041
    %v2054 = vand.u32 2147483647, %v2042
    %v2055 = vand.u32 2147483647, %v2043
    %v2056 = vsub.f32 1.0, %v2044
    %v2057 = vsub.f32 1.0, %v2045
    %v2058 = vsub.f32 1.0, %v2046
    %v2059 = vsub.f32 1.0, %v2047
    %v2060 = vsub.f32 1.0, %v2048
    %v2061 = vsub.f32 1.0, %v2049
    %v2062 = vsub.f32 1.0, %v2050
    %v2063 = vsub.f32 1.0, %v2051
    %v2064 = vsub.f32 1.0, %v2052
    %v2065 = vsub.f32 1.0, %v2053
    %v2066 = vsub.f32 1.0, %v2054
    %v2067 = vsub.f32 1.0, %v2055
    %v2068 = vmax.f32 %v2056, 0.0
    %v2069 = vmax.f32 %v2057, 0.0
    %v2070 = vmax.f32 %v2058, 0.0
    %v2071 = vmax.f32 %v2059, 0.0
    %v2072 = vmax.f32 %v2060, 0.0
    %v2073 = vmax.f32 %v2061, 0.0
    %v2074 = vmax.f32 %v2062, 0.0
    %v2075 = vmax.f32 %v2063, 0.0
    %v2076 = vmax.f32 %v2064, 0.0
    %v2077 = vmax.f32 %v2065, 0.0
    %v2078 = vmax.f32 %v2066, 0.0
    %v2079 = vmax.f32 %v2067, 0.0
    %v2080 = vlaneseq
    %v2081 = vshrl.u32 %v2080, 7
    %v2082 = vsub.s32 2, %v2081
    %v2083 = vrot.slane %v1922, %v2082
    %v2084 = vlaneseq
    %v2085 = vshrl.u32 %v2084, 7
    %v2086 = vsub.s32 6, %v2085
    %v2087 = vrot.slane %v1922, %v2086
    %v2088 = vlaneseq
    %v2089 = vshrl.u32 %v2088, 7
    %v2090 = vsub.s32 2, %v2089
    %v2091 = vrot.slane %v1923, %v2090
    %v2095 = vlaneseq
    %v2096 = vshrl.u32 %v2095, 7
    %v2097 = vsub.s32 2, %v2096
    %v2098 = vrot.slane %v2083, %v2097
    %v2099 = vlaneseq
    %v2100 = vshrl.u32 %v2099, 7
    %v2101 = vsub.s32 2, %v2100
    %v2102 = vrot.slane %v2087, %v2101
    %v2103 = vlaneseq
    %v2104 = vshrl.u32 %v2103, 7
    %v2105 = vsub.s32 2, %v2104
    %v2106 = vrot.slane %v2091, %v2105
    %v2107 = vsub.f32 %v2098, %v26
    %v2108 = vsub.f32 %v2102, %v26
    %v2109 = vsub.f32 %v2106, %v26
    %v2110 = vsub.f32 %v2098, %v27
    %v2111 = vsub.f32 %v2102, %v27
    %v2112 = vsub.f32 %v2106, %v27
    %v2113 = vsub.f32 %v2098, %v1926
    %v2114 = vsub.f32 %v2102, %v1926
    %v2115 = vsub.f32 %v2106, %v1926
    %v2116 = vsub.f32 %v2098, %v1927
    %v2117 = vsub.f32 %v2102, %v1927
    %v2118 = vsub.f32 %v2106, %v1927
    %v2119 = vand.u32 2147483647, %v2107
    %v2120 = vand.u32 2147483647, %v2108
    %v2121 = vand.u32 2147483647, %v2109
    %v2122 = vand.u32 2147483647, %v2110
    %v2123 = vand.u32 2147483647, %v2111
    %v2124 = vand.u32 2147483647, %v2112
    %v2125 = vand.u32 2147483647, %v2113
    %v2126 = vand.u32 2147483647, %v2114
    %v2127 = vand.u32 2147483647, %v2115
    %v2128 = vand.u32 2147483647, %v2116
    %v2129 = vand.u32 2147483647, %v2117
    %v2130 = vand.u32 2147483647, %v2118
    %v2131 = vsub.f32 1.0, %v2119
    %v2132 = vsub.f32 1.0, %v2120
    %v2133 = vsub.f32 1.0, %v2121
    %v2134 = vsub.f32 1.0, %v2122
    %v2135 = vsub.f32 1.0, %v2123
    %v2136 = vsub.f32 1.0, %v2124
    %v2137 = vsub.f32 1.0, %v2125
    %v2138 = vsub.f32 1.0, %v2126
    %v2139 = vsub.f32 1.0, %v2127
    %v2140 = vsub.f32 1.0, %v2128
    %v2141 = vsub.f32 1.0, %v2129
    %v2142 = vsub.f32 1.0, %v2130
    %v2143 = vmax.f32 %v2131, 0.0
    %v2144 = vmax.f32 %v2132, 0.0
    %v2145 = vmax.f32 %v2133, 0.0
    %v2146 = vmax.f32 %v2134, 0.0
    %v2147 = vmax.f32 %v2135, 0.0
    %v2148 = vmax.f32 %v2136, 0.0
    %v2149 = vmax.f32 %v2137, 0.0
    %v2150 = vmax.f32 %v2138, 0.0
    %v2151 = vmax.f32 %v2139, 0.0
    %v2152 = vmax.f32 %v2140, 0.0
    %v2153 = vmax.f32 %v2141, 0.0
    %v2154 = vmax.f32 %v2142, 0.0
    %v2155 = vld [vmem:[%s2] sm:$0xff]
    %v2156 = vld [vmem:[%s2 + $0x8] sm:$0xff]
    %v2157 = vld [vmem:[%s2 + $0x10] sm:$0xff]
    %v2158 = vld [vmem:[%s2 + $0x18] sm:$0xff]
    %v2159 = vld [vmem:[%s2 + $0x20] sm:$0xff]
    %v2160 = vld [vmem:[%s2 + $0x28] sm:$0xff]
    %v2161 = vld [vmem:[%s2 + $0x30] sm:$0xff]
    %v2162 = vld [vmem:[%s2 + $0x38] sm:$0xff]
    %v2163 = vld [vmem:[%s2 + $0x40] sm:$0xff]
    %v2164 = vld [vmem:[%s2 + $0x48] sm:$0xff]
    %v2165 = vld [vmem:[%s2 + $0x50] sm:$0xff]
    %v2166 = vld [vmem:[%s2 + $0x58] sm:$0xff]
    %v2167 = vld [vmem:[%s2 + $0x60] sm:$0xff]
    %v2168 = vld [vmem:[%s2 + $0x68] sm:$0xff]
    %v2169 = vld [vmem:[%s2 + $0x70] sm:$0xff]
    %v2170 = vld [vmem:[%s2 + $0x78] sm:$0xff]
    %v2171 = vld [vmem:[%s2 + $0x80] sm:$0xff]
    %v2172 = vld [vmem:[%s2 + $0x88] sm:$0xff]
    %v2173 = vld [vmem:[%s2 + $0x90] sm:$0xff]
    %v2174 = vld [vmem:[%s2 + $0x98] sm:$0xff]
    %v2175 = vld [vmem:[%s2 + $0xa0] sm:$0xff]
    %v2176 = vld [vmem:[%s2 + $0xa8] sm:$0xff]
    %v2177 = vld [vmem:[%s2 + $0xb0] sm:$0xff]
    %v2178 = vld [vmem:[%s2 + $0xb8] sm:$0xff]
    %v2179 = vld [vmem:[%s2 + $0xc0] sm:$0xff]
    %v2180 = vld [vmem:[%s2 + $0xc8] sm:$0xff]
    %v2181 = vld [vmem:[%s2 + $0xd0] sm:$0xff]
    %v2182 = vld [vmem:[%s2 + $0xd8] sm:$0xff]
    %v2183 = vld [vmem:[%s2 + $0xe0] sm:$0xff]
    %v2184 = vld [vmem:[%s2 + $0xe8] sm:$0xff]
    %v2185 = vld [vmem:[%s2 + $0xf0] sm:$0xff]
    %v2186 = vld [vmem:[%s2 + $0xf8] sm:$0xff]
    %v2187 = vld [vmem:[%s2 + $0x100] sm:$0xff]
    %v2188 = vld [vmem:[%s2 + $0x108] sm:$0xff]
    %v2189 = vld [vmem:[%s2 + $0x110] sm:$0xff]
    %v2190 = vld [vmem:[%s2 + $0x118] sm:$0xff]
    %v2191 = vld [vmem:[%s2 + $0x120] sm:$0xff]
    %v2192 = vld [vmem:[%s2 + $0x128] sm:$0xff]
    %v2193 = vld [vmem:[%s2 + $0x130] sm:$0xff]
    %v2194 = vld [vmem:[%s2 + $0x138] sm:$0xff]
    %v2195 = vld [vmem:[%s2 + $0x140] sm:$0xff]
    %v2196 = vld [vmem:[%s2 + $0x148] sm:$0xff]
    %v2197 = vld [vmem:[%s2 + $0x150] sm:$0xff]
    %v2198 = vld [vmem:[%s2 + $0x158] sm:$0xff]
    %v2199 = vld [vmem:[%s2 + $0x160] sm:$0xff]
    %v2200 = vld [vmem:[%s2 + $0x168] sm:$0xff]
    %v2201 = vld [vmem:[%s2 + $0x170] sm:$0xff]
    %v2202 = vld [vmem:[%s2 + $0x178] sm:$0xff]
    %v2203 = vld [vmem:[%s2 + $0x180] sm:$0xff]
    %v2204 = vld [vmem:[%s2 + $0x188] sm:$0xff]
    %v2205 = vld [vmem:[%s2 + $0x190] sm:$0xff]
    %v2206 = vld [vmem:[%s2 + $0x198] sm:$0xff]
    %v2207 = vld [vmem:[%s2 + $0x1a0] sm:$0xff]
    %v2208 = vld [vmem:[%s2 + $0x1a8] sm:$0xff]
    %v2209 = vld [vmem:[%s2 + $0x1b0] sm:$0xff]
    %v2210 = vld [vmem:[%s2 + $0x1b8] sm:$0xff]
    %v2211 = vld [vmem:[%s2 + $0x1c0] sm:$0xff]
    %v2212 = vld [vmem:[%s2 + $0x1c8] sm:$0xff]
    %v2213 = vld [vmem:[%s2 + $0x1d0] sm:$0xff]
    %v2214 = vld [vmem:[%s2 + $0x1d8] sm:$0xff]
    %v2215 = vld [vmem:[%s2 + $0x1e0] sm:$0xff]
    %v2216 = vld [vmem:[%s2 + $0x1e8] sm:$0xff]
    %v2217 = vld [vmem:[%s2 + $0x1f0] sm:$0xff]
    %v2218 = vld [vmem:[%s2 + $0x1f8] sm:$0xff]
    %vm2219 = vcmask 261120
    %v2221 = vsel %vm2219, %v2155, 0
    %v2224 = vsel %vm2219, %v2156, 0
    %v2227 = vsel %vm2219, %v2157, 0
    %v2230 = vsel %vm2219, %v2158, 0
    %v2233 = vsel %vm2219, %v2159, 0
    %v2236 = vsel %vm2219, %v2160, 0
    %v2239 = vsel %vm2219, %v2161, 0
    %v2242 = vsel %vm2219, %v2162, 0
    %v2245 = vsel %vm2219, %v2163, 0
    %v2248 = vsel %vm2219, %v2164, 0
    %v2251 = vsel %vm2219, %v2165, 0
    %v2254 = vsel %vm2219, %v2166, 0
    %v2257 = vsel %vm2219, %v2167, 0
    %v2260 = vsel %vm2219, %v2168, 0
    %v2263 = vsel %vm2219, %v2169, 0
    %v2266 = vsel %vm2219, %v2170, 0
    %v2269 = vsel %vm2219, %v2171, 0
    %v2272 = vsel %vm2219, %v2172, 0
    %v2275 = vsel %vm2219, %v2173, 0
    %v2278 = vsel %vm2219, %v2174, 0
    %v2281 = vsel %vm2219, %v2175, 0
    %v2284 = vsel %vm2219, %v2176, 0
    %v2287 = vsel %vm2219, %v2177, 0
    %v2290 = vsel %vm2219, %v2178, 0
    %v2293 = vsel %vm2219, %v2179, 0
    %v2296 = vsel %vm2219, %v2180, 0
    %v2299 = vsel %vm2219, %v2181, 0
    %v2302 = vsel %vm2219, %v2182, 0
    %v2305 = vsel %vm2219, %v2183, 0
    %v2308 = vsel %vm2219, %v2184, 0
    %v2311 = vsel %vm2219, %v2185, 0
    %v2314 = vsel %vm2219, %v2186, 0
    %v2317 = vsel %vm2219, %v2187, 0
    %v2320 = vsel %vm2219, %v2188, 0
    %v2323 = vsel %vm2219, %v2189, 0
    %v2326 = vsel %vm2219, %v2190, 0
    %v2329 = vsel %vm2219, %v2191, 0
    %v2332 = vsel %vm2219, %v2192, 0
    %v2335 = vsel %vm2219, %v2193, 0
    %v2338 = vsel %vm2219, %v2194, 0
    %v2341 = vsel %vm2219, %v2195, 0
    %v2344 = vsel %vm2219, %v2196, 0
    %v2347 = vsel %vm2219, %v2197, 0
    %v2350 = vsel %vm2219, %v2198, 0
    %v2353 = vsel %vm2219, %v2199, 0
    %v2356 = vsel %vm2219, %v2200, 0
    %v2359 = vsel %vm2219, %v2201, 0
    %v2362 = vsel %vm2219, %v2202, 0
    %v2365 = vsel %vm2219, %v2203, 0
    %v2368 = vsel %vm2219, %v2204, 0
    %v2371 = vsel %vm2219, %v2205, 0
    %v2374 = vsel %vm2219, %v2206, 0
    %v2377 = vsel %vm2219, %v2207, 0
    %v2380 = vsel %vm2219, %v2208, 0
    %v2383 = vsel %vm2219, %v2209, 0
    %v2386 = vsel %vm2219, %v2210, 0
    %v2389 = vsel %vm2219, %v2211, 0
    %v2392 = vsel %vm2219, %v2212, 0
    %v2395 = vsel %vm2219, %v2213, 0
    %v2398 = vsel %vm2219, %v2214, 0
    %v2401 = vsel %vm2219, %v2215, 0
    %v2404 = vsel %vm2219, %v2216, 0
    %v2407 = vsel %vm2219, %v2217, 0
    %v2410 = vsel %vm2219, %v2218, 0
    %2412 = vmatprep.subr.mxu0 %v1994
    %2413 = vmatpush1.msra.mxu0 %v1993
    %2414 = vmatprep.subr.mxu0 %v1997
    %2415 = vmatpush1.msra.mxu0 %v1996
    %2416 = vmatprep.subr.mxu0 %v2000
    %2417 = vmatpush1.msra.mxu0 %v1999
    %2418 = vmatprep.subr.mxu0 %v2003
    %2419 = vmatpush1.msra.mxu0 %v2002
    %2420 = vmatprep.subr.mxu0 0.0
    %2421 = vmatpush1.msra.mxu0 0.0
    %2422 = vmatprep.subr.mxu0 0.0
    %2423 = vmatpush1.msra.mxu0 0.0
    %2424 = vmatprep.subr.mxu0 0.0
    %2425 = vmatpush1.msra.mxu0 0.0
    %2426 = vmatprep.subr.mxu0 0.0
    %2427 = vmatpush1.msra.mxu0 0.0
    %2428 = vmatprep.subr.mxu0 0.0
    %2429 = vmatpush1.msra.mxu0 0.0
    %2430 = vmatprep.subr.mxu0 0.0
    %2431 = vmatpush1.msra.mxu0 0.0
    %2432 = vmatprep.subr.mxu0 0.0
    %2433 = vmatpush1.msra.mxu0 0.0
    %2434 = vmatprep.subr.mxu0 0.0
    %2435 = vmatpush1.msra.mxu0 0.0
    %2436 = vmatprep.subr.mxu0 0.0
    %2437 = vmatpush1.msra.mxu0 0.0
    %2438 = vmatprep.subr.mxu0 0.0
    %2439 = vmatpush1.msra.mxu0 0.0
    %2440 = vmatprep.subr.mxu0 0.0
    %2441 = vmatpush1.msra.mxu0 0.0
    %2442 = vmatprep.subr.mxu0 0.0
    %2443 = vmatpush1.msra.mxu0 0.0
    %2444 = vmatprep.subr.mxu0 0.0
    %2445 = vmatpush1.msra.mxu0 0.0
    %2446 = vmatprep.subr.mxu0 0.0
    %2447 = vmatpush1.msra.mxu0 0.0
    %2448 = vmatprep.subr.mxu0 0.0
    %2449 = vmatpush1.msra.mxu0 0.0
    %2450 = vmatprep.subr.mxu0 0.0
    %2451 = vmatpush1.msra.mxu0 0.0
    %2452 = vmatprep.subr.mxu0 0.0
    %2453 = vmatpush1.msra.mxu0 0.0
    %2454 = vmatprep.subr.mxu0 0.0
    %2455 = vmatpush1.msra.mxu0 0.0
    %2456 = vmatprep.subr.mxu0 0.0
    %2457 = vmatpush1.msra.mxu0 0.0
    %2458 = vmatprep.subr.mxu0 0.0
    %2459 = vmatpush1.msra.mxu0 0.0
    %2460 = vmatprep.subr.mxu0 0.0
    %2461 = vmatpush1.msra.mxu0 0.0
    %2462 = vmatprep.subr.mxu0 0.0
    %2463 = vmatpush1.msra.mxu0 0.0
    %2464 = vmatprep.subr.mxu0 0.0
    %2465 = vmatpush1.msra.mxu0 0.0
    %2466 = vmatprep.subr.mxu0 0.0
    %2467 = vmatpush1.msra.mxu0 0.0
    %2468 = vmatprep.subr.mxu0 0.0
    %2469 = vmatpush1.msra.mxu0 0.0
    %2470 = vmatprep.subr.mxu0 0.0
    %2471 = vmatpush1.msra.mxu0 0.0
    %2472 = vmatprep.subr.mxu0 0.0
    %2473 = vmatpush1.msra.mxu0 0.0
    %2474 = vmatprep.subr.mxu0 0.0
    %2475 = vmatpush1.msra.mxu0 0.0
    %2476 = vmatprep.mubr.f32.mxu0 0.0
    %2477 = vmatmul.mubr.f32.gmra.mrb[0].mxu0 %v2221
    %v2478 = vpop.f32.mrb[0].mxu0
    %v2479 = vadd.f32 0.0, %v2478
    %v2480 = vpop.f32.mrb[0].mxu0
    %v2481 = vadd.f32 0.0, %v2480
    %2482 = vmatprep.mubr.f32.mxu0 0.0
    %2483 = vmatmul.mubr.f32.gmra.mrb[0].mxu0 %v2224
    %v2484 = vpop.f32.mrb[0].mxu0
    %v2485 = vadd.f32 0.0, %v2484
    %v2486 = vpop.f32.mrb[0].mxu0
    %v2487 = vadd.f32 0.0, %v2486
    %2488 = vmatprep.mubr.f32.mxu0 0.0
    %2489 = vmatmul.mubr.f32.gmra.mrb[0].mxu0 %v2227
    %v2490 = vpop.f32.mrb[0].mxu0
    %v2491 = vadd.f32 0.0, %v2490
    %v2492 = vpop.f32.mrb[0].mxu0
    %v2493 = vadd.f32 0.0, %v2492
    %2494 = vmatprep.mubr.f32.mxu0 0.0
    %2495 = vmatmul.mubr.f32.gmra.mrb[0].mxu0 %v2230
    %v2496 = vpop.f32.mrb[0].mxu0
    %v2497 = vadd.f32 0.0, %v2496
    %v2498 = vpop.f32.mrb[0].mxu0
    %v2499 = vadd.f32 0.0, %v2498
    %2500 = vmatprep.mubr.f32.mxu0 0.0
    %2501 = vmatmul.mubr.f32.gmra.mrb[0].mxu0 %v2233
    %v2502 = vpop.f32.mrb[0].mxu0
    %v2503 = vadd.f32 0.0, %v2502
    %v2504 = vpop.f32.mrb[0].mxu0
    %v2505 = vadd.f32 0.0, %v2504
    %2506 = vmatprep.mubr.f32.mxu0 0.0
    %2507 = vmatmul.mubr.f32.gmra.mrb[0].mxu0 %v2236
    %v2508 = vpop.f32.mrb[0].mxu0
    %v2509 = vadd.f32 0.0, %v2508
    %v2510 = vpop.f32.mrb[0].mxu0
    %v2511 = vadd.f32 0.0, %v2510
    %2512 = vmatprep.mubr.f32.mxu0 0.0
    %2513 = vmatmul.mubr.f32.gmra.mrb[0].mxu0 %v2239
    %v2514 = vpop.f32.mrb[0].mxu0
    %v2515 = vadd.f32 0.0, %v2514
    %v2516 = vpop.f32.mrb[0].mxu0
    %v2517 = vadd.f32 0.0, %v2516
    %2518 = vmatprep.mubr.f32.mxu0 0.0
    %2519 = vmatmul.mubr.f32.gmra.mrb[0].mxu0 %v2242
    %v2520 = vpop.f32.mrb[0].mxu0
    %v2521 = vadd.f32 0.0, %v2520
    %v2522 = vpop.f32.mrb[0].mxu0
    %v2523 = vadd.f32 0.0, %v2522
    %2524 = vmatprep.mubr.f32.mxu0 0.0
    %2525 = vmatmul.mubr.f32.gmra.mrb[0].mxu0 %v2245
    %v2526 = vpop.f32.mrb[0].mxu0
    %v2527 = vadd.f32 0.0, %v2526
    %v2528 = vpop.f32.mrb[0].mxu0
    %v2529 = vadd.f32 0.0, %v2528
    %2530 = vmatprep.mubr.f32.mxu0 0.0
    %2531 = vmatmul.mubr.f32.gmra.mrb[0].mxu0 %v2248
    %v2532 = vpop.f32.mrb[0].mxu0
    %v2533 = vadd.f32 0.0, %v2532
    %v2534 = vpop.f32.mrb[0].mxu0
    %v2535 = vadd.f32 0.0, %v2534
    %2536 = vmatprep.mubr.f32.mxu0 0.0
    %2537 = vmatmul.mubr.f32.gmra.mrb[0].mxu0 %v2251
    %v2538 = vpop.f32.mrb[0].mxu0
    %v2539 = vadd.f32 0.0, %v2538
    %v2540 = vpop.f32.mrb[0].mxu0
    %v2541 = vadd.f32 0.0, %v2540
    %2542 = vmatprep.mubr.f32.mxu0 0.0
    %2543 = vmatmul.mubr.f32.gmra.mrb[0].mxu0 %v2254
    %v2544 = vpop.f32.mrb[0].mxu0
    %v2545 = vadd.f32 0.0, %v2544
    %v2546 = vpop.f32.mrb[0].mxu0
    %v2547 = vadd.f32 0.0, %v2546
    %2548 = vmatprep.mubr.f32.mxu0 0.0
    %2549 = vmatmul.mubr.f32.gmra.mrb[0].mxu0 %v2257
    %v2550 = vpop.f32.mrb[0].mxu0
    %v2551 = vadd.f32 0.0, %v2550
    %v2552 = vpop.f32.mrb[0].mxu0
    %v2553 = vadd.f32 0.0, %v2552
    %2554 = vmatprep.mubr.f32.mxu0 0.0
    %2555 = vmatmul.mubr.f32.gmra.mrb[0].mxu0 %v2260
    %v2556 = vpop.f32.mrb[0].mxu0
    %v2557 = vadd.f32 0.0, %v2556
    %v2558 = vpop.f32.mrb[0].mxu0
    %v2559 = vadd.f32 0.0, %v2558
    %2560 = vmatprep.mubr.f32.mxu0 0.0
    %2561 = vmatmul.mubr.f32.gmra.mrb[0].mxu0 %v2263
    %v2562 = vpop.f32.mrb[0].mxu0
    %v2563 = vadd.f32 0.0, %v2562
    %v2564 = vpop.f32.mrb[0].mxu0
    %v2565 = vadd.f32 0.0, %v2564
    %2566 = vmatprep.mubr.f32.mxu0 0.0
    %2567 = vmatmul.mubr.f32.gmra.mrb[0].mxu0 %v2266
    %v2568 = vpop.f32.mrb[0].mxu0
    %v2569 = vadd.f32 0.0, %v2568
    %v2570 = vpop.f32.mrb[0].mxu0
    %v2571 = vadd.f32 0.0, %v2570
    %2572 = vmatprep.mubr.f32.mxu0 0.0
    %2573 = vmatmul.mubr.f32.gmra.mrb[0].mxu0 %v2269
    %v2574 = vpop.f32.mrb[0].mxu0
    %v2575 = vadd.f32 0.0, %v2574
    %v2576 = vpop.f32.mrb[0].mxu0
    %v2577 = vadd.f32 0.0, %v2576
    %2578 = vmatprep.mubr.f32.mxu0 0.0
    %2579 = vmatmul.mubr.f32.gmra.mrb[0].mxu0 %v2272
    %v2580 = vpop.f32.mrb[0].mxu0
    %v2581 = vadd.f32 0.0, %v2580
    %v2582 = vpop.f32.mrb[0].mxu0
    %v2583 = vadd.f32 0.0, %v2582
    %2584 = vmatprep.mubr.f32.mxu0 0.0
    %2585 = vmatmul.mubr.f32.gmra.mrb[0].mxu0 %v2275
    %v2586 = vpop.f32.mrb[0].mxu0
    %v2587 = vadd.f32 0.0, %v2586
    %v2588 = vpop.f32.mrb[0].mxu0
    %v2589 = vadd.f32 0.0, %v2588
    %2590 = vmatprep.mubr.f32.mxu0 0.0
    %2591 = vmatmul.mubr.f32.gmra.mrb[0].mxu0 %v2278
    %v2592 = vpop.f32.mrb[0].mxu0
    %v2593 = vadd.f32 0.0, %v2592
    %v2594 = vpop.f32.mrb[0].mxu0
    %v2595 = vadd.f32 0.0, %v2594
    %2596 = vmatprep.mubr.f32.mxu0 0.0
    %2597 = vmatmul.mubr.f32.gmra.mrb[0].mxu0 %v2281
    %v2598 = vpop.f32.mrb[0].mxu0
    %v2599 = vadd.f32 0.0, %v2598
    %v2600 = vpop.f32.mrb[0].mxu0
    %v2601 = vadd.f32 0.0, %v2600
    %2602 = vmatprep.mubr.f32.mxu0 0.0
    %2603 = vmatmul.mubr.f32.gmra.mrb[0].mxu0 %v2284
    %v2604 = vpop.f32.mrb[0].mxu0
    %v2605 = vadd.f32 0.0, %v2604
    %v2606 = vpop.f32.mrb[0].mxu0
    %v2607 = vadd.f32 0.0, %v2606
    %2608 = vmatprep.mubr.f32.mxu0 0.0
    %2609 = vmatmul.mubr.f32.gmra.mrb[0].mxu0 %v2287
    %v2610 = vpop.f32.mrb[0].mxu0
    %v2611 = vadd.f32 0.0, %v2610
    %v2612 = vpop.f32.mrb[0].mxu0
    %v2613 = vadd.f32 0.0, %v2612
    %2614 = vmatprep.mubr.f32.mxu0 0.0
    %2615 = vmatmul.mubr.f32.gmra.mrb[0].mxu0 %v2290
    %v2616 = vpop.f32.mrb[0].mxu0
    %v2617 = vadd.f32 0.0, %v2616
    %v2618 = vpop.f32.mrb[0].mxu0
    %v2619 = vadd.f32 0.0, %v2618
    %2620 = vmatprep.mubr.f32.mxu0 0.0
    %2621 = vmatmul.mubr.f32.gmra.mrb[0].mxu0 %v2293
    %v2622 = vpop.f32.mrb[0].mxu0
    %v2623 = vadd.f32 0.0, %v2622
    %v2624 = vpop.f32.mrb[0].mxu0
    %v2625 = vadd.f32 0.0, %v2624
    %2626 = vmatprep.mubr.f32.mxu0 0.0
    %2627 = vmatmul.mubr.f32.gmra.mrb[0].mxu0 %v2296
    %v2628 = vpop.f32.mrb[0].mxu0
    %v2629 = vadd.f32 0.0, %v2628
    %v2630 = vpop.f32.mrb[0].mxu0
    %v2631 = vadd.f32 0.0, %v2630
    %2632 = vmatprep.mubr.f32.mxu0 0.0
    %2633 = vmatmul.mubr.f32.gmra.mrb[0].mxu0 %v2299
    %v2634 = vpop.f32.mrb[0].mxu0
    %v2635 = vadd.f32 0.0, %v2634
    %v2636 = vpop.f32.mrb[0].mxu0
    %v2637 = vadd.f32 0.0, %v2636
    %2638 = vmatprep.mubr.f32.mxu0 0.0
    %2639 = vmatmul.mubr.f32.gmra.mrb[0].mxu0 %v2302
    %v2640 = vpop.f32.mrb[0].mxu0
    %v2641 = vadd.f32 0.0, %v2640
    %v2642 = vpop.f32.mrb[0].mxu0
    %v2643 = vadd.f32 0.0, %v2642
    %2644 = vmatprep.mubr.f32.mxu0 0.0
    %2645 = vmatmul.mubr.f32.gmra.mrb[0].mxu0 %v2305
    %v2646 = vpop.f32.mrb[0].mxu0
    %v2647 = vadd.f32 0.0, %v2646
    %v2648 = vpop.f32.mrb[0].mxu0
    %v2649 = vadd.f32 0.0, %v2648
    %2650 = vmatprep.mubr.f32.mxu0 0.0
    %2651 = vmatmul.mubr.f32.gmra.mrb[0].mxu0 %v2308
    %v2652 = vpop.f32.mrb[0].mxu0
    %v2653 = vadd.f32 0.0, %v2652
    %v2654 = vpop.f32.mrb[0].mxu0
    %v2655 = vadd.f32 0.0, %v2654
    %2656 = vmatprep.mubr.f32.mxu0 0.0
    %2657 = vmatmul.mubr.f32.gmra.mrb[0].mxu0 %v2311
    %v2658 = vpop.f32.mrb[0].mxu0
    %v2659 = vadd.f32 0.0, %v2658
    %v2660 = vpop.f32.mrb[0].mxu0
    %v2661 = vadd.f32 0.0, %v2660
    %2662 = vmatprep.mubr.f32.mxu0 0.0
    %2663 = vmatmul.mubr.f32.gmra.mrb[0].mxu0 %v2314
    %v2664 = vpop.f32.mrb[0].mxu0
    %v2665 = vadd.f32 0.0, %v2664
    %v2666 = vpop.f32.mrb[0].mxu0
    %v2667 = vadd.f32 0.0, %v2666
    %2668 = vmatprep.mubr.f32.mxu0 0.0
    %2669 = vmatmul.mubr.f32.gmra.mrb[0].mxu0 %v2317
    %v2670 = vpop.f32.mrb[0].mxu0
    %v2671 = vadd.f32 0.0, %v2670
    %v2672 = vpop.f32.mrb[0].mxu0
    %v2673 = vadd.f32 0.0, %v2672
    %2674 = vmatprep.mubr.f32.mxu0 0.0
    %2675 = vmatmul.mubr.f32.gmra.mrb[0].mxu0 %v2320
    %v2676 = vpop.f32.mrb[0].mxu0
    %v2677 = vadd.f32 0.0, %v2676
    %v2678 = vpop.f32.mrb[0].mxu0
    %v2679 = vadd.f32 0.0, %v2678
    %2680 = vmatprep.mubr.f32.mxu0 0.0
    %2681 = vmatmul.mubr.f32.gmra.mrb[0].mxu0 %v2323
    %v2682 = vpop.f32.mrb[0].mxu0
    %v2683 = vadd.f32 0.0, %v2682
    %v2684 = vpop.f32.mrb[0].mxu0
    %v2685 = vadd.f32 0.0, %v2684
    %2686 = vmatprep.mubr.f32.mxu0 0.0
    %2687 = vmatmul.mubr.f32.gmra.mrb[0].mxu0 %v2326
    %v2688 = vpop.f32.mrb[0].mxu0
    %v2689 = vadd.f32 0.0, %v2688
    %v2690 = vpop.f32.mrb[0].mxu0
    %v2691 = vadd.f32 0.0, %v2690
    %2692 = vmatprep.mubr.f32.mxu0 0.0
    %2693 = vmatmul.mubr.f32.gmra.mrb[0].mxu0 %v2329
    %v2694 = vpop.f32.mrb[0].mxu0
    %v2695 = vadd.f32 0.0, %v2694
    %v2696 = vpop.f32.mrb[0].mxu0
    %v2697 = vadd.f32 0.0, %v2696
    %2698 = vmatprep.mubr.f32.mxu0 0.0
    %2699 = vmatmul.mubr.f32.gmra.mrb[0].mxu0 %v2332
    %v2700 = vpop.f32.mrb[0].mxu0
    %v2701 = vadd.f32 0.0, %v2700
    %v2702 = vpop.f32.mrb[0].mxu0
    %v2703 = vadd.f32 0.0, %v2702
    %2704 = vmatprep.mubr.f32.mxu0 0.0
    %2705 = vmatmul.mubr.f32.gmra.mrb[0].mxu0 %v2335
    %v2706 = vpop.f32.mrb[0].mxu0
    %v2707 = vadd.f32 0.0, %v2706
    %v2708 = vpop.f32.mrb[0].mxu0
    %v2709 = vadd.f32 0.0, %v2708
    %2710 = vmatprep.mubr.f32.mxu0 0.0
    %2711 = vmatmul.mubr.f32.gmra.mrb[0].mxu0 %v2338
    %v2712 = vpop.f32.mrb[0].mxu0
    %v2713 = vadd.f32 0.0, %v2712
    %v2714 = vpop.f32.mrb[0].mxu0
    %v2715 = vadd.f32 0.0, %v2714
    %2716 = vmatprep.mubr.f32.mxu0 0.0
    %2717 = vmatmul.mubr.f32.gmra.mrb[0].mxu0 %v2341
    %v2718 = vpop.f32.mrb[0].mxu0
    %v2719 = vadd.f32 0.0, %v2718
    %v2720 = vpop.f32.mrb[0].mxu0
    %v2721 = vadd.f32 0.0, %v2720
    %2722 = vmatprep.mubr.f32.mxu0 0.0
    %2723 = vmatmul.mubr.f32.gmra.mrb[0].mxu0 %v2344
    %v2724 = vpop.f32.mrb[0].mxu0
    %v2725 = vadd.f32 0.0, %v2724
    %v2726 = vpop.f32.mrb[0].mxu0
    %v2727 = vadd.f32 0.0, %v2726
    %2728 = vmatprep.mubr.f32.mxu0 0.0
    %2729 = vmatmul.mubr.f32.gmra.mrb[0].mxu0 %v2347
    %v2730 = vpop.f32.mrb[0].mxu0
    %v2731 = vadd.f32 0.0, %v2730
    %v2732 = vpop.f32.mrb[0].mxu0
    %v2733 = vadd.f32 0.0, %v2732
    %2734 = vmatprep.mubr.f32.mxu0 0.0
    %2735 = vmatmul.mubr.f32.gmra.mrb[0].mxu0 %v2350
    %v2736 = vpop.f32.mrb[0].mxu0
    %v2737 = vadd.f32 0.0, %v2736
    %v2738 = vpop.f32.mrb[0].mxu0
    %v2739 = vadd.f32 0.0, %v2738
    %2740 = vmatprep.mubr.f32.mxu0 0.0
    %2741 = vmatmul.mubr.f32.gmra.mrb[0].mxu0 %v2353
    %v2742 = vpop.f32.mrb[0].mxu0
    %v2743 = vadd.f32 0.0, %v2742
    %v2744 = vpop.f32.mrb[0].mxu0
    %v2745 = vadd.f32 0.0, %v2744
    %2746 = vmatprep.mubr.f32.mxu0 0.0
    %2747 = vmatmul.mubr.f32.gmra.mrb[0].mxu0 %v2356
    %v2748 = vpop.f32.mrb[0].mxu0
    %v2749 = vadd.f32 0.0, %v2748
    %v2750 = vpop.f32.mrb[0].mxu0
    %v2751 = vadd.f32 0.0, %v2750
    %2752 = vmatprep.mubr.f32.mxu0 0.0
    %2753 = vmatmul.mubr.f32.gmra.mrb[0].mxu0 %v2359
    %v2754 = vpop.f32.mrb[0].mxu0
    %v2755 = vadd.f32 0.0, %v2754
    %v2756 = vpop.f32.mrb[0].mxu0
    %v2757 = vadd.f32 0.0, %v2756
    %2758 = vmatprep.mubr.f32.mxu0 0.0
    %2759 = vmatmul.mubr.f32.gmra.mrb[0].mxu0 %v2362
    %v2760 = vpop.f32.mrb[0].mxu0
    %v2761 = vadd.f32 0.0, %v2760
    %v2762 = vpop.f32.mrb[0].mxu0
    %v2763 = vadd.f32 0.0, %v2762
    %2764 = vmatprep.mubr.f32.mxu0 0.0
    %2765 = vmatmul.mubr.f32.gmra.mrb[0].mxu0 %v2365
    %v2766 = vpop.f32.mrb[0].mxu0
    %v2767 = vadd.f32 0.0, %v2766
    %v2768 = vpop.f32.mrb[0].mxu0
    %v2769 = vadd.f32 0.0, %v2768
    %2770 = vmatprep.mubr.f32.mxu0 0.0
    %2771 = vmatmul.mubr.f32.gmra.mrb[0].mxu0 %v2368
    %v2772 = vpop.f32.mrb[0].mxu0
    %v2773 = vadd.f32 0.0, %v2772
    %v2774 = vpop.f32.mrb[0].mxu0
    %v2775 = vadd.f32 0.0, %v2774
    %2776 = vmatprep.mubr.f32.mxu0 0.0
    %2777 = vmatmul.mubr.f32.gmra.mrb[0].mxu0 %v2371
    %v2778 = vpop.f32.mrb[0].mxu0
    %v2779 = vadd.f32 0.0, %v2778
    %v2780 = vpop.f32.mrb[0].mxu0
    %v2781 = vadd.f32 0.0, %v2780
    %2782 = vmatprep.mubr.f32.mxu0 0.0
    %2783 = vmatmul.mubr.f32.gmra.mrb[0].mxu0 %v2374
    %v2784 = vpop.f32.mrb[0].mxu0
    %v2785 = vadd.f32 0.0, %v2784
    %v2786 = vpop.f32.mrb[0].mxu0
    %v2787 = vadd.f32 0.0, %v2786
    %2788 = vmatprep.mubr.f32.mxu0 0.0
    %2789 = vmatmul.mubr.f32.gmra.mrb[0].mxu0 %v2377
    %v2790 = vpop.f32.mrb[0].mxu0
    %v2791 = vadd.f32 0.0, %v2790
    %v2792 = vpop.f32.mrb[0].mxu0
    %v2793 = vadd.f32 0.0, %v2792
    %2794 = vmatprep.mubr.f32.mxu0 0.0
    %2795 = vmatmul.mubr.f32.gmra.mrb[0].mxu0 %v2380
    %v2796 = vpop.f32.mrb[0].mxu0
    %v2797 = vadd.f32 0.0, %v2796
    %v2798 = vpop.f32.mrb[0].mxu0
    %v2799 = vadd.f32 0.0, %v2798
    %2800 = vmatprep.mubr.f32.mxu0 0.0
    %2801 = vmatmul.mubr.f32.gmra.mrb[0].mxu0 %v2383
    %v2802 = vpop.f32.mrb[0].mxu0
    %v2803 = vadd.f32 0.0, %v2802
    %v2804 = vpop.f32.mrb[0].mxu0
    %v2805 = vadd.f32 0.0, %v2804
    %2806 = vmatprep.mubr.f32.mxu0 0.0
    %2807 = vmatmul.mubr.f32.gmra.mrb[0].mxu0 %v2386
    %v2808 = vpop.f32.mrb[0].mxu0
    %v2809 = vadd.f32 0.0, %v2808
    %v2810 = vpop.f32.mrb[0].mxu0
    %v2811 = vadd.f32 0.0, %v2810
    %2812 = vmatprep.mubr.f32.mxu0 0.0
    %2813 = vmatmul.mubr.f32.gmra.mrb[0].mxu0 %v2389
    %v2814 = vpop.f32.mrb[0].mxu0
    %v2815 = vadd.f32 0.0, %v2814
    %v2816 = vpop.f32.mrb[0].mxu0
    %v2817 = vadd.f32 0.0, %v2816
    %2818 = vmatprep.mubr.f32.mxu0 0.0
    %2819 = vmatmul.mubr.f32.gmra.mrb[0].mxu0 %v2392
    %v2820 = vpop.f32.mrb[0].mxu0
    %v2821 = vadd.f32 0.0, %v2820
    %v2822 = vpop.f32.mrb[0].mxu0
    %v2823 = vadd.f32 0.0, %v2822
    %2824 = vmatprep.mubr.f32.mxu0 0.0
    %2825 = vmatmul.mubr.f32.gmra.mrb[0].mxu0 %v2395
    %v2826 = vpop.f32.mrb[0].mxu0
    %v2827 = vadd.f32 0.0, %v2826
    %v2828 = vpop.f32.mrb[0].mxu0
    %v2829 = vadd.f32 0.0, %v2828
    %2830 = vmatprep.mubr.f32.mxu0 0.0
    %2831 = vmatmul.mubr.f32.gmra.mrb[0].mxu0 %v2398
    %v2832 = vpop.f32.mrb[0].mxu0
    %v2833 = vadd.f32 0.0, %v2832
    %v2834 = vpop.f32.mrb[0].mxu0
    %v2835 = vadd.f32 0.0, %v2834
    %2836 = vmatprep.mubr.f32.mxu0 0.0
    %2837 = vmatmul.mubr.f32.gmra.mrb[0].mxu0 %v2401
    %v2838 = vpop.f32.mrb[0].mxu0
    %v2839 = vadd.f32 0.0, %v2838
    %v2840 = vpop.f32.mrb[0].mxu0
    %v2841 = vadd.f32 0.0, %v2840
    %2842 = vmatprep.mubr.f32.mxu0 0.0
    %2843 = vmatmul.mubr.f32.gmra.mrb[0].mxu0 %v2404
    %v2844 = vpop.f32.mrb[0].mxu0
    %v2845 = vadd.f32 0.0, %v2844
    %v2846 = vpop.f32.mrb[0].mxu0
    %v2847 = vadd.f32 0.0, %v2846
    %2848 = vmatprep.mubr.f32.mxu0 0.0
    %2849 = vmatmul.mubr.f32.gmra.mrb[0].mxu0 %v2407
    %v2850 = vpop.f32.mrb[0].mxu0
    %v2851 = vadd.f32 0.0, %v2850
    %v2852 = vpop.f32.mrb[0].mxu0
    %v2853 = vadd.f32 0.0, %v2852
    %2854 = vmatprep.mubr.f32.mxu0 0.0
    %2855 = vmatmul.mubr.f32.gmra.mrb[0].mxu0 %v2410
    %v2856 = vpop.f32.mrb[0].mxu0
    %v2857 = vadd.f32 0.0, %v2856
    %v2858 = vpop.f32.mrb[0].mxu0
    %v2859 = vadd.f32 0.0, %v2858
    %2860 = vdwg.mxu0
    %2861 = vmatprep.subr.mxu0 0.0
    %2862 = vmatpush1.msra.mxu0 %v1995
    %2863 = vmatprep.subr.mxu0 0.0
    %2864 = vmatpush1.msra.mxu0 %v1998
    %2865 = vmatprep.subr.mxu0 0.0
    %2866 = vmatpush1.msra.mxu0 %v2001
    %2867 = vmatprep.subr.mxu0 0.0
    %2868 = vmatpush1.msra.mxu0 %v2004
    %2869 = vmatprep.subr.mxu0 0.0
    %2870 = vmatpush1.msra.mxu0 0.0
    %2871 = vmatprep.subr.mxu0 0.0
    %2872 = vmatpush1.msra.mxu0 0.0
    %2873 = vmatprep.subr.mxu0 0.0
    %2874 = vmatpush1.msra.mxu0 0.0
    %2875 = vmatprep.subr.mxu0 0.0
    %2876 = vmatpush1.msra.mxu0 0.0
    %2877 = vmatprep.subr.mxu0 0.0
    %2878 = vmatpush1.msra.mxu0 0.0
    %2879 = vmatprep.subr.mxu0 0.0
    %2880 = vmatpush1.msra.mxu0 0.0
    %2881 = vmatprep.subr.mxu0 0.0
    %2882 = vmatpush1.msra.mxu0 0.0
    %2883 = vmatprep.subr.mxu0 0.0
    %2884 = vmatpush1.msra.mxu0 0.0
    %2885 = vmatprep.subr.mxu0 0.0
    %2886 = vmatpush1.msra.mxu0 0.0
    %2887 = vmatprep.subr.mxu0 0.0
    %2888 = vmatpush1.msra.mxu0 0.0
    %2889 = vmatprep.subr.mxu0 0.0
    %2890 = vmatpush1.msra.mxu0 0.0
    %2891 = vmatprep.subr.mxu0 0.0
    %2892 = vmatpush1.msra.mxu0 0.0
    %2893 = vmatprep.subr.mxu0 0.0
    %2894 = vmatpush1.msra.mxu0 0.0
    %2895 = vmatprep.subr.mxu0 0.0
    %2896 = vmatpush1.msra.mxu0 0.0
    %2897 = vmatprep.subr.mxu0 0.0
    %2898 = vmatpush1.msra.mxu0 0.0
    %2899 = vmatprep.subr.mxu0 0.0
    %2900 = vmatpush1.msra.mxu0 0.0
    %2901 = vmatprep.subr.mxu0 0.0
    %2902 = vmatpush1.msra.mxu0 0.0
    %2903 = vmatprep.subr.mxu0 0.0
    %2904 = vmatpush1.msra.mxu0 0.0
    %2905 = vmatprep.subr.mxu0 0.0
    %2906 = vmatpush1.msra.mxu0 0.0
    %2907 = vmatprep.subr.mxu0 0.0
    %2908 = vmatpush1.msra.mxu0 0.0
    %2909 = vmatprep.subr.mxu0 0.0
    %2910 = vmatpush1.msra.mxu0 0.0
    %2911 = vmatprep.subr.mxu0 0.0
    %2912 = vmatpush1.msra.mxu0 0.0
    %2913 = vmatprep.subr.mxu0 0.0
    %2914 = vmatpush1.msra.mxu0 0.0
    %2915 = vmatprep.subr.mxu0 0.0
    %2916 = vmatpush1.msra.mxu0 0.0
    %2917 = vmatprep.subr.mxu0 0.0
    %2918 = vmatpush1.msra.mxu0 0.0
    %2919 = vmatprep.subr.mxu0 0.0
    %2920 = vmatpush1.msra.mxu0 0.0
    %2921 = vmatprep.subr.mxu0 0.0
    %2922 = vmatpush1.msra.mxu0 0.0
    %2923 = vmatprep.subr.mxu0 0.0
    %2924 = vmatpush1.msra.mxu0 0.0
    %2925 = vmatprep.mubr.f32.mxu0 0.0
    %2926 = vmatmul.mubr.f32.gmra.mrb[0].mxu0 %v2221
    %v2927 = vpop.f32.mrb[0].mxu0
    %v2928 = vadd.f32 0.0, %v2927
    %v2929 = vpop.f32.mrb[0].mxu0
    %2930 = vmatprep.mubr.f32.mxu0 0.0
    %2931 = vmatmul.mubr.f32.gmra.mrb[0].mxu0 %v2224
    %v2932 = vpop.f32.mrb[0].mxu0
    %v2933 = vadd.f32 0.0, %v2932
    %v2934 = vpop.f32.mrb[0].mxu0
    %2935 = vmatprep.mubr.f32.mxu0 0.0
    %2936 = vmatmul.mubr.f32.gmra.mrb[0].mxu0 %v2227
    %v2937 = vpop.f32.mrb[0].mxu0
    %v2938 = vadd.f32 0.0, %v2937
    %v2939 = vpop.f32.mrb[0].mxu0
    %2940 = vmatprep.mubr.f32.mxu0 0.0
    %2941 = vmatmul.mubr.f32.gmra.mrb[0].mxu0 %v2230
    %v2942 = vpop.f32.mrb[0].mxu0
    %v2943 = vadd.f32 0.0, %v2942
    %v2944 = vpop.f32.mrb[0].mxu0
    %2945 = vmatprep.mubr.f32.mxu0 0.0
    %2946 = vmatmul.mubr.f32.gmra.mrb[0].mxu0 %v2233
    %v2947 = vpop.f32.mrb[0].mxu0
    %v2948 = vadd.f32 0.0, %v2947
    %v2949 = vpop.f32.mrb[0].mxu0
    %2950 = vmatprep.mubr.f32.mxu0 0.0
    %2951 = vmatmul.mubr.f32.gmra.mrb[0].mxu0 %v2236
    %v2952 = vpop.f32.mrb[0].mxu0
    %v2953 = vadd.f32 0.0, %v2952
    %v2954 = vpop.f32.mrb[0].mxu0
    %2955 = vmatprep.mubr.f32.mxu0 0.0
    %2956 = vmatmul.mubr.f32.gmra.mrb[0].mxu0 %v2239
    %v2957 = vpop.f32.mrb[0].mxu0
    %v2958 = vadd.f32 0.0, %v2957
    %v2959 = vpop.f32.mrb[0].mxu0
    %2960 = vmatprep.mubr.f32.mxu0 0.0
    %2961 = vmatmul.mubr.f32.gmra.mrb[0].mxu0 %v2242
    %v2962 = vpop.f32.mrb[0].mxu0
    %v2963 = vadd.f32 0.0, %v2962
    %v2964 = vpop.f32.mrb[0].mxu0
    %2965 = vmatprep.mubr.f32.mxu0 0.0
    %2966 = vmatmul.mubr.f32.gmra.mrb[0].mxu0 %v2245
    %v2967 = vpop.f32.mrb[0].mxu0
    %v2968 = vadd.f32 0.0, %v2967
    %v2969 = vpop.f32.mrb[0].mxu0
    %2970 = vmatprep.mubr.f32.mxu0 0.0
    %2971 = vmatmul.mubr.f32.gmra.mrb[0].mxu0 %v2248
    %v2972 = vpop.f32.mrb[0].mxu0
    %v2973 = vadd.f32 0.0, %v2972
    %v2974 = vpop.f32.mrb[0].mxu0
    %2975 = vmatprep.mubr.f32.mxu0 0.0
    %2976 = vmatmul.mubr.f32.gmra.mrb[0].mxu0 %v2251
    %v2977 = vpop.f32.mrb[0].mxu0
    %v2978 = vadd.f32 0.0, %v2977
    %v2979 = vpop.f32.mrb[0].mxu0
    %2980 = vmatprep.mubr.f32.mxu0 0.0
    %2981 = vmatmul.mubr.f32.gmra.mrb[0].mxu0 %v2254
    %v2982 = vpop.f32.mrb[0].mxu0
    %v2983 = vadd.f32 0.0, %v2982
    %v2984 = vpop.f32.mrb[0].mxu0
    %2985 = vmatprep.mubr.f32.mxu0 0.0
    %2986 = vmatmul.mubr.f32.gmra.mrb[0].mxu0 %v2257
    %v2987 = vpop.f32.mrb[0].mxu0
    %v2988 = vadd.f32 0.0, %v2987
    %v2989 = vpop.f32.mrb[0].mxu0
    %2990 = vmatprep.mubr.f32.mxu0 0.0
    %2991 = vmatmul.mubr.f32.gmra.mrb[0].mxu0 %v2260
    %v2992 = vpop.f32.mrb[0].mxu0
    %v2993 = vadd.f32 0.0, %v2992
    %v2994 = vpop.f32.mrb[0].mxu0
    %2995 = vmatprep.mubr.f32.mxu0 0.0
    %2996 = vmatmul.mubr.f32.gmra.mrb[0].mxu0 %v2263
    %v2997 = vpop.f32.mrb[0].mxu0
    %v2998 = vadd.f32 0.0, %v2997
    %v2999 = vpop.f32.mrb[0].mxu0
    %3000 = vmatprep.mubr.f32.mxu0 0.0
    %3001 = vmatmul.mubr.f32.gmra.mrb[0].mxu0 %v2266
    %v3002 = vpop.f32.mrb[0].mxu0
    %v3003 = vadd.f32 0.0, %v3002
    %v3004 = vpop.f32.mrb[0].mxu0
    %3005 = vmatprep.mubr.f32.mxu0 0.0
    %3006 = vmatmul.mubr.f32.gmra.mrb[0].mxu0 %v2269
    %v3007 = vpop.f32.mrb[0].mxu0
    %v3008 = vadd.f32 0.0, %v3007
    %v3009 = vpop.f32.mrb[0].mxu0
    %3010 = vmatprep.mubr.f32.mxu0 0.0
    %3011 = vmatmul.mubr.f32.gmra.mrb[0].mxu0 %v2272
    %v3012 = vpop.f32.mrb[0].mxu0
    %v3013 = vadd.f32 0.0, %v3012
    %v3014 = vpop.f32.mrb[0].mxu0
    %3015 = vmatprep.mubr.f32.mxu0 0.0
    %3016 = vmatmul.mubr.f32.gmra.mrb[0].mxu0 %v2275
    %v3017 = vpop.f32.mrb[0].mxu0
    %v3018 = vadd.f32 0.0, %v3017
    %v3019 = vpop.f32.mrb[0].mxu0
    %3020 = vmatprep.mubr.f32.mxu0 0.0
    %3021 = vmatmul.mubr.f32.gmra.mrb[0].mxu0 %v2278
    %v3022 = vpop.f32.mrb[0].mxu0
    %v3023 = vadd.f32 0.0, %v3022
    %v3024 = vpop.f32.mrb[0].mxu0
    %3025 = vmatprep.mubr.f32.mxu0 0.0
    %3026 = vmatmul.mubr.f32.gmra.mrb[0].mxu0 %v2281
    %v3027 = vpop.f32.mrb[0].mxu0
    %v3028 = vadd.f32 0.0, %v3027
    %v3029 = vpop.f32.mrb[0].mxu0
    %3030 = vmatprep.mubr.f32.mxu0 0.0
    %3031 = vmatmul.mubr.f32.gmra.mrb[0].mxu0 %v2284
    %v3032 = vpop.f32.mrb[0].mxu0
    %v3033 = vadd.f32 0.0, %v3032
    %v3034 = vpop.f32.mrb[0].mxu0
    %3035 = vmatprep.mubr.f32.mxu0 0.0
    %3036 = vmatmul.mubr.f32.gmra.mrb[0].mxu0 %v2287
    %v3037 = vpop.f32.mrb[0].mxu0
    %v3038 = vadd.f32 0.0, %v3037
    %v3039 = vpop.f32.mrb[0].mxu0
    %3040 = vmatprep.mubr.f32.mxu0 0.0
    %3041 = vmatmul.mubr.f32.gmra.mrb[0].mxu0 %v2290
    %v3042 = vpop.f32.mrb[0].mxu0
    %v3043 = vadd.f32 0.0, %v3042
    %v3044 = vpop.f32.mrb[0].mxu0
    %3045 = vmatprep.mubr.f32.mxu0 0.0
    %3046 = vmatmul.mubr.f32.gmra.mrb[0].mxu0 %v2293
    %v3047 = vpop.f32.mrb[0].mxu0
    %v3048 = vadd.f32 0.0, %v3047
    %v3049 = vpop.f32.mrb[0].mxu0
    %3050 = vmatprep.mubr.f32.mxu0 0.0
    %3051 = vmatmul.mubr.f32.gmra.mrb[0].mxu0 %v2296
    %v3052 = vpop.f32.mrb[0].mxu0
    %v3053 = vadd.f32 0.0, %v3052
    %v3054 = vpop.f32.mrb[0].mxu0
    %3055 = vmatprep.mubr.f32.mxu0 0.0
    %3056 = vmatmul.mubr.f32.gmra.mrb[0].mxu0 %v2299
    %v3057 = vpop.f32.mrb[0].mxu0
    %v3058 = vadd.f32 0.0, %v3057
    %v3059 = vpop.f32.mrb[0].mxu0
    %3060 = vmatprep.mubr.f32.mxu0 0.0
    %3061 = vmatmul.mubr.f32.gmra.mrb[0].mxu0 %v2302
    %v3062 = vpop.f32.mrb[0].mxu0
    %v3063 = vadd.f32 0.0, %v3062
    %v3064 = vpop.f32.mrb[0].mxu0
    %3065 = vmatprep.mubr.f32.mxu0 0.0
    %3066 = vmatmul.mubr.f32.gmra.mrb[0].mxu0 %v2305
    %v3067 = vpop.f32.mrb[0].mxu0
    %v3068 = vadd.f32 0.0, %v3067
    %v3069 = vpop.f32.mrb[0].mxu0
    %3070 = vmatprep.mubr.f32.mxu0 0.0
    %3071 = vmatmul.mubr.f32.gmra.mrb[0].mxu0 %v2308
    %v3072 = vpop.f32.mrb[0].mxu0
    %v3073 = vadd.f32 0.0, %v3072
    %v3074 = vpop.f32.mrb[0].mxu0
    %3075 = vmatprep.mubr.f32.mxu0 0.0
    %3076 = vmatmul.mubr.f32.gmra.mrb[0].mxu0 %v2311
    %v3077 = vpop.f32.mrb[0].mxu0
    %v3078 = vadd.f32 0.0, %v3077
    %v3079 = vpop.f32.mrb[0].mxu0
    %3080 = vmatprep.mubr.f32.mxu0 0.0
    %3081 = vmatmul.mubr.f32.gmra.mrb[0].mxu0 %v2314
    %v3082 = vpop.f32.mrb[0].mxu0
    %v3083 = vadd.f32 0.0, %v3082
    %v3084 = vpop.f32.mrb[0].mxu0
    %3085 = vmatprep.mubr.f32.mxu0 0.0
    %3086 = vmatmul.mubr.f32.gmra.mrb[0].mxu0 %v2317
    %v3087 = vpop.f32.mrb[0].mxu0
    %v3088 = vadd.f32 0.0, %v3087
    %v3089 = vpop.f32.mrb[0].mxu0
    %3090 = vmatprep.mubr.f32.mxu0 0.0
    %3091 = vmatmul.mubr.f32.gmra.mrb[0].mxu0 %v2320
    %v3092 = vpop.f32.mrb[0].mxu0
    %v3093 = vadd.f32 0.0, %v3092
    %v3094 = vpop.f32.mrb[0].mxu0
    %3095 = vmatprep.mubr.f32.mxu0 0.0
    %3096 = vmatmul.mubr.f32.gmra.mrb[0].mxu0 %v2323
    %v3097 = vpop.f32.mrb[0].mxu0
    %v3098 = vadd.f32 0.0, %v3097
    %v3099 = vpop.f32.mrb[0].mxu0
    %3100 = vmatprep.mubr.f32.mxu0 0.0
    %3101 = vmatmul.mubr.f32.gmra.mrb[0].mxu0 %v2326
    %v3102 = vpop.f32.mrb[0].mxu0
    %v3103 = vadd.f32 0.0, %v3102
    %v3104 = vpop.f32.mrb[0].mxu0
    %3105 = vmatprep.mubr.f32.mxu0 0.0
    %3106 = vmatmul.mubr.f32.gmra.mrb[0].mxu0 %v2329
    %v3107 = vpop.f32.mrb[0].mxu0
    %v3108 = vadd.f32 0.0, %v3107
    %v3109 = vpop.f32.mrb[0].mxu0
    %3110 = vmatprep.mubr.f32.mxu0 0.0
    %3111 = vmatmul.mubr.f32.gmra.mrb[0].mxu0 %v2332
    %v3112 = vpop.f32.mrb[0].mxu0
    %v3113 = vadd.f32 0.0, %v3112
    %v3114 = vpop.f32.mrb[0].mxu0
    %3115 = vmatprep.mubr.f32.mxu0 0.0
    %3116 = vmatmul.mubr.f32.gmra.mrb[0].mxu0 %v2335
    %v3117 = vpop.f32.mrb[0].mxu0
    %v3118 = vadd.f32 0.0, %v3117
    %v3119 = vpop.f32.mrb[0].mxu0
    %3120 = vmatprep.mubr.f32.mxu0 0.0
    %3121 = vmatmul.mubr.f32.gmra.mrb[0].mxu0 %v2338
    %v3122 = vpop.f32.mrb[0].mxu0
    %v3123 = vadd.f32 0.0, %v3122
    %v3124 = vpop.f32.mrb[0].mxu0
    %3125 = vmatprep.mubr.f32.mxu0 0.0
    %3126 = vmatmul.mubr.f32.gmra.mrb[0].mxu0 %v2341
    %v3127 = vpop.f32.mrb[0].mxu0
    %v3128 = vadd.f32 0.0, %v3127
    %v3129 = vpop.f32.mrb[0].mxu0
    %3130 = vmatprep.mubr.f32.mxu0 0.0
    %3131 = vmatmul.mubr.f32.gmra.mrb[0].mxu0 %v2344
    %v3132 = vpop.f32.mrb[0].mxu0
    %v3133 = vadd.f32 0.0, %v3132
    %v3134 = vpop.f32.mrb[0].mxu0
    %3135 = vmatprep.mubr.f32.mxu0 0.0
    %3136 = vmatmul.mubr.f32.gmra.mrb[0].mxu0 %v2347
    %v3137 = vpop.f32.mrb[0].mxu0
    %v3138 = vadd.f32 0.0, %v3137
    %v3139 = vpop.f32.mrb[0].mxu0
    %3140 = vmatprep.mubr.f32.mxu0 0.0
    %3141 = vmatmul.mubr.f32.gmra.mrb[0].mxu0 %v2350
    %v3142 = vpop.f32.mrb[0].mxu0
    %v3143 = vadd.f32 0.0, %v3142
    %v3144 = vpop.f32.mrb[0].mxu0
    %3145 = vmatprep.mubr.f32.mxu0 0.0
    %3146 = vmatmul.mubr.f32.gmra.mrb[0].mxu0 %v2353
    %v3147 = vpop.f32.mrb[0].mxu0
    %v3148 = vadd.f32 0.0, %v3147
    %v3149 = vpop.f32.mrb[0].mxu0
    %3150 = vmatprep.mubr.f32.mxu0 0.0
    %3151 = vmatmul.mubr.f32.gmra.mrb[0].mxu0 %v2356
    %v3152 = vpop.f32.mrb[0].mxu0
    %v3153 = vadd.f32 0.0, %v3152
    %v3154 = vpop.f32.mrb[0].mxu0
    %3155 = vmatprep.mubr.f32.mxu0 0.0
    %3156 = vmatmul.mubr.f32.gmra.mrb[0].mxu0 %v2359
    %v3157 = vpop.f32.mrb[0].mxu0
    %v3158 = vadd.f32 0.0, %v3157
    %v3159 = vpop.f32.mrb[0].mxu0
    %3160 = vmatprep.mubr.f32.mxu0 0.0
    %3161 = vmatmul.mubr.f32.gmra.mrb[0].mxu0 %v2362
    %v3162 = vpop.f32.mrb[0].mxu0
    %v3163 = vadd.f32 0.0, %v3162
    %v3164 = vpop.f32.mrb[0].mxu0
    %3165 = vmatprep.mubr.f32.mxu0 0.0
    %3166 = vmatmul.mubr.f32.gmra.mrb[0].mxu0 %v2365
    %v3167 = vpop.f32.mrb[0].mxu0
    %v3168 = vadd.f32 0.0, %v3167
    %v3169 = vpop.f32.mrb[0].mxu0
    %3170 = vmatprep.mubr.f32.mxu0 0.0
    %3171 = vmatmul.mubr.f32.gmra.mrb[0].mxu0 %v2368
    %v3172 = vpop.f32.mrb[0].mxu0
    %v3173 = vadd.f32 0.0, %v3172
    %v3174 = vpop.f32.mrb[0].mxu0
    %3175 = vmatprep.mubr.f32.mxu0 0.0
    %3176 = vmatmul.mubr.f32.gmra.mrb[0].mxu0 %v2371
    %v3177 = vpop.f32.mrb[0].mxu0
    %v3178 = vadd.f32 0.0, %v3177
    %v3179 = vpop.f32.mrb[0].mxu0
    %3180 = vmatprep.mubr.f32.mxu0 0.0
    %3181 = vmatmul.mubr.f32.gmra.mrb[0].mxu0 %v2374
    %v3182 = vpop.f32.mrb[0].mxu0
    %v3183 = vadd.f32 0.0, %v3182
    %v3184 = vpop.f32.mrb[0].mxu0
    %3185 = vmatprep.mubr.f32.mxu0 0.0
    %3186 = vmatmul.mubr.f32.gmra.mrb[0].mxu0 %v2377
    %v3187 = vpop.f32.mrb[0].mxu0
    %v3188 = vadd.f32 0.0, %v3187
    %v3189 = vpop.f32.mrb[0].mxu0
    %3190 = vmatprep.mubr.f32.mxu0 0.0
    %3191 = vmatmul.mubr.f32.gmra.mrb[0].mxu0 %v2380
    %v3192 = vpop.f32.mrb[0].mxu0
    %v3193 = vadd.f32 0.0, %v3192
    %v3194 = vpop.f32.mrb[0].mxu0
    %3195 = vmatprep.mubr.f32.mxu0 0.0
    %3196 = vmatmul.mubr.f32.gmra.mrb[0].mxu0 %v2383
    %v3197 = vpop.f32.mrb[0].mxu0
    %v3198 = vadd.f32 0.0, %v3197
    %v3199 = vpop.f32.mrb[0].mxu0
    %3200 = vmatprep.mubr.f32.mxu0 0.0
    %3201 = vmatmul.mubr.f32.gmra.mrb[0].mxu0 %v2386
    %v3202 = vpop.f32.mrb[0].mxu0
    %v3203 = vadd.f32 0.0, %v3202
    %v3204 = vpop.f32.mrb[0].mxu0
    %3205 = vmatprep.mubr.f32.mxu0 0.0
    %3206 = vmatmul.mubr.f32.gmra.mrb[0].mxu0 %v2389
    %v3207 = vpop.f32.mrb[0].mxu0
    %v3208 = vadd.f32 0.0, %v3207
    %v3209 = vpop.f32.mrb[0].mxu0
    %3210 = vmatprep.mubr.f32.mxu0 0.0
    %3211 = vmatmul.mubr.f32.gmra.mrb[0].mxu0 %v2392
    %v3212 = vpop.f32.mrb[0].mxu0
    %v3213 = vadd.f32 0.0, %v3212
    %v3214 = vpop.f32.mrb[0].mxu0
    %3215 = vmatprep.mubr.f32.mxu0 0.0
    %3216 = vmatmul.mubr.f32.gmra.mrb[0].mxu0 %v2395
    %v3217 = vpop.f32.mrb[0].mxu0
    %v3218 = vadd.f32 0.0, %v3217
    %v3219 = vpop.f32.mrb[0].mxu0
    %3220 = vmatprep.mubr.f32.mxu0 0.0
    %3221 = vmatmul.mubr.f32.gmra.mrb[0].mxu0 %v2398
    %v3222 = vpop.f32.mrb[0].mxu0
    %v3223 = vadd.f32 0.0, %v3222
    %v3224 = vpop.f32.mrb[0].mxu0
    %3225 = vmatprep.mubr.f32.mxu0 0.0
    %3226 = vmatmul.mubr.f32.gmra.mrb[0].mxu0 %v2401
    %v3227 = vpop.f32.mrb[0].mxu0
    %v3228 = vadd.f32 0.0, %v3227
    %v3229 = vpop.f32.mrb[0].mxu0
    %3230 = vmatprep.mubr.f32.mxu0 0.0
    %3231 = vmatmul.mubr.f32.gmra.mrb[0].mxu0 %v2404
    %v3232 = vpop.f32.mrb[0].mxu0
    %v3233 = vadd.f32 0.0, %v3232
    %v3234 = vpop.f32.mrb[0].mxu0
    %3235 = vmatprep.mubr.f32.mxu0 0.0
    %3236 = vmatmul.mubr.f32.gmra.mrb[0].mxu0 %v2407
    %v3237 = vpop.f32.mrb[0].mxu0
    %v3238 = vadd.f32 0.0, %v3237
    %v3239 = vpop.f32.mrb[0].mxu0
    %3240 = vmatprep.mubr.f32.mxu0 0.0
    %3241 = vmatmul.mubr.f32.gmra.mrb[0].mxu0 %v2410
    %v3242 = vpop.f32.mrb[0].mxu0
    %v3243 = vadd.f32 0.0, %v3242
    %v3244 = vpop.f32.mrb[0].mxu0
    %3245 = vdwg.mxu0
    %v3246 = vmul.f32 %v2479, %v2143
    %v3247 = vmul.f32 %v2481, %v2144
    %v3248 = vmul.f32 %v2928, %v2145
    %v3249 = vmul.f32 %v2485, %v2146
    %v3250 = vmul.f32 %v2487, %v2147
    %v3251 = vmul.f32 %v2933, %v2148
    %v3252 = vmul.f32 %v2491, %v2149
    %v3253 = vmul.f32 %v2493, %v2150
    %v3254 = vmul.f32 %v2938, %v2151
    %v3255 = vmul.f32 %v2497, %v2152
    %v3256 = vmul.f32 %v2499, %v2153
    %v3257 = vmul.f32 %v2943, %v2154
    %v3258 = vmul.f32 %v2503, %v2143
    %v3259 = vmul.f32 %v2505, %v2144
    %v3260 = vmul.f32 %v2948, %v2145
    %v3261 = vmul.f32 %v2509, %v2146
    %v3262 = vmul.f32 %v2511, %v2147
    %v3263 = vmul.f32 %v2953, %v2148
    %v3264 = vmul.f32 %v2515, %v2149
    %v3265 = vmul.f32 %v2517, %v2150
    %v3266 = vmul.f32 %v2958, %v2151
    %v3267 = vmul.f32 %v2521, %v2152
    %v3268 = vmul.f32 %v2523, %v2153
    %v3269 = vmul.f32 %v2963, %v2154
    %v3270 = vmul.f32 %v2527, %v2143
    %v3271 = vmul.f32 %v2529, %v2144
    %v3272 = vmul.f32 %v2968, %v2145
    %v3273 = vmul.f32 %v2533, %v2146
    %v3274 = vmul.f32 %v2535, %v2147
    %v3275 = vmul.f32 %v2973, %v2148
    %v3276 = vmul.f32 %v2539, %v2149
    %v3277 = vmul.f32 %v2541, %v2150
    %v3278 = vmul.f32 %v2978, %v2151
    %v3279 = vmul.f32 %v2545, %v2152
    %v3280 = vmul.f32 %v2547, %v2153
    %v3281 = vmul.f32 %v2983, %v2154
    %v3282 = vmul.f32 %v2551, %v2143
    %v3283 = vmul.f32 %v2553, %v2144
    %v3284 = vmul.f32 %v2988, %v2145
    %v3285 = vmul.f32 %v2557, %v2146
    %v3286 = vmul.f32 %v2559, %v2147
    %v3287 = vmul.f32 %v2993, %v2148
    %v3288 = vmul.f32 %v2563, %v2149
    %v3289 = vmul.f32 %v2565, %v2150
    %v3290 = vmul.f32 %v2998, %v2151
    %v3291 = vmul.f32 %v2569, %v2152
    %v3292 = vmul.f32 %v2571, %v2153
    %v3293 = vmul.f32 %v3003, %v2154
    %v3294 = vmul.f32 %v2575, %v2143
    %v3295 = vmul.f32 %v2577, %v2144
    %v3296 = vmul.f32 %v3008, %v2145
    %v3297 = vmul.f32 %v2581, %v2146
    %v3298 = vmul.f32 %v2583, %v2147
    %v3299 = vmul.f32 %v3013, %v2148
    %v3300 = vmul.f32 %v2587, %v2149
    %v3301 = vmul.f32 %v2589, %v2150
    %v3302 = vmul.f32 %v3018, %v2151
    %v3303 = vmul.f32 %v2593, %v2152
    %v3304 = vmul.f32 %v2595, %v2153
    %v3305 = vmul.f32 %v3023, %v2154
    %v3306 = vmul.f32 %v2599, %v2143
    %v3307 = vmul.f32 %v2601, %v2144
    %v3308 = vmul.f32 %v3028, %v2145
    %v3309 = vmul.f32 %v2605, %v2146
    %v3310 = vmul.f32 %v2607, %v2147
    %v3311 = vmul.f32 %v3033, %v2148
    %v3312 = vmul.f32 %v2611, %v2149
    %v3313 = vmul.f32 %v2613, %v2150
    %v3314 = vmul.f32 %v3038, %v2151
    %v3315 = vmul.f32 %v2617, %v2152
    %v3316 = vmul.f32 %v2619, %v2153
    %v3317 = vmul.f32 %v3043, %v2154
    %v3318 = vmul.f32 %v2623, %v2143
    %v3319 = vmul.f32 %v2625, %v2144
    %v3320 = vmul.f32 %v3048, %v2145
    %v3321 = vmul.f32 %v2629, %v2146
    %v3322 = vmul.f32 %v2631, %v2147
    %v3323 = vmul.f32 %v3053, %v2148
    %v3324 = vmul.f32 %v2635, %v2149
    %v3325 = vmul.f32 %v2637, %v2150
    %v3326 = vmul.f32 %v3058, %v2151
    %v3327 = vmul.f32 %v2641, %v2152
    %v3328 = vmul.f32 %v2643, %v2153
    %v3329 = vmul.f32 %v3063, %v2154
    %v3330 = vmul.f32 %v2647, %v2143
    %v3331 = vmul.f32 %v2649, %v2144
    %v3332 = vmul.f32 %v3068, %v2145
    %v3333 = vmul.f32 %v2653, %v2146
    %v3334 = vmul.f32 %v2655, %v2147
    %v3335 = vmul.f32 %v3073, %v2148
    %v3336 = vmul.f32 %v2659, %v2149
    %v3337 = vmul.f32 %v2661, %v2150
    %v3338 = vmul.f32 %v3078, %v2151
    %v3339 = vmul.f32 %v2665, %v2152
    %v3340 = vmul.f32 %v2667, %v2153
    %v3341 = vmul.f32 %v3083, %v2154
    %v3342 = vadd.f32 %v3246, %v3249
    %v3343 = vadd.f32 %v3342, %v3252
    %v3344 = vadd.f32 %v3343, %v3255
    %v3345 = vrot.slane %v3344, 4
    %v3346 = vadd.f32 %v3344, %v3345
    %v3347 = vrot.slane %v3346, 2
    %v3348 = vadd.f32 %v3346, %v3347
    %v3349 = vrot.slane %v3348, 1
    %v3350 = vadd.f32 %v3348, %v3349
    %v3351 = vadd.f32 %v3247, %v3250
    %v3352 = vadd.f32 %v3351, %v3253
    %v3353 = vadd.f32 %v3352, %v3256
    %v3354 = vrot.slane %v3353, 4
    %v3355 = vadd.f32 %v3353, %v3354
    %v3356 = vrot.slane %v3355, 2
    %v3357 = vadd.f32 %v3355, %v3356
    %v3358 = vrot.slane %v3357, 1
    %v3359 = vadd.f32 %v3357, %v3358
    %v3360 = vadd.f32 %v3248, %v3251
    %v3361 = vadd.f32 %v3360, %v3254
    %v3362 = vadd.f32 %v3361, %v3257
    %v3363 = vrot.slane %v3362, 4
    %v3364 = vadd.f32 %v3362, %v3363
    %v3365 = vrot.slane %v3364, 2
    %v3366 = vadd.f32 %v3364, %v3365
    %v3367 = vrot.slane %v3366, 1
    %v3368 = vadd.f32 %v3366, %v3367
    %v3369 = vadd.f32 %v3258, %v3261
    %v3370 = vadd.f32 %v3369, %v3264
    %v3371 = vadd.f32 %v3370, %v3267
    %v3372 = vrot.slane %v3371, 4
    %v3373 = vadd.f32 %v3371, %v3372
    %v3374 = vrot.slane %v3373, 2
    %v3375 = vadd.f32 %v3373, %v3374
    %v3376 = vrot.slane %v3375, 1
    %v3377 = vadd.f32 %v3375, %v3376
    %v3378 = vadd.f32 %v3259, %v3262
    %v3379 = vadd.f32 %v3378, %v3265
    %v3380 = vadd.f32 %v3379, %v3268
    %v3381 = vrot.slane %v3380, 4
    %v3382 = vadd.f32 %v3380, %v3381
    %v3383 = vrot.slane %v3382, 2
    %v3384 = vadd.f32 %v3382, %v3383
    %v3385 = vrot.slane %v3384, 1
    %v3386 = vadd.f32 %v3384, %v3385
    %v3387 = vadd.f32 %v3260, %v3263
    %v3388 = vadd.f32 %v3387, %v3266
    %v3389 = vadd.f32 %v3388, %v3269
    %v3390 = vrot.slane %v3389, 4
    %v3391 = vadd.f32 %v3389, %v3390
    %v3392 = vrot.slane %v3391, 2
    %v3393 = vadd.f32 %v3391, %v3392
    %v3394 = vrot.slane %v3393, 1
    %v3395 = vadd.f32 %v3393, %v3394
    %v3396 = vadd.f32 %v3270, %v3273
    %v3397 = vadd.f32 %v3396, %v3276
    %v3398 = vadd.f32 %v3397, %v3279
    %v3399 = vrot.slane %v3398, 4
    %v3400 = vadd.f32 %v3398, %v3399
    %v3401 = vrot.slane %v3400, 2
    %v3402 = vadd.f32 %v3400, %v3401
    %v3403 = vrot.slane %v3402, 1
    %v3404 = vadd.f32 %v3402, %v3403
    %v3405 = vadd.f32 %v3271, %v3274
    %v3406 = vadd.f32 %v3405, %v3277
    %v3407 = vadd.f32 %v3406, %v3280
    %v3408 = vrot.slane %v3407, 4
    %v3409 = vadd.f32 %v3407, %v3408
    %v3410 = vrot.slane %v3409, 2
    %v3411 = vadd.f32 %v3409, %v3410
    %v3412 = vrot.slane %v3411, 1
    %v3413 = vadd.f32 %v3411, %v3412
    %v3414 = vadd.f32 %v3272, %v3275
    %v3415 = vadd.f32 %v3414, %v3278
    %v3416 = vadd.f32 %v3415, %v3281
    %v3417 = vrot.slane %v3416, 4
    %v3418 = vadd.f32 %v3416, %v3417
    %v3419 = vrot.slane %v3418, 2
    %v3420 = vadd.f32 %v3418, %v3419
    %v3421 = vrot.slane %v3420, 1
    %v3422 = vadd.f32 %v3420, %v3421
    %v3423 = vadd.f32 %v3282, %v3285
    %v3424 = vadd.f32 %v3423, %v3288
    %v3425 = vadd.f32 %v3424, %v3291
    %v3426 = vrot.slane %v3425, 4
    %v3427 = vadd.f32 %v3425, %v3426
    %v3428 = vrot.slane %v3427, 2
    %v3429 = vadd.f32 %v3427, %v3428
    %v3430 = vrot.slane %v3429, 1
    %v3431 = vadd.f32 %v3429, %v3430
    %v3432 = vadd.f32 %v3283, %v3286
    %v3433 = vadd.f32 %v3432, %v3289
    %v3434 = vadd.f32 %v3433, %v3292
    %v3435 = vrot.slane %v3434, 4
    %v3436 = vadd.f32 %v3434, %v3435
    %v3437 = vrot.slane %v3436, 2
    %v3438 = vadd.f32 %v3436, %v3437
    %v3439 = vrot.slane %v3438, 1
    %v3440 = vadd.f32 %v3438, %v3439
    %v3441 = vadd.f32 %v3284, %v3287
    %v3442 = vadd.f32 %v3441, %v3290
    %v3443 = vadd.f32 %v3442, %v3293
    %v3444 = vrot.slane %v3443, 4
    %v3445 = vadd.f32 %v3443, %v3444
    %v3446 = vrot.slane %v3445, 2
    %v3447 = vadd.f32 %v3445, %v3446
    %v3448 = vrot.slane %v3447, 1
    %v3449 = vadd.f32 %v3447, %v3448
    %v3450 = vadd.f32 %v3294, %v3297
    %v3451 = vadd.f32 %v3450, %v3300
    %v3452 = vadd.f32 %v3451, %v3303
    %v3453 = vrot.slane %v3452, 4
    %v3454 = vadd.f32 %v3452, %v3453
    %v3455 = vrot.slane %v3454, 2
    %v3456 = vadd.f32 %v3454, %v3455
    %v3457 = vrot.slane %v3456, 1
    %v3458 = vadd.f32 %v3456, %v3457
    %v3459 = vadd.f32 %v3295, %v3298
    %v3460 = vadd.f32 %v3459, %v3301
    %v3461 = vadd.f32 %v3460, %v3304
    %v3462 = vrot.slane %v3461, 4
    %v3463 = vadd.f32 %v3461, %v3462
    %v3464 = vrot.slane %v3463, 2
    %v3465 = vadd.f32 %v3463, %v3464
    %v3466 = vrot.slane %v3465, 1
    %v3467 = vadd.f32 %v3465, %v3466
    %v3468 = vadd.f32 %v3296, %v3299
    %v3469 = vadd.f32 %v3468, %v3302
    %v3470 = vadd.f32 %v3469, %v3305
    %v3471 = vrot.slane %v3470, 4
    %v3472 = vadd.f32 %v3470, %v3471
    %v3473 = vrot.slane %v3472, 2
    %v3474 = vadd.f32 %v3472, %v3473
    %v3475 = vrot.slane %v3474, 1
    %v3476 = vadd.f32 %v3474, %v3475
    %v3477 = vadd.f32 %v3306, %v3309
    %v3478 = vadd.f32 %v3477, %v3312
    %v3479 = vadd.f32 %v3478, %v3315
    %v3480 = vrot.slane %v3479, 4
    %v3481 = vadd.f32 %v3479, %v3480
    %v3482 = vrot.slane %v3481, 2
    %v3483 = vadd.f32 %v3481, %v3482
    %v3484 = vrot.slane %v3483, 1
    %v3485 = vadd.f32 %v3483, %v3484
    %v3486 = vadd.f32 %v3307, %v3310
    %v3487 = vadd.f32 %v3486, %v3313
    %v3488 = vadd.f32 %v3487, %v3316
    %v3489 = vrot.slane %v3488, 4
    %v3490 = vadd.f32 %v3488, %v3489
    %v3491 = vrot.slane %v3490, 2
    %v3492 = vadd.f32 %v3490, %v3491
    %v3493 = vrot.slane %v3492, 1
    %v3494 = vadd.f32 %v3492, %v3493
    %v3495 = vadd.f32 %v3308, %v3311
    %v3496 = vadd.f32 %v3495, %v3314
    %v3497 = vadd.f32 %v3496, %v3317
    %v3498 = vrot.slane %v3497, 4
    %v3499 = vadd.f32 %v3497, %v3498
    %v3500 = vrot.slane %v3499, 2
    %v3501 = vadd.f32 %v3499, %v3500
    %v3502 = vrot.slane %v3501, 1
    %v3503 = vadd.f32 %v3501, %v3502
    %v3504 = vadd.f32 %v3318, %v3321
    %v3505 = vadd.f32 %v3504, %v3324
    %v3506 = vadd.f32 %v3505, %v3327
    %v3507 = vrot.slane %v3506, 4
    %v3508 = vadd.f32 %v3506, %v3507
    %v3509 = vrot.slane %v3508, 2
    %v3510 = vadd.f32 %v3508, %v3509
    %v3511 = vrot.slane %v3510, 1
    %v3512 = vadd.f32 %v3510, %v3511
    %v3513 = vadd.f32 %v3319, %v3322
    %v3514 = vadd.f32 %v3513, %v3325
    %v3515 = vadd.f32 %v3514, %v3328
    %v3516 = vrot.slane %v3515, 4
    %v3517 = vadd.f32 %v3515, %v3516
    %v3518 = vrot.slane %v3517, 2
    %v3519 = vadd.f32 %v3517, %v3518
    %v3520 = vrot.slane %v3519, 1
    %v3521 = vadd.f32 %v3519, %v3520
    %v3522 = vadd.f32 %v3320, %v3323
    %v3523 = vadd.f32 %v3522, %v3326
    %v3524 = vadd.f32 %v3523, %v3329
    %v3525 = vrot.slane %v3524, 4
    %v3526 = vadd.f32 %v3524, %v3525
    %v3527 = vrot.slane %v3526, 2
    %v3528 = vadd.f32 %v3526, %v3527
    %v3529 = vrot.slane %v3528, 1
    %v3530 = vadd.f32 %v3528, %v3529
    %v3531 = vadd.f32 %v3330, %v3333
    %v3532 = vadd.f32 %v3531, %v3336
    %v3533 = vadd.f32 %v3532, %v3339
    %v3534 = vrot.slane %v3533, 4
    %v3535 = vadd.f32 %v3533, %v3534
    %v3536 = vrot.slane %v3535, 2
    %v3537 = vadd.f32 %v3535, %v3536
    %v3538 = vrot.slane %v3537, 1
    %v3539 = vadd.f32 %v3537, %v3538
    %v3540 = vadd.f32 %v3331, %v3334
    %v3541 = vadd.f32 %v3540, %v3337
    %v3542 = vadd.f32 %v3541, %v3340
    %v3543 = vrot.slane %v3542, 4
    %v3544 = vadd.f32 %v3542, %v3543
    %v3545 = vrot.slane %v3544, 2
    %v3546 = vadd.f32 %v3544, %v3545
    %v3547 = vrot.slane %v3546, 1
    %v3548 = vadd.f32 %v3546, %v3547
    %v3549 = vadd.f32 %v3332, %v3335
    %v3550 = vadd.f32 %v3549, %v3338
    %v3551 = vadd.f32 %v3550, %v3341
    %v3552 = vrot.slane %v3551, 4
    %v3553 = vadd.f32 %v3551, %v3552
    %v3554 = vrot.slane %v3553, 2
    %v3555 = vadd.f32 %v3553, %v3554
    %v3556 = vrot.slane %v3555, 1
    %v3557 = vadd.f32 %v3555, %v3556
    %v3558 = vmul.f32 %v2671, %v2068
    %v3559 = vmul.f32 %v2673, %v2069
    %v3560 = vmul.f32 %v3088, %v2070
    %v3561 = vmul.f32 %v2677, %v2071
    %v3562 = vmul.f32 %v2679, %v2072
    %v3563 = vmul.f32 %v3093, %v2073
    %v3564 = vmul.f32 %v2683, %v2074
    %v3565 = vmul.f32 %v2685, %v2075
    %v3566 = vmul.f32 %v3098, %v2076
    %v3567 = vmul.f32 %v2689, %v2077
    %v3568 = vmul.f32 %v2691, %v2078
    %v3569 = vmul.f32 %v3103, %v2079
    %v3570 = vmul.f32 %v2695, %v2068
    %v3571 = vmul.f32 %v2697, %v2069
    %v3572 = vmul.f32 %v3108, %v2070
    %v3573 = vmul.f32 %v2701, %v2071
    %v3574 = vmul.f32 %v2703, %v2072
    %v3575 = vmul.f32 %v3113, %v2073
    %v3576 = vmul.f32 %v2707, %v2074
    %v3577 = vmul.f32 %v2709, %v2075
    %v3578 = vmul.f32 %v3118, %v2076
    %v3579 = vmul.f32 %v2713, %v2077
    %v3580 = vmul.f32 %v2715, %v2078
    %v3581 = vmul.f32 %v3123, %v2079
    %v3582 = vmul.f32 %v2719, %v2068
    %v3583 = vmul.f32 %v2721, %v2069
    %v3584 = vmul.f32 %v3128, %v2070
    %v3585 = vmul.f32 %v2725, %v2071
    %v3586 = vmul.f32 %v2727, %v2072
    %v3587 = vmul.f32 %v3133, %v2073
    %v3588 = vmul.f32 %v2731, %v2074
    %v3589 = vmul.f32 %v2733, %v2075
    %v3590 = vmul.f32 %v3138, %v2076
    %v3591 = vmul.f32 %v2737, %v2077
    %v3592 = vmul.f32 %v2739, %v2078
    %v3593 = vmul.f32 %v3143, %v2079
    %v3594 = vmul.f32 %v2743, %v2068
    %v3595 = vmul.f32 %v2745, %v2069
    %v3596 = vmul.f32 %v3148, %v2070
    %v3597 = vmul.f32 %v2749, %v2071
    %v3598 = vmul.f32 %v2751, %v2072
    %v3599 = vmul.f32 %v3153, %v2073
    %v3600 = vmul.f32 %v2755, %v2074
    %v3601 = vmul.f32 %v2757, %v2075
    %v3602 = vmul.f32 %v3158, %v2076
    %v3603 = vmul.f32 %v2761, %v2077
    %v3604 = vmul.f32 %v2763, %v2078
    %v3605 = vmul.f32 %v3163, %v2079
    %v3606 = vmul.f32 %v2767, %v2068
    %v3607 = vmul.f32 %v2769, %v2069
    %v3608 = vmul.f32 %v3168, %v2070
    %v3609 = vmul.f32 %v2773, %v2071
    %v3610 = vmul.f32 %v2775, %v2072
    %v3611 = vmul.f32 %v3173, %v2073
    %v3612 = vmul.f32 %v2779, %v2074
    %v3613 = vmul.f32 %v2781, %v2075
    %v3614 = vmul.f32 %v3178, %v2076
    %v3615 = vmul.f32 %v2785, %v2077
    %v3616 = vmul.f32 %v2787, %v2078
    %v3617 = vmul.f32 %v3183, %v2079
    %v3618 = vmul.f32 %v2791, %v2068
    %v3619 = vmul.f32 %v2793, %v2069
    %v3620 = vmul.f32 %v3188, %v2070
    %v3621 = vmul.f32 %v2797, %v2071
    %v3622 = vmul.f32 %v2799, %v2072
    %v3623 = vmul.f32 %v3193, %v2073
    %v3624 = vmul.f32 %v2803, %v2074
    %v3625 = vmul.f32 %v2805, %v2075
    %v3626 = vmul.f32 %v3198, %v2076
    %v3627 = vmul.f32 %v2809, %v2077
    %v3628 = vmul.f32 %v2811, %v2078
    %v3629 = vmul.f32 %v3203, %v2079
    %v3630 = vmul.f32 %v2815, %v2068
    %v3631 = vmul.f32 %v2817, %v2069
    %v3632 = vmul.f32 %v3208, %v2070
    %v3633 = vmul.f32 %v2821, %v2071
    %v3634 = vmul.f32 %v2823, %v2072
    %v3635 = vmul.f32 %v3213, %v2073
    %v3636 = vmul.f32 %v2827, %v2074
    %v3637 = vmul.f32 %v2829, %v2075
    %v3638 = vmul.f32 %v3218, %v2076
    %v3639 = vmul.f32 %v2833, %v2077
    %v3640 = vmul.f32 %v2835, %v2078
    %v3641 = vmul.f32 %v3223, %v2079
    %v3642 = vmul.f32 %v2839, %v2068
    %v3643 = vmul.f32 %v2841, %v2069
    %v3644 = vmul.f32 %v3228, %v2070
    %v3645 = vmul.f32 %v2845, %v2071
    %v3646 = vmul.f32 %v2847, %v2072
    %v3647 = vmul.f32 %v3233, %v2073
    %v3648 = vmul.f32 %v2851, %v2074
    %v3649 = vmul.f32 %v2853, %v2075
    %v3650 = vmul.f32 %v3238, %v2076
    %v3651 = vmul.f32 %v2857, %v2077
    %v3652 = vmul.f32 %v2859, %v2078
    %v3653 = vmul.f32 %v3243, %v2079
    %v3654 = vadd.f32 %v3558, %v3561
    %v3655 = vadd.f32 %v3654, %v3564
    %v3656 = vadd.f32 %v3655, %v3567
    %v3657 = vrot.slane %v3656, 4
    %v3658 = vadd.f32 %v3656, %v3657
    %v3659 = vrot.slane %v3658, 2
    %v3660 = vadd.f32 %v3658, %v3659
    %v3661 = vrot.slane %v3660, 1
    %v3662 = vadd.f32 %v3660, %v3661
    %v3663 = vadd.f32 %v3559, %v3562
    %v3664 = vadd.f32 %v3663, %v3565
    %v3665 = vadd.f32 %v3664, %v3568
    %v3666 = vrot.slane %v3665, 4
    %v3667 = vadd.f32 %v3665, %v3666
    %v3668 = vrot.slane %v3667, 2
    %v3669 = vadd.f32 %v3667, %v3668
    %v3670 = vrot.slane %v3669, 1
    %v3671 = vadd.f32 %v3669, %v3670
    %v3672 = vadd.f32 %v3560, %v3563
    %v3673 = vadd.f32 %v3672, %v3566
    %v3674 = vadd.f32 %v3673, %v3569
    %v3675 = vrot.slane %v3674, 4
    %v3676 = vadd.f32 %v3674, %v3675
    %v3677 = vrot.slane %v3676, 2
    %v3678 = vadd.f32 %v3676, %v3677
    %v3679 = vrot.slane %v3678, 1
    %v3680 = vadd.f32 %v3678, %v3679
    %v3681 = vadd.f32 %v3570, %v3573
    %v3682 = vadd.f32 %v3681, %v3576
    %v3683 = vadd.f32 %v3682, %v3579
    %v3684 = vrot.slane %v3683, 4
    %v3685 = vadd.f32 %v3683, %v3684
    %v3686 = vrot.slane %v3685, 2
    %v3687 = vadd.f32 %v3685, %v3686
    %v3688 = vrot.slane %v3687, 1
    %v3689 = vadd.f32 %v3687, %v3688
    %v3690 = vadd.f32 %v3571, %v3574
    %v3691 = vadd.f32 %v3690, %v3577
    %v3692 = vadd.f32 %v3691, %v3580
    %v3693 = vrot.slane %v3692, 4
    %v3694 = vadd.f32 %v3692, %v3693
    %v3695 = vrot.slane %v3694, 2
    %v3696 = vadd.f32 %v3694, %v3695
    %v3697 = vrot.slane %v3696, 1
    %v3698 = vadd.f32 %v3696, %v3697
    %v3699 = vadd.f32 %v3572, %v3575
    %v3700 = vadd.f32 %v3699, %v3578
    %v3701 = vadd.f32 %v3700, %v3581
    %v3702 = vrot.slane %v3701, 4
    %v3703 = vadd.f32 %v3701, %v3702
    %v3704 = vrot.slane %v3703, 2
    %v3705 = vadd.f32 %v3703, %v3704
    %v3706 = vrot.slane %v3705, 1
    %v3707 = vadd.f32 %v3705, %v3706
    %v3708 = vadd.f32 %v3582, %v3585
    %v3709 = vadd.f32 %v3708, %v3588
    %v3710 = vadd.f32 %v3709, %v3591
    %v3711 = vrot.slane %v3710, 4
    %v3712 = vadd.f32 %v3710, %v3711
    %v3713 = vrot.slane %v3712, 2
    %v3714 = vadd.f32 %v3712, %v3713
    %v3715 = vrot.slane %v3714, 1
    %v3716 = vadd.f32 %v3714, %v3715
    %v3717 = vadd.f32 %v3583, %v3586
    %v3718 = vadd.f32 %v3717, %v3589
    %v3719 = vadd.f32 %v3718, %v3592
    %v3720 = vrot.slane %v3719, 4
    %v3721 = vadd.f32 %v3719, %v3720
    %v3722 = vrot.slane %v3721, 2
    %v3723 = vadd.f32 %v3721, %v3722
    %v3724 = vrot.slane %v3723, 1
    %v3725 = vadd.f32 %v3723, %v3724
    %v3726 = vadd.f32 %v3584, %v3587
    %v3727 = vadd.f32 %v3726, %v3590
    %v3728 = vadd.f32 %v3727, %v3593
    %v3729 = vrot.slane %v3728, 4
    %v3730 = vadd.f32 %v3728, %v3729
    %v3731 = vrot.slane %v3730, 2
    %v3732 = vadd.f32 %v3730, %v3731
    %v3733 = vrot.slane %v3732, 1
    %v3734 = vadd.f32 %v3732, %v3733
    %v3735 = vadd.f32 %v3594, %v3597
    %v3736 = vadd.f32 %v3735, %v3600
    %v3737 = vadd.f32 %v3736, %v3603
    %v3738 = vrot.slane %v3737, 4
    %v3739 = vadd.f32 %v3737, %v3738
    %v3740 = vrot.slane %v3739, 2
    %v3741 = vadd.f32 %v3739, %v3740
    %v3742 = vrot.slane %v3741, 1
    %v3743 = vadd.f32 %v3741, %v3742
    %v3744 = vadd.f32 %v3595, %v3598
    %v3745 = vadd.f32 %v3744, %v3601
    %v3746 = vadd.f32 %v3745, %v3604
    %v3747 = vrot.slane %v3746, 4
    %v3748 = vadd.f32 %v3746, %v3747
    %v3749 = vrot.slane %v3748, 2
    %v3750 = vadd.f32 %v3748, %v3749
    %v3751 = vrot.slane %v3750, 1
    %v3752 = vadd.f32 %v3750, %v3751
    %v3753 = vadd.f32 %v3596, %v3599
    %v3754 = vadd.f32 %v3753, %v3602
    %v3755 = vadd.f32 %v3754, %v3605
    %v3756 = vrot.slane %v3755, 4
    %v3757 = vadd.f32 %v3755, %v3756
    %v3758 = vrot.slane %v3757, 2
    %v3759 = vadd.f32 %v3757, %v3758
    %v3760 = vrot.slane %v3759, 1
    %v3761 = vadd.f32 %v3759, %v3760
    %v3762 = vadd.f32 %v3606, %v3609
    %v3763 = vadd.f32 %v3762, %v3612
    %v3764 = vadd.f32 %v3763, %v3615
    %v3765 = vrot.slane %v3764, 4
    %v3766 = vadd.f32 %v3764, %v3765
    %v3767 = vrot.slane %v3766, 2
    %v3768 = vadd.f32 %v3766, %v3767
    %v3769 = vrot.slane %v3768, 1
    %v3770 = vadd.f32 %v3768, %v3769
    %v3771 = vadd.f32 %v3607, %v3610
    %v3772 = vadd.f32 %v3771, %v3613
    %v3773 = vadd.f32 %v3772, %v3616
    %v3774 = vrot.slane %v3773, 4
    %v3775 = vadd.f32 %v3773, %v3774
    %v3776 = vrot.slane %v3775, 2
    %v3777 = vadd.f32 %v3775, %v3776
    %v3778 = vrot.slane %v3777, 1
    %v3779 = vadd.f32 %v3777, %v3778
    %v3780 = vadd.f32 %v3608, %v3611
    %v3781 = vadd.f32 %v3780, %v3614
    %v3782 = vadd.f32 %v3781, %v3617
    %v3783 = vrot.slane %v3782, 4
    %v3784 = vadd.f32 %v3782, %v3783
    %v3785 = vrot.slane %v3784, 2
    %v3786 = vadd.f32 %v3784, %v3785
    %v3787 = vrot.slane %v3786, 1
    %v3788 = vadd.f32 %v3786, %v3787
    %v3789 = vadd.f32 %v3618, %v3621
    %v3790 = vadd.f32 %v3789, %v3624
    %v3791 = vadd.f32 %v3790, %v3627
    %v3792 = vrot.slane %v3791, 4
    %v3793 = vadd.f32 %v3791, %v3792
    %v3794 = vrot.slane %v3793, 2
    %v3795 = vadd.f32 %v3793, %v3794
    %v3796 = vrot.slane %v3795, 1
    %v3797 = vadd.f32 %v3795, %v3796
    %v3798 = vadd.f32 %v3619, %v3622
    %v3799 = vadd.f32 %v3798, %v3625
    %v3800 = vadd.f32 %v3799, %v3628
    %v3801 = vrot.slane %v3800, 4
    %v3802 = vadd.f32 %v3800, %v3801
    %v3803 = vrot.slane %v3802, 2
    %v3804 = vadd.f32 %v3802, %v3803
    %v3805 = vrot.slane %v3804, 1
    %v3806 = vadd.f32 %v3804, %v3805
    %v3807 = vadd.f32 %v3620, %v3623
    %v3808 = vadd.f32 %v3807, %v3626
    %v3809 = vadd.f32 %v3808, %v3629
    %v3810 = vrot.slane %v3809, 4
    %v3811 = vadd.f32 %v3809, %v3810
    %v3812 = vrot.slane %v3811, 2
    %v3813 = vadd.f32 %v3811, %v3812
    %v3814 = vrot.slane %v3813, 1
    %v3815 = vadd.f32 %v3813, %v3814
    %v3816 = vadd.f32 %v3630, %v3633
    %v3817 = vadd.f32 %v3816, %v3636
    %v3818 = vadd.f32 %v3817, %v3639
    %v3819 = vrot.slane %v3818, 4
    %v3820 = vadd.f32 %v3818, %v3819
    %v3821 = vrot.slane %v3820, 2
    %v3822 = vadd.f32 %v3820, %v3821
    %v3823 = vrot.slane %v3822, 1
    %v3824 = vadd.f32 %v3822, %v3823
    %v3825 = vadd.f32 %v3631, %v3634
    %v3826 = vadd.f32 %v3825, %v3637
    %v3827 = vadd.f32 %v3826, %v3640
    %v3828 = vrot.slane %v3827, 4
    %v3829 = vadd.f32 %v3827, %v3828
    %v3830 = vrot.slane %v3829, 2
    %v3831 = vadd.f32 %v3829, %v3830
    %v3832 = vrot.slane %v3831, 1
    %v3833 = vadd.f32 %v3831, %v3832
    %v3834 = vadd.f32 %v3632, %v3635
    %v3835 = vadd.f32 %v3834, %v3638
    %v3836 = vadd.f32 %v3835, %v3641
    %v3837 = vrot.slane %v3836, 4
    %v3838 = vadd.f32 %v3836, %v3837
    %v3839 = vrot.slane %v3838, 2
    %v3840 = vadd.f32 %v3838, %v3839
    %v3841 = vrot.slane %v3840, 1
    %v3842 = vadd.f32 %v3840, %v3841
    %v3843 = vadd.f32 %v3642, %v3645
    %v3844 = vadd.f32 %v3843, %v3648
    %v3845 = vadd.f32 %v3844, %v3651
    %v3846 = vrot.slane %v3845, 4
    %v3847 = vadd.f32 %v3845, %v3846
    %v3848 = vrot.slane %v3847, 2
    %v3849 = vadd.f32 %v3847, %v3848
    %v3850 = vrot.slane %v3849, 1
    %v3851 = vadd.f32 %v3849, %v3850
    %v3852 = vadd.f32 %v3643, %v3646
    %v3853 = vadd.f32 %v3852, %v3649
    %v3854 = vadd.f32 %v3853, %v3652
    %v3855 = vrot.slane %v3854, 4
    %v3856 = vadd.f32 %v3854, %v3855
    %v3857 = vrot.slane %v3856, 2
    %v3858 = vadd.f32 %v3856, %v3857
    %v3859 = vrot.slane %v3858, 1
    %v3860 = vadd.f32 %v3858, %v3859
    %v3861 = vadd.f32 %v3644, %v3647
    %v3862 = vadd.f32 %v3861, %v3650
    %v3863 = vadd.f32 %v3862, %v3653
    %v3864 = vrot.slane %v3863, 4
    %v3865 = vadd.f32 %v3863, %v3864
    %v3866 = vrot.slane %v3865, 2
    %v3867 = vadd.f32 %v3865, %v3866
    %v3868 = vrot.slane %v3867, 1
    %v3869 = vadd.f32 %v3867, %v3868
    %v3870 = vld [vmem:[%s2 + $0x200] sm:$0xff]
    %v3871 = vld [vmem:[%s2 + $0x208] sm:$0xff]
    %v3872 = vld [vmem:[%s2 + $0x210] sm:$0xff]
    %v3873 = vld [vmem:[%s2 + $0x218] sm:$0xff]
    %v3874 = vld [vmem:[%s2 + $0x220] sm:$0xff]
    %v3875 = vld [vmem:[%s2 + $0x228] sm:$0xff]
    %v3876 = vld [vmem:[%s2 + $0x230] sm:$0xff]
    %v3877 = vld [vmem:[%s2 + $0x238] sm:$0xff]
    %v3878 = vld [vmem:[%s2 + $0x240] sm:$0xff]
    %v3879 = vld [vmem:[%s2 + $0x248] sm:$0xff]
    %v3880 = vld [vmem:[%s2 + $0x250] sm:$0xff]
    %v3881 = vld [vmem:[%s2 + $0x258] sm:$0xff]
    %v3882 = vld [vmem:[%s2 + $0x260] sm:$0xff]
    %v3883 = vld [vmem:[%s2 + $0x268] sm:$0xff]
    %v3884 = vld [vmem:[%s2 + $0x270] sm:$0xff]
    %v3885 = vld [vmem:[%s2 + $0x278] sm:$0xff]
    %v3886 = vld [vmem:[%s2 + $0x280] sm:$0xff]
    %v3887 = vld [vmem:[%s2 + $0x288] sm:$0xff]
    %v3888 = vld [vmem:[%s2 + $0x290] sm:$0xff]
    %v3889 = vld [vmem:[%s2 + $0x298] sm:$0xff]
    %v3890 = vld [vmem:[%s2 + $0x2a0] sm:$0xff]
    %v3891 = vld [vmem:[%s2 + $0x2a8] sm:$0xff]
    %v3892 = vld [vmem:[%s2 + $0x2b0] sm:$0xff]
    %v3893 = vld [vmem:[%s2 + $0x2b8] sm:$0xff]
    %v3894 = vld [vmem:[%s2 + $0x2c0] sm:$0xff]
    %v3895 = vld [vmem:[%s2 + $0x2c8] sm:$0xff]
    %v3896 = vld [vmem:[%s2 + $0x2d0] sm:$0xff]
    %v3897 = vld [vmem:[%s2 + $0x2d8] sm:$0xff]
    %v3898 = vld [vmem:[%s2 + $0x2e0] sm:$0xff]
    %v3899 = vld [vmem:[%s2 + $0x2e8] sm:$0xff]
    %v3900 = vld [vmem:[%s2 + $0x2f0] sm:$0xff]
    %v3901 = vld [vmem:[%s2 + $0x2f8] sm:$0xff]
    %v3903 = vsel %vm2219, %v3870, 0
    %v3906 = vsel %vm2219, %v3871, 0
    %v3909 = vsel %vm2219, %v3872, 0
    %v3912 = vsel %vm2219, %v3873, 0
    %v3915 = vsel %vm2219, %v3874, 0
    %v3918 = vsel %vm2219, %v3875, 0
    %v3921 = vsel %vm2219, %v3876, 0
    %v3924 = vsel %vm2219, %v3877, 0
    %v3927 = vsel %vm2219, %v3878, 0
    %v3930 = vsel %vm2219, %v3879, 0
    %v3933 = vsel %vm2219, %v3880, 0
    %v3936 = vsel %vm2219, %v3881, 0
    %v3939 = vsel %vm2219, %v3882, 0
    %v3942 = vsel %vm2219, %v3883, 0
    %v3945 = vsel %vm2219, %v3884, 0
    %v3948 = vsel %vm2219, %v3885, 0
    %v3951 = vsel %vm2219, %v3886, 0
    %v3954 = vsel %vm2219, %v3887, 0
    %v3957 = vsel %vm2219, %v3888, 0
    %v3960 = vsel %vm2219, %v3889, 0
    %v3963 = vsel %vm2219, %v3890, 0
    %v3966 = vsel %vm2219, %v3891, 0
    %v3969 = vsel %vm2219, %v3892, 0
    %v3972 = vsel %vm2219, %v3893, 0
    %v3975 = vsel %vm2219, %v3894, 0
    %v3978 = vsel %vm2219, %v3895, 0
    %v3981 = vsel %vm2219, %v3896, 0
    %v3984 = vsel %vm2219, %v3897, 0
    %v3987 = vsel %vm2219, %v3898, 0
    %v3990 = vsel %vm2219, %v3899, 0
    %v3993 = vsel %vm2219, %v3900, 0
    %v3996 = vsel %vm2219, %v3901, 0
    %3998 = vmatprep.subr.mxu0 %v2069
    %3999 = vmatpush1.msra.mxu0 %v2068
    %4000 = vmatprep.subr.mxu0 %v2072
    %4001 = vmatpush1.msra.mxu0 %v2071
    %4002 = vmatprep.subr.mxu0 %v2075
    %4003 = vmatpush1.msra.mxu0 %v2074
    %4004 = vmatprep.subr.mxu0 %v2078
    %4005 = vmatpush1.msra.mxu0 %v2077
    %4006 = vmatprep.subr.mxu0 0.0
    %4007 = vmatpush1.msra.mxu0 0.0
    %4008 = vmatprep.subr.mxu0 0.0
    %4009 = vmatpush1.msra.mxu0 0.0
    %4010 = vmatprep.subr.mxu0 0.0
    %4011 = vmatpush1.msra.mxu0 0.0
    %4012 = vmatprep.subr.mxu0 0.0
    %4013 = vmatpush1.msra.mxu0 0.0
    %4014 = vmatprep.subr.mxu0 0.0
    %4015 = vmatpush1.msra.mxu0 0.0
    %4016 = vmatprep.subr.mxu0 0.0
    %4017 = vmatpush1.msra.mxu0 0.0
    %4018 = vmatprep.subr.mxu0 0.0
    %4019 = vmatpush1.msra.mxu0 0.0
    %4020 = vmatprep.subr.mxu0 0.0
    %4021 = vmatpush1.msra.mxu0 0.0
    %4022 = vmatprep.subr.mxu0 0.0
    %4023 = vmatpush1.msra.mxu0 0.0
    %4024 = vmatprep.subr.mxu0 0.0
    %4025 = vmatpush1.msra.mxu0 0.0
    %4026 = vmatprep.subr.mxu0 0.0
    %4027 = vmatpush1.msra.mxu0 0.0
    %4028 = vmatprep.subr.mxu0 0.0
    %4029 = vmatpush1.msra.mxu0 0.0
    %4030 = vmatprep.subr.mxu0 0.0
    %4031 = vmatpush1.msra.mxu0 0.0
    %4032 = vmatprep.subr.mxu0 0.0
    %4033 = vmatpush1.msra.mxu0 0.0
    %4034 = vmatprep.subr.mxu0 0.0
    %4035 = vmatpush1.msra.mxu0 0.0
    %4036 = vmatprep.subr.mxu0 0.0
    %4037 = vmatpush1.msra.mxu0 0.0
    %4038 = vmatprep.subr.mxu0 0.0
    %4039 = vmatpush1.msra.mxu0 0.0
    %4040 = vmatprep.subr.mxu0 0.0
    %4041 = vmatpush1.msra.mxu0 0.0
    %4042 = vmatprep.subr.mxu0 0.0
    %4043 = vmatpush1.msra.mxu0 0.0
    %4044 = vmatprep.subr.mxu0 0.0
    %4045 = vmatpush1.msra.mxu0 0.0
    %4046 = vmatprep.subr.mxu0 0.0
    %4047 = vmatpush1.msra.mxu0 0.0
    %4048 = vmatprep.subr.mxu0 0.0
    %4049 = vmatpush1.msra.mxu0 0.0
    %4050 = vmatprep.subr.mxu0 0.0
    %4051 = vmatpush1.msra.mxu0 0.0
    %4052 = vmatprep.subr.mxu0 0.0
    %4053 = vmatpush1.msra.mxu0 0.0
    %4054 = vmatprep.subr.mxu0 0.0
    %4055 = vmatpush1.msra.mxu0 0.0
    %4056 = vmatprep.subr.mxu0 0.0
    %4057 = vmatpush1.msra.mxu0 0.0
    %4058 = vmatprep.subr.mxu0 0.0
    %4059 = vmatpush1.msra.mxu0 0.0
    %4060 = vmatprep.subr.mxu0 0.0
    %4061 = vmatpush1.msra.mxu0 0.0
    %4062 = vmatprep.mubr.f32.mxu0 0.0
    %4063 = vmatmul.mubr.f32.gmra.mrb[0].mxu0 %v3903
    %v4064 = vpop.f32.mrb[0].mxu0
    %v4065 = vadd.f32 0.0, %v4064
    %v4066 = vpop.f32.mrb[0].mxu0
    %v4067 = vadd.f32 0.0, %v4066
    %4068 = vmatprep.mubr.f32.mxu0 0.0
    %4069 = vmatmul.mubr.f32.gmra.mrb[0].mxu0 %v3906
    %v4070 = vpop.f32.mrb[0].mxu0
    %v4071 = vadd.f32 0.0, %v4070
    %v4072 = vpop.f32.mrb[0].mxu0
    %v4073 = vadd.f32 0.0, %v4072
    %4074 = vmatprep.mubr.f32.mxu0 0.0
    %4075 = vmatmul.mubr.f32.gmra.mrb[0].mxu0 %v3909
    %v4076 = vpop.f32.mrb[0].mxu0
    %v4077 = vadd.f32 0.0, %v4076
    %v4078 = vpop.f32.mrb[0].mxu0
    %v4079 = vadd.f32 0.0, %v4078
    %4080 = vmatprep.mubr.f32.mxu0 0.0
    %4081 = vmatmul.mubr.f32.gmra.mrb[0].mxu0 %v3912
    %v4082 = vpop.f32.mrb[0].mxu0
    %v4083 = vadd.f32 0.0, %v4082
    %v4084 = vpop.f32.mrb[0].mxu0
    %v4085 = vadd.f32 0.0, %v4084
    %4086 = vmatprep.mubr.f32.mxu0 0.0
    %4087 = vmatmul.mubr.f32.gmra.mrb[0].mxu0 %v3915
    %v4088 = vpop.f32.mrb[0].mxu0
    %v4089 = vadd.f32 0.0, %v4088
    %v4090 = vpop.f32.mrb[0].mxu0
    %v4091 = vadd.f32 0.0, %v4090
    %4092 = vmatprep.mubr.f32.mxu0 0.0
    %4093 = vmatmul.mubr.f32.gmra.mrb[0].mxu0 %v3918
    %v4094 = vpop.f32.mrb[0].mxu0
    %v4095 = vadd.f32 0.0, %v4094
    %v4096 = vpop.f32.mrb[0].mxu0
    %v4097 = vadd.f32 0.0, %v4096
    %4098 = vmatprep.mubr.f32.mxu0 0.0
    %4099 = vmatmul.mubr.f32.gmra.mrb[0].mxu0 %v3921
    %v4100 = vpop.f32.mrb[0].mxu0
    %v4101 = vadd.f32 0.0, %v4100
    %v4102 = vpop.f32.mrb[0].mxu0
    %v4103 = vadd.f32 0.0, %v4102
    %4104 = vmatprep.mubr.f32.mxu0 0.0
    %4105 = vmatmul.mubr.f32.gmra.mrb[0].mxu0 %v3924
    %v4106 = vpop.f32.mrb[0].mxu0
    %v4107 = vadd.f32 0.0, %v4106
    %v4108 = vpop.f32.mrb[0].mxu0
    %v4109 = vadd.f32 0.0, %v4108
    %4110 = vmatprep.mubr.f32.mxu0 0.0
    %4111 = vmatmul.mubr.f32.gmra.mrb[0].mxu0 %v3927
    %v4112 = vpop.f32.mrb[0].mxu0
    %v4113 = vadd.f32 0.0, %v4112
    %v4114 = vpop.f32.mrb[0].mxu0
    %v4115 = vadd.f32 0.0, %v4114
    %4116 = vmatprep.mubr.f32.mxu0 0.0
    %4117 = vmatmul.mubr.f32.gmra.mrb[0].mxu0 %v3930
    %v4118 = vpop.f32.mrb[0].mxu0
    %v4119 = vadd.f32 0.0, %v4118
    %v4120 = vpop.f32.mrb[0].mxu0
    %v4121 = vadd.f32 0.0, %v4120
    %4122 = vmatprep.mubr.f32.mxu0 0.0
    %4123 = vmatmul.mubr.f32.gmra.mrb[0].mxu0 %v3933
    %v4124 = vpop.f32.mrb[0].mxu0
    %v4125 = vadd.f32 0.0, %v4124
    %v4126 = vpop.f32.mrb[0].mxu0
    %v4127 = vadd.f32 0.0, %v4126
    %4128 = vmatprep.mubr.f32.mxu0 0.0
    %4129 = vmatmul.mubr.f32.gmra.mrb[0].mxu0 %v3936
    %v4130 = vpop.f32.mrb[0].mxu0
    %v4131 = vadd.f32 0.0, %v4130
    %v4132 = vpop.f32.mrb[0].mxu0
    %v4133 = vadd.f32 0.0, %v4132
    %4134 = vmatprep.mubr.f32.mxu0 0.0
    %4135 = vmatmul.mubr.f32.gmra.mrb[0].mxu0 %v3939
    %v4136 = vpop.f32.mrb[0].mxu0
    %v4137 = vadd.f32 0.0, %v4136
    %v4138 = vpop.f32.mrb[0].mxu0
    %v4139 = vadd.f32 0.0, %v4138
    %4140 = vmatprep.mubr.f32.mxu0 0.0
    %4141 = vmatmul.mubr.f32.gmra.mrb[0].mxu0 %v3942
    %v4142 = vpop.f32.mrb[0].mxu0
    %v4143 = vadd.f32 0.0, %v4142
    %v4144 = vpop.f32.mrb[0].mxu0
    %v4145 = vadd.f32 0.0, %v4144
    %4146 = vmatprep.mubr.f32.mxu0 0.0
    %4147 = vmatmul.mubr.f32.gmra.mrb[0].mxu0 %v3945
    %v4148 = vpop.f32.mrb[0].mxu0
    %v4149 = vadd.f32 0.0, %v4148
    %v4150 = vpop.f32.mrb[0].mxu0
    %v4151 = vadd.f32 0.0, %v4150
    %4152 = vmatprep.mubr.f32.mxu0 0.0
    %4153 = vmatmul.mubr.f32.gmra.mrb[0].mxu0 %v3948
    %v4154 = vpop.f32.mrb[0].mxu0
    %v4155 = vadd.f32 0.0, %v4154
    %v4156 = vpop.f32.mrb[0].mxu0
    %v4157 = vadd.f32 0.0, %v4156
    %4158 = vmatprep.mubr.f32.mxu0 0.0
    %4159 = vmatmul.mubr.f32.gmra.mrb[0].mxu0 %v3951
    %v4160 = vpop.f32.mrb[0].mxu0
    %v4161 = vadd.f32 0.0, %v4160
    %v4162 = vpop.f32.mrb[0].mxu0
    %v4163 = vadd.f32 0.0, %v4162
    %4164 = vmatprep.mubr.f32.mxu0 0.0
    %4165 = vmatmul.mubr.f32.gmra.mrb[0].mxu0 %v3954
    %v4166 = vpop.f32.mrb[0].mxu0
    %v4167 = vadd.f32 0.0, %v4166
    %v4168 = vpop.f32.mrb[0].mxu0
    %v4169 = vadd.f32 0.0, %v4168
    %4170 = vmatprep.mubr.f32.mxu0 0.0
    %4171 = vmatmul.mubr.f32.gmra.mrb[0].mxu0 %v3957
    %v4172 = vpop.f32.mrb[0].mxu0
    %v4173 = vadd.f32 0.0, %v4172
    %v4174 = vpop.f32.mrb[0].mxu0
    %v4175 = vadd.f32 0.0, %v4174
    %4176 = vmatprep.mubr.f32.mxu0 0.0
    %4177 = vmatmul.mubr.f32.gmra.mrb[0].mxu0 %v3960
    %v4178 = vpop.f32.mrb[0].mxu0
    %v4179 = vadd.f32 0.0, %v4178
    %v4180 = vpop.f32.mrb[0].mxu0
    %v4181 = vadd.f32 0.0, %v4180
    %4182 = vmatprep.mubr.f32.mxu0 0.0
    %4183 = vmatmul.mubr.f32.gmra.mrb[0].mxu0 %v3963
    %v4184 = vpop.f32.mrb[0].mxu0
    %v4185 = vadd.f32 0.0, %v4184
    %v4186 = vpop.f32.mrb[0].mxu0
    %v4187 = vadd.f32 0.0, %v4186
    %4188 = vmatprep.mubr.f32.mxu0 0.0
    %4189 = vmatmul.mubr.f32.gmra.mrb[0].mxu0 %v3966
    %v4190 = vpop.f32.mrb[0].mxu0
    %v4191 = vadd.f32 0.0, %v4190
    %v4192 = vpop.f32.mrb[0].mxu0
    %v4193 = vadd.f32 0.0, %v4192
    %4194 = vmatprep.mubr.f32.mxu0 0.0
    %4195 = vmatmul.mubr.f32.gmra.mrb[0].mxu0 %v3969
    %v4196 = vpop.f32.mrb[0].mxu0
    %v4197 = vadd.f32 0.0, %v4196
    %v4198 = vpop.f32.mrb[0].mxu0
    %v4199 = vadd.f32 0.0, %v4198
    %4200 = vmatprep.mubr.f32.mxu0 0.0
    %4201 = vmatmul.mubr.f32.gmra.mrb[0].mxu0 %v3972
    %v4202 = vpop.f32.mrb[0].mxu0
    %v4203 = vadd.f32 0.0, %v4202
    %v4204 = vpop.f32.mrb[0].mxu0
    %v4205 = vadd.f32 0.0, %v4204
    %4206 = vmatprep.mubr.f32.mxu0 0.0
    %4207 = vmatmul.mubr.f32.gmra.mrb[0].mxu0 %v3975
    %v4208 = vpop.f32.mrb[0].mxu0
    %v4209 = vadd.f32 0.0, %v4208
    %v4210 = vpop.f32.mrb[0].mxu0
    %v4211 = vadd.f32 0.0, %v4210
    %4212 = vmatprep.mubr.f32.mxu0 0.0
    %4213 = vmatmul.mubr.f32.gmra.mrb[0].mxu0 %v3978
    %v4214 = vpop.f32.mrb[0].mxu0
    %v4215 = vadd.f32 0.0, %v4214
    %v4216 = vpop.f32.mrb[0].mxu0
    %v4217 = vadd.f32 0.0, %v4216
    %4218 = vmatprep.mubr.f32.mxu0 0.0
    %4219 = vmatmul.mubr.f32.gmra.mrb[0].mxu0 %v3981
    %v4220 = vpop.f32.mrb[0].mxu0
    %v4221 = vadd.f32 0.0, %v4220
    %v4222 = vpop.f32.mrb[0].mxu0
    %v4223 = vadd.f32 0.0, %v4222
    %4224 = vmatprep.mubr.f32.mxu0 0.0
    %4225 = vmatmul.mubr.f32.gmra.mrb[0].mxu0 %v3984
    %v4226 = vpop.f32.mrb[0].mxu0
    %v4227 = vadd.f32 0.0, %v4226
    %v4228 = vpop.f32.mrb[0].mxu0
    %v4229 = vadd.f32 0.0, %v4228
    %4230 = vmatprep.mubr.f32.mxu0 0.0
    %4231 = vmatmul.mubr.f32.gmra.mrb[0].mxu0 %v3987
    %v4232 = vpop.f32.mrb[0].mxu0
    %v4233 = vadd.f32 0.0, %v4232
    %v4234 = vpop.f32.mrb[0].mxu0
    %v4235 = vadd.f32 0.0, %v4234
    %4236 = vmatprep.mubr.f32.mxu0 0.0
    %4237 = vmatmul.mubr.f32.gmra.mrb[0].mxu0 %v3990
    %v4238 = vpop.f32.mrb[0].mxu0
    %v4239 = vadd.f32 0.0, %v4238
    %v4240 = vpop.f32.mrb[0].mxu0
    %v4241 = vadd.f32 0.0, %v4240
    %4242 = vmatprep.mubr.f32.mxu0 0.0
    %4243 = vmatmul.mubr.f32.gmra.mrb[0].mxu0 %v3993
    %v4244 = vpop.f32.mrb[0].mxu0
    %v4245 = vadd.f32 0.0, %v4244
    %v4246 = vpop.f32.mrb[0].mxu0
    %v4247 = vadd.f32 0.0, %v4246
    %4248 = vmatprep.mubr.f32.mxu0 0.0
    %4249 = vmatmul.mubr.f32.gmra.mrb[0].mxu0 %v3996
    %v4250 = vpop.f32.mrb[0].mxu0
    %v4251 = vadd.f32 0.0, %v4250
    %v4252 = vpop.f32.mrb[0].mxu0
    %v4253 = vadd.f32 0.0, %v4252
    %4254 = vdwg.mxu0
    %4255 = vmatprep.subr.mxu0 0.0
    %4256 = vmatpush1.msra.mxu0 %v2070
    %4257 = vmatprep.subr.mxu0 0.0
    %4258 = vmatpush1.msra.mxu0 %v2073
    %4259 = vmatprep.subr.mxu0 0.0
    %4260 = vmatpush1.msra.mxu0 %v2076
    %4261 = vmatprep.subr.mxu0 0.0
    %4262 = vmatpush1.msra.mxu0 %v2079
    %4263 = vmatprep.subr.mxu0 0.0
    %4264 = vmatpush1.msra.mxu0 0.0
    %4265 = vmatprep.subr.mxu0 0.0
    %4266 = vmatpush1.msra.mxu0 0.0
    %4267 = vmatprep.subr.mxu0 0.0
    %4268 = vmatpush1.msra.mxu0 0.0
    %4269 = vmatprep.subr.mxu0 0.0
    %4270 = vmatpush1.msra.mxu0 0.0
    %4271 = vmatprep.subr.mxu0 0.0
    %4272 = vmatpush1.msra.mxu0 0.0
    %4273 = vmatprep.subr.mxu0 0.0
    %4274 = vmatpush1.msra.mxu0 0.0
    %4275 = vmatprep.subr.mxu0 0.0
    %4276 = vmatpush1.msra.mxu0 0.0
    %4277 = vmatprep.subr.mxu0 0.0
    %4278 = vmatpush1.msra.mxu0 0.0
    %4279 = vmatprep.subr.mxu0 0.0
    %4280 = vmatpush1.msra.mxu0 0.0
    %4281 = vmatprep.subr.mxu0 0.0
    %4282 = vmatpush1.msra.mxu0 0.0
    %4283 = vmatprep.subr.mxu0 0.0
    %4284 = vmatpush1.msra.mxu0 0.0
    %4285 = vmatprep.subr.mxu0 0.0
    %4286 = vmatpush1.msra.mxu0 0.0
    %4287 = vmatprep.subr.mxu0 0.0
    %4288 = vmatpush1.msra.mxu0 0.0
    %4289 = vmatprep.subr.mxu0 0.0
    %4290 = vmatpush1.msra.mxu0 0.0
    %4291 = vmatprep.subr.mxu0 0.0
    %4292 = vmatpush1.msra.mxu0 0.0
    %4293 = vmatprep.subr.mxu0 0.0
    %4294 = vmatpush1.msra.mxu0 0.0
    %4295 = vmatprep.subr.mxu0 0.0
    %4296 = vmatpush1.msra.mxu0 0.0
    %4297 = vmatprep.subr.mxu0 0.0
    %4298 = vmatpush1.msra.mxu0 0.0
    %4299 = vmatprep.subr.mxu0 0.0
    %4300 = vmatpush1.msra.mxu0 0.0
    %4301 = vmatprep.subr.mxu0 0.0
    %4302 = vmatpush1.msra.mxu0 0.0
    %4303 = vmatprep.subr.mxu0 0.0
    %4304 = vmatpush1.msra.mxu0 0.0
    %4305 = vmatprep.subr.mxu0 0.0
    %4306 = vmatpush1.msra.mxu0 0.0
    %4307 = vmatprep.subr.mxu0 0.0
    %4308 = vmatpush1.msra.mxu0 0.0
    %4309 = vmatprep.subr.mxu0 0.0
    %4310 = vmatpush1.msra.mxu0 0.0
    %4311 = vmatprep.subr.mxu0 0.0
    %4312 = vmatpush1.msra.mxu0 0.0
    %4313 = vmatprep.subr.mxu0 0.0
    %4314 = vmatpush1.msra.mxu0 0.0
    %4315 = vmatprep.subr.mxu0 0.0
    %4316 = vmatpush1.msra.mxu0 0.0
    %4317 = vmatprep.subr.mxu0 0.0
    %4318 = vmatpush1.msra.mxu0 0.0
    %4319 = vmatprep.mubr.f32.mxu0 0.0
    %4320 = vmatmul.mubr.f32.gmra.mrb[0].mxu0 %v3903
    %v4321 = vpop.f32.mrb[0].mxu0
    %v4322 = vadd.f32 0.0, %v4321
    %v4323 = vpop.f32.mrb[0].mxu0
    %4324 = vmatprep.mubr.f32.mxu0 0.0
    %4325 = vmatmul.mubr.f32.gmra.mrb[0].mxu0 %v3906
    %v4326 = vpop.f32.mrb[0].mxu0
    %v4327 = vadd.f32 0.0, %v4326
    %v4328 = vpop.f32.mrb[0].mxu0
    %4329 = vmatprep.mubr.f32.mxu0 0.0
    %4330 = vmatmul.mubr.f32.gmra.mrb[0].mxu0 %v3909
    %v4331 = vpop.f32.mrb[0].mxu0
    %v4332 = vadd.f32 0.0, %v4331
    %v4333 = vpop.f32.mrb[0].mxu0
    %4334 = vmatprep.mubr.f32.mxu0 0.0
    %4335 = vmatmul.mubr.f32.gmra.mrb[0].mxu0 %v3912
    %v4336 = vpop.f32.mrb[0].mxu0
    %v4337 = vadd.f32 0.0, %v4336
    %v4338 = vpop.f32.mrb[0].mxu0
    %4339 = vmatprep.mubr.f32.mxu0 0.0
    %4340 = vmatmul.mubr.f32.gmra.mrb[0].mxu0 %v3915
    %v4341 = vpop.f32.mrb[0].mxu0
    %v4342 = vadd.f32 0.0, %v4341
    %v4343 = vpop.f32.mrb[0].mxu0
    %4344 = vmatprep.mubr.f32.mxu0 0.0
    %4345 = vmatmul.mubr.f32.gmra.mrb[0].mxu0 %v3918
    %v4346 = vpop.f32.mrb[0].mxu0
    %v4347 = vadd.f32 0.0, %v4346
    %v4348 = vpop.f32.mrb[0].mxu0
    %4349 = vmatprep.mubr.f32.mxu0 0.0
    %4350 = vmatmul.mubr.f32.gmra.mrb[0].mxu0 %v3921
    %v4351 = vpop.f32.mrb[0].mxu0
    %v4352 = vadd.f32 0.0, %v4351
    %v4353 = vpop.f32.mrb[0].mxu0
    %4354 = vmatprep.mubr.f32.mxu0 0.0
    %4355 = vmatmul.mubr.f32.gmra.mrb[0].mxu0 %v3924
    %v4356 = vpop.f32.mrb[0].mxu0
    %v4357 = vadd.f32 0.0, %v4356
    %v4358 = vpop.f32.mrb[0].mxu0
    %4359 = vmatprep.mubr.f32.mxu0 0.0
    %4360 = vmatmul.mubr.f32.gmra.mrb[0].mxu0 %v3927
    %v4361 = vpop.f32.mrb[0].mxu0
    %v4362 = vadd.f32 0.0, %v4361
    %v4363 = vpop.f32.mrb[0].mxu0
    %4364 = vmatprep.mubr.f32.mxu0 0.0
    %4365 = vmatmul.mubr.f32.gmra.mrb[0].mxu0 %v3930
    %v4366 = vpop.f32.mrb[0].mxu0
    %v4367 = vadd.f32 0.0, %v4366
    %v4368 = vpop.f32.mrb[0].mxu0
    %4369 = vmatprep.mubr.f32.mxu0 0.0
    %4370 = vmatmul.mubr.f32.gmra.mrb[0].mxu0 %v3933
    %v4371 = vpop.f32.mrb[0].mxu0
    %v4372 = vadd.f32 0.0, %v4371
    %v4373 = vpop.f32.mrb[0].mxu0
    %4374 = vmatprep.mubr.f32.mxu0 0.0
    %4375 = vmatmul.mubr.f32.gmra.mrb[0].mxu0 %v3936
    %v4376 = vpop.f32.mrb[0].mxu0
    %v4377 = vadd.f32 0.0, %v4376
    %v4378 = vpop.f32.mrb[0].mxu0
    %4379 = vmatprep.mubr.f32.mxu0 0.0
    %4380 = vmatmul.mubr.f32.gmra.mrb[0].mxu0 %v3939
    %v4381 = vpop.f32.mrb[0].mxu0
    %v4382 = vadd.f32 0.0, %v4381
    %v4383 = vpop.f32.mrb[0].mxu0
    %4384 = vmatprep.mubr.f32.mxu0 0.0
    %4385 = vmatmul.mubr.f32.gmra.mrb[0].mxu0 %v3942
    %v4386 = vpop.f32.mrb[0].mxu0
    %v4387 = vadd.f32 0.0, %v4386
    %v4388 = vpop.f32.mrb[0].mxu0
    %4389 = vmatprep.mubr.f32.mxu0 0.0
    %4390 = vmatmul.mubr.f32.gmra.mrb[0].mxu0 %v3945
    %v4391 = vpop.f32.mrb[0].mxu0
    %v4392 = vadd.f32 0.0, %v4391
    %v4393 = vpop.f32.mrb[0].mxu0
    %4394 = vmatprep.mubr.f32.mxu0 0.0
    %4395 = vmatmul.mubr.f32.gmra.mrb[0].mxu0 %v3948
    %v4396 = vpop.f32.mrb[0].mxu0
    %v4397 = vadd.f32 0.0, %v4396
    %v4398 = vpop.f32.mrb[0].mxu0
    %4399 = vmatprep.mubr.f32.mxu0 0.0
    %4400 = vmatmul.mubr.f32.gmra.mrb[0].mxu0 %v3951
    %v4401 = vpop.f32.mrb[0].mxu0
    %v4402 = vadd.f32 0.0, %v4401
    %v4403 = vpop.f32.mrb[0].mxu0
    %4404 = vmatprep.mubr.f32.mxu0 0.0
    %4405 = vmatmul.mubr.f32.gmra.mrb[0].mxu0 %v3954
    %v4406 = vpop.f32.mrb[0].mxu0
    %v4407 = vadd.f32 0.0, %v4406
    %v4408 = vpop.f32.mrb[0].mxu0
    %4409 = vmatprep.mubr.f32.mxu0 0.0
    %4410 = vmatmul.mubr.f32.gmra.mrb[0].mxu0 %v3957
    %v4411 = vpop.f32.mrb[0].mxu0
    %v4412 = vadd.f32 0.0, %v4411
    %v4413 = vpop.f32.mrb[0].mxu0
    %4414 = vmatprep.mubr.f32.mxu0 0.0
    %4415 = vmatmul.mubr.f32.gmra.mrb[0].mxu0 %v3960
    %v4416 = vpop.f32.mrb[0].mxu0
    %v4417 = vadd.f32 0.0, %v4416
    %v4418 = vpop.f32.mrb[0].mxu0
    %4419 = vmatprep.mubr.f32.mxu0 0.0
    %4420 = vmatmul.mubr.f32.gmra.mrb[0].mxu0 %v3963
    %v4421 = vpop.f32.mrb[0].mxu0
    %v4422 = vadd.f32 0.0, %v4421
    %v4423 = vpop.f32.mrb[0].mxu0
    %4424 = vmatprep.mubr.f32.mxu0 0.0
    %4425 = vmatmul.mubr.f32.gmra.mrb[0].mxu0 %v3966
    %v4426 = vpop.f32.mrb[0].mxu0
    %v4427 = vadd.f32 0.0, %v4426
    %v4428 = vpop.f32.mrb[0].mxu0
    %4429 = vmatprep.mubr.f32.mxu0 0.0
    %4430 = vmatmul.mubr.f32.gmra.mrb[0].mxu0 %v3969
    %v4431 = vpop.f32.mrb[0].mxu0
    %v4432 = vadd.f32 0.0, %v4431
    %v4433 = vpop.f32.mrb[0].mxu0
    %4434 = vmatprep.mubr.f32.mxu0 0.0
    %4435 = vmatmul.mubr.f32.gmra.mrb[0].mxu0 %v3972
    %v4436 = vpop.f32.mrb[0].mxu0
    %v4437 = vadd.f32 0.0, %v4436
    %v4438 = vpop.f32.mrb[0].mxu0
    %4439 = vmatprep.mubr.f32.mxu0 0.0
    %4440 = vmatmul.mubr.f32.gmra.mrb[0].mxu0 %v3975
    %v4441 = vpop.f32.mrb[0].mxu0
    %v4442 = vadd.f32 0.0, %v4441
    %v4443 = vpop.f32.mrb[0].mxu0
    %4444 = vmatprep.mubr.f32.mxu0 0.0
    %4445 = vmatmul.mubr.f32.gmra.mrb[0].mxu0 %v3978
    %v4446 = vpop.f32.mrb[0].mxu0
    %v4447 = vadd.f32 0.0, %v4446
    %v4448 = vpop.f32.mrb[0].mxu0
    %4449 = vmatprep.mubr.f32.mxu0 0.0
    %4450 = vmatmul.mubr.f32.gmra.mrb[0].mxu0 %v3981
    %v4451 = vpop.f32.mrb[0].mxu0
    %v4452 = vadd.f32 0.0, %v4451
    %v4453 = vpop.f32.mrb[0].mxu0
    %4454 = vmatprep.mubr.f32.mxu0 0.0
    %4455 = vmatmul.mubr.f32.gmra.mrb[0].mxu0 %v3984
    %v4456 = vpop.f32.mrb[0].mxu0
    %v4457 = vadd.f32 0.0, %v4456
    %v4458 = vpop.f32.mrb[0].mxu0
    %4459 = vmatprep.mubr.f32.mxu0 0.0
    %4460 = vmatmul.mubr.f32.gmra.mrb[0].mxu0 %v3987
    %v4461 = vpop.f32.mrb[0].mxu0
    %v4462 = vadd.f32 0.0, %v4461
    %v4463 = vpop.f32.mrb[0].mxu0
    %4464 = vmatprep.mubr.f32.mxu0 0.0
    %4465 = vmatmul.mubr.f32.gmra.mrb[0].mxu0 %v3990
    %v4466 = vpop.f32.mrb[0].mxu0
    %v4467 = vadd.f32 0.0, %v4466
    %v4468 = vpop.f32.mrb[0].mxu0
    %4469 = vmatprep.mubr.f32.mxu0 0.0
    %4470 = vmatmul.mubr.f32.gmra.mrb[0].mxu0 %v3993
    %v4471 = vpop.f32.mrb[0].mxu0
    %v4472 = vadd.f32 0.0, %v4471
    %v4473 = vpop.f32.mrb[0].mxu0
    %4474 = vmatprep.mubr.f32.mxu0 0.0
    %4475 = vmatmul.mubr.f32.gmra.mrb[0].mxu0 %v3996
    %v4476 = vpop.f32.mrb[0].mxu0
    %v4477 = vadd.f32 0.0, %v4476
    %v4478 = vpop.f32.mrb[0].mxu0
    %4479 = vdwg.mxu0
    %v4480 = vmul.f32 %v4065, %v2143
    %v4481 = vmul.f32 %v4067, %v2144
    %v4482 = vmul.f32 %v4322, %v2145
    %v4483 = vmul.f32 %v4071, %v2146
    %v4484 = vmul.f32 %v4073, %v2147
    %v4485 = vmul.f32 %v4327, %v2148
    %v4486 = vmul.f32 %v4077, %v2149
    %v4487 = vmul.f32 %v4079, %v2150
    %v4488 = vmul.f32 %v4332, %v2151
    %v4489 = vmul.f32 %v4083, %v2152
    %v4490 = vmul.f32 %v4085, %v2153
    %v4491 = vmul.f32 %v4337, %v2154
    %v4492 = vmul.f32 %v4089, %v2143
    %v4493 = vmul.f32 %v4091, %v2144
    %v4494 = vmul.f32 %v4342, %v2145
    %v4495 = vmul.f32 %v4095, %v2146
    %v4496 = vmul.f32 %v4097, %v2147
    %v4497 = vmul.f32 %v4347, %v2148
    %v4498 = vmul.f32 %v4101, %v2149
    %v4499 = vmul.f32 %v4103, %v2150
    %v4500 = vmul.f32 %v4352, %v2151
    %v4501 = vmul.f32 %v4107, %v2152
    %v4502 = vmul.f32 %v4109, %v2153
    %v4503 = vmul.f32 %v4357, %v2154
    %v4504 = vmul.f32 %v4113, %v2143
    %v4505 = vmul.f32 %v4115, %v2144
    %v4506 = vmul.f32 %v4362, %v2145
    %v4507 = vmul.f32 %v4119, %v2146
    %v4508 = vmul.f32 %v4121, %v2147
    %v4509 = vmul.f32 %v4367, %v2148
    %v4510 = vmul.f32 %v4125, %v2149
    %v4511 = vmul.f32 %v4127, %v2150
    %v4512 = vmul.f32 %v4372, %v2151
    %v4513 = vmul.f32 %v4131, %v2152
    %v4514 = vmul.f32 %v4133, %v2153
    %v4515 = vmul.f32 %v4377, %v2154
    %v4516 = vmul.f32 %v4137, %v2143
    %v4517 = vmul.f32 %v4139, %v2144
    %v4518 = vmul.f32 %v4382, %v2145
    %v4519 = vmul.f32 %v4143, %v2146
    %v4520 = vmul.f32 %v4145, %v2147
    %v4521 = vmul.f32 %v4387, %v2148
    %v4522 = vmul.f32 %v4149, %v2149
    %v4523 = vmul.f32 %v4151, %v2150
    %v4524 = vmul.f32 %v4392, %v2151
    %v4525 = vmul.f32 %v4155, %v2152
    %v4526 = vmul.f32 %v4157, %v2153
    %v4527 = vmul.f32 %v4397, %v2154
    %v4528 = vmul.f32 %v4161, %v2143
    %v4529 = vmul.f32 %v4163, %v2144
    %v4530 = vmul.f32 %v4402, %v2145
    %v4531 = vmul.f32 %v4167, %v2146
    %v4532 = vmul.f32 %v4169, %v2147
    %v4533 = vmul.f32 %v4407, %v2148
    %v4534 = vmul.f32 %v4173, %v2149
    %v4535 = vmul.f32 %v4175, %v2150
    %v4536 = vmul.f32 %v4412, %v2151
    %v4537 = vmul.f32 %v4179, %v2152
    %v4538 = vmul.f32 %v4181, %v2153
    %v4539 = vmul.f32 %v4417, %v2154
    %v4540 = vmul.f32 %v4185, %v2143
    %v4541 = vmul.f32 %v4187, %v2144
    %v4542 = vmul.f32 %v4422, %v2145
    %v4543 = vmul.f32 %v4191, %v2146
    %v4544 = vmul.f32 %v4193, %v2147
    %v4545 = vmul.f32 %v4427, %v2148
    %v4546 = vmul.f32 %v4197, %v2149
    %v4547 = vmul.f32 %v4199, %v2150
    %v4548 = vmul.f32 %v4432, %v2151
    %v4549 = vmul.f32 %v4203, %v2152
    %v4550 = vmul.f32 %v4205, %v2153
    %v4551 = vmul.f32 %v4437, %v2154
    %v4552 = vmul.f32 %v4209, %v2143
    %v4553 = vmul.f32 %v4211, %v2144
    %v4554 = vmul.f32 %v4442, %v2145
    %v4555 = vmul.f32 %v4215, %v2146
    %v4556 = vmul.f32 %v4217, %v2147
    %v4557 = vmul.f32 %v4447, %v2148
    %v4558 = vmul.f32 %v4221, %v2149
    %v4559 = vmul.f32 %v4223, %v2150
    %v4560 = vmul.f32 %v4452, %v2151
    %v4561 = vmul.f32 %v4227, %v2152
    %v4562 = vmul.f32 %v4229, %v2153
    %v4563 = vmul.f32 %v4457, %v2154
    %v4564 = vmul.f32 %v4233, %v2143
    %v4565 = vmul.f32 %v4235, %v2144
    %v4566 = vmul.f32 %v4462, %v2145
    %v4567 = vmul.f32 %v4239, %v2146
    %v4568 = vmul.f32 %v4241, %v2147
    %v4569 = vmul.f32 %v4467, %v2148
    %v4570 = vmul.f32 %v4245, %v2149
    %v4571 = vmul.f32 %v4247, %v2150
    %v4572 = vmul.f32 %v4472, %v2151
    %v4573 = vmul.f32 %v4251, %v2152
    %v4574 = vmul.f32 %v4253, %v2153
    %v4575 = vmul.f32 %v4477, %v2154
    %v4576 = vadd.f32 %v4480, %v4483
    %v4577 = vadd.f32 %v4576, %v4486
    %v4578 = vadd.f32 %v4577, %v4489
    %v4579 = vrot.slane %v4578, 4
    %v4580 = vadd.f32 %v4578, %v4579
    %v4581 = vrot.slane %v4580, 2
    %v4582 = vadd.f32 %v4580, %v4581
    %v4583 = vrot.slane %v4582, 1
    %v4584 = vadd.f32 %v4582, %v4583
    %v4585 = vadd.f32 %v4481, %v4484
    %v4586 = vadd.f32 %v4585, %v4487
    %v4587 = vadd.f32 %v4586, %v4490
    %v4588 = vrot.slane %v4587, 4
    %v4589 = vadd.f32 %v4587, %v4588
    %v4590 = vrot.slane %v4589, 2
    %v4591 = vadd.f32 %v4589, %v4590
    %v4592 = vrot.slane %v4591, 1
    %v4593 = vadd.f32 %v4591, %v4592
    %v4594 = vadd.f32 %v4482, %v4485
    %v4595 = vadd.f32 %v4594, %v4488
    %v4596 = vadd.f32 %v4595, %v4491
    %v4597 = vrot.slane %v4596, 4
    %v4598 = vadd.f32 %v4596, %v4597
    %v4599 = vrot.slane %v4598, 2
    %v4600 = vadd.f32 %v4598, %v4599
    %v4601 = vrot.slane %v4600, 1
    %v4602 = vadd.f32 %v4600, %v4601
    %v4603 = vadd.f32 %v4492, %v4495
    %v4604 = vadd.f32 %v4603, %v4498
    %v4605 = vadd.f32 %v4604, %v4501
    %v4606 = vrot.slane %v4605, 4
    %v4607 = vadd.f32 %v4605, %v4606
    %v4608 = vrot.slane %v4607, 2
    %v4609 = vadd.f32 %v4607, %v4608
    %v4610 = vrot.slane %v4609, 1
    %v4611 = vadd.f32 %v4609, %v4610
    %v4612 = vadd.f32 %v4493, %v4496
    %v4613 = vadd.f32 %v4612, %v4499
    %v4614 = vadd.f32 %v4613, %v4502
    %v4615 = vrot.slane %v4614, 4
    %v4616 = vadd.f32 %v4614, %v4615
    %v4617 = vrot.slane %v4616, 2
    %v4618 = vadd.f32 %v4616, %v4617
    %v4619 = vrot.slane %v4618, 1
    %v4620 = vadd.f32 %v4618, %v4619
    %v4621 = vadd.f32 %v4494, %v4497
    %v4622 = vadd.f32 %v4621, %v4500
    %v4623 = vadd.f32 %v4622, %v4503
    %v4624 = vrot.slane %v4623, 4
    %v4625 = vadd.f32 %v4623, %v4624
    %v4626 = vrot.slane %v4625, 2
    %v4627 = vadd.f32 %v4625, %v4626
    %v4628 = vrot.slane %v4627, 1
    %v4629 = vadd.f32 %v4627, %v4628
    %v4630 = vadd.f32 %v4504, %v4507
    %v4631 = vadd.f32 %v4630, %v4510
    %v4632 = vadd.f32 %v4631, %v4513
    %v4633 = vrot.slane %v4632, 4
    %v4634 = vadd.f32 %v4632, %v4633
    %v4635 = vrot.slane %v4634, 2
    %v4636 = vadd.f32 %v4634, %v4635
    %v4637 = vrot.slane %v4636, 1
    %v4638 = vadd.f32 %v4636, %v4637
    %v4639 = vadd.f32 %v4505, %v4508
    %v4640 = vadd.f32 %v4639, %v4511
    %v4641 = vadd.f32 %v4640, %v4514
    %v4642 = vrot.slane %v4641, 4
    %v4643 = vadd.f32 %v4641, %v4642
    %v4644 = vrot.slane %v4643, 2
    %v4645 = vadd.f32 %v4643, %v4644
    %v4646 = vrot.slane %v4645, 1
    %v4647 = vadd.f32 %v4645, %v4646
    %v4648 = vadd.f32 %v4506, %v4509
    %v4649 = vadd.f32 %v4648, %v4512
    %v4650 = vadd.f32 %v4649, %v4515
    %v4651 = vrot.slane %v4650, 4
    %v4652 = vadd.f32 %v4650, %v4651
    %v4653 = vrot.slane %v4652, 2
    %v4654 = vadd.f32 %v4652, %v4653
    %v4655 = vrot.slane %v4654, 1
    %v4656 = vadd.f32 %v4654, %v4655
    %v4657 = vadd.f32 %v4516, %v4519
    %v4658 = vadd.f32 %v4657, %v4522
    %v4659 = vadd.f32 %v4658, %v4525
    %v4660 = vrot.slane %v4659, 4
    %v4661 = vadd.f32 %v4659, %v4660
    %v4662 = vrot.slane %v4661, 2
    %v4663 = vadd.f32 %v4661, %v4662
    %v4664 = vrot.slane %v4663, 1
    %v4665 = vadd.f32 %v4663, %v4664
    %v4666 = vadd.f32 %v4517, %v4520
    %v4667 = vadd.f32 %v4666, %v4523
    %v4668 = vadd.f32 %v4667, %v4526
    %v4669 = vrot.slane %v4668, 4
    %v4670 = vadd.f32 %v4668, %v4669
    %v4671 = vrot.slane %v4670, 2
    %v4672 = vadd.f32 %v4670, %v4671
    %v4673 = vrot.slane %v4672, 1
    %v4674 = vadd.f32 %v4672, %v4673
    %v4675 = vadd.f32 %v4518, %v4521
    %v4676 = vadd.f32 %v4675, %v4524
    %v4677 = vadd.f32 %v4676, %v4527
    %v4678 = vrot.slane %v4677, 4
    %v4679 = vadd.f32 %v4677, %v4678
    %v4680 = vrot.slane %v4679, 2
    %v4681 = vadd.f32 %v4679, %v4680
    %v4682 = vrot.slane %v4681, 1
    %v4683 = vadd.f32 %v4681, %v4682
    %v4684 = vadd.f32 %v4528, %v4531
    %v4685 = vadd.f32 %v4684, %v4534
    %v4686 = vadd.f32 %v4685, %v4537
    %v4687 = vrot.slane %v4686, 4
    %v4688 = vadd.f32 %v4686, %v4687
    %v4689 = vrot.slane %v4688, 2
    %v4690 = vadd.f32 %v4688, %v4689
    %v4691 = vrot.slane %v4690, 1
    %v4692 = vadd.f32 %v4690, %v4691
    %v4693 = vadd.f32 %v4529, %v4532
    %v4694 = vadd.f32 %v4693, %v4535
    %v4695 = vadd.f32 %v4694, %v4538
    %v4696 = vrot.slane %v4695, 4
    %v4697 = vadd.f32 %v4695, %v4696
    %v4698 = vrot.slane %v4697, 2
    %v4699 = vadd.f32 %v4697, %v4698
    %v4700 = vrot.slane %v4699, 1
    %v4701 = vadd.f32 %v4699, %v4700
    %v4702 = vadd.f32 %v4530, %v4533
    %v4703 = vadd.f32 %v4702, %v4536
    %v4704 = vadd.f32 %v4703, %v4539
    %v4705 = vrot.slane %v4704, 4
    %v4706 = vadd.f32 %v4704, %v4705
    %v4707 = vrot.slane %v4706, 2
    %v4708 = vadd.f32 %v4706, %v4707
    %v4709 = vrot.slane %v4708, 1
    %v4710 = vadd.f32 %v4708, %v4709
    %v4711 = vadd.f32 %v4540, %v4543
    %v4712 = vadd.f32 %v4711, %v4546
    %v4713 = vadd.f32 %v4712, %v4549
    %v4714 = vrot.slane %v4713, 4
    %v4715 = vadd.f32 %v4713, %v4714
    %v4716 = vrot.slane %v4715, 2
    %v4717 = vadd.f32 %v4715, %v4716
    %v4718 = vrot.slane %v4717, 1
    %v4719 = vadd.f32 %v4717, %v4718
    %v4720 = vadd.f32 %v4541, %v4544
    %v4721 = vadd.f32 %v4720, %v4547
    %v4722 = vadd.f32 %v4721, %v4550
    %v4723 = vrot.slane %v4722, 4
    %v4724 = vadd.f32 %v4722, %v4723
    %v4725 = vrot.slane %v4724, 2
    %v4726 = vadd.f32 %v4724, %v4725
    %v4727 = vrot.slane %v4726, 1
    %v4728 = vadd.f32 %v4726, %v4727
    %v4729 = vadd.f32 %v4542, %v4545
    %v4730 = vadd.f32 %v4729, %v4548
    %v4731 = vadd.f32 %v4730, %v4551
    %v4732 = vrot.slane %v4731, 4
    %v4733 = vadd.f32 %v4731, %v4732
    %v4734 = vrot.slane %v4733, 2
    %v4735 = vadd.f32 %v4733, %v4734
    %v4736 = vrot.slane %v4735, 1
    %v4737 = vadd.f32 %v4735, %v4736
    %v4738 = vadd.f32 %v4552, %v4555
    %v4739 = vadd.f32 %v4738, %v4558
    %v4740 = vadd.f32 %v4739, %v4561
    %v4741 = vrot.slane %v4740, 4
    %v4742 = vadd.f32 %v4740, %v4741
    %v4743 = vrot.slane %v4742, 2
    %v4744 = vadd.f32 %v4742, %v4743
    %v4745 = vrot.slane %v4744, 1
    %v4746 = vadd.f32 %v4744, %v4745
    %v4747 = vadd.f32 %v4553, %v4556
    %v4748 = vadd.f32 %v4747, %v4559
    %v4749 = vadd.f32 %v4748, %v4562
    %v4750 = vrot.slane %v4749, 4
    %v4751 = vadd.f32 %v4749, %v4750
    %v4752 = vrot.slane %v4751, 2
    %v4753 = vadd.f32 %v4751, %v4752
    %v4754 = vrot.slane %v4753, 1
    %v4755 = vadd.f32 %v4753, %v4754
    %v4756 = vadd.f32 %v4554, %v4557
    %v4757 = vadd.f32 %v4756, %v4560
    %v4758 = vadd.f32 %v4757, %v4563
    %v4759 = vrot.slane %v4758, 4
    %v4760 = vadd.f32 %v4758, %v4759
    %v4761 = vrot.slane %v4760, 2
    %v4762 = vadd.f32 %v4760, %v4761
    %v4763 = vrot.slane %v4762, 1
    %v4764 = vadd.f32 %v4762, %v4763
    %v4765 = vadd.f32 %v4564, %v4567
    %v4766 = vadd.f32 %v4765, %v4570
    %v4767 = vadd.f32 %v4766, %v4573
    %v4768 = vrot.slane %v4767, 4
    %v4769 = vadd.f32 %v4767, %v4768
    %v4770 = vrot.slane %v4769, 2
    %v4771 = vadd.f32 %v4769, %v4770
    %v4772 = vrot.slane %v4771, 1
    %v4773 = vadd.f32 %v4771, %v4772
    %v4774 = vadd.f32 %v4565, %v4568
    %v4775 = vadd.f32 %v4774, %v4571
    %v4776 = vadd.f32 %v4775, %v4574
    %v4777 = vrot.slane %v4776, 4
    %v4778 = vadd.f32 %v4776, %v4777
    %v4779 = vrot.slane %v4778, 2
    %v4780 = vadd.f32 %v4778, %v4779
    %v4781 = vrot.slane %v4780, 1
    %v4782 = vadd.f32 %v4780, %v4781
    %v4783 = vadd.f32 %v4566, %v4569
    %v4784 = vadd.f32 %v4783, %v4572
    %v4785 = vadd.f32 %v4784, %v4575
    %v4786 = vrot.slane %v4785, 4
    %v4787 = vadd.f32 %v4785, %v4786
    %v4788 = vrot.slane %v4787, 2
    %v4789 = vadd.f32 %v4787, %v4788
    %v4790 = vrot.slane %v4789, 1
    %v4791 = vadd.f32 %v4789, %v4790
    %v4792 = vmul.f32 %v3350, %v3662
    %v4793 = vmul.f32 %v3359, %v3671
    %v4794 = vmul.f32 %v3368, %v3680
    %v4795 = vmul.f32 %v3377, %v3689
    %v4796 = vmul.f32 %v3386, %v3698
    %v4797 = vmul.f32 %v3395, %v3707
    %v4798 = vmul.f32 %v3404, %v3716
    %v4799 = vmul.f32 %v3413, %v3725
    %v4800 = vmul.f32 %v3422, %v3734
    %v4801 = vmul.f32 %v3431, %v3743
    %v4802 = vmul.f32 %v3440, %v3752
    %v4803 = vmul.f32 %v3449, %v3761
    %v4804 = vmul.f32 %v3458, %v3770
    %v4805 = vmul.f32 %v3467, %v3779
    %v4806 = vmul.f32 %v3476, %v3788
    %v4807 = vmul.f32 %v3485, %v3797
    %v4808 = vmul.f32 %v3494, %v3806
    %v4809 = vmul.f32 %v3503, %v3815
    %v4810 = vmul.f32 %v3512, %v3824
    %v4811 = vmul.f32 %v3521, %v3833
    %v4812 = vmul.f32 %v3530, %v3842
    %v4813 = vmul.f32 %v3539, %v3851
    %v4814 = vmul.f32 %v3548, %v3860
    %v4815 = vmul.f32 %v3557, %v3869
    %v4816 = vmul.f32 %v4792, %v4584
    %v4817 = vmul.f32 %v4793, %v4593
    %v4818 = vmul.f32 %v4794, %v4602
    %v4819 = vmul.f32 %v4795, %v4611
    %v4820 = vmul.f32 %v4796, %v4620
    %v4821 = vmul.f32 %v4797, %v4629
    %v4822 = vmul.f32 %v4798, %v4638
    %v4823 = vmul.f32 %v4799, %v4647
    %v4824 = vmul.f32 %v4800, %v4656
    %v4825 = vmul.f32 %v4801, %v4665
    %v4826 = vmul.f32 %v4802, %v4674
    %v4827 = vmul.f32 %v4803, %v4683
    %v4828 = vmul.f32 %v4804, %v4692
    %v4829 = vmul.f32 %v4805, %v4701
    %v4830 = vmul.f32 %v4806, %v4710
    %v4831 = vmul.f32 %v4807, %v4719
    %v4832 = vmul.f32 %v4808, %v4728
    %v4833 = vmul.f32 %v4809, %v4737
    %v4834 = vmul.f32 %v4810, %v4746
    %v4835 = vmul.f32 %v4811, %v4755
    %v4836 = vmul.f32 %v4812, %v4764
    %v4837 = vmul.f32 %v4813, %v4773
    %v4838 = vmul.f32 %v4814, %v4782
    %v4839 = vmul.f32 %v4815, %v4791
    %v4864 = vsel %vm1884, %v4819, %v4816
    %v4865 = vsel %vm1886, %v4822, %v4864
    %v4866 = vsel %vm1888, %v4825, %v4865
    %v4867 = vsel %vm1890, %v4828, %v4866
    %v4868 = vsel %vm1892, %v4831, %v4867
    %v4869 = vsel %vm1894, %v4834, %v4868
    %v4870 = vsel %vm1896, %v4837, %v4869
    %v4871 = vsel %vm1884, %v4820, %v4817
    %v4872 = vsel %vm1886, %v4823, %v4871
    %v4873 = vsel %vm1888, %v4826, %v4872
    %v4874 = vsel %vm1890, %v4829, %v4873
    %v4875 = vsel %vm1892, %v4832, %v4874
    %v4876 = vsel %vm1894, %v4835, %v4875
    %v4877 = vsel %vm1896, %v4838, %v4876
    %v4878 = vsel %vm1884, %v4821, %v4818
    %v4879 = vsel %vm1886, %v4824, %v4878
    %v4880 = vsel %vm1888, %v4827, %v4879
    %v4881 = vsel %vm1890, %v4830, %v4880
    %v4882 = vsel %vm1892, %v4833, %v4881
    %v4883 = vsel %vm1894, %v4836, %v4882
    %v4884 = vsel %vm1896, %v4839, %v4883
    %4888 = vst [vmem:[#allocation2 + $0x18] sm:$0xff] %v4870
    %4889 = vst [vmem:[#allocation2 + $0x20] sm:$0xff] %v4877
    %4890 = vst [vmem:[#allocation2 + $0x28] sm:$0xff] %v4884
    // Predicated region
    $region14: #{tpu_custom_call.1} parent=1 // pred_check
      _
    $region15: #{tpu_custom_call.1} parent=1 // pred_check_branch
      %4892 = sbr.rel (0) target = $region17
    $region16: #{tpu_custom_call.1} parent=1 // pred_region
      %s4894 = ssub.s32 768, 768
      %4895 = vsyncadd [#allocation3], %s4894
      %s4896 = sshll.u32 [#allocation2], 4
      %s4897 = int_to_ptr.vmem [resolvable:$true] %s4896
      %4902 = dma.vmem_to_hbm [thread:$0]  %s4897, 768, %s3, [#allocation3], 384, 384, 24
    $region17: #{tpu_custom_call.1} parent=1 // pred_fallthru
      _
    // Predicated region
    $region18: #{tpu_custom_call.1} parent=1 // pred_check
      _
    $region19: #{tpu_custom_call.1} parent=1 // pred_check_branch
      %4904 = sbr.rel (0) target = $region21
    $region20: #{tpu_custom_call.1} parent=1 // pred_region
      %4905 = dma.done [#allocation3], 768
    $region21: #{tpu_custom_call.1} parent=1 // pred_fallthru
      _
    %4906 = vsyncpa [#allocation3], 1

// kernel: tpu_custom_call.1
$region0: #{tpu_custom_call.1}
  #allocation0 [shape = 'u32[]', space=smem, size = 0x4, offset = 0x4, fixed_abs, tag = 'smem constant byte address 0x4 - core index']
  #allocation1 [shape = 'u32[144,128]{1,0:T(1,128)}', space=vmem, size = 0x12000, scoped, tag = 'internal scratch']
  %s0 = inlined_call_operand.vmem [shape: f32[3,384], index: 0, kind: input, shape index: {}]
  %s1 = inlined_call_operand.vmem [shape: f32[384,16], index: 1, kind: input, shape index: {}]
  %s2 = inlined_call_operand.vmem [shape: f32[768,32], index: 2, kind: input, shape index: {}]
  %s3 = inlined_call_operand.hbm [shape: f32[16,384], index: 3, kind: output, shape index: {}]
  %s4 = sld [smem:[#allocation0]]
  $region22: #{tpu_custom_call.1} parent=0
    _
  %s6 = ssub.s32 1, %s4
  %s7 = scalar_select 0, %s6, %s4
  $region1: #{tpu_custom_call.1} parent=0
    #allocation2 [shape = 'u8[24576]{0}', space=vmem, size = 0x6000, scoped, tag = 'output window, operand 0, single buffered']
    #allocation3 [shape = 's32[1]{0}', space=sflag, size = 0x4, scoped, tag = 'scoped memory for tpu_custom_call.1']
    %8 = vsyncpa [#allocation3], 0
    // Predicated region
    $region2: #{tpu_custom_call.1} parent=1 // pred_check
      _
    $region3: #{tpu_custom_call.1} parent=1 // pred_check_branch
      %10 = sbr.rel (0) target = $region5
    $region4: #{tpu_custom_call.1} parent=1 // pred_region
      _
    $region5: #{tpu_custom_call.1} parent=1 // pred_fallthru
      _
    // Predicated region
    $region6: #{tpu_custom_call.1} parent=1 // pred_check
      _
    $region7: #{tpu_custom_call.1} parent=1 // pred_check_branch
      %12 = sbr.rel (0) target = $region9
    $region8: #{tpu_custom_call.1} parent=1 // pred_region
      _
    $region9: #{tpu_custom_call.1} parent=1 // pred_fallthru
      _
    // Predicated region
    $region10: #{tpu_custom_call.1} parent=1 // pred_check
      _
    $region11: #{tpu_custom_call.1} parent=1 // pred_check_branch
      %14 = sbr.rel (0) target = $region13
    $region12: #{tpu_custom_call.1} parent=1 // pred_region
      _
    $region13: #{tpu_custom_call.1} parent=1 // pred_fallthru
      _
    %v15 = vld [vmem:[%s0] sm:$0x77]
    %v16 = vld [vmem:[%s0 + $0x8] sm:$0x7]
    %v17 = vmul.f32 %v15, 15.0
    %v18 = vmul.f32 %v16, 15.0
    %v19 = vmax.f32 %v17, 0.0
    %v20 = vmax.f32 %v18, 0.0
    %v21 = vmin.f32 %v19, 15.0
    %v22 = vmin.f32 %v20, 15.0
    %v23 = vlaneseq
    %v24 = vshrl.u32 %v23, 7
    %v25 = vadd.s32 %v24, 8
    %v26 = vcvt.s32.f32 %v24
    %v27 = vcvt.s32.f32 %v25
    %v30 = vlaneseq
    %v31 = vshrl.u32 %v30, 7
    %v32 = vsub.s32 0, %v31
    %v33 = vrot.slane %v21, %v32
    %v34 = vlaneseq
    %v35 = vshrl.u32 %v34, 7
    %v36 = vsub.s32 4, %v35
    %v37 = vrot.slane %v21, %v36
    %v38 = vlaneseq
    %v39 = vshrl.u32 %v38, 7
    %v40 = vsub.s32 0, %v39
    %v41 = vrot.slane %v22, %v40
    %v45 = vlaneseq
    %v46 = vshrl.u32 %v45, 7
    %v47 = vsub.s32 0, %v46
    %v48 = vrot.slane %v33, %v47
    %v49 = vlaneseq
    %v50 = vshrl.u32 %v49, 7
    %v51 = vsub.s32 0, %v50
    %v52 = vrot.slane %v37, %v51
    %v53 = vlaneseq
    %v54 = vshrl.u32 %v53, 7
    %v55 = vsub.s32 0, %v54
    %v56 = vrot.slane %v41, %v55
    %v57 = vsub.f32 %v48, %v26
    %v58 = vsub.f32 %v52, %v26
    %v59 = vsub.f32 %v56, %v26
    %v60 = vsub.f32 %v48, %v27
    %v61 = vsub.f32 %v52, %v27
    %v62 = vsub.f32 %v56, %v27
    %v63 = vand.u32 2147483647, %v57
    %v64 = vand.u32 2147483647, %v58
    %v65 = vand.u32 2147483647, %v59
    %v66 = vand.u32 2147483647, %v60
    %v67 = vand.u32 2147483647, %v61
    %v68 = vand.u32 2147483647, %v62
    %v69 = vsub.f32 1.0, %v63
    %v70 = vsub.f32 1.0, %v64
    %v71 = vsub.f32 1.0, %v65
    %v72 = vsub.f32 1.0, %v66
    %v73 = vsub.f32 1.0, %v67
    %v74 = vsub.f32 1.0, %v68
    %v75 = vmax.f32 %v69, 0.0
    %v76 = vmax.f32 %v70, 0.0
    %v77 = vmax.f32 %v71, 0.0
    %v78 = vmax.f32 %v72, 0.0
    %v79 = vmax.f32 %v73, 0.0
    %v80 = vmax.f32 %v74, 0.0
    %v81 = vlaneseq
    %v82 = vshrl.u32 %v81, 7
    %v83 = vsub.s32 1, %v82
    %v84 = vrot.slane %v21, %v83
    %v85 = vlaneseq
    %v86 = vshrl.u32 %v85, 7
    %v87 = vsub.s32 5, %v86
    %v88 = vrot.slane %v21, %v87
    %v89 = vlaneseq
    %v90 = vshrl.u32 %v89, 7
    %v91 = vsub.s32 1, %v90
    %v92 = vrot.slane %v22, %v91
    %v96 = vlaneseq
    %v97 = vshrl.u32 %v96, 7
    %v98 = vsub.s32 1, %v97
    %v99 = vrot.slane %v84, %v98
    %v100 = vlaneseq
    %v101 = vshrl.u32 %v100, 7
    %v102 = vsub.s32 1, %v101
    %v103 = vrot.slane %v88, %v102
    %v104 = vlaneseq
    %v105 = vshrl.u32 %v104, 7
    %v106 = vsub.s32 1, %v105
    %v107 = vrot.slane %v92, %v106
    %v108 = vsub.f32 %v99, %v26
    %v109 = vsub.f32 %v103, %v26
    %v110 = vsub.f32 %v107, %v26
    %v111 = vsub.f32 %v99, %v27
    %v112 = vsub.f32 %v103, %v27
    %v113 = vsub.f32 %v107, %v27
    %v114 = vand.u32 2147483647, %v108
    %v115 = vand.u32 2147483647, %v109
    %v116 = vand.u32 2147483647, %v110
    %v117 = vand.u32 2147483647, %v111
    %v118 = vand.u32 2147483647, %v112
    %v119 = vand.u32 2147483647, %v113
    %v120 = vsub.f32 1.0, %v114
    %v121 = vsub.f32 1.0, %v115
    %v122 = vsub.f32 1.0, %v116
    %v123 = vsub.f32 1.0, %v117
    %v124 = vsub.f32 1.0, %v118
    %v125 = vsub.f32 1.0, %v119
    %v126 = vmax.f32 %v120, 0.0
    %v127 = vmax.f32 %v121, 0.0
    %v128 = vmax.f32 %v122, 0.0
    %v129 = vmax.f32 %v123, 0.0
    %v130 = vmax.f32 %v124, 0.0
    %v131 = vmax.f32 %v125, 0.0
    %v132 = vlaneseq
    %v133 = vshrl.u32 %v132, 7
    %v134 = vsub.s32 2, %v133
    %v135 = vrot.slane %v21, %v134
    %v136 = vlaneseq
    %v137 = vshrl.u32 %v136, 7
    %v138 = vsub.s32 6, %v137
    %v139 = vrot.slane %v21, %v138
    %v140 = vlaneseq
    %v141 = vshrl.u32 %v140, 7
    %v142 = vsub.s32 2, %v141
    %v143 = vrot.slane %v22, %v142
    %v147 = vlaneseq
    %v148 = vshrl.u32 %v147, 7
    %v149 = vsub.s32 2, %v148
    %v150 = vrot.slane %v135, %v149
    %v151 = vlaneseq
    %v152 = vshrl.u32 %v151, 7
    %v153 = vsub.s32 2, %v152
    %v154 = vrot.slane %v139, %v153
    %v155 = vlaneseq
    %v156 = vshrl.u32 %v155, 7
    %v157 = vsub.s32 2, %v156
    %v158 = vrot.slane %v143, %v157
    %v159 = vsub.f32 %v150, %v26
    %v160 = vsub.f32 %v154, %v26
    %v161 = vsub.f32 %v158, %v26
    %v162 = vsub.f32 %v150, %v27
    %v163 = vsub.f32 %v154, %v27
    %v164 = vsub.f32 %v158, %v27
    %v165 = vand.u32 2147483647, %v159
    %v166 = vand.u32 2147483647, %v160
    %v167 = vand.u32 2147483647, %v161
    %v168 = vand.u32 2147483647, %v162
    %v169 = vand.u32 2147483647, %v163
    %v170 = vand.u32 2147483647, %v164
    %v171 = vsub.f32 1.0, %v165
    %v172 = vsub.f32 1.0, %v166
    %v173 = vsub.f32 1.0, %v167
    %v174 = vsub.f32 1.0, %v168
    %v175 = vsub.f32 1.0, %v169
    %v176 = vsub.f32 1.0, %v170
    %v177 = vmax.f32 %v171, 0.0
    %v178 = vmax.f32 %v172, 0.0
    %v179 = vmax.f32 %v173, 0.0
    %v180 = vmax.f32 %v174, 0.0
    %v181 = vmax.f32 %v175, 0.0
    %v182 = vmax.f32 %v176, 0.0
    %v183 = vld [vmem:[%s1] sm:$0xff]
    %v184 = vld [vmem:[%s1 + $0x8] sm:$0xff]
    %v185 = vld [vmem:[%s1 + $0x10] sm:$0xff]
    %v186 = vld [vmem:[%s1 + $0x18] sm:$0xff]
    %v187 = vld [vmem:[%s1 + $0x20] sm:$0xff]
    %v188 = vld [vmem:[%s1 + $0x28] sm:$0xff]
    %v189 = vld [vmem:[%s1 + $0x30] sm:$0xff]
    %v190 = vld [vmem:[%s1 + $0x38] sm:$0xff]
    %v191 = vld [vmem:[%s1 + $0x40] sm:$0xff]
    %v192 = vld [vmem:[%s1 + $0x48] sm:$0xff]
    %v193 = vld [vmem:[%s1 + $0x50] sm:$0xff]
    %v194 = vld [vmem:[%s1 + $0x58] sm:$0xff]
    %v195 = vld [vmem:[%s1 + $0x60] sm:$0xff]
    %v196 = vld [vmem:[%s1 + $0x68] sm:$0xff]
    %v197 = vld [vmem:[%s1 + $0x70] sm:$0xff]
    %v198 = vld [vmem:[%s1 + $0x78] sm:$0xff]
    %v199 = vld [vmem:[%s1 + $0x80] sm:$0xff]
    %v200 = vld [vmem:[%s1 + $0x88] sm:$0xff]
    %v201 = vld [vmem:[%s1 + $0x90] sm:$0xff]
    %v202 = vld [vmem:[%s1 + $0x98] sm:$0xff]
    %v203 = vld [vmem:[%s1 + $0xa0] sm:$0xff]
    %v204 = vld [vmem:[%s1 + $0xa8] sm:$0xff]
    %v205 = vld [vmem:[%s1 + $0xb0] sm:$0xff]
    %v206 = vld [vmem:[%s1 + $0xb8] sm:$0xff]
    %v207 = vld [vmem:[%s1 + $0xc0] sm:$0xff]
    %v208 = vld [vmem:[%s1 + $0xc8] sm:$0xff]
    %v209 = vld [vmem:[%s1 + $0xd0] sm:$0xff]
    %v210 = vld [vmem:[%s1 + $0xd8] sm:$0xff]
    %v211 = vld [vmem:[%s1 + $0xe0] sm:$0xff]
    %v212 = vld [vmem:[%s1 + $0xe8] sm:$0xff]
    %v213 = vld [vmem:[%s1 + $0xf0] sm:$0xff]
    %v214 = vld [vmem:[%s1 + $0xf8] sm:$0xff]
    %vm215 = vcmask 130048
    %v217 = vsel %vm215, %v183, 0
    %v220 = vsel %vm215, %v184, 0
    %v223 = vsel %vm215, %v185, 0
    %v226 = vsel %vm215, %v186, 0
    %v229 = vsel %vm215, %v187, 0
    %v232 = vsel %vm215, %v188, 0
    %v235 = vsel %vm215, %v189, 0
    %v238 = vsel %vm215, %v190, 0
    %v241 = vsel %vm215, %v191, 0
    %v244 = vsel %vm215, %v192, 0
    %v247 = vsel %vm215, %v193, 0
    %v250 = vsel %vm215, %v194, 0
    %v253 = vsel %vm215, %v195, 0
    %v256 = vsel %vm215, %v196, 0
    %v259 = vsel %vm215, %v197, 0
    %v262 = vsel %vm215, %v198, 0
    %v265 = vsel %vm215, %v199, 0
    %v268 = vsel %vm215, %v200, 0
    %v271 = vsel %vm215, %v201, 0
    %v274 = vsel %vm215, %v202, 0
    %v277 = vsel %vm215, %v203, 0
    %v280 = vsel %vm215, %v204, 0
    %v283 = vsel %vm215, %v205, 0
    %v286 = vsel %vm215, %v206, 0
    %v289 = vsel %vm215, %v207, 0
    %v292 = vsel %vm215, %v208, 0
    %v295 = vsel %vm215, %v209, 0
    %v298 = vsel %vm215, %v210, 0
    %v301 = vsel %vm215, %v211, 0
    %v304 = vsel %vm215, %v212, 0
    %v307 = vsel %vm215, %v213, 0
    %v310 = vsel %vm215, %v214, 0
    %312 = vmatprep.subr.mxu0 %v76
    %313 = vmatpush1.msra.mxu0 %v75
    %314 = vmatprep.subr.mxu0 %v79
    %315 = vmatpush1.msra.mxu0 %v78
    %316 = vmatprep.subr.mxu0 0.0
    %317 = vmatpush1.msra.mxu0 0.0
    %318 = vmatprep.subr.mxu0 0.0
    %319 = vmatpush1.msra.mxu0 0.0
    %320 = vmatprep.subr.mxu0 0.0
    %321 = vmatpush1.msra.mxu0 0.0
    %322 = vmatprep.subr.mxu0 0.0
    %323 = vmatpush1.msra.mxu0 0.0
    %324 = vmatprep.subr.mxu0 0.0
    %325 = vmatpush1.msra.mxu0 0.0
    %326 = vmatprep.subr.mxu0 0.0
    %327 = vmatpush1.msra.mxu0 0.0
    %328 = vmatprep.subr.mxu0 0.0
    %329 = vmatpush1.msra.mxu0 0.0
    %330 = vmatprep.subr.mxu0 0.0
    %331 = vmatpush1.msra.mxu0 0.0
    %332 = vmatprep.subr.mxu0 0.0
    %333 = vmatpush1.msra.mxu0 0.0
    %334 = vmatprep.subr.mxu0 0.0
    %335 = vmatpush1.msra.mxu0 0.0
    %336 = vmatprep.subr.mxu0 0.0
    %337 = vmatpush1.msra.mxu0 0.0
    %338 = vmatprep.subr.mxu0 0.0
    %339 = vmatpush1.msra.mxu0 0.0
    %340 = vmatprep.subr.mxu0 0.0
    %341 = vmatpush1.msra.mxu0 0.0
    %342 = vmatprep.subr.mxu0 0.0
    %343 = vmatpush1.msra.mxu0 0.0
    %344 = vmatprep.subr.mxu0 0.0
    %345 = vmatpush1.msra.mxu0 0.0
    %346 = vmatprep.subr.mxu0 0.0
    %347 = vmatpush1.msra.mxu0 0.0
    %348 = vmatprep.subr.mxu0 0.0
    %349 = vmatpush1.msra.mxu0 0.0
    %350 = vmatprep.subr.mxu0 0.0
    %351 = vmatpush1.msra.mxu0 0.0
    %352 = vmatprep.subr.mxu0 0.0
    %353 = vmatpush1.msra.mxu0 0.0
    %354 = vmatprep.subr.mxu0 0.0
    %355 = vmatpush1.msra.mxu0 0.0
    %356 = vmatprep.subr.mxu0 0.0
    %357 = vmatpush1.msra.mxu0 0.0
    %358 = vmatprep.subr.mxu0 0.0
    %359 = vmatpush1.msra.mxu0 0.0
    %360 = vmatprep.subr.mxu0 0.0
    %361 = vmatpush1.msra.mxu0 0.0
    %362 = vmatprep.subr.mxu0 0.0
    %363 = vmatpush1.msra.mxu0 0.0
    %364 = vmatprep.subr.mxu0 0.0
    %365 = vmatpush1.msra.mxu0 0.0
    %366 = vmatprep.subr.mxu0 0.0
    %367 = vmatpush1.msra.mxu0 0.0
    %368 = vmatprep.subr.mxu0 0.0
    %369 = vmatpush1.msra.mxu0 0.0
    %370 = vmatprep.subr.mxu0 0.0
    %371 = vmatpush1.msra.mxu0 0.0
    %372 = vmatprep.subr.mxu0 0.0
    %373 = vmatpush1.msra.mxu0 0.0
    %374 = vmatprep.subr.mxu0 0.0
    %375 = vmatpush1.msra.mxu0 0.0
    %376 = vmatprep.mubr.f32.mxu0 0.0
    %377 = vmatmul.mubr.f32.gmra.mrb[0].mxu0 %v217
    %v378 = vpop.f32.mrb[0].mxu0
    %v379 = vadd.f32 0.0, %v378
    %v380 = vpop.f32.mrb[0].mxu0
    %v381 = vadd.f32 0.0, %v380
    %382 = vmatprep.mubr.f32.mxu0 0.0
    %383 = vmatmul.mubr.f32.gmra.mrb[0].mxu0 %v220
    %v384 = vpop.f32.mrb[0].mxu0
    %v385 = vadd.f32 0.0, %v384
    %v386 = vpop.f32.mrb[0].mxu0
    %v387 = vadd.f32 0.0, %v386
    %388 = vmatprep.mubr.f32.mxu0 0.0
    %389 = vmatmul.mubr.f32.gmra.mrb[0].mxu0 %v223
    %v390 = vpop.f32.mrb[0].mxu0
    %v391 = vadd.f32 0.0, %v390
    %v392 = vpop.f32.mrb[0].mxu0
    %v393 = vadd.f32 0.0, %v392
    %394 = vmatprep.mubr.f32.mxu0 0.0
    %395 = vmatmul.mubr.f32.gmra.mrb[0].mxu0 %v226
    %v396 = vpop.f32.mrb[0].mxu0
    %v397 = vadd.f32 0.0, %v396
    %v398 = vpop.f32.mrb[0].mxu0
    %v399 = vadd.f32 0.0, %v398
    %400 = vmatprep.mubr.f32.mxu0 0.0
    %401 = vmatmul.mubr.f32.gmra.mrb[0].mxu0 %v229
    %v402 = vpop.f32.mrb[0].mxu0
    %v403 = vadd.f32 0.0, %v402
    %v404 = vpop.f32.mrb[0].mxu0
    %v405 = vadd.f32 0.0, %v404
    %406 = vmatprep.mubr.f32.mxu0 0.0
    %407 = vmatmul.mubr.f32.gmra.mrb[0].mxu0 %v232
    %v408 = vpop.f32.mrb[0].mxu0
    %v409 = vadd.f32 0.0, %v408
    %v410 = vpop.f32.mrb[0].mxu0
    %v411 = vadd.f32 0.0, %v410
    %412 = vmatprep.mubr.f32.mxu0 0.0
    %413 = vmatmul.mubr.f32.gmra.mrb[0].mxu0 %v235
    %v414 = vpop.f32.mrb[0].mxu0
    %v415 = vadd.f32 0.0, %v414
    %v416 = vpop.f32.mrb[0].mxu0
    %v417 = vadd.f32 0.0, %v416
    %418 = vmatprep.mubr.f32.mxu0 0.0
    %419 = vmatmul.mubr.f32.gmra.mrb[0].mxu0 %v238
    %v420 = vpop.f32.mrb[0].mxu0
    %v421 = vadd.f32 0.0, %v420
    %v422 = vpop.f32.mrb[0].mxu0
    %v423 = vadd.f32 0.0, %v422
    %424 = vmatprep.mubr.f32.mxu0 0.0
    %425 = vmatmul.mubr.f32.gmra.mrb[0].mxu0 %v241
    %v426 = vpop.f32.mrb[0].mxu0
    %v427 = vadd.f32 0.0, %v426
    %v428 = vpop.f32.mrb[0].mxu0
    %v429 = vadd.f32 0.0, %v428
    %430 = vmatprep.mubr.f32.mxu0 0.0
    %431 = vmatmul.mubr.f32.gmra.mrb[0].mxu0 %v244
    %v432 = vpop.f32.mrb[0].mxu0
    %v433 = vadd.f32 0.0, %v432
    %v434 = vpop.f32.mrb[0].mxu0
    %v435 = vadd.f32 0.0, %v434
    %436 = vmatprep.mubr.f32.mxu0 0.0
    %437 = vmatmul.mubr.f32.gmra.mrb[0].mxu0 %v247
    %v438 = vpop.f32.mrb[0].mxu0
    %v439 = vadd.f32 0.0, %v438
    %v440 = vpop.f32.mrb[0].mxu0
    %v441 = vadd.f32 0.0, %v440
    %442 = vmatprep.mubr.f32.mxu0 0.0
    %443 = vmatmul.mubr.f32.gmra.mrb[0].mxu0 %v250
    %v444 = vpop.f32.mrb[0].mxu0
    %v445 = vadd.f32 0.0, %v444
    %v446 = vpop.f32.mrb[0].mxu0
    %v447 = vadd.f32 0.0, %v446
    %448 = vmatprep.mubr.f32.mxu0 0.0
    %449 = vmatmul.mubr.f32.gmra.mrb[0].mxu0 %v253
    %v450 = vpop.f32.mrb[0].mxu0
    %v451 = vadd.f32 0.0, %v450
    %v452 = vpop.f32.mrb[0].mxu0
    %v453 = vadd.f32 0.0, %v452
    %454 = vmatprep.mubr.f32.mxu0 0.0
    %455 = vmatmul.mubr.f32.gmra.mrb[0].mxu0 %v256
    %v456 = vpop.f32.mrb[0].mxu0
    %v457 = vadd.f32 0.0, %v456
    %v458 = vpop.f32.mrb[0].mxu0
    %v459 = vadd.f32 0.0, %v458
    %460 = vmatprep.mubr.f32.mxu0 0.0
    %461 = vmatmul.mubr.f32.gmra.mrb[0].mxu0 %v259
    %v462 = vpop.f32.mrb[0].mxu0
    %v463 = vadd.f32 0.0, %v462
    %v464 = vpop.f32.mrb[0].mxu0
    %v465 = vadd.f32 0.0, %v464
    %466 = vmatprep.mubr.f32.mxu0 0.0
    %467 = vmatmul.mubr.f32.gmra.mrb[0].mxu0 %v262
    %v468 = vpop.f32.mrb[0].mxu0
    %v469 = vadd.f32 0.0, %v468
    %v470 = vpop.f32.mrb[0].mxu0
    %v471 = vadd.f32 0.0, %v470
    %472 = vmatprep.mubr.f32.mxu0 0.0
    %473 = vmatmul.mubr.f32.gmra.mrb[0].mxu0 %v265
    %v474 = vpop.f32.mrb[0].mxu0
    %v475 = vadd.f32 0.0, %v474
    %v476 = vpop.f32.mrb[0].mxu0
    %v477 = vadd.f32 0.0, %v476
    %478 = vmatprep.mubr.f32.mxu0 0.0
    %479 = vmatmul.mubr.f32.gmra.mrb[0].mxu0 %v268
    %v480 = vpop.f32.mrb[0].mxu0
    %v481 = vadd.f32 0.0, %v480
    %v482 = vpop.f32.mrb[0].mxu0
    %v483 = vadd.f32 0.0, %v482
    %484 = vmatprep.mubr.f32.mxu0 0.0
    %485 = vmatmul.mubr.f32.gmra.mrb[0].mxu0 %v271
    %v486 = vpop.f32.mrb[0].mxu0
    %v487 = vadd.f32 0.0, %v486
    %v488 = vpop.f32.mrb[0].mxu0
    %v489 = vadd.f32 0.0, %v488
    %490 = vmatprep.mubr.f32.mxu0 0.0
    %491 = vmatmul.mubr.f32.gmra.mrb[0].mxu0 %v274
    %v492 = vpop.f32.mrb[0].mxu0
    %v493 = vadd.f32 0.0, %v492
    %v494 = vpop.f32.mrb[0].mxu0
    %v495 = vadd.f32 0.0, %v494
    %496 = vmatprep.mubr.f32.mxu0 0.0
    %497 = vmatmul.mubr.f32.gmra.mrb[0].mxu0 %v277
    %v498 = vpop.f32.mrb[0].mxu0
    %v499 = vadd.f32 0.0, %v498
    %v500 = vpop.f32.mrb[0].mxu0
    %v501 = vadd.f32 0.0, %v500
    %502 = vmatprep.mubr.f32.mxu0 0.0
    %503 = vmatmul.mubr.f32.gmra.mrb[0].mxu0 %v280
    %v504 = vpop.f32.mrb[0].mxu0
    %v505 = vadd.f32 0.0, %v504
    %v506 = vpop.f32.mrb[0].mxu0
    %v507 = vadd.f32 0.0, %v506
    %508 = vmatprep.mubr.f32.mxu0 0.0
    %509 = vmatmul.mubr.f32.gmra.mrb[0].mxu0 %v283
    %v510 = vpop.f32.mrb[0].mxu0
    %v511 = vadd.f32 0.0, %v510
    %v512 = vpop.f32.mrb[0].mxu0
    %v513 = vadd.f32 0.0, %v512
    %514 = vmatprep.mubr.f32.mxu0 0.0
    %515 = vmatmul.mubr.f32.gmra.mrb[0].mxu0 %v286
    %v516 = vpop.f32.mrb[0].mxu0
    %v517 = vadd.f32 0.0, %v516
    %v518 = vpop.f32.mrb[0].mxu0
    %v519 = vadd.f32 0.0, %v518
    %520 = vmatprep.mubr.f32.mxu0 0.0
    %521 = vmatmul.mubr.f32.gmra.mrb[0].mxu0 %v289
    %v522 = vpop.f32.mrb[0].mxu0
    %v523 = vadd.f32 0.0, %v522
    %v524 = vpop.f32.mrb[0].mxu0
    %v525 = vadd.f32 0.0, %v524
    %526 = vmatprep.mubr.f32.mxu0 0.0
    %527 = vmatmul.mubr.f32.gmra.mrb[0].mxu0 %v292
    %v528 = vpop.f32.mrb[0].mxu0
    %v529 = vadd.f32 0.0, %v528
    %v530 = vpop.f32.mrb[0].mxu0
    %v531 = vadd.f32 0.0, %v530
    %532 = vmatprep.mubr.f32.mxu0 0.0
    %533 = vmatmul.mubr.f32.gmra.mrb[0].mxu0 %v295
    %v534 = vpop.f32.mrb[0].mxu0
    %v535 = vadd.f32 0.0, %v534
    %v536 = vpop.f32.mrb[0].mxu0
    %v537 = vadd.f32 0.0, %v536
    %538 = vmatprep.mubr.f32.mxu0 0.0
    %539 = vmatmul.mubr.f32.gmra.mrb[0].mxu0 %v298
    %v540 = vpop.f32.mrb[0].mxu0
    %v541 = vadd.f32 0.0, %v540
    %v542 = vpop.f32.mrb[0].mxu0
    %v543 = vadd.f32 0.0, %v542
    %544 = vmatprep.mubr.f32.mxu0 0.0
    %545 = vmatmul.mubr.f32.gmra.mrb[0].mxu0 %v301
    %v546 = vpop.f32.mrb[0].mxu0
    %v547 = vadd.f32 0.0, %v546
    %v548 = vpop.f32.mrb[0].mxu0
    %v549 = vadd.f32 0.0, %v548
    %550 = vmatprep.mubr.f32.mxu0 0.0
    %551 = vmatmul.mubr.f32.gmra.mrb[0].mxu0 %v304
    %v552 = vpop.f32.mrb[0].mxu0
    %v553 = vadd.f32 0.0, %v552
    %v554 = vpop.f32.mrb[0].mxu0
    %v555 = vadd.f32 0.0, %v554
    %556 = vmatprep.mubr.f32.mxu0 0.0
    %557 = vmatmul.mubr.f32.gmra.mrb[0].mxu0 %v307
    %v558 = vpop.f32.mrb[0].mxu0
    %v559 = vadd.f32 0.0, %v558
    %v560 = vpop.f32.mrb[0].mxu0
    %v561 = vadd.f32 0.0, %v560
    %562 = vmatprep.mubr.f32.mxu0 0.0
    %563 = vmatmul.mubr.f32.gmra.mrb[0].mxu0 %v310
    %v564 = vpop.f32.mrb[0].mxu0
    %v565 = vadd.f32 0.0, %v564
    %v566 = vpop.f32.mrb[0].mxu0
    %v567 = vadd.f32 0.0, %v566
    %568 = vdwg.mxu0
    %569 = vmatprep.subr.mxu0 0.0
    %570 = vmatpush1.msra.mxu0 %v77
    %571 = vmatprep.subr.mxu0 0.0
    %572 = vmatpush1.msra.mxu0 %v80
    %573 = vmatprep.subr.mxu0 0.0
    %574 = vmatpush1.msra.mxu0 0.0
    %575 = vmatprep.subr.mxu0 0.0
    %576 = vmatpush1.msra.mxu0 0.0
    %577 = vmatprep.subr.mxu0 0.0
    %578 = vmatpush1.msra.mxu0 0.0
    %579 = vmatprep.subr.mxu0 0.0
    %580 = vmatpush1.msra.mxu0 0.0
    %581 = vmatprep.subr.mxu0 0.0
    %582 = vmatpush1.msra.mxu0 0.0
    %583 = vmatprep.subr.mxu0 0.0
    %584 = vmatpush1.msra.mxu0 0.0
    %585 = vmatprep.subr.mxu0 0.0
    %586 = vmatpush1.msra.mxu0 0.0
    %587 = vmatprep.subr.mxu0 0.0
    %588 = vmatpush1.msra.mxu0 0.0
    %589 = vmatprep.subr.mxu0 0.0
    %590 = vmatpush1.msra.mxu0 0.0
    %591 = vmatprep.subr.mxu0 0.0
    %592 = vmatpush1.msra.mxu0 0.0
    %593 = vmatprep.subr.mxu0 0.0
    %594 = vmatpush1.msra.mxu0 0.0
    %595 = vmatprep.subr.mxu0 0.0
    %596 = vmatpush1.msra.mxu0 0.0
    %597 = vmatprep.subr.mxu0 0.0
    %598 = vmatpush1.msra.mxu0 0.0
    %599 = vmatprep.subr.mxu0 0.0
    %600 = vmatpush1.msra.mxu0 0.0
    %601 = vmatprep.subr.mxu0 0.0
    %602 = vmatpush1.msra.mxu0 0.0
    %603 = vmatprep.subr.mxu0 0.0
    %604 = vmatpush1.msra.mxu0 0.0
    %605 = vmatprep.subr.mxu0 0.0
    %606 = vmatpush1.msra.mxu0 0.0
    %607 = vmatprep.subr.mxu0 0.0
    %608 = vmatpush1.msra.mxu0 0.0
    %609 = vmatprep.subr.mxu0 0.0
    %610 = vmatpush1.msra.mxu0 0.0
    %611 = vmatprep.subr.mxu0 0.0
    %612 = vmatpush1.msra.mxu0 0.0
    %613 = vmatprep.subr.mxu0 0.0
    %614 = vmatpush1.msra.mxu0 0.0
    %615 = vmatprep.subr.mxu0 0.0
    %616 = vmatpush1.msra.mxu0 0.0
    %617 = vmatprep.subr.mxu0 0.0
    %618 = vmatpush1.msra.mxu0 0.0
    %619 = vmatprep.subr.mxu0 0.0
    %620 = vmatpush1.msra.mxu0 0.0
    %621 = vmatprep.subr.mxu0 0.0
    %622 = vmatpush1.msra.mxu0 0.0
    %623 = vmatprep.subr.mxu0 0.0
    %624 = vmatpush1.msra.mxu0 0.0
    %625 = vmatprep.subr.mxu0 0.0
    %626 = vmatpush1.msra.mxu0 0.0
    %627 = vmatprep.subr.mxu0 0.0
    %628 = vmatpush1.msra.mxu0 0.0
    %629 = vmatprep.subr.mxu0 0.0
    %630 = vmatpush1.msra.mxu0 0.0
    %631 = vmatprep.subr.mxu0 0.0
    %632 = vmatpush1.msra.mxu0 0.0
    %633 = vmatprep.mubr.f32.mxu0 0.0
    %634 = vmatmul.mubr.f32.gmra.mrb[0].mxu0 %v217
    %v635 = vpop.f32.mrb[0].mxu0
    %v636 = vadd.f32 0.0, %v635
    %v637 = vpop.f32.mrb[0].mxu0
    %638 = vmatprep.mubr.f32.mxu0 0.0
    %639 = vmatmul.mubr.f32.gmra.mrb[0].mxu0 %v220
    %v640 = vpop.f32.mrb[0].mxu0
    %v641 = vadd.f32 0.0, %v640
    %v642 = vpop.f32.mrb[0].mxu0
    %643 = vmatprep.mubr.f32.mxu0 0.0
    %644 = vmatmul.mubr.f32.gmra.mrb[0].mxu0 %v223
    %v645 = vpop.f32.mrb[0].mxu0
    %v646 = vadd.f32 0.0, %v645
    %v647 = vpop.f32.mrb[0].mxu0
    %648 = vmatprep.mubr.f32.mxu0 0.0
    %649 = vmatmul.mubr.f32.gmra.mrb[0].mxu0 %v226
    %v650 = vpop.f32.mrb[0].mxu0
    %v651 = vadd.f32 0.0, %v650
    %v652 = vpop.f32.mrb[0].mxu0
    %653 = vmatprep.mubr.f32.mxu0 0.0
    %654 = vmatmul.mubr.f32.gmra.mrb[0].mxu0 %v229
    %v655 = vpop.f32.mrb[0].mxu0
    %v656 = vadd.f32 0.0, %v655
    %v657 = vpop.f32.mrb[0].mxu0
    %658 = vmatprep.mubr.f32.mxu0 0.0
    %659 = vmatmul.mubr.f32.gmra.mrb[0].mxu0 %v232
    %v660 = vpop.f32.mrb[0].mxu0
    %v661 = vadd.f32 0.0, %v660
    %v662 = vpop.f32.mrb[0].mxu0
    %663 = vmatprep.mubr.f32.mxu0 0.0
    %664 = vmatmul.mubr.f32.gmra.mrb[0].mxu0 %v235
    %v665 = vpop.f32.mrb[0].mxu0
    %v666 = vadd.f32 0.0, %v665
    %v667 = vpop.f32.mrb[0].mxu0
    %668 = vmatprep.mubr.f32.mxu0 0.0
    %669 = vmatmul.mubr.f32.gmra.mrb[0].mxu0 %v238
    %v670 = vpop.f32.mrb[0].mxu0
    %v671 = vadd.f32 0.0, %v670
    %v672 = vpop.f32.mrb[0].mxu0
    %673 = vmatprep.mubr.f32.mxu0 0.0
    %674 = vmatmul.mubr.f32.gmra.mrb[0].mxu0 %v241
    %v675 = vpop.f32.mrb[0].mxu0
    %v676 = vadd.f32 0.0, %v675
    %v677 = vpop.f32.mrb[0].mxu0
    %678 = vmatprep.mubr.f32.mxu0 0.0
    %679 = vmatmul.mubr.f32.gmra.mrb[0].mxu0 %v244
    %v680 = vpop.f32.mrb[0].mxu0
    %v681 = vadd.f32 0.0, %v680
    %v682 = vpop.f32.mrb[0].mxu0
    %683 = vmatprep.mubr.f32.mxu0 0.0
    %684 = vmatmul.mubr.f32.gmra.mrb[0].mxu0 %v247
    %v685 = vpop.f32.mrb[0].mxu0
    %v686 = vadd.f32 0.0, %v685
    %v687 = vpop.f32.mrb[0].mxu0
    %688 = vmatprep.mubr.f32.mxu0 0.0
    %689 = vmatmul.mubr.f32.gmra.mrb[0].mxu0 %v250
    %v690 = vpop.f32.mrb[0].mxu0
    %v691 = vadd.f32 0.0, %v690
    %v692 = vpop.f32.mrb[0].mxu0
    %693 = vmatprep.mubr.f32.mxu0 0.0
    %694 = vmatmul.mubr.f32.gmra.mrb[0].mxu0 %v253
    %v695 = vpop.f32.mrb[0].mxu0
    %v696 = vadd.f32 0.0, %v695
    %v697 = vpop.f32.mrb[0].mxu0
    %698 = vmatprep.mubr.f32.mxu0 0.0
    %699 = vmatmul.mubr.f32.gmra.mrb[0].mxu0 %v256
    %v700 = vpop.f32.mrb[0].mxu0
    %v701 = vadd.f32 0.0, %v700
    %v702 = vpop.f32.mrb[0].mxu0
    %703 = vmatprep.mubr.f32.mxu0 0.0
    %704 = vmatmul.mubr.f32.gmra.mrb[0].mxu0 %v259
    %v705 = vpop.f32.mrb[0].mxu0
    %v706 = vadd.f32 0.0, %v705
    %v707 = vpop.f32.mrb[0].mxu0
    %708 = vmatprep.mubr.f32.mxu0 0.0
    %709 = vmatmul.mubr.f32.gmra.mrb[0].mxu0 %v262
    %v710 = vpop.f32.mrb[0].mxu0
    %v711 = vadd.f32 0.0, %v710
    %v712 = vpop.f32.mrb[0].mxu0
    %713 = vmatprep.mubr.f32.mxu0 0.0
    %714 = vmatmul.mubr.f32.gmra.mrb[0].mxu0 %v265
    %v715 = vpop.f32.mrb[0].mxu0
    %v716 = vadd.f32 0.0, %v715
    %v717 = vpop.f32.mrb[0].mxu0
    %718 = vmatprep.mubr.f32.mxu0 0.0
    %719 = vmatmul.mubr.f32.gmra.mrb[0].mxu0 %v268
    %v720 = vpop.f32.mrb[0].mxu0
    %v721 = vadd.f32 0.0, %v720
    %v722 = vpop.f32.mrb[0].mxu0
    %723 = vmatprep.mubr.f32.mxu0 0.0
    %724 = vmatmul.mubr.f32.gmra.mrb[0].mxu0 %v271
    %v725 = vpop.f32.mrb[0].mxu0
    %v726 = vadd.f32 0.0, %v725
    %v727 = vpop.f32.mrb[0].mxu0
    %728 = vmatprep.mubr.f32.mxu0 0.0
    %729 = vmatmul.mubr.f32.gmra.mrb[0].mxu0 %v274
    %v730 = vpop.f32.mrb[0].mxu0
    %v731 = vadd.f32 0.0, %v730
    %v732 = vpop.f32.mrb[0].mxu0
    %733 = vmatprep.mubr.f32.mxu0 0.0
    %734 = vmatmul.mubr.f32.gmra.mrb[0].mxu0 %v277
    %v735 = vpop.f32.mrb[0].mxu0
    %v736 = vadd.f32 0.0, %v735
    %v737 = vpop.f32.mrb[0].mxu0
    %738 = vmatprep.mubr.f32.mxu0 0.0
    %739 = vmatmul.mubr.f32.gmra.mrb[0].mxu0 %v280
    %v740 = vpop.f32.mrb[0].mxu0
    %v741 = vadd.f32 0.0, %v740
    %v742 = vpop.f32.mrb[0].mxu0
    %743 = vmatprep.mubr.f32.mxu0 0.0
    %744 = vmatmul.mubr.f32.gmra.mrb[0].mxu0 %v283
    %v745 = vpop.f32.mrb[0].mxu0
    %v746 = vadd.f32 0.0, %v745
    %v747 = vpop.f32.mrb[0].mxu0
    %748 = vmatprep.mubr.f32.mxu0 0.0
    %749 = vmatmul.mubr.f32.gmra.mrb[0].mxu0 %v286
    %v750 = vpop.f32.mrb[0].mxu0
    %v751 = vadd.f32 0.0, %v750
    %v752 = vpop.f32.mrb[0].mxu0
    %753 = vmatprep.mubr.f32.mxu0 0.0
    %754 = vmatmul.mubr.f32.gmra.mrb[0].mxu0 %v289
    %v755 = vpop.f32.mrb[0].mxu0
    %v756 = vadd.f32 0.0, %v755
    %v757 = vpop.f32.mrb[0].mxu0
    %758 = vmatprep.mubr.f32.mxu0 0.0
    %759 = vmatmul.mubr.f32.gmra.mrb[0].mxu0 %v292
    %v760 = vpop.f32.mrb[0].mxu0
    %v761 = vadd.f32 0.0, %v760
    %v762 = vpop.f32.mrb[0].mxu0
    %763 = vmatprep.mubr.f32.mxu0 0.0
    %764 = vmatmul.mubr.f32.gmra.mrb[0].mxu0 %v295
    %v765 = vpop.f32.mrb[0].mxu0
    %v766 = vadd.f32 0.0, %v765
    %v767 = vpop.f32.mrb[0].mxu0
    %768 = vmatprep.mubr.f32.mxu0 0.0
    %769 = vmatmul.mubr.f32.gmra.mrb[0].mxu0 %v298
    %v770 = vpop.f32.mrb[0].mxu0
    %v771 = vadd.f32 0.0, %v770
    %v772 = vpop.f32.mrb[0].mxu0
    %773 = vmatprep.mubr.f32.mxu0 0.0
    %774 = vmatmul.mubr.f32.gmra.mrb[0].mxu0 %v301
    %v775 = vpop.f32.mrb[0].mxu0
    %v776 = vadd.f32 0.0, %v775
    %v777 = vpop.f32.mrb[0].mxu0
    %778 = vmatprep.mubr.f32.mxu0 0.0
    %779 = vmatmul.mubr.f32.gmra.mrb[0].mxu0 %v304
    %v780 = vpop.f32.mrb[0].mxu0
    %v781 = vadd.f32 0.0, %v780
    %v782 = vpop.f32.mrb[0].mxu0
    %783 = vmatprep.mubr.f32.mxu0 0.0
    %784 = vmatmul.mubr.f32.gmra.mrb[0].mxu0 %v307
    %v785 = vpop.f32.mrb[0].mxu0
    %v786 = vadd.f32 0.0, %v785
    %v787 = vpop.f32.mrb[0].mxu0
    %788 = vmatprep.mubr.f32.mxu0 0.0
    %789 = vmatmul.mubr.f32.gmra.mrb[0].mxu0 %v310
    %v790 = vpop.f32.mrb[0].mxu0
    %v791 = vadd.f32 0.0, %v790
    %v792 = vpop.f32.mrb[0].mxu0
    %793 = vdwg.mxu0
    %v794 = vmul.f32 %v379, %v177
    %v795 = vmul.f32 %v381, %v178
    %v796 = vmul.f32 %v636, %v179
    %v797 = vmul.f32 %v385, %v180
    %v798 = vmul.f32 %v387, %v181
    %v799 = vmul.f32 %v641, %v182
    %v800 = vmul.f32 %v391, %v177
    %v801 = vmul.f32 %v393, %v178
    %v802 = vmul.f32 %v646, %v179
    %v803 = vmul.f32 %v397, %v180
    %v804 = vmul.f32 %v399, %v181
    %v805 = vmul.f32 %v651, %v182
    %v806 = vmul.f32 %v403, %v177
    %v807 = vmul.f32 %v405, %v178
    %v808 = vmul.f32 %v656, %v179
    %v809 = vmul.f32 %v409, %v180
    %v810 = vmul.f32 %v411, %v181
    %v811 = vmul.f32 %v661, %v182
    %v812 = vmul.f32 %v415, %v177
    %v813 = vmul.f32 %v417, %v178
    %v814 = vmul.f32 %v666, %v179
    %v815 = vmul.f32 %v421, %v180
    %v816 = vmul.f32 %v423, %v181
    %v817 = vmul.f32 %v671, %v182
    %v818 = vmul.f32 %v427, %v177
    %v819 = vmul.f32 %v429, %v178
    %v820 = vmul.f32 %v676, %v179
    %v821 = vmul.f32 %v433, %v180
    %v822 = vmul.f32 %v435, %v181
    %v823 = vmul.f32 %v681, %v182
    %v824 = vmul.f32 %v439, %v177
    %v825 = vmul.f32 %v441, %v178
    %v826 = vmul.f32 %v686, %v179
    %v827 = vmul.f32 %v445, %v180
    %v828 = vmul.f32 %v447, %v181
    %v829 = vmul.f32 %v691, %v182
    %v830 = vmul.f32 %v451, %v177
    %v831 = vmul.f32 %v453, %v178
    %v832 = vmul.f32 %v696, %v179
    %v833 = vmul.f32 %v457, %v180
    %v834 = vmul.f32 %v459, %v181
    %v835 = vmul.f32 %v701, %v182
    %v836 = vmul.f32 %v463, %v177
    %v837 = vmul.f32 %v465, %v178
    %v838 = vmul.f32 %v706, %v179
    %v839 = vmul.f32 %v469, %v180
    %v840 = vmul.f32 %v471, %v181
    %v841 = vmul.f32 %v711, %v182
    %v842 = vadd.f32 %v794, %v797
    %v843 = vrot.slane %v842, 4
    %v844 = vadd.f32 %v842, %v843
    %v845 = vrot.slane %v844, 2
    %v846 = vadd.f32 %v844, %v845
    %v847 = vrot.slane %v846, 1
    %v848 = vadd.f32 %v846, %v847
    %v849 = vadd.f32 %v795, %v798
    %v850 = vrot.slane %v849, 4
    %v851 = vadd.f32 %v849, %v850
    %v852 = vrot.slane %v851, 2
    %v853 = vadd.f32 %v851, %v852
    %v854 = vrot.slane %v853, 1
    %v855 = vadd.f32 %v853, %v854
    %v856 = vadd.f32 %v796, %v799
    %v857 = vrot.slane %v856, 4
    %v858 = vadd.f32 %v856, %v857
    %v859 = vrot.slane %v858, 2
    %v860 = vadd.f32 %v858, %v859
    %v861 = vrot.slane %v860, 1
    %v862 = vadd.f32 %v860, %v861
    %v863 = vadd.f32 %v800, %v803
    %v864 = vrot.slane %v863, 4
    %v865 = vadd.f32 %v863, %v864
    %v866 = vrot.slane %v865, 2
    %v867 = vadd.f32 %v865, %v866
    %v868 = vrot.slane %v867, 1
    %v869 = vadd.f32 %v867, %v868
    %v870 = vadd.f32 %v801, %v804
    %v871 = vrot.slane %v870, 4
    %v872 = vadd.f32 %v870, %v871
    %v873 = vrot.slane %v872, 2
    %v874 = vadd.f32 %v872, %v873
    %v875 = vrot.slane %v874, 1
    %v876 = vadd.f32 %v874, %v875
    %v877 = vadd.f32 %v802, %v805
    %v878 = vrot.slane %v877, 4
    %v879 = vadd.f32 %v877, %v878
    %v880 = vrot.slane %v879, 2
    %v881 = vadd.f32 %v879, %v880
    %v882 = vrot.slane %v881, 1
    %v883 = vadd.f32 %v881, %v882
    %v884 = vadd.f32 %v806, %v809
    %v885 = vrot.slane %v884, 4
    %v886 = vadd.f32 %v884, %v885
    %v887 = vrot.slane %v886, 2
    %v888 = vadd.f32 %v886, %v887
    %v889 = vrot.slane %v888, 1
    %v890 = vadd.f32 %v888, %v889
    %v891 = vadd.f32 %v807, %v810
    %v892 = vrot.slane %v891, 4
    %v893 = vadd.f32 %v891, %v892
    %v894 = vrot.slane %v893, 2
    %v895 = vadd.f32 %v893, %v894
    %v896 = vrot.slane %v895, 1
    %v897 = vadd.f32 %v895, %v896
    %v898 = vadd.f32 %v808, %v811
    %v899 = vrot.slane %v898, 4
    %v900 = vadd.f32 %v898, %v899
    %v901 = vrot.slane %v900, 2
    %v902 = vadd.f32 %v900, %v901
    %v903 = vrot.slane %v902, 1
    %v904 = vadd.f32 %v902, %v903
    %v905 = vadd.f32 %v812, %v815
    %v906 = vrot.slane %v905, 4
    %v907 = vadd.f32 %v905, %v906
    %v908 = vrot.slane %v907, 2
    %v909 = vadd.f32 %v907, %v908
    %v910 = vrot.slane %v909, 1
    %v911 = vadd.f32 %v909, %v910
    %v912 = vadd.f32 %v813, %v816
    %v913 = vrot.slane %v912, 4
    %v914 = vadd.f32 %v912, %v913
    %v915 = vrot.slane %v914, 2
    %v916 = vadd.f32 %v914, %v915
    %v917 = vrot.slane %v916, 1
    %v918 = vadd.f32 %v916, %v917
    %v919 = vadd.f32 %v814, %v817
    %v920 = vrot.slane %v919, 4
    %v921 = vadd.f32 %v919, %v920
    %v922 = vrot.slane %v921, 2
    %v923 = vadd.f32 %v921, %v922
    %v924 = vrot.slane %v923, 1
    %v925 = vadd.f32 %v923, %v924
    %v926 = vadd.f32 %v818, %v821
    %v927 = vrot.slane %v926, 4
    %v928 = vadd.f32 %v926, %v927
    %v929 = vrot.slane %v928, 2
    %v930 = vadd.f32 %v928, %v929
    %v931 = vrot.slane %v930, 1
    %v932 = vadd.f32 %v930, %v931
    %v933 = vadd.f32 %v819, %v822
    %v934 = vrot.slane %v933, 4
    %v935 = vadd.f32 %v933, %v934
    %v936 = vrot.slane %v935, 2
    %v937 = vadd.f32 %v935, %v936
    %v938 = vrot.slane %v937, 1
    %v939 = vadd.f32 %v937, %v938
    %v940 = vadd.f32 %v820, %v823
    %v941 = vrot.slane %v940, 4
    %v942 = vadd.f32 %v940, %v941
    %v943 = vrot.slane %v942, 2
    %v944 = vadd.f32 %v942, %v943
    %v945 = vrot.slane %v944, 1
    %v946 = vadd.f32 %v944, %v945
    %v947 = vadd.f32 %v824, %v827
    %v948 = vrot.slane %v947, 4
    %v949 = vadd.f32 %v947, %v948
    %v950 = vrot.slane %v949, 2
    %v951 = vadd.f32 %v949, %v950
    %v952 = vrot.slane %v951, 1
    %v953 = vadd.f32 %v951, %v952
    %v954 = vadd.f32 %v825, %v828
    %v955 = vrot.slane %v954, 4
    %v956 = vadd.f32 %v954, %v955
    %v957 = vrot.slane %v956, 2
    %v958 = vadd.f32 %v956, %v957
    %v959 = vrot.slane %v958, 1
    %v960 = vadd.f32 %v958, %v959
    %v961 = vadd.f32 %v826, %v829
    %v962 = vrot.slane %v961, 4
    %v963 = vadd.f32 %v961, %v962
    %v964 = vrot.slane %v963, 2
    %v965 = vadd.f32 %v963, %v964
    %v966 = vrot.slane %v965, 1
    %v967 = vadd.f32 %v965, %v966
    %v968 = vadd.f32 %v830, %v833
    %v969 = vrot.slane %v968, 4
    %v970 = vadd.f32 %v968, %v969
    %v971 = vrot.slane %v970, 2
    %v972 = vadd.f32 %v970, %v971
    %v973 = vrot.slane %v972, 1
    %v974 = vadd.f32 %v972, %v973
    %v975 = vadd.f32 %v831, %v834
    %v976 = vrot.slane %v975, 4
    %v977 = vadd.f32 %v975, %v976
    %v978 = vrot.slane %v977, 2
    %v979 = vadd.f32 %v977, %v978
    %v980 = vrot.slane %v979, 1
    %v981 = vadd.f32 %v979, %v980
    %v982 = vadd.f32 %v832, %v835
    %v983 = vrot.slane %v982, 4
    %v984 = vadd.f32 %v982, %v983
    %v985 = vrot.slane %v984, 2
    %v986 = vadd.f32 %v984, %v985
    %v987 = vrot.slane %v986, 1
    %v988 = vadd.f32 %v986, %v987
    %v989 = vadd.f32 %v836, %v839
    %v990 = vrot.slane %v989, 4
    %v991 = vadd.f32 %v989, %v990
    %v992 = vrot.slane %v991, 2
    %v993 = vadd.f32 %v991, %v992
    %v994 = vrot.slane %v993, 1
    %v995 = vadd.f32 %v993, %v994
    %v996 = vadd.f32 %v837, %v840
    %v997 = vrot.slane %v996, 4
    %v998 = vadd.f32 %v996, %v997
    %v999 = vrot.slane %v998, 2
    %v1000 = vadd.f32 %v998, %v999
    %v1001 = vrot.slane %v1000, 1
    %v1002 = vadd.f32 %v1000, %v1001
    %v1003 = vadd.f32 %v838, %v841
    %v1004 = vrot.slane %v1003, 4
    %v1005 = vadd.f32 %v1003, %v1004
    %v1006 = vrot.slane %v1005, 2
    %v1007 = vadd.f32 %v1005, %v1006
    %v1008 = vrot.slane %v1007, 1
    %v1009 = vadd.f32 %v1007, %v1008
    %v1010 = vmul.f32 %v475, %v126
    %v1011 = vmul.f32 %v477, %v127
    %v1012 = vmul.f32 %v716, %v128
    %v1013 = vmul.f32 %v481, %v129
    %v1014 = vmul.f32 %v483, %v130
    %v1015 = vmul.f32 %v721, %v131
    %v1016 = vmul.f32 %v487, %v126
    %v1017 = vmul.f32 %v489, %v127
    %v1018 = vmul.f32 %v726, %v128
    %v1019 = vmul.f32 %v493, %v129
    %v1020 = vmul.f32 %v495, %v130
    %v1021 = vmul.f32 %v731, %v131
    %v1022 = vmul.f32 %v499, %v126
    %v1023 = vmul.f32 %v501, %v127
    %v1024 = vmul.f32 %v736, %v128
    %v1025 = vmul.f32 %v505, %v129
    %v1026 = vmul.f32 %v507, %v130
    %v1027 = vmul.f32 %v741, %v131
    %v1028 = vmul.f32 %v511, %v126
    %v1029 = vmul.f32 %v513, %v127
    %v1030 = vmul.f32 %v746, %v128
    %v1031 = vmul.f32 %v517, %v129
    %v1032 = vmul.f32 %v519, %v130
    %v1033 = vmul.f32 %v751, %v131
    %v1034 = vmul.f32 %v523, %v126
    %v1035 = vmul.f32 %v525, %v127
    %v1036 = vmul.f32 %v756, %v128
    %v1037 = vmul.f32 %v529, %v129
    %v1038 = vmul.f32 %v531, %v130
    %v1039 = vmul.f32 %v761, %v131
    %v1040 = vmul.f32 %v535, %v126
    %v1041 = vmul.f32 %v537, %v127
    %v1042 = vmul.f32 %v766, %v128
    %v1043 = vmul.f32 %v541, %v129
    %v1044 = vmul.f32 %v543, %v130
    %v1045 = vmul.f32 %v771, %v131
    %v1046 = vmul.f32 %v547, %v126
    %v1047 = vmul.f32 %v549, %v127
    %v1048 = vmul.f32 %v776, %v128
    %v1049 = vmul.f32 %v553, %v129
    %v1050 = vmul.f32 %v555, %v130
    %v1051 = vmul.f32 %v781, %v131
    %v1052 = vmul.f32 %v559, %v126
    %v1053 = vmul.f32 %v561, %v127
    %v1054 = vmul.f32 %v786, %v128
    %v1055 = vmul.f32 %v565, %v129
    %v1056 = vmul.f32 %v567, %v130
    %v1057 = vmul.f32 %v791, %v131
    %v1058 = vadd.f32 %v1010, %v1013
    %v1059 = vrot.slane %v1058, 4
    %v1060 = vadd.f32 %v1058, %v1059
    %v1061 = vrot.slane %v1060, 2
    %v1062 = vadd.f32 %v1060, %v1061
    %v1063 = vrot.slane %v1062, 1
    %v1064 = vadd.f32 %v1062, %v1063
    %v1065 = vadd.f32 %v1011, %v1014
    %v1066 = vrot.slane %v1065, 4
    %v1067 = vadd.f32 %v1065, %v1066
    %v1068 = vrot.slane %v1067, 2
    %v1069 = vadd.f32 %v1067, %v1068
    %v1070 = vrot.slane %v1069, 1
    %v1071 = vadd.f32 %v1069, %v1070
    %v1072 = vadd.f32 %v1012, %v1015
    %v1073 = vrot.slane %v1072, 4
    %v1074 = vadd.f32 %v1072, %v1073
    %v1075 = vrot.slane %v1074, 2
    %v1076 = vadd.f32 %v1074, %v1075
    %v1077 = vrot.slane %v1076, 1
    %v1078 = vadd.f32 %v1076, %v1077
    %v1079 = vadd.f32 %v1016, %v1019
    %v1080 = vrot.slane %v1079, 4
    %v1081 = vadd.f32 %v1079, %v1080
    %v1082 = vrot.slane %v1081, 2
    %v1083 = vadd.f32 %v1081, %v1082
    %v1084 = vrot.slane %v1083, 1
    %v1085 = vadd.f32 %v1083, %v1084
    %v1086 = vadd.f32 %v1017, %v1020
    %v1087 = vrot.slane %v1086, 4
    %v1088 = vadd.f32 %v1086, %v1087
    %v1089 = vrot.slane %v1088, 2
    %v1090 = vadd.f32 %v1088, %v1089
    %v1091 = vrot.slane %v1090, 1
    %v1092 = vadd.f32 %v1090, %v1091
    %v1093 = vadd.f32 %v1018, %v1021
    %v1094 = vrot.slane %v1093, 4
    %v1095 = vadd.f32 %v1093, %v1094
    %v1096 = vrot.slane %v1095, 2
    %v1097 = vadd.f32 %v1095, %v1096
    %v1098 = vrot.slane %v1097, 1
    %v1099 = vadd.f32 %v1097, %v1098
    %v1100 = vadd.f32 %v1022, %v1025
    %v1101 = vrot.slane %v1100, 4
    %v1102 = vadd.f32 %v1100, %v1101
    %v1103 = vrot.slane %v1102, 2
    %v1104 = vadd.f32 %v1102, %v1103
    %v1105 = vrot.slane %v1104, 1
    %v1106 = vadd.f32 %v1104, %v1105
    %v1107 = vadd.f32 %v1023, %v1026
    %v1108 = vrot.slane %v1107, 4
    %v1109 = vadd.f32 %v1107, %v1108
    %v1110 = vrot.slane %v1109, 2
    %v1111 = vadd.f32 %v1109, %v1110
    %v1112 = vrot.slane %v1111, 1
    %v1113 = vadd.f32 %v1111, %v1112
    %v1114 = vadd.f32 %v1024, %v1027
    %v1115 = vrot.slane %v1114, 4
    %v1116 = vadd.f32 %v1114, %v1115
    %v1117 = vrot.slane %v1116, 2
    %v1118 = vadd.f32 %v1116, %v1117
    %v1119 = vrot.slane %v1118, 1
    %v1120 = vadd.f32 %v1118, %v1119
    %v1121 = vadd.f32 %v1028, %v1031
    %v1122 = vrot.slane %v1121, 4
    %v1123 = vadd.f32 %v1121, %v1122
    %v1124 = vrot.slane %v1123, 2
    %v1125 = vadd.f32 %v1123, %v1124
    %v1126 = vrot.slane %v1125, 1
    %v1127 = vadd.f32 %v1125, %v1126
    %v1128 = vadd.f32 %v1029, %v1032
    %v1129 = vrot.slane %v1128, 4
    %v1130 = vadd.f32 %v1128, %v1129
    %v1131 = vrot.slane %v1130, 2
    %v1132 = vadd.f32 %v1130, %v1131
    %v1133 = vrot.slane %v1132, 1
    %v1134 = vadd.f32 %v1132, %v1133
    %v1135 = vadd.f32 %v1030, %v1033
    %v1136 = vrot.slane %v1135, 4
    %v1137 = vadd.f32 %v1135, %v1136
    %v1138 = vrot.slane %v1137, 2
    %v1139 = vadd.f32 %v1137, %v1138
    %v1140 = vrot.slane %v1139, 1
    %v1141 = vadd.f32 %v1139, %v1140
    %v1142 = vadd.f32 %v1034, %v1037
    %v1143 = vrot.slane %v1142, 4
    %v1144 = vadd.f32 %v1142, %v1143
    %v1145 = vrot.slane %v1144, 2
    %v1146 = vadd.f32 %v1144, %v1145
    %v1147 = vrot.slane %v1146, 1
    %v1148 = vadd.f32 %v1146, %v1147
    %v1149 = vadd.f32 %v1035, %v1038
    %v1150 = vrot.slane %v1149, 4
    %v1151 = vadd.f32 %v1149, %v1150
    %v1152 = vrot.slane %v1151, 2
    %v1153 = vadd.f32 %v1151, %v1152
    %v1154 = vrot.slane %v1153, 1
    %v1155 = vadd.f32 %v1153, %v1154
    %v1156 = vadd.f32 %v1036, %v1039
    %v1157 = vrot.slane %v1156, 4
    %v1158 = vadd.f32 %v1156, %v1157
    %v1159 = vrot.slane %v1158, 2
    %v1160 = vadd.f32 %v1158, %v1159
    %v1161 = vrot.slane %v1160, 1
    %v1162 = vadd.f32 %v1160, %v1161
    %v1163 = vadd.f32 %v1040, %v1043
    %v1164 = vrot.slane %v1163, 4
    %v1165 = vadd.f32 %v1163, %v1164
    %v1166 = vrot.slane %v1165, 2
    %v1167 = vadd.f32 %v1165, %v1166
    %v1168 = vrot.slane %v1167, 1
    %v1169 = vadd.f32 %v1167, %v1168
    %v1170 = vadd.f32 %v1041, %v1044
    %v1171 = vrot.slane %v1170, 4
    %v1172 = vadd.f32 %v1170, %v1171
    %v1173 = vrot.slane %v1172, 2
    %v1174 = vadd.f32 %v1172, %v1173
    %v1175 = vrot.slane %v1174, 1
    %v1176 = vadd.f32 %v1174, %v1175
    %v1177 = vadd.f32 %v1042, %v1045
    %v1178 = vrot.slane %v1177, 4
    %v1179 = vadd.f32 %v1177, %v1178
    %v1180 = vrot.slane %v1179, 2
    %v1181 = vadd.f32 %v1179, %v1180
    %v1182 = vrot.slane %v1181, 1
    %v1183 = vadd.f32 %v1181, %v1182
    %v1184 = vadd.f32 %v1046, %v1049
    %v1185 = vrot.slane %v1184, 4
    %v1186 = vadd.f32 %v1184, %v1185
    %v1187 = vrot.slane %v1186, 2
    %v1188 = vadd.f32 %v1186, %v1187
    %v1189 = vrot.slane %v1188, 1
    %v1190 = vadd.f32 %v1188, %v1189
    %v1191 = vadd.f32 %v1047, %v1050
    %v1192 = vrot.slane %v1191, 4
    %v1193 = vadd.f32 %v1191, %v1192
    %v1194 = vrot.slane %v1193, 2
    %v1195 = vadd.f32 %v1193, %v1194
    %v1196 = vrot.slane %v1195, 1
    %v1197 = vadd.f32 %v1195, %v1196
    %v1198 = vadd.f32 %v1048, %v1051
    %v1199 = vrot.slane %v1198, 4
    %v1200 = vadd.f32 %v1198, %v1199
    %v1201 = vrot.slane %v1200, 2
    %v1202 = vadd.f32 %v1200, %v1201
    %v1203 = vrot.slane %v1202, 1
    %v1204 = vadd.f32 %v1202, %v1203
    %v1205 = vadd.f32 %v1052, %v1055
    %v1206 = vrot.slane %v1205, 4
    %v1207 = vadd.f32 %v1205, %v1206
    %v1208 = vrot.slane %v1207, 2
    %v1209 = vadd.f32 %v1207, %v1208
    %v1210 = vrot.slane %v1209, 1
    %v1211 = vadd.f32 %v1209, %v1210
    %v1212 = vadd.f32 %v1053, %v1056
    %v1213 = vrot.slane %v1212, 4
    %v1214 = vadd.f32 %v1212, %v1213
    %v1215 = vrot.slane %v1214, 2
    %v1216 = vadd.f32 %v1214, %v1215
    %v1217 = vrot.slane %v1216, 1
    %v1218 = vadd.f32 %v1216, %v1217
    %v1219 = vadd.f32 %v1054, %v1057
    %v1220 = vrot.slane %v1219, 4
    %v1221 = vadd.f32 %v1219, %v1220
    %v1222 = vrot.slane %v1221, 2
    %v1223 = vadd.f32 %v1221, %v1222
    %v1224 = vrot.slane %v1223, 1
    %v1225 = vadd.f32 %v1223, %v1224
    %v1226 = vld [vmem:[%s1 + $0x100] sm:$0xff]
    %v1227 = vld [vmem:[%s1 + $0x108] sm:$0xff]
    %v1228 = vld [vmem:[%s1 + $0x110] sm:$0xff]
    %v1229 = vld [vmem:[%s1 + $0x118] sm:$0xff]
    %v1230 = vld [vmem:[%s1 + $0x120] sm:$0xff]
    %v1231 = vld [vmem:[%s1 + $0x128] sm:$0xff]
    %v1232 = vld [vmem:[%s1 + $0x130] sm:$0xff]
    %v1233 = vld [vmem:[%s1 + $0x138] sm:$0xff]
    %v1234 = vld [vmem:[%s1 + $0x140] sm:$0xff]
    %v1235 = vld [vmem:[%s1 + $0x148] sm:$0xff]
    %v1236 = vld [vmem:[%s1 + $0x150] sm:$0xff]
    %v1237 = vld [vmem:[%s1 + $0x158] sm:$0xff]
    %v1238 = vld [vmem:[%s1 + $0x160] sm:$0xff]
    %v1239 = vld [vmem:[%s1 + $0x168] sm:$0xff]
    %v1240 = vld [vmem:[%s1 + $0x170] sm:$0xff]
    %v1241 = vld [vmem:[%s1 + $0x178] sm:$0xff]
    %v1243 = vsel %vm215, %v1226, 0
    %v1246 = vsel %vm215, %v1227, 0
    %v1249 = vsel %vm215, %v1228, 0
    %v1252 = vsel %vm215, %v1229, 0
    %v1255 = vsel %vm215, %v1230, 0
    %v1258 = vsel %vm215, %v1231, 0
    %v1261 = vsel %vm215, %v1232, 0
    %v1264 = vsel %vm215, %v1233, 0
    %v1267 = vsel %vm215, %v1234, 0
    %v1270 = vsel %vm215, %v1235, 0
    %v1273 = vsel %vm215, %v1236, 0
    %v1276 = vsel %vm215, %v1237, 0
    %v1279 = vsel %vm215, %v1238, 0
    %v1282 = vsel %vm215, %v1239, 0
    %v1285 = vsel %vm215, %v1240, 0
    %v1288 = vsel %vm215, %v1241, 0
    %1290 = vmatprep.subr.mxu0 %v127
    %1291 = vmatpush1.msra.mxu0 %v126
    %1292 = vmatprep.subr.mxu0 %v130
    %1293 = vmatpush1.msra.mxu0 %v129
    %1294 = vmatprep.subr.mxu0 0.0
    %1295 = vmatpush1.msra.mxu0 0.0
    %1296 = vmatprep.subr.mxu0 0.0
    %1297 = vmatpush1.msra.mxu0 0.0
    %1298 = vmatprep.subr.mxu0 0.0
    %1299 = vmatpush1.msra.mxu0 0.0
    %1300 = vmatprep.subr.mxu0 0.0
    %1301 = vmatpush1.msra.mxu0 0.0
    %1302 = vmatprep.subr.mxu0 0.0
    %1303 = vmatpush1.msra.mxu0 0.0
    %1304 = vmatprep.subr.mxu0 0.0
    %1305 = vmatpush1.msra.mxu0 0.0
    %1306 = vmatprep.subr.mxu0 0.0
    %1307 = vmatpush1.msra.mxu0 0.0
    %1308 = vmatprep.subr.mxu0 0.0
    %1309 = vmatpush1.msra.mxu0 0.0
    %1310 = vmatprep.subr.mxu0 0.0
    %1311 = vmatpush1.msra.mxu0 0.0
    %1312 = vmatprep.subr.mxu0 0.0
    %1313 = vmatpush1.msra.mxu0 0.0
    %1314 = vmatprep.subr.mxu0 0.0
    %1315 = vmatpush1.msra.mxu0 0.0
    %1316 = vmatprep.subr.mxu0 0.0
    %1317 = vmatpush1.msra.mxu0 0.0
    %1318 = vmatprep.subr.mxu0 0.0
    %1319 = vmatpush1.msra.mxu0 0.0
    %1320 = vmatprep.subr.mxu0 0.0
    %1321 = vmatpush1.msra.mxu0 0.0
    %1322 = vmatprep.subr.mxu0 0.0
    %1323 = vmatpush1.msra.mxu0 0.0
    %1324 = vmatprep.subr.mxu0 0.0
    %1325 = vmatpush1.msra.mxu0 0.0
    %1326 = vmatprep.subr.mxu0 0.0
    %1327 = vmatpush1.msra.mxu0 0.0
    %1328 = vmatprep.subr.mxu0 0.0
    %1329 = vmatpush1.msra.mxu0 0.0
    %1330 = vmatprep.subr.mxu0 0.0
    %1331 = vmatpush1.msra.mxu0 0.0
    %1332 = vmatprep.subr.mxu0 0.0
    %1333 = vmatpush1.msra.mxu0 0.0
    %1334 = vmatprep.subr.mxu0 0.0
    %1335 = vmatpush1.msra.mxu0 0.0
    %1336 = vmatprep.subr.mxu0 0.0
    %1337 = vmatpush1.msra.mxu0 0.0
    %1338 = vmatprep.subr.mxu0 0.0
    %1339 = vmatpush1.msra.mxu0 0.0
    %1340 = vmatprep.subr.mxu0 0.0
    %1341 = vmatpush1.msra.mxu0 0.0
    %1342 = vmatprep.subr.mxu0 0.0
    %1343 = vmatpush1.msra.mxu0 0.0
    %1344 = vmatprep.subr.mxu0 0.0
    %1345 = vmatpush1.msra.mxu0 0.0
    %1346 = vmatprep.subr.mxu0 0.0
    %1347 = vmatpush1.msra.mxu0 0.0
    %1348 = vmatprep.subr.mxu0 0.0
    %1349 = vmatpush1.msra.mxu0 0.0
    %1350 = vmatprep.subr.mxu0 0.0
    %1351 = vmatpush1.msra.mxu0 0.0
    %1352 = vmatprep.subr.mxu0 0.0
    %1353 = vmatpush1.msra.mxu0 0.0
    %1354 = vmatprep.mubr.f32.mxu0 0.0
    %1355 = vmatmul.mubr.f32.gmra.mrb[0].mxu0 %v1243
    %v1356 = vpop.f32.mrb[0].mxu0
    %v1357 = vadd.f32 0.0, %v1356
    %v1358 = vpop.f32.mrb[0].mxu0
    %v1359 = vadd.f32 0.0, %v1358
    %1360 = vmatprep.mubr.f32.mxu0 0.0
    %1361 = vmatmul.mubr.f32.gmra.mrb[0].mxu0 %v1246
    %v1362 = vpop.f32.mrb[0].mxu0
    %v1363 = vadd.f32 0.0, %v1362
    %v1364 = vpop.f32.mrb[0].mxu0
    %v1365 = vadd.f32 0.0, %v1364
    %1366 = vmatprep.mubr.f32.mxu0 0.0
    %1367 = vmatmul.mubr.f32.gmra.mrb[0].mxu0 %v1249
    %v1368 = vpop.f32.mrb[0].mxu0
    %v1369 = vadd.f32 0.0, %v1368
    %v1370 = vpop.f32.mrb[0].mxu0
    %v1371 = vadd.f32 0.0, %v1370
    %1372 = vmatprep.mubr.f32.mxu0 0.0
    %1373 = vmatmul.mubr.f32.gmra.mrb[0].mxu0 %v1252
    %v1374 = vpop.f32.mrb[0].mxu0
    %v1375 = vadd.f32 0.0, %v1374
    %v1376 = vpop.f32.mrb[0].mxu0
    %v1377 = vadd.f32 0.0, %v1376
    %1378 = vmatprep.mubr.f32.mxu0 0.0
    %1379 = vmatmul.mubr.f32.gmra.mrb[0].mxu0 %v1255
    %v1380 = vpop.f32.mrb[0].mxu0
    %v1381 = vadd.f32 0.0, %v1380
    %v1382 = vpop.f32.mrb[0].mxu0
    %v1383 = vadd.f32 0.0, %v1382
    %1384 = vmatprep.mubr.f32.mxu0 0.0
    %1385 = vmatmul.mubr.f32.gmra.mrb[0].mxu0 %v1258
    %v1386 = vpop.f32.mrb[0].mxu0
    %v1387 = vadd.f32 0.0, %v1386
    %v1388 = vpop.f32.mrb[0].mxu0
    %v1389 = vadd.f32 0.0, %v1388
    %1390 = vmatprep.mubr.f32.mxu0 0.0
    %1391 = vmatmul.mubr.f32.gmra.mrb[0].mxu0 %v1261
    %v1392 = vpop.f32.mrb[0].mxu0
    %v1393 = vadd.f32 0.0, %v1392
    %v1394 = vpop.f32.mrb[0].mxu0
    %v1395 = vadd.f32 0.0, %v1394
    %1396 = vmatprep.mubr.f32.mxu0 0.0
    %1397 = vmatmul.mubr.f32.gmra.mrb[0].mxu0 %v1264
    %v1398 = vpop.f32.mrb[0].mxu0
    %v1399 = vadd.f32 0.0, %v1398
    %v1400 = vpop.f32.mrb[0].mxu0
    %v1401 = vadd.f32 0.0, %v1400
    %1402 = vmatprep.mubr.f32.mxu0 0.0
    %1403 = vmatmul.mubr.f32.gmra.mrb[0].mxu0 %v1267
    %v1404 = vpop.f32.mrb[0].mxu0
    %v1405 = vadd.f32 0.0, %v1404
    %v1406 = vpop.f32.mrb[0].mxu0
    %v1407 = vadd.f32 0.0, %v1406
    %1408 = vmatprep.mubr.f32.mxu0 0.0
    %1409 = vmatmul.mubr.f32.gmra.mrb[0].mxu0 %v1270
    %v1410 = vpop.f32.mrb[0].mxu0
    %v1411 = vadd.f32 0.0, %v1410
    %v1412 = vpop.f32.mrb[0].mxu0
    %v1413 = vadd.f32 0.0, %v1412
    %1414 = vmatprep.mubr.f32.mxu0 0.0
    %1415 = vmatmul.mubr.f32.gmra.mrb[0].mxu0 %v1273
    %v1416 = vpop.f32.mrb[0].mxu0
    %v1417 = vadd.f32 0.0, %v1416
    %v1418 = vpop.f32.mrb[0].mxu0
    %v1419 = vadd.f32 0.0, %v1418
    %1420 = vmatprep.mubr.f32.mxu0 0.0
    %1421 = vmatmul.mubr.f32.gmra.mrb[0].mxu0 %v1276
    %v1422 = vpop.f32.mrb[0].mxu0
    %v1423 = vadd.f32 0.0, %v1422
    %v1424 = vpop.f32.mrb[0].mxu0
    %v1425 = vadd.f32 0.0, %v1424
    %1426 = vmatprep.mubr.f32.mxu0 0.0
    %1427 = vmatmul.mubr.f32.gmra.mrb[0].mxu0 %v1279
    %v1428 = vpop.f32.mrb[0].mxu0
    %v1429 = vadd.f32 0.0, %v1428
    %v1430 = vpop.f32.mrb[0].mxu0
    %v1431 = vadd.f32 0.0, %v1430
    %1432 = vmatprep.mubr.f32.mxu0 0.0
    %1433 = vmatmul.mubr.f32.gmra.mrb[0].mxu0 %v1282
    %v1434 = vpop.f32.mrb[0].mxu0
    %v1435 = vadd.f32 0.0, %v1434
    %v1436 = vpop.f32.mrb[0].mxu0
    %v1437 = vadd.f32 0.0, %v1436
    %1438 = vmatprep.mubr.f32.mxu0 0.0
    %1439 = vmatmul.mubr.f32.gmra.mrb[0].mxu0 %v1285
    %v1440 = vpop.f32.mrb[0].mxu0
    %v1441 = vadd.f32 0.0, %v1440
    %v1442 = vpop.f32.mrb[0].mxu0
    %v1443 = vadd.f32 0.0, %v1442
    %1444 = vmatprep.mubr.f32.mxu0 0.0
    %1445 = vmatmul.mubr.f32.gmra.mrb[0].mxu0 %v1288
    %v1446 = vpop.f32.mrb[0].mxu0
    %v1447 = vadd.f32 0.0, %v1446
    %v1448 = vpop.f32.mrb[0].mxu0
    %v1449 = vadd.f32 0.0, %v1448
    %1450 = vdwg.mxu0
    %1451 = vmatprep.subr.mxu0 0.0
    %1452 = vmatpush1.msra.mxu0 %v128
    %1453 = vmatprep.subr.mxu0 0.0
    %1454 = vmatpush1.msra.mxu0 %v131
    %1455 = vmatprep.subr.mxu0 0.0
    %1456 = vmatpush1.msra.mxu0 0.0
    %1457 = vmatprep.subr.mxu0 0.0
    %1458 = vmatpush1.msra.mxu0 0.0
    %1459 = vmatprep.subr.mxu0 0.0
    %1460 = vmatpush1.msra.mxu0 0.0
    %1461 = vmatprep.subr.mxu0 0.0
    %1462 = vmatpush1.msra.mxu0 0.0
    %1463 = vmatprep.subr.mxu0 0.0
    %1464 = vmatpush1.msra.mxu0 0.0
    %1465 = vmatprep.subr.mxu0 0.0
    %1466 = vmatpush1.msra.mxu0 0.0
    %1467 = vmatprep.subr.mxu0 0.0
    %1468 = vmatpush1.msra.mxu0 0.0
    %1469 = vmatprep.subr.mxu0 0.0
    %1470 = vmatpush1.msra.mxu0 0.0
    %1471 = vmatprep.subr.mxu0 0.0
    %1472 = vmatpush1.msra.mxu0 0.0
    %1473 = vmatprep.subr.mxu0 0.0
    %1474 = vmatpush1.msra.mxu0 0.0
    %1475 = vmatprep.subr.mxu0 0.0
    %1476 = vmatpush1.msra.mxu0 0.0
    %1477 = vmatprep.subr.mxu0 0.0
    %1478 = vmatpush1.msra.mxu0 0.0
    %1479 = vmatprep.subr.mxu0 0.0
    %1480 = vmatpush1.msra.mxu0 0.0
    %1481 = vmatprep.subr.mxu0 0.0
    %1482 = vmatpush1.msra.mxu0 0.0
    %1483 = vmatprep.subr.mxu0 0.0
    %1484 = vmatpush1.msra.mxu0 0.0
    %1485 = vmatprep.subr.mxu0 0.0
    %1486 = vmatpush1.msra.mxu0 0.0
    %1487 = vmatprep.subr.mxu0 0.0
    %1488 = vmatpush1.msra.mxu0 0.0
    %1489 = vmatprep.subr.mxu0 0.0
    %1490 = vmatpush1.msra.mxu0 0.0
    %1491 = vmatprep.subr.mxu0 0.0
    %1492 = vmatpush1.msra.mxu0 0.0
    %1493 = vmatprep.subr.mxu0 0.0
    %1494 = vmatpush1.msra.mxu0 0.0
    %1495 = vmatprep.subr.mxu0 0.0
    %1496 = vmatpush1.msra.mxu0 0.0
    %1497 = vmatprep.subr.mxu0 0.0
    %1498 = vmatpush1.msra.mxu0 0.0
    %1499 = vmatprep.subr.mxu0 0.0
    %1500 = vmatpush1.msra.mxu0 0.0
    %1501 = vmatprep.subr.mxu0 0.0
    %1502 = vmatpush1.msra.mxu0 0.0
    %1503 = vmatprep.subr.mxu0 0.0
    %1504 = vmatpush1.msra.mxu0 0.0
    %1505 = vmatprep.subr.mxu0 0.0
    %1506 = vmatpush1.msra.mxu0 0.0
    %1507 = vmatprep.subr.mxu0 0.0
    %1508 = vmatpush1.msra.mxu0 0.0
    %1509 = vmatprep.subr.mxu0 0.0
    %1510 = vmatpush1.msra.mxu0 0.0
    %1511 = vmatprep.subr.mxu0 0.0
    %1512 = vmatpush1.msra.mxu0 0.0
    %1513 = vmatprep.subr.mxu0 0.0
    %1514 = vmatpush1.msra.mxu0 0.0
    %1515 = vmatprep.mubr.f32.mxu0 0.0
    %1516 = vmatmul.mubr.f32.gmra.mrb[0].mxu0 %v1243
    %v1517 = vpop.f32.mrb[0].mxu0
    %v1518 = vadd.f32 0.0, %v1517
    %v1519 = vpop.f32.mrb[0].mxu0
    %1520 = vmatprep.mubr.f32.mxu0 0.0
    %1521 = vmatmul.mubr.f32.gmra.mrb[0].mxu0 %v1246
    %v1522 = vpop.f32.mrb[0].mxu0
    %v1523 = vadd.f32 0.0, %v1522
    %v1524 = vpop.f32.mrb[0].mxu0
    %1525 = vmatprep.mubr.f32.mxu0 0.0
    %1526 = vmatmul.mubr.f32.gmra.mrb[0].mxu0 %v1249
    %v1527 = vpop.f32.mrb[0].mxu0
    %v1528 = vadd.f32 0.0, %v1527
    %v1529 = vpop.f32.mrb[0].mxu0
    %1530 = vmatprep.mubr.f32.mxu0 0.0
    %1531 = vmatmul.mubr.f32.gmra.mrb[0].mxu0 %v1252
    %v1532 = vpop.f32.mrb[0].mxu0
    %v1533 = vadd.f32 0.0, %v1532
    %v1534 = vpop.f32.mrb[0].mxu0
    %1535 = vmatprep.mubr.f32.mxu0 0.0
    %1536 = vmatmul.mubr.f32.gmra.mrb[0].mxu0 %v1255
    %v1537 = vpop.f32.mrb[0].mxu0
    %v1538 = vadd.f32 0.0, %v1537
    %v1539 = vpop.f32.mrb[0].mxu0
    %1540 = vmatprep.mubr.f32.mxu0 0.0
    %1541 = vmatmul.mubr.f32.gmra.mrb[0].mxu0 %v1258
    %v1542 = vpop.f32.mrb[0].mxu0
    %v1543 = vadd.f32 0.0, %v1542
    %v1544 = vpop.f32.mrb[0].mxu0
    %1545 = vmatprep.mubr.f32.mxu0 0.0
    %1546 = vmatmul.mubr.f32.gmra.mrb[0].mxu0 %v1261
    %v1547 = vpop.f32.mrb[0].mxu0
    %v1548 = vadd.f32 0.0, %v1547
    %v1549 = vpop.f32.mrb[0].mxu0
    %1550 = vmatprep.mubr.f32.mxu0 0.0
    %1551 = vmatmul.mubr.f32.gmra.mrb[0].mxu0 %v1264
    %v1552 = vpop.f32.mrb[0].mxu0
    %v1553 = vadd.f32 0.0, %v1552
    %v1554 = vpop.f32.mrb[0].mxu0
    %1555 = vmatprep.mubr.f32.mxu0 0.0
    %1556 = vmatmul.mubr.f32.gmra.mrb[0].mxu0 %v1267
    %v1557 = vpop.f32.mrb[0].mxu0
    %v1558 = vadd.f32 0.0, %v1557
    %v1559 = vpop.f32.mrb[0].mxu0
    %1560 = vmatprep.mubr.f32.mxu0 0.0
    %1561 = vmatmul.mubr.f32.gmra.mrb[0].mxu0 %v1270
    %v1562 = vpop.f32.mrb[0].mxu0
    %v1563 = vadd.f32 0.0, %v1562
    %v1564 = vpop.f32.mrb[0].mxu0
    %1565 = vmatprep.mubr.f32.mxu0 0.0
    %1566 = vmatmul.mubr.f32.gmra.mrb[0].mxu0 %v1273
    %v1567 = vpop.f32.mrb[0].mxu0
    %v1568 = vadd.f32 0.0, %v1567
    %v1569 = vpop.f32.mrb[0].mxu0
    %1570 = vmatprep.mubr.f32.mxu0 0.0
    %1571 = vmatmul.mubr.f32.gmra.mrb[0].mxu0 %v1276
    %v1572 = vpop.f32.mrb[0].mxu0
    %v1573 = vadd.f32 0.0, %v1572
    %v1574 = vpop.f32.mrb[0].mxu0
    %1575 = vmatprep.mubr.f32.mxu0 0.0
    %1576 = vmatmul.mubr.f32.gmra.mrb[0].mxu0 %v1279
    %v1577 = vpop.f32.mrb[0].mxu0
    %v1578 = vadd.f32 0.0, %v1577
    %v1579 = vpop.f32.mrb[0].mxu0
    %1580 = vmatprep.mubr.f32.mxu0 0.0
    %1581 = vmatmul.mubr.f32.gmra.mrb[0].mxu0 %v1282
    %v1582 = vpop.f32.mrb[0].mxu0
    %v1583 = vadd.f32 0.0, %v1582
    %v1584 = vpop.f32.mrb[0].mxu0
    %1585 = vmatprep.mubr.f32.mxu0 0.0
    %1586 = vmatmul.mubr.f32.gmra.mrb[0].mxu0 %v1285
    %v1587 = vpop.f32.mrb[0].mxu0
    %v1588 = vadd.f32 0.0, %v1587
    %v1589 = vpop.f32.mrb[0].mxu0
    %1590 = vmatprep.mubr.f32.mxu0 0.0
    %1591 = vmatmul.mubr.f32.gmra.mrb[0].mxu0 %v1288
    %v1592 = vpop.f32.mrb[0].mxu0
    %v1593 = vadd.f32 0.0, %v1592
    %v1594 = vpop.f32.mrb[0].mxu0
    %1595 = vdwg.mxu0
    %v1596 = vmul.f32 %v1357, %v177
    %v1597 = vmul.f32 %v1359, %v178
    %v1598 = vmul.f32 %v1518, %v179
    %v1599 = vmul.f32 %v1363, %v180
    %v1600 = vmul.f32 %v1365, %v181
    %v1601 = vmul.f32 %v1523, %v182
    %v1602 = vmul.f32 %v1369, %v177
    %v1603 = vmul.f32 %v1371, %v178
    %v1604 = vmul.f32 %v1528, %v179
    %v1605 = vmul.f32 %v1375, %v180
    %v1606 = vmul.f32 %v1377, %v181
    %v1607 = vmul.f32 %v1533, %v182
    %v1608 = vmul.f32 %v1381, %v177
    %v1609 = vmul.f32 %v1383, %v178
    %v1610 = vmul.f32 %v1538, %v179
    %v1611 = vmul.f32 %v1387, %v180
    %v1612 = vmul.f32 %v1389, %v181
    %v1613 = vmul.f32 %v1543, %v182
    %v1614 = vmul.f32 %v1393, %v177
    %v1615 = vmul.f32 %v1395, %v178
    %v1616 = vmul.f32 %v1548, %v179
    %v1617 = vmul.f32 %v1399, %v180
    %v1618 = vmul.f32 %v1401, %v181
    %v1619 = vmul.f32 %v1553, %v182
    %v1620 = vmul.f32 %v1405, %v177
    %v1621 = vmul.f32 %v1407, %v178
    %v1622 = vmul.f32 %v1558, %v179
    %v1623 = vmul.f32 %v1411, %v180
    %v1624 = vmul.f32 %v1413, %v181
    %v1625 = vmul.f32 %v1563, %v182
    %v1626 = vmul.f32 %v1417, %v177
    %v1627 = vmul.f32 %v1419, %v178
    %v1628 = vmul.f32 %v1568, %v179
    %v1629 = vmul.f32 %v1423, %v180
    %v1630 = vmul.f32 %v1425, %v181
    %v1631 = vmul.f32 %v1573, %v182
    %v1632 = vmul.f32 %v1429, %v177
    %v1633 = vmul.f32 %v1431, %v178
    %v1634 = vmul.f32 %v1578, %v179
    %v1635 = vmul.f32 %v1435, %v180
    %v1636 = vmul.f32 %v1437, %v181
    %v1637 = vmul.f32 %v1583, %v182
    %v1638 = vmul.f32 %v1441, %v177
    %v1639 = vmul.f32 %v1443, %v178
    %v1640 = vmul.f32 %v1588, %v179
    %v1641 = vmul.f32 %v1447, %v180
    %v1642 = vmul.f32 %v1449, %v181
    %v1643 = vmul.f32 %v1593, %v182
    %v1644 = vadd.f32 %v1596, %v1599
    %v1645 = vrot.slane %v1644, 4
    %v1646 = vadd.f32 %v1644, %v1645
    %v1647 = vrot.slane %v1646, 2
    %v1648 = vadd.f32 %v1646, %v1647
    %v1649 = vrot.slane %v1648, 1
    %v1650 = vadd.f32 %v1648, %v1649
    %v1651 = vadd.f32 %v1597, %v1600
    %v1652 = vrot.slane %v1651, 4
    %v1653 = vadd.f32 %v1651, %v1652
    %v1654 = vrot.slane %v1653, 2
    %v1655 = vadd.f32 %v1653, %v1654
    %v1656 = vrot.slane %v1655, 1
    %v1657 = vadd.f32 %v1655, %v1656
    %v1658 = vadd.f32 %v1598, %v1601
    %v1659 = vrot.slane %v1658, 4
    %v1660 = vadd.f32 %v1658, %v1659
    %v1661 = vrot.slane %v1660, 2
    %v1662 = vadd.f32 %v1660, %v1661
    %v1663 = vrot.slane %v1662, 1
    %v1664 = vadd.f32 %v1662, %v1663
    %v1665 = vadd.f32 %v1602, %v1605
    %v1666 = vrot.slane %v1665, 4
    %v1667 = vadd.f32 %v1665, %v1666
    %v1668 = vrot.slane %v1667, 2
    %v1669 = vadd.f32 %v1667, %v1668
    %v1670 = vrot.slane %v1669, 1
    %v1671 = vadd.f32 %v1669, %v1670
    %v1672 = vadd.f32 %v1603, %v1606
    %v1673 = vrot.slane %v1672, 4
    %v1674 = vadd.f32 %v1672, %v1673
    %v1675 = vrot.slane %v1674, 2
    %v1676 = vadd.f32 %v1674, %v1675
    %v1677 = vrot.slane %v1676, 1
    %v1678 = vadd.f32 %v1676, %v1677
    %v1679 = vadd.f32 %v1604, %v1607
    %v1680 = vrot.slane %v1679, 4
    %v1681 = vadd.f32 %v1679, %v1680
    %v1682 = vrot.slane %v1681, 2
    %v1683 = vadd.f32 %v1681, %v1682
    %v1684 = vrot.slane %v1683, 1
    %v1685 = vadd.f32 %v1683, %v1684
    %v1686 = vadd.f32 %v1608, %v1611
    %v1687 = vrot.slane %v1686, 4
    %v1688 = vadd.f32 %v1686, %v1687
    %v1689 = vrot.slane %v1688, 2
    %v1690 = vadd.f32 %v1688, %v1689
    %v1691 = vrot.slane %v1690, 1
    %v1692 = vadd.f32 %v1690, %v1691
    %v1693 = vadd.f32 %v1609, %v1612
    %v1694 = vrot.slane %v1693, 4
    %v1695 = vadd.f32 %v1693, %v1694
    %v1696 = vrot.slane %v1695, 2
    %v1697 = vadd.f32 %v1695, %v1696
    %v1698 = vrot.slane %v1697, 1
    %v1699 = vadd.f32 %v1697, %v1698
    %v1700 = vadd.f32 %v1610, %v1613
    %v1701 = vrot.slane %v1700, 4
    %v1702 = vadd.f32 %v1700, %v1701
    %v1703 = vrot.slane %v1702, 2
    %v1704 = vadd.f32 %v1702, %v1703
    %v1705 = vrot.slane %v1704, 1
    %v1706 = vadd.f32 %v1704, %v1705
    %v1707 = vadd.f32 %v1614, %v1617
    %v1708 = vrot.slane %v1707, 4
    %v1709 = vadd.f32 %v1707, %v1708
    %v1710 = vrot.slane %v1709, 2
    %v1711 = vadd.f32 %v1709, %v1710
    %v1712 = vrot.slane %v1711, 1
    %v1713 = vadd.f32 %v1711, %v1712
    %v1714 = vadd.f32 %v1615, %v1618
    %v1715 = vrot.slane %v1714, 4
    %v1716 = vadd.f32 %v1714, %v1715
    %v1717 = vrot.slane %v1716, 2
    %v1718 = vadd.f32 %v1716, %v1717
    %v1719 = vrot.slane %v1718, 1
    %v1720 = vadd.f32 %v1718, %v1719
    %v1721 = vadd.f32 %v1616, %v1619
    %v1722 = vrot.slane %v1721, 4
    %v1723 = vadd.f32 %v1721, %v1722
    %v1724 = vrot.slane %v1723, 2
    %v1725 = vadd.f32 %v1723, %v1724
    %v1726 = vrot.slane %v1725, 1
    %v1727 = vadd.f32 %v1725, %v1726
    %v1728 = vadd.f32 %v1620, %v1623
    %v1729 = vrot.slane %v1728, 4
    %v1730 = vadd.f32 %v1728, %v1729
    %v1731 = vrot.slane %v1730, 2
    %v1732 = vadd.f32 %v1730, %v1731
    %v1733 = vrot.slane %v1732, 1
    %v1734 = vadd.f32 %v1732, %v1733
    %v1735 = vadd.f32 %v1621, %v1624
    %v1736 = vrot.slane %v1735, 4
    %v1737 = vadd.f32 %v1735, %v1736
    %v1738 = vrot.slane %v1737, 2
    %v1739 = vadd.f32 %v1737, %v1738
    %v1740 = vrot.slane %v1739, 1
    %v1741 = vadd.f32 %v1739, %v1740
    %v1742 = vadd.f32 %v1622, %v1625
    %v1743 = vrot.slane %v1742, 4
    %v1744 = vadd.f32 %v1742, %v1743
    %v1745 = vrot.slane %v1744, 2
    %v1746 = vadd.f32 %v1744, %v1745
    %v1747 = vrot.slane %v1746, 1
    %v1748 = vadd.f32 %v1746, %v1747
    %v1749 = vadd.f32 %v1626, %v1629
    %v1750 = vrot.slane %v1749, 4
    %v1751 = vadd.f32 %v1749, %v1750
    %v1752 = vrot.slane %v1751, 2
    %v1753 = vadd.f32 %v1751, %v1752
    %v1754 = vrot.slane %v1753, 1
    %v1755 = vadd.f32 %v1753, %v1754
    %v1756 = vadd.f32 %v1627, %v1630
    %v1757 = vrot.slane %v1756, 4
    %v1758 = vadd.f32 %v1756, %v1757
    %v1759 = vrot.slane %v1758, 2
    %v1760 = vadd.f32 %v1758, %v1759
    %v1761 = vrot.slane %v1760, 1
    %v1762 = vadd.f32 %v1760, %v1761
    %v1763 = vadd.f32 %v1628, %v1631
    %v1764 = vrot.slane %v1763, 4
    %v1765 = vadd.f32 %v1763, %v1764
    %v1766 = vrot.slane %v1765, 2
    %v1767 = vadd.f32 %v1765, %v1766
    %v1768 = vrot.slane %v1767, 1
    %v1769 = vadd.f32 %v1767, %v1768
    %v1770 = vadd.f32 %v1632, %v1635
    %v1771 = vrot.slane %v1770, 4
    %v1772 = vadd.f32 %v1770, %v1771
    %v1773 = vrot.slane %v1772, 2
    %v1774 = vadd.f32 %v1772, %v1773
    %v1775 = vrot.slane %v1774, 1
    %v1776 = vadd.f32 %v1774, %v1775
    %v1777 = vadd.f32 %v1633, %v1636
    %v1778 = vrot.slane %v1777, 4
    %v1779 = vadd.f32 %v1777, %v1778
    %v1780 = vrot.slane %v1779, 2
    %v1781 = vadd.f32 %v1779, %v1780
    %v1782 = vrot.slane %v1781, 1
    %v1783 = vadd.f32 %v1781, %v1782
    %v1784 = vadd.f32 %v1634, %v1637
    %v1785 = vrot.slane %v1784, 4
    %v1786 = vadd.f32 %v1784, %v1785
    %v1787 = vrot.slane %v1786, 2
    %v1788 = vadd.f32 %v1786, %v1787
    %v1789 = vrot.slane %v1788, 1
    %v1790 = vadd.f32 %v1788, %v1789
    %v1791 = vadd.f32 %v1638, %v1641
    %v1792 = vrot.slane %v1791, 4
    %v1793 = vadd.f32 %v1791, %v1792
    %v1794 = vrot.slane %v1793, 2
    %v1795 = vadd.f32 %v1793, %v1794
    %v1796 = vrot.slane %v1795, 1
    %v1797 = vadd.f32 %v1795, %v1796
    %v1798 = vadd.f32 %v1639, %v1642
    %v1799 = vrot.slane %v1798, 4
    %v1800 = vadd.f32 %v1798, %v1799
    %v1801 = vrot.slane %v1800, 2
    %v1802 = vadd.f32 %v1800, %v1801
    %v1803 = vrot.slane %v1802, 1
    %v1804 = vadd.f32 %v1802, %v1803
    %v1805 = vadd.f32 %v1640, %v1643
    %v1806 = vrot.slane %v1805, 4
    %v1807 = vadd.f32 %v1805, %v1806
    %v1808 = vrot.slane %v1807, 2
    %v1809 = vadd.f32 %v1807, %v1808
    %v1810 = vrot.slane %v1809, 1
    %v1811 = vadd.f32 %v1809, %v1810
    %v1812 = vmul.f32 %v848, %v1064
    %v1813 = vmul.f32 %v855, %v1071
    %v1814 = vmul.f32 %v862, %v1078
    %v1815 = vmul.f32 %v869, %v1085
    %v1816 = vmul.f32 %v876, %v1092
    %v1817 = vmul.f32 %v883, %v1099
    %v1818 = vmul.f32 %v890, %v1106
    %v1819 = vmul.f32 %v897, %v1113
    %v1820 = vmul.f32 %v904, %v1120
    %v1821 = vmul.f32 %v911, %v1127
    %v1822 = vmul.f32 %v918, %v1134
    %v1823 = vmul.f32 %v925, %v1141
    %v1824 = vmul.f32 %v932, %v1148
    %v1825 = vmul.f32 %v939, %v1155
    %v1826 = vmul.f32 %v946, %v1162
    %v1827 = vmul.f32 %v953, %v1169
    %v1828 = vmul.f32 %v960, %v1176
    %v1829 = vmul.f32 %v967, %v1183
    %v1830 = vmul.f32 %v974, %v1190
    %v1831 = vmul.f32 %v981, %v1197
    %v1832 = vmul.f32 %v988, %v1204
    %v1833 = vmul.f32 %v995, %v1211
    %v1834 = vmul.f32 %v1002, %v1218
    %v1835 = vmul.f32 %v1009, %v1225
    %v1836 = vmul.f32 %v1812, %v1650
    %v1837 = vmul.f32 %v1813, %v1657
    %v1838 = vmul.f32 %v1814, %v1664
    %v1839 = vmul.f32 %v1815, %v1671
    %v1840 = vmul.f32 %v1816, %v1678
    %v1841 = vmul.f32 %v1817, %v1685
    %v1842 = vmul.f32 %v1818, %v1692
    %v1843 = vmul.f32 %v1819, %v1699
    %v1844 = vmul.f32 %v1820, %v1706
    %v1845 = vmul.f32 %v1821, %v1713
    %v1846 = vmul.f32 %v1822, %v1720
    %v1847 = vmul.f32 %v1823, %v1727
    %v1848 = vmul.f32 %v1824, %v1734
    %v1849 = vmul.f32 %v1825, %v1741
    %v1850 = vmul.f32 %v1826, %v1748
    %v1851 = vmul.f32 %v1827, %v1755
    %v1852 = vmul.f32 %v1828, %v1762
    %v1853 = vmul.f32 %v1829, %v1769
    %v1854 = vmul.f32 %v1830, %v1776
    %v1855 = vmul.f32 %v1831, %v1783
    %v1856 = vmul.f32 %v1832, %v1790
    %v1857 = vmul.f32 %v1833, %v1797
    %v1858 = vmul.f32 %v1834, %v1804
    %v1859 = vmul.f32 %v1835, %v1811
    %vm1884 = vcmask 1041409
    %v1885 = vsel %vm1884, %v1839, %v1836
    %vm1886 = vcmask 1042434
    %v1887 = vsel %vm1886, %v1842, %v1885
    %vm1888 = vcmask 1043459
    %v1889 = vsel %vm1888, %v1845, %v1887
    %vm1890 = vcmask 1044484
    %v1891 = vsel %vm1890, %v1848, %v1889
    %vm1892 = vcmask 1045509
    %v1893 = vsel %vm1892, %v1851, %v1891
    %vm1894 = vcmask 1046534
    %v1895 = vsel %vm1894, %v1854, %v1893
    %vm1896 = vcmask 1047559
    %v1897 = vsel %vm1896, %v1857, %v1895
    %v1898 = vsel %vm1884, %v1840, %v1837
    %v1899 = vsel %vm1886, %v1843, %v1898
    %v1900 = vsel %vm1888, %v1846, %v1899
    %v1901 = vsel %vm1890, %v1849, %v1900
    %v1902 = vsel %vm1892, %v1852, %v1901
    %v1903 = vsel %vm1894, %v1855, %v1902
    %v1904 = vsel %vm1896, %v1858, %v1903
    %v1905 = vsel %vm1884, %v1841, %v1838
    %v1906 = vsel %vm1886, %v1844, %v1905
    %v1907 = vsel %vm1888, %v1847, %v1906
    %v1908 = vsel %vm1890, %v1850, %v1907
    %v1909 = vsel %vm1892, %v1853, %v1908
    %v1910 = vsel %vm1894, %v1856, %v1909
    %v1911 = vsel %vm1896, %v1859, %v1910
    %1915 = vst [vmem:[#allocation2] sm:$0xff] %v1897
    %1916 = vst [vmem:[#allocation2 + $0x8] sm:$0xff] %v1904
    %1917 = vst [vmem:[#allocation2 + $0x10] sm:$0xff] %v1911
    %v1918 = vmul.f32 %v15, 31.0
    %v1919 = vmul.f32 %v16, 31.0
    %v1920 = vmax.f32 %v1918, 0.0
    %v1921 = vmax.f32 %v1919, 0.0
    %v1922 = vmin.f32 %v1920, 31.0
    %v1923 = vmin.f32 %v1921, 31.0
    %v1924 = vadd.s32 %v24, 16
    %v1925 = vadd.s32 %v24, 24
    %v1926 = vcvt.s32.f32 %v1924
    %v1927 = vcvt.s32.f32 %v1925
    %v1930 = vlaneseq
    %v1931 = vshrl.u32 %v1930, 7
    %v1932 = vsub.s32 0, %v1931
    %v1933 = vrot.slane %v1922, %v1932
    %v1934 = vlaneseq
    %v1935 = vshrl.u32 %v1934, 7
    %v1936 = vsub.s32 4, %v1935
    %v1937 = vrot.slane %v1922, %v1936
    %v1938 = vlaneseq
    %v1939 = vshrl.u32 %v1938, 7
    %v1940 = vsub.s32 0, %v1939
    %v1941 = vrot.slane %v1923, %v1940
    %v1945 = vlaneseq
    %v1946 = vshrl.u32 %v1945, 7
    %v1947 = vsub.s32 0, %v1946
    %v1948 = vrot.slane %v1933, %v1947
    %v1949 = vlaneseq
    %v1950 = vshrl.u32 %v1949, 7
    %v1951 = vsub.s32 0, %v1950
    %v1952 = vrot.slane %v1937, %v1951
    %v1953 = vlaneseq
    %v1954 = vshrl.u32 %v1953, 7
    %v1955 = vsub.s32 0, %v1954
    %v1956 = vrot.slane %v1941, %v1955
    %v1957 = vsub.f32 %v1948, %v26
    %v1958 = vsub.f32 %v1952, %v26
    %v1959 = vsub.f32 %v1956, %v26
    %v1960 = vsub.f32 %v1948, %v27
    %v1961 = vsub.f32 %v1952, %v27
    %v1962 = vsub.f32 %v1956, %v27
    %v1963 = vsub.f32 %v1948, %v1926
    %v1964 = vsub.f32 %v1952, %v1926
    %v1965 = vsub.f32 %v1956, %v1926
    %v1966 = vsub.f32 %v1948, %v1927
    %v1967 = vsub.f32 %v1952, %v1927
    %v1968 = vsub.f32 %v1956, %v1927
    %v1969 = vand.u32 2147483647, %v1957
    %v1970 = vand.u32 2147483647, %v1958
    %v1971 = vand.u32 2147483647, %v1959
    %v1972 = vand.u32 2147483647, %v1960
    %v1973 = vand.u32 2147483647, %v1961
    %v1974 = vand.u32 2147483647, %v1962
    %v1975 = vand.u32 2147483647, %v1963
    %v1976 = vand.u32 2147483647, %v1964
    %v1977 = vand.u32 2147483647, %v1965
    %v1978 = vand.u32 2147483647, %v1966
    %v1979 = vand.u32 2147483647, %v1967
    %v1980 = vand.u32 2147483647, %v1968
    %v1981 = vsub.f32 1.0, %v1969
    %v1982 = vsub.f32 1.0, %v1970
    %v1983 = vsub.f32 1.0, %v1971
    %v1984 = vsub.f32 1.0, %v1972
    %v1985 = vsub.f32 1.0, %v1973
    %v1986 = vsub.f32 1.0, %v1974
    %v1987 = vsub.f32 1.0, %v1975
    %v1988 = vsub.f32 1.0, %v1976
    %v1989 = vsub.f32 1.0, %v1977
    %v1990 = vsub.f32 1.0, %v1978
    %v1991 = vsub.f32 1.0, %v1979
    %v1992 = vsub.f32 1.0, %v1980
    %v1993 = vmax.f32 %v1981, 0.0
    %v1994 = vmax.f32 %v1982, 0.0
    %v1995 = vmax.f32 %v1983, 0.0
    %v1996 = vmax.f32 %v1984, 0.0
    %v1997 = vmax.f32 %v1985, 0.0
    %v1998 = vmax.f32 %v1986, 0.0
    %v1999 = vmax.f32 %v1987, 0.0
    %v2000 = vmax.f32 %v1988, 0.0
    %v2001 = vmax.f32 %v1989, 0.0
    %v2002 = vmax.f32 %v1990, 0.0
    %v2003 = vmax.f32 %v1991, 0.0
    %v2004 = vmax.f32 %v1992, 0.0
    %v2005 = vlaneseq
    %v2006 = vshrl.u32 %v2005, 7
    %v2007 = vsub.s32 1, %v2006
    %v2008 = vrot.slane %v1922, %v2007
    %v2009 = vlaneseq
    %v2010 = vshrl.u32 %v2009, 7
    %v2011 = vsub.s32 5, %v2010
    %v2012 = vrot.slane %v1922, %v2011
    %v2013 = vlaneseq
    %v2014 = vshrl.u32 %v2013, 7
    %v2015 = vsub.s32 1, %v2014
    %v2016 = vrot.slane %v1923, %v2015
    %v2020 = vlaneseq
    %v2021 = vshrl.u32 %v2020, 7
    %v2022 = vsub.s32 1, %v2021
    %v2023 = vrot.slane %v2008, %v2022
    %v2024 = vlaneseq
    %v2025 = vshrl.u32 %v2024, 7
    %v2026 = vsub.s32 1, %v2025
    %v2027 = vrot.slane %v2012, %v2026
    %v2028 = vlaneseq
    %v2029 = vshrl.u32 %v2028, 7
    %v2030 = vsub.s32 1, %v2029
    %v2031 = vrot.slane %v2016, %v2030
    %v2032 = vsub.f32 %v2023, %v26
    %v2033 = vsub.f32 %v2027, %v26
    %v2034 = vsub.f32 %v2031, %v26
    %v2035 = vsub.f32 %v2023, %v27
    %v2036 = vsub.f32 %v2027, %v27
    %v2037 = vsub.f32 %v2031, %v27
    %v2038 = vsub.f32 %v2023, %v1926
    %v2039 = vsub.f32 %v2027, %v1926
    %v2040 = vsub.f32 %v2031, %v1926
    %v2041 = vsub.f32 %v2023, %v1927
    %v2042 = vsub.f32 %v2027, %v1927
    %v2043 = vsub.f32 %v2031, %v1927
    %v2044 = vand.u32 2147483647, %v2032
    %v2045 = vand.u32 2147483647, %v2033
    %v2046 = vand.u32 2147483647, %v2034
    %v2047 = vand.u32 2147483647, %v2035
    %v2048 = vand.u32 2147483647, %v2036
    %v2049 = vand.u32 2147483647, %v2037
    %v2050 = vand.u32 2147483647, %v2038
    %v2051 = vand.u32 2147483647, %v2039
    %v2052 = vand.u32 2147483647, %v2040
    %v2053 = vand.u32 2147483647, %v2041
    %v2054 = vand.u32 2147483647, %v2042
    %v2055 = vand.u32 2147483647, %v2043
    %v2056 = vsub.f32 1.0, %v2044
    %v2057 = vsub.f32 1.0, %v2045
    %v2058 = vsub.f32 1.0, %v2046
    %v2059 = vsub.f32 1.0, %v2047
    %v2060 = vsub.f32 1.0, %v2048
    %v2061 = vsub.f32 1.0, %v2049
    %v2062 = vsub.f32 1.0, %v2050
    %v2063 = vsub.f32 1.0, %v2051
    %v2064 = vsub.f32 1.0, %v2052
    %v2065 = vsub.f32 1.0, %v2053
    %v2066 = vsub.f32 1.0, %v2054
    %v2067 = vsub.f32 1.0, %v2055
    %v2068 = vmax.f32 %v2056, 0.0
    %v2069 = vmax.f32 %v2057, 0.0
    %v2070 = vmax.f32 %v2058, 0.0
    %v2071 = vmax.f32 %v2059, 0.0
    %v2072 = vmax.f32 %v2060, 0.0
    %v2073 = vmax.f32 %v2061, 0.0
    %v2074 = vmax.f32 %v2062, 0.0
    %v2075 = vmax.f32 %v2063, 0.0
    %v2076 = vmax.f32 %v2064, 0.0
    %v2077 = vmax.f32 %v2065, 0.0
    %v2078 = vmax.f32 %v2066, 0.0
    %v2079 = vmax.f32 %v2067, 0.0
    %v2080 = vlaneseq
    %v2081 = vshrl.u32 %v2080, 7
    %v2082 = vsub.s32 2, %v2081
    %v2083 = vrot.slane %v1922, %v2082
    %v2084 = vlaneseq
    %v2085 = vshrl.u32 %v2084, 7
    %v2086 = vsub.s32 6, %v2085
    %v2087 = vrot.slane %v1922, %v2086
    %v2088 = vlaneseq
    %v2089 = vshrl.u32 %v2088, 7
    %v2090 = vsub.s32 2, %v2089
    %v2091 = vrot.slane %v1923, %v2090
    %v2095 = vlaneseq
    %v2096 = vshrl.u32 %v2095, 7
    %v2097 = vsub.s32 2, %v2096
    %v2098 = vrot.slane %v2083, %v2097
    %v2099 = vlaneseq
    %v2100 = vshrl.u32 %v2099, 7
    %v2101 = vsub.s32 2, %v2100
    %v2102 = vrot.slane %v2087, %v2101
    %v2103 = vlaneseq
    %v2104 = vshrl.u32 %v2103, 7
    %v2105 = vsub.s32 2, %v2104
    %v2106 = vrot.slane %v2091, %v2105
    %v2107 = vsub.f32 %v2098, %v26
    %v2108 = vsub.f32 %v2102, %v26
    %v2109 = vsub.f32 %v2106, %v26
    %v2110 = vsub.f32 %v2098, %v27
    %v2111 = vsub.f32 %v2102, %v27
    %v2112 = vsub.f32 %v2106, %v27
    %v2113 = vsub.f32 %v2098, %v1926
    %v2114 = vsub.f32 %v2102, %v1926
    %v2115 = vsub.f32 %v2106, %v1926
    %v2116 = vsub.f32 %v2098, %v1927
    %v2117 = vsub.f32 %v2102, %v1927
    %v2118 = vsub.f32 %v2106, %v1927
    %v2119 = vand.u32 2147483647, %v2107
    %v2120 = vand.u32 2147483647, %v2108
    %v2121 = vand.u32 2147483647, %v2109
    %v2122 = vand.u32 2147483647, %v2110
    %v2123 = vand.u32 2147483647, %v2111
    %v2124 = vand.u32 2147483647, %v2112
    %v2125 = vand.u32 2147483647, %v2113
    %v2126 = vand.u32 2147483647, %v2114
    %v2127 = vand.u32 2147483647, %v2115
    %v2128 = vand.u32 2147483647, %v2116
    %v2129 = vand.u32 2147483647, %v2117
    %v2130 = vand.u32 2147483647, %v2118
    %v2131 = vsub.f32 1.0, %v2119
    %v2132 = vsub.f32 1.0, %v2120
    %v2133 = vsub.f32 1.0, %v2121
    %v2134 = vsub.f32 1.0, %v2122
    %v2135 = vsub.f32 1.0, %v2123
    %v2136 = vsub.f32 1.0, %v2124
    %v2137 = vsub.f32 1.0, %v2125
    %v2138 = vsub.f32 1.0, %v2126
    %v2139 = vsub.f32 1.0, %v2127
    %v2140 = vsub.f32 1.0, %v2128
    %v2141 = vsub.f32 1.0, %v2129
    %v2142 = vsub.f32 1.0, %v2130
    %v2143 = vmax.f32 %v2131, 0.0
    %v2144 = vmax.f32 %v2132, 0.0
    %v2145 = vmax.f32 %v2133, 0.0
    %v2146 = vmax.f32 %v2134, 0.0
    %v2147 = vmax.f32 %v2135, 0.0
    %v2148 = vmax.f32 %v2136, 0.0
    %v2149 = vmax.f32 %v2137, 0.0
    %v2150 = vmax.f32 %v2138, 0.0
    %v2151 = vmax.f32 %v2139, 0.0
    %v2152 = vmax.f32 %v2140, 0.0
    %v2153 = vmax.f32 %v2141, 0.0
    %v2154 = vmax.f32 %v2142, 0.0
    %v2155 = vld [vmem:[%s2] sm:$0xff]
    %v2156 = vld [vmem:[%s2 + $0x8] sm:$0xff]
    %v2157 = vld [vmem:[%s2 + $0x10] sm:$0xff]
    %v2158 = vld [vmem:[%s2 + $0x18] sm:$0xff]
    %v2159 = vld [vmem:[%s2 + $0x20] sm:$0xff]
    %v2160 = vld [vmem:[%s2 + $0x28] sm:$0xff]
    %v2161 = vld [vmem:[%s2 + $0x30] sm:$0xff]
    %v2162 = vld [vmem:[%s2 + $0x38] sm:$0xff]
    %v2163 = vld [vmem:[%s2 + $0x40] sm:$0xff]
    %v2164 = vld [vmem:[%s2 + $0x48] sm:$0xff]
    %v2165 = vld [vmem:[%s2 + $0x50] sm:$0xff]
    %v2166 = vld [vmem:[%s2 + $0x58] sm:$0xff]
    %v2167 = vld [vmem:[%s2 + $0x60] sm:$0xff]
    %v2168 = vld [vmem:[%s2 + $0x68] sm:$0xff]
    %v2169 = vld [vmem:[%s2 + $0x70] sm:$0xff]
    %v2170 = vld [vmem:[%s2 + $0x78] sm:$0xff]
    %v2171 = vld [vmem:[%s2 + $0x80] sm:$0xff]
    %v2172 = vld [vmem:[%s2 + $0x88] sm:$0xff]
    %v2173 = vld [vmem:[%s2 + $0x90] sm:$0xff]
    %v2174 = vld [vmem:[%s2 + $0x98] sm:$0xff]
    %v2175 = vld [vmem:[%s2 + $0xa0] sm:$0xff]
    %v2176 = vld [vmem:[%s2 + $0xa8] sm:$0xff]
    %v2177 = vld [vmem:[%s2 + $0xb0] sm:$0xff]
    %v2178 = vld [vmem:[%s2 + $0xb8] sm:$0xff]
    %v2179 = vld [vmem:[%s2 + $0xc0] sm:$0xff]
    %v2180 = vld [vmem:[%s2 + $0xc8] sm:$0xff]
    %v2181 = vld [vmem:[%s2 + $0xd0] sm:$0xff]
    %v2182 = vld [vmem:[%s2 + $0xd8] sm:$0xff]
    %v2183 = vld [vmem:[%s2 + $0xe0] sm:$0xff]
    %v2184 = vld [vmem:[%s2 + $0xe8] sm:$0xff]
    %v2185 = vld [vmem:[%s2 + $0xf0] sm:$0xff]
    %v2186 = vld [vmem:[%s2 + $0xf8] sm:$0xff]
    %v2187 = vld [vmem:[%s2 + $0x100] sm:$0xff]
    %v2188 = vld [vmem:[%s2 + $0x108] sm:$0xff]
    %v2189 = vld [vmem:[%s2 + $0x110] sm:$0xff]
    %v2190 = vld [vmem:[%s2 + $0x118] sm:$0xff]
    %v2191 = vld [vmem:[%s2 + $0x120] sm:$0xff]
    %v2192 = vld [vmem:[%s2 + $0x128] sm:$0xff]
    %v2193 = vld [vmem:[%s2 + $0x130] sm:$0xff]
    %v2194 = vld [vmem:[%s2 + $0x138] sm:$0xff]
    %v2195 = vld [vmem:[%s2 + $0x140] sm:$0xff]
    %v2196 = vld [vmem:[%s2 + $0x148] sm:$0xff]
    %v2197 = vld [vmem:[%s2 + $0x150] sm:$0xff]
    %v2198 = vld [vmem:[%s2 + $0x158] sm:$0xff]
    %v2199 = vld [vmem:[%s2 + $0x160] sm:$0xff]
    %v2200 = vld [vmem:[%s2 + $0x168] sm:$0xff]
    %v2201 = vld [vmem:[%s2 + $0x170] sm:$0xff]
    %v2202 = vld [vmem:[%s2 + $0x178] sm:$0xff]
    %v2203 = vld [vmem:[%s2 + $0x180] sm:$0xff]
    %v2204 = vld [vmem:[%s2 + $0x188] sm:$0xff]
    %v2205 = vld [vmem:[%s2 + $0x190] sm:$0xff]
    %v2206 = vld [vmem:[%s2 + $0x198] sm:$0xff]
    %v2207 = vld [vmem:[%s2 + $0x1a0] sm:$0xff]
    %v2208 = vld [vmem:[%s2 + $0x1a8] sm:$0xff]
    %v2209 = vld [vmem:[%s2 + $0x1b0] sm:$0xff]
    %v2210 = vld [vmem:[%s2 + $0x1b8] sm:$0xff]
    %v2211 = vld [vmem:[%s2 + $0x1c0] sm:$0xff]
    %v2212 = vld [vmem:[%s2 + $0x1c8] sm:$0xff]
    %v2213 = vld [vmem:[%s2 + $0x1d0] sm:$0xff]
    %v2214 = vld [vmem:[%s2 + $0x1d8] sm:$0xff]
    %v2215 = vld [vmem:[%s2 + $0x1e0] sm:$0xff]
    %v2216 = vld [vmem:[%s2 + $0x1e8] sm:$0xff]
    %v2217 = vld [vmem:[%s2 + $0x1f0] sm:$0xff]
    %v2218 = vld [vmem:[%s2 + $0x1f8] sm:$0xff]
    %vm2219 = vcmask 261120
    %v2221 = vsel %vm2219, %v2155, 0
    %v2224 = vsel %vm2219, %v2156, 0
    %v2227 = vsel %vm2219, %v2157, 0
    %v2230 = vsel %vm2219, %v2158, 0
    %v2233 = vsel %vm2219, %v2159, 0
    %v2236 = vsel %vm2219, %v2160, 0
    %v2239 = vsel %vm2219, %v2161, 0
    %v2242 = vsel %vm2219, %v2162, 0
    %v2245 = vsel %vm2219, %v2163, 0
    %v2248 = vsel %vm2219, %v2164, 0
    %v2251 = vsel %vm2219, %v2165, 0
    %v2254 = vsel %vm2219, %v2166, 0
    %v2257 = vsel %vm2219, %v2167, 0
    %v2260 = vsel %vm2219, %v2168, 0
    %v2263 = vsel %vm2219, %v2169, 0
    %v2266 = vsel %vm2219, %v2170, 0
    %v2269 = vsel %vm2219, %v2171, 0
    %v2272 = vsel %vm2219, %v2172, 0
    %v2275 = vsel %vm2219, %v2173, 0
    %v2278 = vsel %vm2219, %v2174, 0
    %v2281 = vsel %vm2219, %v2175, 0
    %v2284 = vsel %vm2219, %v2176, 0
    %v2287 = vsel %vm2219, %v2177, 0
    %v2290 = vsel %vm2219, %v2178, 0
    %v2293 = vsel %vm2219, %v2179, 0
    %v2296 = vsel %vm2219, %v2180, 0
    %v2299 = vsel %vm2219, %v2181, 0
    %v2302 = vsel %vm2219, %v2182, 0
    %v2305 = vsel %vm2219, %v2183, 0
    %v2308 = vsel %vm2219, %v2184, 0
    %v2311 = vsel %vm2219, %v2185, 0
    %v2314 = vsel %vm2219, %v2186, 0
    %v2317 = vsel %vm2219, %v2187, 0
    %v2320 = vsel %vm2219, %v2188, 0
    %v2323 = vsel %vm2219, %v2189, 0
    %v2326 = vsel %vm2219, %v2190, 0
    %v2329 = vsel %vm2219, %v2191, 0
    %v2332 = vsel %vm2219, %v2192, 0
    %v2335 = vsel %vm2219, %v2193, 0
    %v2338 = vsel %vm2219, %v2194, 0
    %v2341 = vsel %vm2219, %v2195, 0
    %v2344 = vsel %vm2219, %v2196, 0
    %v2347 = vsel %vm2219, %v2197, 0
    %v2350 = vsel %vm2219, %v2198, 0
    %v2353 = vsel %vm2219, %v2199, 0
    %v2356 = vsel %vm2219, %v2200, 0
    %v2359 = vsel %vm2219, %v2201, 0
    %v2362 = vsel %vm2219, %v2202, 0
    %v2365 = vsel %vm2219, %v2203, 0
    %v2368 = vsel %vm2219, %v2204, 0
    %v2371 = vsel %vm2219, %v2205, 0
    %v2374 = vsel %vm2219, %v2206, 0
    %v2377 = vsel %vm2219, %v2207, 0
    %v2380 = vsel %vm2219, %v2208, 0
    %v2383 = vsel %vm2219, %v2209, 0
    %v2386 = vsel %vm2219, %v2210, 0
    %v2389 = vsel %vm2219, %v2211, 0
    %v2392 = vsel %vm2219, %v2212, 0
    %v2395 = vsel %vm2219, %v2213, 0
    %v2398 = vsel %vm2219, %v2214, 0
    %v2401 = vsel %vm2219, %v2215, 0
    %v2404 = vsel %vm2219, %v2216, 0
    %v2407 = vsel %vm2219, %v2217, 0
    %v2410 = vsel %vm2219, %v2218, 0
    %2412 = vmatprep.subr.mxu0 %v1994
    %2413 = vmatpush1.msra.mxu0 %v1993
    %2414 = vmatprep.subr.mxu0 %v1997
    %2415 = vmatpush1.msra.mxu0 %v1996
    %2416 = vmatprep.subr.mxu0 %v2000
    %2417 = vmatpush1.msra.mxu0 %v1999
    %2418 = vmatprep.subr.mxu0 %v2003
    %2419 = vmatpush1.msra.mxu0 %v2002
    %2420 = vmatprep.subr.mxu0 0.0
    %2421 = vmatpush1.msra.mxu0 0.0
    %2422 = vmatprep.subr.mxu0 0.0
    %2423 = vmatpush1.msra.mxu0 0.0
    %2424 = vmatprep.subr.mxu0 0.0
    %2425 = vmatpush1.msra.mxu0 0.0
    %2426 = vmatprep.subr.mxu0 0.0
    %2427 = vmatpush1.msra.mxu0 0.0
    %2428 = vmatprep.subr.mxu0 0.0
    %2429 = vmatpush1.msra.mxu0 0.0
    %2430 = vmatprep.subr.mxu0 0.0
    %2431 = vmatpush1.msra.mxu0 0.0
    %2432 = vmatprep.subr.mxu0 0.0
    %2433 = vmatpush1.msra.mxu0 0.0
    %2434 = vmatprep.subr.mxu0 0.0
    %2435 = vmatpush1.msra.mxu0 0.0
    %2436 = vmatprep.subr.mxu0 0.0
    %2437 = vmatpush1.msra.mxu0 0.0
    %2438 = vmatprep.subr.mxu0 0.0
    %2439 = vmatpush1.msra.mxu0 0.0
    %2440 = vmatprep.subr.mxu0 0.0
    %2441 = vmatpush1.msra.mxu0 0.0
    %2442 = vmatprep.subr.mxu0 0.0
    %2443 = vmatpush1.msra.mxu0 0.0
    %2444 = vmatprep.subr.mxu0 0.0
    %2445 = vmatpush1.msra.mxu0 0.0
    %2446 = vmatprep.subr.mxu0 0.0
    %2447 = vmatpush1.msra.mxu0 0.0
    %2448 = vmatprep.subr.mxu0 0.0
    %2449 = vmatpush1.msra.mxu0 0.0
    %2450 = vmatprep.subr.mxu0 0.0
    %2451 = vmatpush1.msra.mxu0 0.0
    %2452 = vmatprep.subr.mxu0 0.0
    %2453 = vmatpush1.msra.mxu0 0.0
    %2454 = vmatprep.subr.mxu0 0.0
    %2455 = vmatpush1.msra.mxu0 0.0
    %2456 = vmatprep.subr.mxu0 0.0
    %2457 = vmatpush1.msra.mxu0 0.0
    %2458 = vmatprep.subr.mxu0 0.0
    %2459 = vmatpush1.msra.mxu0 0.0
    %2460 = vmatprep.subr.mxu0 0.0
    %2461 = vmatpush1.msra.mxu0 0.0
    %2462 = vmatprep.subr.mxu0 0.0
    %2463 = vmatpush1.msra.mxu0 0.0
    %2464 = vmatprep.subr.mxu0 0.0
    %2465 = vmatpush1.msra.mxu0 0.0
    %2466 = vmatprep.subr.mxu0 0.0
    %2467 = vmatpush1.msra.mxu0 0.0
    %2468 = vmatprep.subr.mxu0 0.0
    %2469 = vmatpush1.msra.mxu0 0.0
    %2470 = vmatprep.subr.mxu0 0.0
    %2471 = vmatpush1.msra.mxu0 0.0
    %2472 = vmatprep.subr.mxu0 0.0
    %2473 = vmatpush1.msra.mxu0 0.0
    %2474 = vmatprep.subr.mxu0 0.0
    %2475 = vmatpush1.msra.mxu0 0.0
    %2476 = vmatprep.mubr.f32.mxu0 0.0
    %2477 = vmatmul.mubr.f32.gmra.mrb[0].mxu0 %v2221
    %v2478 = vpop.f32.mrb[0].mxu0
    %v2479 = vadd.f32 0.0, %v2478
    %v2480 = vpop.f32.mrb[0].mxu0
    %v2481 = vadd.f32 0.0, %v2480
    %2482 = vmatprep.mubr.f32.mxu0 0.0
    %2483 = vmatmul.mubr.f32.gmra.mrb[0].mxu0 %v2224
    %v2484 = vpop.f32.mrb[0].mxu0
    %v2485 = vadd.f32 0.0, %v2484
    %v2486 = vpop.f32.mrb[0].mxu0
    %v2487 = vadd.f32 0.0, %v2486
    %2488 = vmatprep.mubr.f32.mxu0 0.0
    %2489 = vmatmul.mubr.f32.gmra.mrb[0].mxu0 %v2227
    %v2490 = vpop.f32.mrb[0].mxu0
    %v2491 = vadd.f32 0.0, %v2490
    %v2492 = vpop.f32.mrb[0].mxu0
    %v2493 = vadd.f32 0.0, %v2492
    %2494 = vmatprep.mubr.f32.mxu0 0.0
    %2495 = vmatmul.mubr.f32.gmra.mrb[0].mxu0 %v2230
    %v2496 = vpop.f32.mrb[0].mxu0
    %v2497 = vadd.f32 0.0, %v2496
    %v2498 = vpop.f32.mrb[0].mxu0
    %v2499 = vadd.f32 0.0, %v2498
    %2500 = vmatprep.mubr.f32.mxu0 0.0
    %2501 = vmatmul.mubr.f32.gmra.mrb[0].mxu0 %v2233
    %v2502 = vpop.f32.mrb[0].mxu0
    %v2503 = vadd.f32 0.0, %v2502
    %v2504 = vpop.f32.mrb[0].mxu0
    %v2505 = vadd.f32 0.0, %v2504
    %2506 = vmatprep.mubr.f32.mxu0 0.0
    %2507 = vmatmul.mubr.f32.gmra.mrb[0].mxu0 %v2236
    %v2508 = vpop.f32.mrb[0].mxu0
    %v2509 = vadd.f32 0.0, %v2508
    %v2510 = vpop.f32.mrb[0].mxu0
    %v2511 = vadd.f32 0.0, %v2510
    %2512 = vmatprep.mubr.f32.mxu0 0.0
    %2513 = vmatmul.mubr.f32.gmra.mrb[0].mxu0 %v2239
    %v2514 = vpop.f32.mrb[0].mxu0
    %v2515 = vadd.f32 0.0, %v2514
    %v2516 = vpop.f32.mrb[0].mxu0
    %v2517 = vadd.f32 0.0, %v2516
    %2518 = vmatprep.mubr.f32.mxu0 0.0
    %2519 = vmatmul.mubr.f32.gmra.mrb[0].mxu0 %v2242
    %v2520 = vpop.f32.mrb[0].mxu0
    %v2521 = vadd.f32 0.0, %v2520
    %v2522 = vpop.f32.mrb[0].mxu0
    %v2523 = vadd.f32 0.0, %v2522
    %2524 = vmatprep.mubr.f32.mxu0 0.0
    %2525 = vmatmul.mubr.f32.gmra.mrb[0].mxu0 %v2245
    %v2526 = vpop.f32.mrb[0].mxu0
    %v2527 = vadd.f32 0.0, %v2526
    %v2528 = vpop.f32.mrb[0].mxu0
    %v2529 = vadd.f32 0.0, %v2528
    %2530 = vmatprep.mubr.f32.mxu0 0.0
    %2531 = vmatmul.mubr.f32.gmra.mrb[0].mxu0 %v2248
    %v2532 = vpop.f32.mrb[0].mxu0
    %v2533 = vadd.f32 0.0, %v2532
    %v2534 = vpop.f32.mrb[0].mxu0
    %v2535 = vadd.f32 0.0, %v2534
    %2536 = vmatprep.mubr.f32.mxu0 0.0
    %2537 = vmatmul.mubr.f32.gmra.mrb[0].mxu0 %v2251
    %v2538 = vpop.f32.mrb[0].mxu0
    %v2539 = vadd.f32 0.0, %v2538
    %v2540 = vpop.f32.mrb[0].mxu0
    %v2541 = vadd.f32 0.0, %v2540
    %2542 = vmatprep.mubr.f32.mxu0 0.0
    %2543 = vmatmul.mubr.f32.gmra.mrb[0].mxu0 %v2254
    %v2544 = vpop.f32.mrb[0].mxu0
    %v2545 = vadd.f32 0.0, %v2544
    %v2546 = vpop.f32.mrb[0].mxu0
    %v2547 = vadd.f32 0.0, %v2546
    %2548 = vmatprep.mubr.f32.mxu0 0.0
    %2549 = vmatmul.mubr.f32.gmra.mrb[0].mxu0 %v2257
    %v2550 = vpop.f32.mrb[0].mxu0
    %v2551 = vadd.f32 0.0, %v2550
    %v2552 = vpop.f32.mrb[0].mxu0
    %v2553 = vadd.f32 0.0, %v2552
    %2554 = vmatprep.mubr.f32.mxu0 0.0
    %2555 = vmatmul.mubr.f32.gmra.mrb[0].mxu0 %v2260
    %v2556 = vpop.f32.mrb[0].mxu0
    %v2557 = vadd.f32 0.0, %v2556
    %v2558 = vpop.f32.mrb[0].mxu0
    %v2559 = vadd.f32 0.0, %v2558
    %2560 = vmatprep.mubr.f32.mxu0 0.0
    %2561 = vmatmul.mubr.f32.gmra.mrb[0].mxu0 %v2263
    %v2562 = vpop.f32.mrb[0].mxu0
    %v2563 = vadd.f32 0.0, %v2562
    %v2564 = vpop.f32.mrb[0].mxu0
    %v2565 = vadd.f32 0.0, %v2564
    %2566 = vmatprep.mubr.f32.mxu0 0.0
    %2567 = vmatmul.mubr.f32.gmra.mrb[0].mxu0 %v2266
    %v2568 = vpop.f32.mrb[0].mxu0
    %v2569 = vadd.f32 0.0, %v2568
    %v2570 = vpop.f32.mrb[0].mxu0
    %v2571 = vadd.f32 0.0, %v2570
    %2572 = vmatprep.mubr.f32.mxu0 0.0
    %2573 = vmatmul.mubr.f32.gmra.mrb[0].mxu0 %v2269
    %v2574 = vpop.f32.mrb[0].mxu0
    %v2575 = vadd.f32 0.0, %v2574
    %v2576 = vpop.f32.mrb[0].mxu0
    %v2577 = vadd.f32 0.0, %v2576
    %2578 = vmatprep.mubr.f32.mxu0 0.0
    %2579 = vmatmul.mubr.f32.gmra.mrb[0].mxu0 %v2272
    %v2580 = vpop.f32.mrb[0].mxu0
    %v2581 = vadd.f32 0.0, %v2580
    %v2582 = vpop.f32.mrb[0].mxu0
    %v2583 = vadd.f32 0.0, %v2582
    %2584 = vmatprep.mubr.f32.mxu0 0.0
    %2585 = vmatmul.mubr.f32.gmra.mrb[0].mxu0 %v2275
    %v2586 = vpop.f32.mrb[0].mxu0
    %v2587 = vadd.f32 0.0, %v2586
    %v2588 = vpop.f32.mrb[0].mxu0
    %v2589 = vadd.f32 0.0, %v2588
    %2590 = vmatprep.mubr.f32.mxu0 0.0
    %2591 = vmatmul.mubr.f32.gmra.mrb[0].mxu0 %v2278
    %v2592 = vpop.f32.mrb[0].mxu0
    %v2593 = vadd.f32 0.0, %v2592
    %v2594 = vpop.f32.mrb[0].mxu0
    %v2595 = vadd.f32 0.0, %v2594
    %2596 = vmatprep.mubr.f32.mxu0 0.0
    %2597 = vmatmul.mubr.f32.gmra.mrb[0].mxu0 %v2281
    %v2598 = vpop.f32.mrb[0].mxu0
    %v2599 = vadd.f32 0.0, %v2598
    %v2600 = vpop.f32.mrb[0].mxu0
    %v2601 = vadd.f32 0.0, %v2600
    %2602 = vmatprep.mubr.f32.mxu0 0.0
    %2603 = vmatmul.mubr.f32.gmra.mrb[0].mxu0 %v2284
    %v2604 = vpop.f32.mrb[0].mxu0
    %v2605 = vadd.f32 0.0, %v2604
    %v2606 = vpop.f32.mrb[0].mxu0
    %v2607 = vadd.f32 0.0, %v2606
    %2608 = vmatprep.mubr.f32.mxu0 0.0
    %2609 = vmatmul.mubr.f32.gmra.mrb[0].mxu0 %v2287
    %v2610 = vpop.f32.mrb[0].mxu0
    %v2611 = vadd.f32 0.0, %v2610
    %v2612 = vpop.f32.mrb[0].mxu0
    %v2613 = vadd.f32 0.0, %v2612
    %2614 = vmatprep.mubr.f32.mxu0 0.0
    %2615 = vmatmul.mubr.f32.gmra.mrb[0].mxu0 %v2290
    %v2616 = vpop.f32.mrb[0].mxu0
    %v2617 = vadd.f32 0.0, %v2616
    %v2618 = vpop.f32.mrb[0].mxu0
    %v2619 = vadd.f32 0.0, %v2618
    %2620 = vmatprep.mubr.f32.mxu0 0.0
    %2621 = vmatmul.mubr.f32.gmra.mrb[0].mxu0 %v2293
    %v2622 = vpop.f32.mrb[0].mxu0
    %v2623 = vadd.f32 0.0, %v2622
    %v2624 = vpop.f32.mrb[0].mxu0
    %v2625 = vadd.f32 0.0, %v2624
    %2626 = vmatprep.mubr.f32.mxu0 0.0
    %2627 = vmatmul.mubr.f32.gmra.mrb[0].mxu0 %v2296
    %v2628 = vpop.f32.mrb[0].mxu0
    %v2629 = vadd.f32 0.0, %v2628
    %v2630 = vpop.f32.mrb[0].mxu0
    %v2631 = vadd.f32 0.0, %v2630
    %2632 = vmatprep.mubr.f32.mxu0 0.0
    %2633 = vmatmul.mubr.f32.gmra.mrb[0].mxu0 %v2299
    %v2634 = vpop.f32.mrb[0].mxu0
    %v2635 = vadd.f32 0.0, %v2634
    %v2636 = vpop.f32.mrb[0].mxu0
    %v2637 = vadd.f32 0.0, %v2636
    %2638 = vmatprep.mubr.f32.mxu0 0.0
    %2639 = vmatmul.mubr.f32.gmra.mrb[0].mxu0 %v2302
    %v2640 = vpop.f32.mrb[0].mxu0
    %v2641 = vadd.f32 0.0, %v2640
    %v2642 = vpop.f32.mrb[0].mxu0
    %v2643 = vadd.f32 0.0, %v2642
    %2644 = vmatprep.mubr.f32.mxu0 0.0
    %2645 = vmatmul.mubr.f32.gmra.mrb[0].mxu0 %v2305
    %v2646 = vpop.f32.mrb[0].mxu0
    %v2647 = vadd.f32 0.0, %v2646
    %v2648 = vpop.f32.mrb[0].mxu0
    %v2649 = vadd.f32 0.0, %v2648
    %2650 = vmatprep.mubr.f32.mxu0 0.0
    %2651 = vmatmul.mubr.f32.gmra.mrb[0].mxu0 %v2308
    %v2652 = vpop.f32.mrb[0].mxu0
    %v2653 = vadd.f32 0.0, %v2652
    %v2654 = vpop.f32.mrb[0].mxu0
    %v2655 = vadd.f32 0.0, %v2654
    %2656 = vmatprep.mubr.f32.mxu0 0.0
    %2657 = vmatmul.mubr.f32.gmra.mrb[0].mxu0 %v2311
    %v2658 = vpop.f32.mrb[0].mxu0
    %v2659 = vadd.f32 0.0, %v2658
    %v2660 = vpop.f32.mrb[0].mxu0
    %v2661 = vadd.f32 0.0, %v2660
    %2662 = vmatprep.mubr.f32.mxu0 0.0
    %2663 = vmatmul.mubr.f32.gmra.mrb[0].mxu0 %v2314
    %v2664 = vpop.f32.mrb[0].mxu0
    %v2665 = vadd.f32 0.0, %v2664
    %v2666 = vpop.f32.mrb[0].mxu0
    %v2667 = vadd.f32 0.0, %v2666
    %2668 = vmatprep.mubr.f32.mxu0 0.0
    %2669 = vmatmul.mubr.f32.gmra.mrb[0].mxu0 %v2317
    %v2670 = vpop.f32.mrb[0].mxu0
    %v2671 = vadd.f32 0.0, %v2670
    %v2672 = vpop.f32.mrb[0].mxu0
    %v2673 = vadd.f32 0.0, %v2672
    %2674 = vmatprep.mubr.f32.mxu0 0.0
    %2675 = vmatmul.mubr.f32.gmra.mrb[0].mxu0 %v2320
    %v2676 = vpop.f32.mrb[0].mxu0
    %v2677 = vadd.f32 0.0, %v2676
    %v2678 = vpop.f32.mrb[0].mxu0
    %v2679 = vadd.f32 0.0, %v2678
    %2680 = vmatprep.mubr.f32.mxu0 0.0
    %2681 = vmatmul.mubr.f32.gmra.mrb[0].mxu0 %v2323
    %v2682 = vpop.f32.mrb[0].mxu0
    %v2683 = vadd.f32 0.0, %v2682
    %v2684 = vpop.f32.mrb[0].mxu0
    %v2685 = vadd.f32 0.0, %v2684
    %2686 = vmatprep.mubr.f32.mxu0 0.0
    %2687 = vmatmul.mubr.f32.gmra.mrb[0].mxu0 %v2326
    %v2688 = vpop.f32.mrb[0].mxu0
    %v2689 = vadd.f32 0.0, %v2688
    %v2690 = vpop.f32.mrb[0].mxu0
    %v2691 = vadd.f32 0.0, %v2690
    %2692 = vmatprep.mubr.f32.mxu0 0.0
    %2693 = vmatmul.mubr.f32.gmra.mrb[0].mxu0 %v2329
    %v2694 = vpop.f32.mrb[0].mxu0
    %v2695 = vadd.f32 0.0, %v2694
    %v2696 = vpop.f32.mrb[0].mxu0
    %v2697 = vadd.f32 0.0, %v2696
    %2698 = vmatprep.mubr.f32.mxu0 0.0
    %2699 = vmatmul.mubr.f32.gmra.mrb[0].mxu0 %v2332
    %v2700 = vpop.f32.mrb[0].mxu0
    %v2701 = vadd.f32 0.0, %v2700
    %v2702 = vpop.f32.mrb[0].mxu0
    %v2703 = vadd.f32 0.0, %v2702
    %2704 = vmatprep.mubr.f32.mxu0 0.0
    %2705 = vmatmul.mubr.f32.gmra.mrb[0].mxu0 %v2335
    %v2706 = vpop.f32.mrb[0].mxu0
    %v2707 = vadd.f32 0.0, %v2706
    %v2708 = vpop.f32.mrb[0].mxu0
    %v2709 = vadd.f32 0.0, %v2708
    %2710 = vmatprep.mubr.f32.mxu0 0.0
    %2711 = vmatmul.mubr.f32.gmra.mrb[0].mxu0 %v2338
    %v2712 = vpop.f32.mrb[0].mxu0
    %v2713 = vadd.f32 0.0, %v2712
    %v2714 = vpop.f32.mrb[0].mxu0
    %v2715 = vadd.f32 0.0, %v2714
    %2716 = vmatprep.mubr.f32.mxu0 0.0
    %2717 = vmatmul.mubr.f32.gmra.mrb[0].mxu0 %v2341
    %v2718 = vpop.f32.mrb[0].mxu0
    %v2719 = vadd.f32 0.0, %v2718
    %v2720 = vpop.f32.mrb[0].mxu0
    %v2721 = vadd.f32 0.0, %v2720
    %2722 = vmatprep.mubr.f32.mxu0 0.0
    %2723 = vmatmul.mubr.f32.gmra.mrb[0].mxu0 %v2344
    %v2724 = vpop.f32.mrb[0].mxu0
    %v2725 = vadd.f32 0.0, %v2724
    %v2726 = vpop.f32.mrb[0].mxu0
    %v2727 = vadd.f32 0.0, %v2726
    %2728 = vmatprep.mubr.f32.mxu0 0.0
    %2729 = vmatmul.mubr.f32.gmra.mrb[0].mxu0 %v2347
    %v2730 = vpop.f32.mrb[0].mxu0
    %v2731 = vadd.f32 0.0, %v2730
    %v2732 = vpop.f32.mrb[0].mxu0
    %v2733 = vadd.f32 0.0, %v2732
    %2734 = vmatprep.mubr.f32.mxu0 0.0
    %2735 = vmatmul.mubr.f32.gmra.mrb[0].mxu0 %v2350
    %v2736 = vpop.f32.mrb[0].mxu0
    %v2737 = vadd.f32 0.0, %v2736
    %v2738 = vpop.f32.mrb[0].mxu0
    %v2739 = vadd.f32 0.0, %v2738
    %2740 = vmatprep.mubr.f32.mxu0 0.0
    %2741 = vmatmul.mubr.f32.gmra.mrb[0].mxu0 %v2353
    %v2742 = vpop.f32.mrb[0].mxu0
    %v2743 = vadd.f32 0.0, %v2742
    %v2744 = vpop.f32.mrb[0].mxu0
    %v2745 = vadd.f32 0.0, %v2744
    %2746 = vmatprep.mubr.f32.mxu0 0.0
    %2747 = vmatmul.mubr.f32.gmra.mrb[0].mxu0 %v2356
    %v2748 = vpop.f32.mrb[0].mxu0
    %v2749 = vadd.f32 0.0, %v2748
    %v2750 = vpop.f32.mrb[0].mxu0
    %v2751 = vadd.f32 0.0, %v2750
    %2752 = vmatprep.mubr.f32.mxu0 0.0
    %2753 = vmatmul.mubr.f32.gmra.mrb[0].mxu0 %v2359
    %v2754 = vpop.f32.mrb[0].mxu0
    %v2755 = vadd.f32 0.0, %v2754
    %v2756 = vpop.f32.mrb[0].mxu0
    %v2757 = vadd.f32 0.0, %v2756
    %2758 = vmatprep.mubr.f32.mxu0 0.0
    %2759 = vmatmul.mubr.f32.gmra.mrb[0].mxu0 %v2362
    %v2760 = vpop.f32.mrb[0].mxu0
    %v2761 = vadd.f32 0.0, %v2760
    %v2762 = vpop.f32.mrb[0].mxu0
    %v2763 = vadd.f32 0.0, %v2762
    %2764 = vmatprep.mubr.f32.mxu0 0.0
    %2765 = vmatmul.mubr.f32.gmra.mrb[0].mxu0 %v2365
    %v2766 = vpop.f32.mrb[0].mxu0
    %v2767 = vadd.f32 0.0, %v2766
    %v2768 = vpop.f32.mrb[0].mxu0
    %v2769 = vadd.f32 0.0, %v2768
    %2770 = vmatprep.mubr.f32.mxu0 0.0
    %2771 = vmatmul.mubr.f32.gmra.mrb[0].mxu0 %v2368
    %v2772 = vpop.f32.mrb[0].mxu0
    %v2773 = vadd.f32 0.0, %v2772
    %v2774 = vpop.f32.mrb[0].mxu0
    %v2775 = vadd.f32 0.0, %v2774
    %2776 = vmatprep.mubr.f32.mxu0 0.0
    %2777 = vmatmul.mubr.f32.gmra.mrb[0].mxu0 %v2371
    %v2778 = vpop.f32.mrb[0].mxu0
    %v2779 = vadd.f32 0.0, %v2778
    %v2780 = vpop.f32.mrb[0].mxu0
    %v2781 = vadd.f32 0.0, %v2780
    %2782 = vmatprep.mubr.f32.mxu0 0.0
    %2783 = vmatmul.mubr.f32.gmra.mrb[0].mxu0 %v2374
    %v2784 = vpop.f32.mrb[0].mxu0
    %v2785 = vadd.f32 0.0, %v2784
    %v2786 = vpop.f32.mrb[0].mxu0
    %v2787 = vadd.f32 0.0, %v2786
    %2788 = vmatprep.mubr.f32.mxu0 0.0
    %2789 = vmatmul.mubr.f32.gmra.mrb[0].mxu0 %v2377
    %v2790 = vpop.f32.mrb[0].mxu0
    %v2791 = vadd.f32 0.0, %v2790
    %v2792 = vpop.f32.mrb[0].mxu0
    %v2793 = vadd.f32 0.0, %v2792
    %2794 = vmatprep.mubr.f32.mxu0 0.0
    %2795 = vmatmul.mubr.f32.gmra.mrb[0].mxu0 %v2380
    %v2796 = vpop.f32.mrb[0].mxu0
    %v2797 = vadd.f32 0.0, %v2796
    %v2798 = vpop.f32.mrb[0].mxu0
    %v2799 = vadd.f32 0.0, %v2798
    %2800 = vmatprep.mubr.f32.mxu0 0.0
    %2801 = vmatmul.mubr.f32.gmra.mrb[0].mxu0 %v2383
    %v2802 = vpop.f32.mrb[0].mxu0
    %v2803 = vadd.f32 0.0, %v2802
    %v2804 = vpop.f32.mrb[0].mxu0
    %v2805 = vadd.f32 0.0, %v2804
    %2806 = vmatprep.mubr.f32.mxu0 0.0
    %2807 = vmatmul.mubr.f32.gmra.mrb[0].mxu0 %v2386
    %v2808 = vpop.f32.mrb[0].mxu0
    %v2809 = vadd.f32 0.0, %v2808
    %v2810 = vpop.f32.mrb[0].mxu0
    %v2811 = vadd.f32 0.0, %v2810
    %2812 = vmatprep.mubr.f32.mxu0 0.0
    %2813 = vmatmul.mubr.f32.gmra.mrb[0].mxu0 %v2389
    %v2814 = vpop.f32.mrb[0].mxu0
    %v2815 = vadd.f32 0.0, %v2814
    %v2816 = vpop.f32.mrb[0].mxu0
    %v2817 = vadd.f32 0.0, %v2816
    %2818 = vmatprep.mubr.f32.mxu0 0.0
    %2819 = vmatmul.mubr.f32.gmra.mrb[0].mxu0 %v2392
    %v2820 = vpop.f32.mrb[0].mxu0
    %v2821 = vadd.f32 0.0, %v2820
    %v2822 = vpop.f32.mrb[0].mxu0
    %v2823 = vadd.f32 0.0, %v2822
    %2824 = vmatprep.mubr.f32.mxu0 0.0
    %2825 = vmatmul.mubr.f32.gmra.mrb[0].mxu0 %v2395
    %v2826 = vpop.f32.mrb[0].mxu0
    %v2827 = vadd.f32 0.0, %v2826
    %v2828 = vpop.f32.mrb[0].mxu0
    %v2829 = vadd.f32 0.0, %v2828
    %2830 = vmatprep.mubr.f32.mxu0 0.0
    %2831 = vmatmul.mubr.f32.gmra.mrb[0].mxu0 %v2398
    %v2832 = vpop.f32.mrb[0].mxu0
    %v2833 = vadd.f32 0.0, %v2832
    %v2834 = vpop.f32.mrb[0].mxu0
    %v2835 = vadd.f32 0.0, %v2834
    %2836 = vmatprep.mubr.f32.mxu0 0.0
    %2837 = vmatmul.mubr.f32.gmra.mrb[0].mxu0 %v2401
    %v2838 = vpop.f32.mrb[0].mxu0
    %v2839 = vadd.f32 0.0, %v2838
    %v2840 = vpop.f32.mrb[0].mxu0
    %v2841 = vadd.f32 0.0, %v2840
    %2842 = vmatprep.mubr.f32.mxu0 0.0
    %2843 = vmatmul.mubr.f32.gmra.mrb[0].mxu0 %v2404
    %v2844 = vpop.f32.mrb[0].mxu0
    %v2845 = vadd.f32 0.0, %v2844
    %v2846 = vpop.f32.mrb[0].mxu0
    %v2847 = vadd.f32 0.0, %v2846
    %2848 = vmatprep.mubr.f32.mxu0 0.0
    %2849 = vmatmul.mubr.f32.gmra.mrb[0].mxu0 %v2407
    %v2850 = vpop.f32.mrb[0].mxu0
    %v2851 = vadd.f32 0.0, %v2850
    %v2852 = vpop.f32.mrb[0].mxu0
    %v2853 = vadd.f32 0.0, %v2852
    %2854 = vmatprep.mubr.f32.mxu0 0.0
    %2855 = vmatmul.mubr.f32.gmra.mrb[0].mxu0 %v2410
    %v2856 = vpop.f32.mrb[0].mxu0
    %v2857 = vadd.f32 0.0, %v2856
    %v2858 = vpop.f32.mrb[0].mxu0
    %v2859 = vadd.f32 0.0, %v2858
    %2860 = vdwg.mxu0
    %2861 = vmatprep.subr.mxu0 0.0
    %2862 = vmatpush1.msra.mxu0 %v1995
    %2863 = vmatprep.subr.mxu0 0.0
    %2864 = vmatpush1.msra.mxu0 %v1998
    %2865 = vmatprep.subr.mxu0 0.0
    %2866 = vmatpush1.msra.mxu0 %v2001
    %2867 = vmatprep.subr.mxu0 0.0
    %2868 = vmatpush1.msra.mxu0 %v2004
    %2869 = vmatprep.subr.mxu0 0.0
    %2870 = vmatpush1.msra.mxu0 0.0
    %2871 = vmatprep.subr.mxu0 0.0
    %2872 = vmatpush1.msra.mxu0 0.0
    %2873 = vmatprep.subr.mxu0 0.0
    %2874 = vmatpush1.msra.mxu0 0.0
    %2875 = vmatprep.subr.mxu0 0.0
    %2876 = vmatpush1.msra.mxu0 0.0
    %2877 = vmatprep.subr.mxu0 0.0
    %2878 = vmatpush1.msra.mxu0 0.0
    %2879 = vmatprep.subr.mxu0 0.0
    %2880 = vmatpush1.msra.mxu0 0.0
    %2881 = vmatprep.subr.mxu0 0.0
    %2882 = vmatpush1.msra.mxu0 0.0
    %2883 = vmatprep.subr.mxu0 0.0
    %2884 = vmatpush1.msra.mxu0 0.0
    %2885 = vmatprep.subr.mxu0 0.0
    %2886 = vmatpush1.msra.mxu0 0.0
    %2887 = vmatprep.subr.mxu0 0.0
    %2888 = vmatpush1.msra.mxu0 0.0
    %2889 = vmatprep.subr.mxu0 0.0
    %2890 = vmatpush1.msra.mxu0 0.0
    %2891 = vmatprep.subr.mxu0 0.0
    %2892 = vmatpush1.msra.mxu0 0.0
    %2893 = vmatprep.subr.mxu0 0.0
    %2894 = vmatpush1.msra.mxu0 0.0
    %2895 = vmatprep.subr.mxu0 0.0
    %2896 = vmatpush1.msra.mxu0 0.0
    %2897 = vmatprep.subr.mxu0 0.0
    %2898 = vmatpush1.msra.mxu0 0.0
    %2899 = vmatprep.subr.mxu0 0.0
    %2900 = vmatpush1.msra.mxu0 0.0
    %2901 = vmatprep.subr.mxu0 0.0
    %2902 = vmatpush1.msra.mxu0 0.0
    %2903 = vmatprep.subr.mxu0 0.0
    %2904 = vmatpush1.msra.mxu0 0.0
    %2905 = vmatprep.subr.mxu0 0.0
    %2906 = vmatpush1.msra.mxu0 0.0
    %2907 = vmatprep.subr.mxu0 0.0
    %2908 = vmatpush1.msra.mxu0 0.0
    %2909 = vmatprep.subr.mxu0 0.0
    %2910 = vmatpush1.msra.mxu0 0.0
    %2911 = vmatprep.subr.mxu0 0.0
    %2912 = vmatpush1.msra.mxu0 0.0
    %2913 = vmatprep.subr.mxu0 0.0
    %2914 = vmatpush1.msra.mxu0 0.0
    %2915 = vmatprep.subr.mxu0 0.0
    %2916 = vmatpush1.msra.mxu0 0.0
    %2917 = vmatprep.subr.mxu0 0.0
    %2918 = vmatpush1.msra.mxu0 0.0
    %2919 = vmatprep.subr.mxu0 0.0
    %2920 = vmatpush1.msra.mxu0 0.0
    %2921 = vmatprep.subr.mxu0 0.0
    %2922 = vmatpush1.msra.mxu0 0.0
    %2923 = vmatprep.subr.mxu0 0.0
    %2924 = vmatpush1.msra.mxu0 0.0
    %2925 = vmatprep.mubr.f32.mxu0 0.0
    %2926 = vmatmul.mubr.f32.gmra.mrb[0].mxu0 %v2221
    %v2927 = vpop.f32.mrb[0].mxu0
    %v2928 = vadd.f32 0.0, %v2927
    %v2929 = vpop.f32.mrb[0].mxu0
    %2930 = vmatprep.mubr.f32.mxu0 0.0
    %2931 = vmatmul.mubr.f32.gmra.mrb[0].mxu0 %v2224
    %v2932 = vpop.f32.mrb[0].mxu0
    %v2933 = vadd.f32 0.0, %v2932
    %v2934 = vpop.f32.mrb[0].mxu0
    %2935 = vmatprep.mubr.f32.mxu0 0.0
    %2936 = vmatmul.mubr.f32.gmra.mrb[0].mxu0 %v2227
    %v2937 = vpop.f32.mrb[0].mxu0
    %v2938 = vadd.f32 0.0, %v2937
    %v2939 = vpop.f32.mrb[0].mxu0
    %2940 = vmatprep.mubr.f32.mxu0 0.0
    %2941 = vmatmul.mubr.f32.gmra.mrb[0].mxu0 %v2230
    %v2942 = vpop.f32.mrb[0].mxu0
    %v2943 = vadd.f32 0.0, %v2942
    %v2944 = vpop.f32.mrb[0].mxu0
    %2945 = vmatprep.mubr.f32.mxu0 0.0
    %2946 = vmatmul.mubr.f32.gmra.mrb[0].mxu0 %v2233
    %v2947 = vpop.f32.mrb[0].mxu0
    %v2948 = vadd.f32 0.0, %v2947
    %v2949 = vpop.f32.mrb[0].mxu0
    %2950 = vmatprep.mubr.f32.mxu0 0.0
    %2951 = vmatmul.mubr.f32.gmra.mrb[0].mxu0 %v2236
    %v2952 = vpop.f32.mrb[0].mxu0
    %v2953 = vadd.f32 0.0, %v2952
    %v2954 = vpop.f32.mrb[0].mxu0
    %2955 = vmatprep.mubr.f32.mxu0 0.0
    %2956 = vmatmul.mubr.f32.gmra.mrb[0].mxu0 %v2239
    %v2957 = vpop.f32.mrb[0].mxu0
    %v2958 = vadd.f32 0.0, %v2957
    %v2959 = vpop.f32.mrb[0].mxu0
    %2960 = vmatprep.mubr.f32.mxu0 0.0
    %2961 = vmatmul.mubr.f32.gmra.mrb[0].mxu0 %v2242
    %v2962 = vpop.f32.mrb[0].mxu0
    %v2963 = vadd.f32 0.0, %v2962
    %v2964 = vpop.f32.mrb[0].mxu0
    %2965 = vmatprep.mubr.f32.mxu0 0.0
    %2966 = vmatmul.mubr.f32.gmra.mrb[0].mxu0 %v2245
    %v2967 = vpop.f32.mrb[0].mxu0
    %v2968 = vadd.f32 0.0, %v2967
    %v2969 = vpop.f32.mrb[0].mxu0
    %2970 = vmatprep.mubr.f32.mxu0 0.0
    %2971 = vmatmul.mubr.f32.gmra.mrb[0].mxu0 %v2248
    %v2972 = vpop.f32.mrb[0].mxu0
    %v2973 = vadd.f32 0.0, %v2972
    %v2974 = vpop.f32.mrb[0].mxu0
    %2975 = vmatprep.mubr.f32.mxu0 0.0
    %2976 = vmatmul.mubr.f32.gmra.mrb[0].mxu0 %v2251
    %v2977 = vpop.f32.mrb[0].mxu0
    %v2978 = vadd.f32 0.0, %v2977
    %v2979 = vpop.f32.mrb[0].mxu0
    %2980 = vmatprep.mubr.f32.mxu0 0.0
    %2981 = vmatmul.mubr.f32.gmra.mrb[0].mxu0 %v2254
    %v2982 = vpop.f32.mrb[0].mxu0
    %v2983 = vadd.f32 0.0, %v2982
    %v2984 = vpop.f32.mrb[0].mxu0
    %2985 = vmatprep.mubr.f32.mxu0 0.0
    %2986 = vmatmul.mubr.f32.gmra.mrb[0].mxu0 %v2257
    %v2987 = vpop.f32.mrb[0].mxu0
    %v2988 = vadd.f32 0.0, %v2987
    %v2989 = vpop.f32.mrb[0].mxu0
    %2990 = vmatprep.mubr.f32.mxu0 0.0
    %2991 = vmatmul.mubr.f32.gmra.mrb[0].mxu0 %v2260
    %v2992 = vpop.f32.mrb[0].mxu0
    %v2993 = vadd.f32 0.0, %v2992
    %v2994 = vpop.f32.mrb[0].mxu0
    %2995 = vmatprep.mubr.f32.mxu0 0.0
    %2996 = vmatmul.mubr.f32.gmra.mrb[0].mxu0 %v2263
    %v2997 = vpop.f32.mrb[0].mxu0
    %v2998 = vadd.f32 0.0, %v2997
    %v2999 = vpop.f32.mrb[0].mxu0
    %3000 = vmatprep.mubr.f32.mxu0 0.0
    %3001 = vmatmul.mubr.f32.gmra.mrb[0].mxu0 %v2266
    %v3002 = vpop.f32.mrb[0].mxu0
    %v3003 = vadd.f32 0.0, %v3002
    %v3004 = vpop.f32.mrb[0].mxu0
    %3005 = vmatprep.mubr.f32.mxu0 0.0
    %3006 = vmatmul.mubr.f32.gmra.mrb[0].mxu0 %v2269
    %v3007 = vpop.f32.mrb[0].mxu0
    %v3008 = vadd.f32 0.0, %v3007
    %v3009 = vpop.f32.mrb[0].mxu0
    %3010 = vmatprep.mubr.f32.mxu0 0.0
    %3011 = vmatmul.mubr.f32.gmra.mrb[0].mxu0 %v2272
    %v3012 = vpop.f32.mrb[0].mxu0
    %v3013 = vadd.f32 0.0, %v3012
    %v3014 = vpop.f32.mrb[0].mxu0
    %3015 = vmatprep.mubr.f32.mxu0 0.0
    %3016 = vmatmul.mubr.f32.gmra.mrb[0].mxu0 %v2275
    %v3017 = vpop.f32.mrb[0].mxu0
    %v3018 = vadd.f32 0.0, %v3017
    %v3019 = vpop.f32.mrb[0].mxu0
    %3020 = vmatprep.mubr.f32.mxu0 0.0
    %3021 = vmatmul.mubr.f32.gmra.mrb[0].mxu0 %v2278
    %v3022 = vpop.f32.mrb[0].mxu0
    %v3023 = vadd.f32 0.0, %v3022
    %v3024 = vpop.f32.mrb[0].mxu0
    %3025 = vmatprep.mubr.f32.mxu0 0.0
    %3026 = vmatmul.mubr.f32.gmra.mrb[0].mxu0 %v2281
    %v3027 = vpop.f32.mrb[0].mxu0
    %v3028 = vadd.f32 0.0, %v3027
    %v3029 = vpop.f32.mrb[0].mxu0
    %3030 = vmatprep.mubr.f32.mxu0 0.0
    %3031 = vmatmul.mubr.f32.gmra.mrb[0].mxu0 %v2284
    %v3032 = vpop.f32.mrb[0].mxu0
    %v3033 = vadd.f32 0.0, %v3032
    %v3034 = vpop.f32.mrb[0].mxu0
    %3035 = vmatprep.mubr.f32.mxu0 0.0
    %3036 = vmatmul.mubr.f32.gmra.mrb[0].mxu0 %v2287
    %v3037 = vpop.f32.mrb[0].mxu0
    %v3038 = vadd.f32 0.0, %v3037
    %v3039 = vpop.f32.mrb[0].mxu0
    %3040 = vmatprep.mubr.f32.mxu0 0.0
    %3041 = vmatmul.mubr.f32.gmra.mrb[0].mxu0 %v2290
    %v3042 = vpop.f32.mrb[0].mxu0
    %v3043 = vadd.f32 0.0, %v3042
    %v3044 = vpop.f32.mrb[0].mxu0
    %3045 = vmatprep.mubr.f32.mxu0 0.0
    %3046 = vmatmul.mubr.f32.gmra.mrb[0].mxu0 %v2293
    %v3047 = vpop.f32.mrb[0].mxu0
    %v3048 = vadd.f32 0.0, %v3047
    %v3049 = vpop.f32.mrb[0].mxu0
    %3050 = vmatprep.mubr.f32.mxu0 0.0
    %3051 = vmatmul.mubr.f32.gmra.mrb[0].mxu0 %v2296
    %v3052 = vpop.f32.mrb[0].mxu0
    %v3053 = vadd.f32 0.0, %v3052
    %v3054 = vpop.f32.mrb[0].mxu0
    %3055 = vmatprep.mubr.f32.mxu0 0.0
    %3056 = vmatmul.mubr.f32.gmra.mrb[0].mxu0 %v2299
    %v3057 = vpop.f32.mrb[0].mxu0
    %v3058 = vadd.f32 0.0, %v3057
    %v3059 = vpop.f32.mrb[0].mxu0
    %3060 = vmatprep.mubr.f32.mxu0 0.0
    %3061 = vmatmul.mubr.f32.gmra.mrb[0].mxu0 %v2302
    %v3062 = vpop.f32.mrb[0].mxu0
    %v3063 = vadd.f32 0.0, %v3062
    %v3064 = vpop.f32.mrb[0].mxu0
    %3065 = vmatprep.mubr.f32.mxu0 0.0
    %3066 = vmatmul.mubr.f32.gmra.mrb[0].mxu0 %v2305
    %v3067 = vpop.f32.mrb[0].mxu0
    %v3068 = vadd.f32 0.0, %v3067
    %v3069 = vpop.f32.mrb[0].mxu0
    %3070 = vmatprep.mubr.f32.mxu0 0.0
    %3071 = vmatmul.mubr.f32.gmra.mrb[0].mxu0 %v2308
    %v3072 = vpop.f32.mrb[0].mxu0
    %v3073 = vadd.f32 0.0, %v3072
    %v3074 = vpop.f32.mrb[0].mxu0
    %3075 = vmatprep.mubr.f32.mxu0 0.0
    %3076 = vmatmul.mubr.f32.gmra.mrb[0].mxu0 %v2311
    %v3077 = vpop.f32.mrb[0].mxu0
    %v3078 = vadd.f32 0.0, %v3077
    %v3079 = vpop.f32.mrb[0].mxu0
    %3080 = vmatprep.mubr.f32.mxu0 0.0
    %3081 = vmatmul.mubr.f32.gmra.mrb[0].mxu0 %v2314
    %v3082 = vpop.f32.mrb[0].mxu0
    %v3083 = vadd.f32 0.0, %v3082
    %v3084 = vpop.f32.mrb[0].mxu0
    %3085 = vmatprep.mubr.f32.mxu0 0.0
    %3086 = vmatmul.mubr.f32.gmra.mrb[0].mxu0 %v2317
    %v3087 = vpop.f32.mrb[0].mxu0
    %v3088 = vadd.f32 0.0, %v3087
    %v3089 = vpop.f32.mrb[0].mxu0
    %3090 = vmatprep.mubr.f32.mxu0 0.0
    %3091 = vmatmul.mubr.f32.gmra.mrb[0].mxu0 %v2320
    %v3092 = vpop.f32.mrb[0].mxu0
    %v3093 = vadd.f32 0.0, %v3092
    %v3094 = vpop.f32.mrb[0].mxu0
    %3095 = vmatprep.mubr.f32.mxu0 0.0
    %3096 = vmatmul.mubr.f32.gmra.mrb[0].mxu0 %v2323
    %v3097 = vpop.f32.mrb[0].mxu0
    %v3098 = vadd.f32 0.0, %v3097
    %v3099 = vpop.f32.mrb[0].mxu0
    %3100 = vmatprep.mubr.f32.mxu0 0.0
    %3101 = vmatmul.mubr.f32.gmra.mrb[0].mxu0 %v2326
    %v3102 = vpop.f32.mrb[0].mxu0
    %v3103 = vadd.f32 0.0, %v3102
    %v3104 = vpop.f32.mrb[0].mxu0
    %3105 = vmatprep.mubr.f32.mxu0 0.0
    %3106 = vmatmul.mubr.f32.gmra.mrb[0].mxu0 %v2329
    %v3107 = vpop.f32.mrb[0].mxu0
    %v3108 = vadd.f32 0.0, %v3107
    %v3109 = vpop.f32.mrb[0].mxu0
    %3110 = vmatprep.mubr.f32.mxu0 0.0
    %3111 = vmatmul.mubr.f32.gmra.mrb[0].mxu0 %v2332
    %v3112 = vpop.f32.mrb[0].mxu0
    %v3113 = vadd.f32 0.0, %v3112
    %v3114 = vpop.f32.mrb[0].mxu0
    %3115 = vmatprep.mubr.f32.mxu0 0.0
    %3116 = vmatmul.mubr.f32.gmra.mrb[0].mxu0 %v2335
    %v3117 = vpop.f32.mrb[0].mxu0
    %v3118 = vadd.f32 0.0, %v3117
    %v3119 = vpop.f32.mrb[0].mxu0
    %3120 = vmatprep.mubr.f32.mxu0 0.0
    %3121 = vmatmul.mubr.f32.gmra.mrb[0].mxu0 %v2338
    %v3122 = vpop.f32.mrb[0].mxu0
    %v3123 = vadd.f32 0.0, %v3122
    %v3124 = vpop.f32.mrb[0].mxu0
    %3125 = vmatprep.mubr.f32.mxu0 0.0
    %3126 = vmatmul.mubr.f32.gmra.mrb[0].mxu0 %v2341
    %v3127 = vpop.f32.mrb[0].mxu0
    %v3128 = vadd.f32 0.0, %v3127
    %v3129 = vpop.f32.mrb[0].mxu0
    %3130 = vmatprep.mubr.f32.mxu0 0.0
    %3131 = vmatmul.mubr.f32.gmra.mrb[0].mxu0 %v2344
    %v3132 = vpop.f32.mrb[0].mxu0
    %v3133 = vadd.f32 0.0, %v3132
    %v3134 = vpop.f32.mrb[0].mxu0
    %3135 = vmatprep.mubr.f32.mxu0 0.0
    %3136 = vmatmul.mubr.f32.gmra.mrb[0].mxu0 %v2347
    %v3137 = vpop.f32.mrb[0].mxu0
    %v3138 = vadd.f32 0.0, %v3137
    %v3139 = vpop.f32.mrb[0].mxu0
    %3140 = vmatprep.mubr.f32.mxu0 0.0
    %3141 = vmatmul.mubr.f32.gmra.mrb[0].mxu0 %v2350
    %v3142 = vpop.f32.mrb[0].mxu0
    %v3143 = vadd.f32 0.0, %v3142
    %v3144 = vpop.f32.mrb[0].mxu0
    %3145 = vmatprep.mubr.f32.mxu0 0.0
    %3146 = vmatmul.mubr.f32.gmra.mrb[0].mxu0 %v2353
    %v3147 = vpop.f32.mrb[0].mxu0
    %v3148 = vadd.f32 0.0, %v3147
    %v3149 = vpop.f32.mrb[0].mxu0
    %3150 = vmatprep.mubr.f32.mxu0 0.0
    %3151 = vmatmul.mubr.f32.gmra.mrb[0].mxu0 %v2356
    %v3152 = vpop.f32.mrb[0].mxu0
    %v3153 = vadd.f32 0.0, %v3152
    %v3154 = vpop.f32.mrb[0].mxu0
    %3155 = vmatprep.mubr.f32.mxu0 0.0
    %3156 = vmatmul.mubr.f32.gmra.mrb[0].mxu0 %v2359
    %v3157 = vpop.f32.mrb[0].mxu0
    %v3158 = vadd.f32 0.0, %v3157
    %v3159 = vpop.f32.mrb[0].mxu0
    %3160 = vmatprep.mubr.f32.mxu0 0.0
    %3161 = vmatmul.mubr.f32.gmra.mrb[0].mxu0 %v2362
    %v3162 = vpop.f32.mrb[0].mxu0
    %v3163 = vadd.f32 0.0, %v3162
    %v3164 = vpop.f32.mrb[0].mxu0
    %3165 = vmatprep.mubr.f32.mxu0 0.0
    %3166 = vmatmul.mubr.f32.gmra.mrb[0].mxu0 %v2365
    %v3167 = vpop.f32.mrb[0].mxu0
    %v3168 = vadd.f32 0.0, %v3167
    %v3169 = vpop.f32.mrb[0].mxu0
    %3170 = vmatprep.mubr.f32.mxu0 0.0
    %3171 = vmatmul.mubr.f32.gmra.mrb[0].mxu0 %v2368
    %v3172 = vpop.f32.mrb[0].mxu0
    %v3173 = vadd.f32 0.0, %v3172
    %v3174 = vpop.f32.mrb[0].mxu0
    %3175 = vmatprep.mubr.f32.mxu0 0.0
    %3176 = vmatmul.mubr.f32.gmra.mrb[0].mxu0 %v2371
    %v3177 = vpop.f32.mrb[0].mxu0
    %v3178 = vadd.f32 0.0, %v3177
    %v3179 = vpop.f32.mrb[0].mxu0
    %3180 = vmatprep.mubr.f32.mxu0 0.0
    %3181 = vmatmul.mubr.f32.gmra.mrb[0].mxu0 %v2374
    %v3182 = vpop.f32.mrb[0].mxu0
    %v3183 = vadd.f32 0.0, %v3182
    %v3184 = vpop.f32.mrb[0].mxu0
    %3185 = vmatprep.mubr.f32.mxu0 0.0
    %3186 = vmatmul.mubr.f32.gmra.mrb[0].mxu0 %v2377
    %v3187 = vpop.f32.mrb[0].mxu0
    %v3188 = vadd.f32 0.0, %v3187
    %v3189 = vpop.f32.mrb[0].mxu0
    %3190 = vmatprep.mubr.f32.mxu0 0.0
    %3191 = vmatmul.mubr.f32.gmra.mrb[0].mxu0 %v2380
    %v3192 = vpop.f32.mrb[0].mxu0
    %v3193 = vadd.f32 0.0, %v3192
    %v3194 = vpop.f32.mrb[0].mxu0
    %3195 = vmatprep.mubr.f32.mxu0 0.0
    %3196 = vmatmul.mubr.f32.gmra.mrb[0].mxu0 %v2383
    %v3197 = vpop.f32.mrb[0].mxu0
    %v3198 = vadd.f32 0.0, %v3197
    %v3199 = vpop.f32.mrb[0].mxu0
    %3200 = vmatprep.mubr.f32.mxu0 0.0
    %3201 = vmatmul.mubr.f32.gmra.mrb[0].mxu0 %v2386
    %v3202 = vpop.f32.mrb[0].mxu0
    %v3203 = vadd.f32 0.0, %v3202
    %v3204 = vpop.f32.mrb[0].mxu0
    %3205 = vmatprep.mubr.f32.mxu0 0.0
    %3206 = vmatmul.mubr.f32.gmra.mrb[0].mxu0 %v2389
    %v3207 = vpop.f32.mrb[0].mxu0
    %v3208 = vadd.f32 0.0, %v3207
    %v3209 = vpop.f32.mrb[0].mxu0
    %3210 = vmatprep.mubr.f32.mxu0 0.0
    %3211 = vmatmul.mubr.f32.gmra.mrb[0].mxu0 %v2392
    %v3212 = vpop.f32.mrb[0].mxu0
    %v3213 = vadd.f32 0.0, %v3212
    %v3214 = vpop.f32.mrb[0].mxu0
    %3215 = vmatprep.mubr.f32.mxu0 0.0
    %3216 = vmatmul.mubr.f32.gmra.mrb[0].mxu0 %v2395
    %v3217 = vpop.f32.mrb[0].mxu0
    %v3218 = vadd.f32 0.0, %v3217
    %v3219 = vpop.f32.mrb[0].mxu0
    %3220 = vmatprep.mubr.f32.mxu0 0.0
    %3221 = vmatmul.mubr.f32.gmra.mrb[0].mxu0 %v2398
    %v3222 = vpop.f32.mrb[0].mxu0
    %v3223 = vadd.f32 0.0, %v3222
    %v3224 = vpop.f32.mrb[0].mxu0
    %3225 = vmatprep.mubr.f32.mxu0 0.0
    %3226 = vmatmul.mubr.f32.gmra.mrb[0].mxu0 %v2401
    %v3227 = vpop.f32.mrb[0].mxu0
    %v3228 = vadd.f32 0.0, %v3227
    %v3229 = vpop.f32.mrb[0].mxu0
    %3230 = vmatprep.mubr.f32.mxu0 0.0
    %3231 = vmatmul.mubr.f32.gmra.mrb[0].mxu0 %v2404
    %v3232 = vpop.f32.mrb[0].mxu0
    %v3233 = vadd.f32 0.0, %v3232
    %v3234 = vpop.f32.mrb[0].mxu0
    %3235 = vmatprep.mubr.f32.mxu0 0.0
    %3236 = vmatmul.mubr.f32.gmra.mrb[0].mxu0 %v2407
    %v3237 = vpop.f32.mrb[0].mxu0
    %v3238 = vadd.f32 0.0, %v3237
    %v3239 = vpop.f32.mrb[0].mxu0
    %3240 = vmatprep.mubr.f32.mxu0 0.0
    %3241 = vmatmul.mubr.f32.gmra.mrb[0].mxu0 %v2410
    %v3242 = vpop.f32.mrb[0].mxu0
    %v3243 = vadd.f32 0.0, %v3242
    %v3244 = vpop.f32.mrb[0].mxu0
    %3245 = vdwg.mxu0
    %v3246 = vmul.f32 %v2479, %v2143
    %v3247 = vmul.f32 %v2481, %v2144
    %v3248 = vmul.f32 %v2928, %v2145
    %v3249 = vmul.f32 %v2485, %v2146
    %v3250 = vmul.f32 %v2487, %v2147
    %v3251 = vmul.f32 %v2933, %v2148
    %v3252 = vmul.f32 %v2491, %v2149
    %v3253 = vmul.f32 %v2493, %v2150
    %v3254 = vmul.f32 %v2938, %v2151
    %v3255 = vmul.f32 %v2497, %v2152
    %v3256 = vmul.f32 %v2499, %v2153
    %v3257 = vmul.f32 %v2943, %v2154
    %v3258 = vmul.f32 %v2503, %v2143
    %v3259 = vmul.f32 %v2505, %v2144
    %v3260 = vmul.f32 %v2948, %v2145
    %v3261 = vmul.f32 %v2509, %v2146
    %v3262 = vmul.f32 %v2511, %v2147
    %v3263 = vmul.f32 %v2953, %v2148
    %v3264 = vmul.f32 %v2515, %v2149
    %v3265 = vmul.f32 %v2517, %v2150
    %v3266 = vmul.f32 %v2958, %v2151
    %v3267 = vmul.f32 %v2521, %v2152
    %v3268 = vmul.f32 %v2523, %v2153
    %v3269 = vmul.f32 %v2963, %v2154
    %v3270 = vmul.f32 %v2527, %v2143
    %v3271 = vmul.f32 %v2529, %v2144
    %v3272 = vmul.f32 %v2968, %v2145
    %v3273 = vmul.f32 %v2533, %v2146
    %v3274 = vmul.f32 %v2535, %v2147
    %v3275 = vmul.f32 %v2973, %v2148
    %v3276 = vmul.f32 %v2539, %v2149
    %v3277 = vmul.f32 %v2541, %v2150
    %v3278 = vmul.f32 %v2978, %v2151
    %v3279 = vmul.f32 %v2545, %v2152
    %v3280 = vmul.f32 %v2547, %v2153
    %v3281 = vmul.f32 %v2983, %v2154
    %v3282 = vmul.f32 %v2551, %v2143
    %v3283 = vmul.f32 %v2553, %v2144
    %v3284 = vmul.f32 %v2988, %v2145
    %v3285 = vmul.f32 %v2557, %v2146
    %v3286 = vmul.f32 %v2559, %v2147
    %v3287 = vmul.f32 %v2993, %v2148
    %v3288 = vmul.f32 %v2563, %v2149
    %v3289 = vmul.f32 %v2565, %v2150
    %v3290 = vmul.f32 %v2998, %v2151
    %v3291 = vmul.f32 %v2569, %v2152
    %v3292 = vmul.f32 %v2571, %v2153
    %v3293 = vmul.f32 %v3003, %v2154
    %v3294 = vmul.f32 %v2575, %v2143
    %v3295 = vmul.f32 %v2577, %v2144
    %v3296 = vmul.f32 %v3008, %v2145
    %v3297 = vmul.f32 %v2581, %v2146
    %v3298 = vmul.f32 %v2583, %v2147
    %v3299 = vmul.f32 %v3013, %v2148
    %v3300 = vmul.f32 %v2587, %v2149
    %v3301 = vmul.f32 %v2589, %v2150
    %v3302 = vmul.f32 %v3018, %v2151
    %v3303 = vmul.f32 %v2593, %v2152
    %v3304 = vmul.f32 %v2595, %v2153
    %v3305 = vmul.f32 %v3023, %v2154
    %v3306 = vmul.f32 %v2599, %v2143
    %v3307 = vmul.f32 %v2601, %v2144
    %v3308 = vmul.f32 %v3028, %v2145
    %v3309 = vmul.f32 %v2605, %v2146
    %v3310 = vmul.f32 %v2607, %v2147
    %v3311 = vmul.f32 %v3033, %v2148
    %v3312 = vmul.f32 %v2611, %v2149
    %v3313 = vmul.f32 %v2613, %v2150
    %v3314 = vmul.f32 %v3038, %v2151
    %v3315 = vmul.f32 %v2617, %v2152
    %v3316 = vmul.f32 %v2619, %v2153
    %v3317 = vmul.f32 %v3043, %v2154
    %v3318 = vmul.f32 %v2623, %v2143
    %v3319 = vmul.f32 %v2625, %v2144
    %v3320 = vmul.f32 %v3048, %v2145
    %v3321 = vmul.f32 %v2629, %v2146
    %v3322 = vmul.f32 %v2631, %v2147
    %v3323 = vmul.f32 %v3053, %v2148
    %v3324 = vmul.f32 %v2635, %v2149
    %v3325 = vmul.f32 %v2637, %v2150
    %v3326 = vmul.f32 %v3058, %v2151
    %v3327 = vmul.f32 %v2641, %v2152
    %v3328 = vmul.f32 %v2643, %v2153
    %v3329 = vmul.f32 %v3063, %v2154
    %v3330 = vmul.f32 %v2647, %v2143
    %v3331 = vmul.f32 %v2649, %v2144
    %v3332 = vmul.f32 %v3068, %v2145
    %v3333 = vmul.f32 %v2653, %v2146
    %v3334 = vmul.f32 %v2655, %v2147
    %v3335 = vmul.f32 %v3073, %v2148
    %v3336 = vmul.f32 %v2659, %v2149
    %v3337 = vmul.f32 %v2661, %v2150
    %v3338 = vmul.f32 %v3078, %v2151
    %v3339 = vmul.f32 %v2665, %v2152
    %v3340 = vmul.f32 %v2667, %v2153
    %v3341 = vmul.f32 %v3083, %v2154
    %v3342 = vadd.f32 %v3246, %v3249
    %v3343 = vadd.f32 %v3342, %v3252
    %v3344 = vadd.f32 %v3343, %v3255
    %v3345 = vrot.slane %v3344, 4
    %v3346 = vadd.f32 %v3344, %v3345
    %v3347 = vrot.slane %v3346, 2
    %v3348 = vadd.f32 %v3346, %v3347
    %v3349 = vrot.slane %v3348, 1
    %v3350 = vadd.f32 %v3348, %v3349
    %v3351 = vadd.f32 %v3247, %v3250
    %v3352 = vadd.f32 %v3351, %v3253
    %v3353 = vadd.f32 %v3352, %v3256
    %v3354 = vrot.slane %v3353, 4
    %v3355 = vadd.f32 %v3353, %v3354
    %v3356 = vrot.slane %v3355, 2
    %v3357 = vadd.f32 %v3355, %v3356
    %v3358 = vrot.slane %v3357, 1
    %v3359 = vadd.f32 %v3357, %v3358
    %v3360 = vadd.f32 %v3248, %v3251
    %v3361 = vadd.f32 %v3360, %v3254
    %v3362 = vadd.f32 %v3361, %v3257
    %v3363 = vrot.slane %v3362, 4
    %v3364 = vadd.f32 %v3362, %v3363
    %v3365 = vrot.slane %v3364, 2
    %v3366 = vadd.f32 %v3364, %v3365
    %v3367 = vrot.slane %v3366, 1
    %v3368 = vadd.f32 %v3366, %v3367
    %v3369 = vadd.f32 %v3258, %v3261
    %v3370 = vadd.f32 %v3369, %v3264
    %v3371 = vadd.f32 %v3370, %v3267
    %v3372 = vrot.slane %v3371, 4
    %v3373 = vadd.f32 %v3371, %v3372
    %v3374 = vrot.slane %v3373, 2
    %v3375 = vadd.f32 %v3373, %v3374
    %v3376 = vrot.slane %v3375, 1
    %v3377 = vadd.f32 %v3375, %v3376
    %v3378 = vadd.f32 %v3259, %v3262
    %v3379 = vadd.f32 %v3378, %v3265
    %v3380 = vadd.f32 %v3379, %v3268
    %v3381 = vrot.slane %v3380, 4
    %v3382 = vadd.f32 %v3380, %v3381
    %v3383 = vrot.slane %v3382, 2
    %v3384 = vadd.f32 %v3382, %v3383
    %v3385 = vrot.slane %v3384, 1
    %v3386 = vadd.f32 %v3384, %v3385
    %v3387 = vadd.f32 %v3260, %v3263
    %v3388 = vadd.f32 %v3387, %v3266
    %v3389 = vadd.f32 %v3388, %v3269
    %v3390 = vrot.slane %v3389, 4
    %v3391 = vadd.f32 %v3389, %v3390
    %v3392 = vrot.slane %v3391, 2
    %v3393 = vadd.f32 %v3391, %v3392
    %v3394 = vrot.slane %v3393, 1
    %v3395 = vadd.f32 %v3393, %v3394
    %v3396 = vadd.f32 %v3270, %v3273
    %v3397 = vadd.f32 %v3396, %v3276
    %v3398 = vadd.f32 %v3397, %v3279
    %v3399 = vrot.slane %v3398, 4
    %v3400 = vadd.f32 %v3398, %v3399
    %v3401 = vrot.slane %v3400, 2
    %v3402 = vadd.f32 %v3400, %v3401
    %v3403 = vrot.slane %v3402, 1
    %v3404 = vadd.f32 %v3402, %v3403
    %v3405 = vadd.f32 %v3271, %v3274
    %v3406 = vadd.f32 %v3405, %v3277
    %v3407 = vadd.f32 %v3406, %v3280
    %v3408 = vrot.slane %v3407, 4
    %v3409 = vadd.f32 %v3407, %v3408
    %v3410 = vrot.slane %v3409, 2
    %v3411 = vadd.f32 %v3409, %v3410
    %v3412 = vrot.slane %v3411, 1
    %v3413 = vadd.f32 %v3411, %v3412
    %v3414 = vadd.f32 %v3272, %v3275
    %v3415 = vadd.f32 %v3414, %v3278
    %v3416 = vadd.f32 %v3415, %v3281
    %v3417 = vrot.slane %v3416, 4
    %v3418 = vadd.f32 %v3416, %v3417
    %v3419 = vrot.slane %v3418, 2
    %v3420 = vadd.f32 %v3418, %v3419
    %v3421 = vrot.slane %v3420, 1
    %v3422 = vadd.f32 %v3420, %v3421
    %v3423 = vadd.f32 %v3282, %v3285
    %v3424 = vadd.f32 %v3423, %v3288
    %v3425 = vadd.f32 %v3424, %v3291
    %v3426 = vrot.slane %v3425, 4
    %v3427 = vadd.f32 %v3425, %v3426
    %v3428 = vrot.slane %v3427, 2
    %v3429 = vadd.f32 %v3427, %v3428
    %v3430 = vrot.slane %v3429, 1
    %v3431 = vadd.f32 %v3429, %v3430
    %v3432 = vadd.f32 %v3283, %v3286
    %v3433 = vadd.f32 %v3432, %v3289
    %v3434 = vadd.f32 %v3433, %v3292
    %v3435 = vrot.slane %v3434, 4
    %v3436 = vadd.f32 %v3434, %v3435
    %v3437 = vrot.slane %v3436, 2
    %v3438 = vadd.f32 %v3436, %v3437
    %v3439 = vrot.slane %v3438, 1
    %v3440 = vadd.f32 %v3438, %v3439
    %v3441 = vadd.f32 %v3284, %v3287
    %v3442 = vadd.f32 %v3441, %v3290
    %v3443 = vadd.f32 %v3442, %v3293
    %v3444 = vrot.slane %v3443, 4
    %v3445 = vadd.f32 %v3443, %v3444
    %v3446 = vrot.slane %v3445, 2
    %v3447 = vadd.f32 %v3445, %v3446
    %v3448 = vrot.slane %v3447, 1
    %v3449 = vadd.f32 %v3447, %v3448
    %v3450 = vadd.f32 %v3294, %v3297
    %v3451 = vadd.f32 %v3450, %v3300
    %v3452 = vadd.f32 %v3451, %v3303
    %v3453 = vrot.slane %v3452, 4
    %v3454 = vadd.f32 %v3452, %v3453
    %v3455 = vrot.slane %v3454, 2
    %v3456 = vadd.f32 %v3454, %v3455
    %v3457 = vrot.slane %v3456, 1
    %v3458 = vadd.f32 %v3456, %v3457
    %v3459 = vadd.f32 %v3295, %v3298
    %v3460 = vadd.f32 %v3459, %v3301
    %v3461 = vadd.f32 %v3460, %v3304
    %v3462 = vrot.slane %v3461, 4
    %v3463 = vadd.f32 %v3461, %v3462
    %v3464 = vrot.slane %v3463, 2
    %v3465 = vadd.f32 %v3463, %v3464
    %v3466 = vrot.slane %v3465, 1
    %v3467 = vadd.f32 %v3465, %v3466
    %v3468 = vadd.f32 %v3296, %v3299
    %v3469 = vadd.f32 %v3468, %v3302
    %v3470 = vadd.f32 %v3469, %v3305
    %v3471 = vrot.slane %v3470, 4
    %v3472 = vadd.f32 %v3470, %v3471
    %v3473 = vrot.slane %v3472, 2
    %v3474 = vadd.f32 %v3472, %v3473
    %v3475 = vrot.slane %v3474, 1
    %v3476 = vadd.f32 %v3474, %v3475
    %v3477 = vadd.f32 %v3306, %v3309
    %v3478 = vadd.f32 %v3477, %v3312
    %v3479 = vadd.f32 %v3478, %v3315
    %v3480 = vrot.slane %v3479, 4
    %v3481 = vadd.f32 %v3479, %v3480
    %v3482 = vrot.slane %v3481, 2
    %v3483 = vadd.f32 %v3481, %v3482
    %v3484 = vrot.slane %v3483, 1
    %v3485 = vadd.f32 %v3483, %v3484
    %v3486 = vadd.f32 %v3307, %v3310
    %v3487 = vadd.f32 %v3486, %v3313
    %v3488 = vadd.f32 %v3487, %v3316
    %v3489 = vrot.slane %v3488, 4
    %v3490 = vadd.f32 %v3488, %v3489
    %v3491 = vrot.slane %v3490, 2
    %v3492 = vadd.f32 %v3490, %v3491
    %v3493 = vrot.slane %v3492, 1
    %v3494 = vadd.f32 %v3492, %v3493
    %v3495 = vadd.f32 %v3308, %v3311
    %v3496 = vadd.f32 %v3495, %v3314
    %v3497 = vadd.f32 %v3496, %v3317
    %v3498 = vrot.slane %v3497, 4
    %v3499 = vadd.f32 %v3497, %v3498
    %v3500 = vrot.slane %v3499, 2
    %v3501 = vadd.f32 %v3499, %v3500
    %v3502 = vrot.slane %v3501, 1
    %v3503 = vadd.f32 %v3501, %v3502
    %v3504 = vadd.f32 %v3318, %v3321
    %v3505 = vadd.f32 %v3504, %v3324
    %v3506 = vadd.f32 %v3505, %v3327
    %v3507 = vrot.slane %v3506, 4
    %v3508 = vadd.f32 %v3506, %v3507
    %v3509 = vrot.slane %v3508, 2
    %v3510 = vadd.f32 %v3508, %v3509
    %v3511 = vrot.slane %v3510, 1
    %v3512 = vadd.f32 %v3510, %v3511
    %v3513 = vadd.f32 %v3319, %v3322
    %v3514 = vadd.f32 %v3513, %v3325
    %v3515 = vadd.f32 %v3514, %v3328
    %v3516 = vrot.slane %v3515, 4
    %v3517 = vadd.f32 %v3515, %v3516
    %v3518 = vrot.slane %v3517, 2
    %v3519 = vadd.f32 %v3517, %v3518
    %v3520 = vrot.slane %v3519, 1
    %v3521 = vadd.f32 %v3519, %v3520
    %v3522 = vadd.f32 %v3320, %v3323
    %v3523 = vadd.f32 %v3522, %v3326
    %v3524 = vadd.f32 %v3523, %v3329
    %v3525 = vrot.slane %v3524, 4
    %v3526 = vadd.f32 %v3524, %v3525
    %v3527 = vrot.slane %v3526, 2
    %v3528 = vadd.f32 %v3526, %v3527
    %v3529 = vrot.slane %v3528, 1
    %v3530 = vadd.f32 %v3528, %v3529
    %v3531 = vadd.f32 %v3330, %v3333
    %v3532 = vadd.f32 %v3531, %v3336
    %v3533 = vadd.f32 %v3532, %v3339
    %v3534 = vrot.slane %v3533, 4
    %v3535 = vadd.f32 %v3533, %v3534
    %v3536 = vrot.slane %v3535, 2
    %v3537 = vadd.f32 %v3535, %v3536
    %v3538 = vrot.slane %v3537, 1
    %v3539 = vadd.f32 %v3537, %v3538
    %v3540 = vadd.f32 %v3331, %v3334
    %v3541 = vadd.f32 %v3540, %v3337
    %v3542 = vadd.f32 %v3541, %v3340
    %v3543 = vrot.slane %v3542, 4
    %v3544 = vadd.f32 %v3542, %v3543
    %v3545 = vrot.slane %v3544, 2
    %v3546 = vadd.f32 %v3544, %v3545
    %v3547 = vrot.slane %v3546, 1
    %v3548 = vadd.f32 %v3546, %v3547
    %v3549 = vadd.f32 %v3332, %v3335
    %v3550 = vadd.f32 %v3549, %v3338
    %v3551 = vadd.f32 %v3550, %v3341
    %v3552 = vrot.slane %v3551, 4
    %v3553 = vadd.f32 %v3551, %v3552
    %v3554 = vrot.slane %v3553, 2
    %v3555 = vadd.f32 %v3553, %v3554
    %v3556 = vrot.slane %v3555, 1
    %v3557 = vadd.f32 %v3555, %v3556
    %v3558 = vmul.f32 %v2671, %v2068
    %v3559 = vmul.f32 %v2673, %v2069
    %v3560 = vmul.f32 %v3088, %v2070
    %v3561 = vmul.f32 %v2677, %v2071
    %v3562 = vmul.f32 %v2679, %v2072
    %v3563 = vmul.f32 %v3093, %v2073
    %v3564 = vmul.f32 %v2683, %v2074
    %v3565 = vmul.f32 %v2685, %v2075
    %v3566 = vmul.f32 %v3098, %v2076
    %v3567 = vmul.f32 %v2689, %v2077
    %v3568 = vmul.f32 %v2691, %v2078
    %v3569 = vmul.f32 %v3103, %v2079
    %v3570 = vmul.f32 %v2695, %v2068
    %v3571 = vmul.f32 %v2697, %v2069
    %v3572 = vmul.f32 %v3108, %v2070
    %v3573 = vmul.f32 %v2701, %v2071
    %v3574 = vmul.f32 %v2703, %v2072
    %v3575 = vmul.f32 %v3113, %v2073
    %v3576 = vmul.f32 %v2707, %v2074
    %v3577 = vmul.f32 %v2709, %v2075
    %v3578 = vmul.f32 %v3118, %v2076
    %v3579 = vmul.f32 %v2713, %v2077
    %v3580 = vmul.f32 %v2715, %v2078
    %v3581 = vmul.f32 %v3123, %v2079
    %v3582 = vmul.f32 %v2719, %v2068
    %v3583 = vmul.f32 %v2721, %v2069
    %v3584 = vmul.f32 %v3128, %v2070
    %v3585 = vmul.f32 %v2725, %v2071
    %v3586 = vmul.f32 %v2727, %v2072
    %v3587 = vmul.f32 %v3133, %v2073
    %v3588 = vmul.f32 %v2731, %v2074
    %v3589 = vmul.f32 %v2733, %v2075
    %v3590 = vmul.f32 %v3138, %v2076
    %v3591 = vmul.f32 %v2737, %v2077
    %v3592 = vmul.f32 %v2739, %v2078
    %v3593 = vmul.f32 %v3143, %v2079
    %v3594 = vmul.f32 %v2743, %v2068
    %v3595 = vmul.f32 %v2745, %v2069
    %v3596 = vmul.f32 %v3148, %v2070
    %v3597 = vmul.f32 %v2749, %v2071
    %v3598 = vmul.f32 %v2751, %v2072
    %v3599 = vmul.f32 %v3153, %v2073
    %v3600 = vmul.f32 %v2755, %v2074
    %v3601 = vmul.f32 %v2757, %v2075
    %v3602 = vmul.f32 %v3158, %v2076
    %v3603 = vmul.f32 %v2761, %v2077
    %v3604 = vmul.f32 %v2763, %v2078
    %v3605 = vmul.f32 %v3163, %v2079
    %v3606 = vmul.f32 %v2767, %v2068
    %v3607 = vmul.f32 %v2769, %v2069
    %v3608 = vmul.f32 %v3168, %v2070
    %v3609 = vmul.f32 %v2773, %v2071
    %v3610 = vmul.f32 %v2775, %v2072
    %v3611 = vmul.f32 %v3173, %v2073
    %v3612 = vmul.f32 %v2779, %v2074
    %v3613 = vmul.f32 %v2781, %v2075
    %v3614 = vmul.f32 %v3178, %v2076
    %v3615 = vmul.f32 %v2785, %v2077
    %v3616 = vmul.f32 %v2787, %v2078
    %v3617 = vmul.f32 %v3183, %v2079
    %v3618 = vmul.f32 %v2791, %v2068
    %v3619 = vmul.f32 %v2793, %v2069
    %v3620 = vmul.f32 %v3188, %v2070
    %v3621 = vmul.f32 %v2797, %v2071
    %v3622 = vmul.f32 %v2799, %v2072
    %v3623 = vmul.f32 %v3193, %v2073
    %v3624 = vmul.f32 %v2803, %v2074
    %v3625 = vmul.f32 %v2805, %v2075
    %v3626 = vmul.f32 %v3198, %v2076
    %v3627 = vmul.f32 %v2809, %v2077
    %v3628 = vmul.f32 %v2811, %v2078
    %v3629 = vmul.f32 %v3203, %v2079
    %v3630 = vmul.f32 %v2815, %v2068
    %v3631 = vmul.f32 %v2817, %v2069
    %v3632 = vmul.f32 %v3208, %v2070
    %v3633 = vmul.f32 %v2821, %v2071
    %v3634 = vmul.f32 %v2823, %v2072
    %v3635 = vmul.f32 %v3213, %v2073
    %v3636 = vmul.f32 %v2827, %v2074
    %v3637 = vmul.f32 %v2829, %v2075
    %v3638 = vmul.f32 %v3218, %v2076
    %v3639 = vmul.f32 %v2833, %v2077
    %v3640 = vmul.f32 %v2835, %v2078
    %v3641 = vmul.f32 %v3223, %v2079
    %v3642 = vmul.f32 %v2839, %v2068
    %v3643 = vmul.f32 %v2841, %v2069
    %v3644 = vmul.f32 %v3228, %v2070
    %v3645 = vmul.f32 %v2845, %v2071
    %v3646 = vmul.f32 %v2847, %v2072
    %v3647 = vmul.f32 %v3233, %v2073
    %v3648 = vmul.f32 %v2851, %v2074
    %v3649 = vmul.f32 %v2853, %v2075
    %v3650 = vmul.f32 %v3238, %v2076
    %v3651 = vmul.f32 %v2857, %v2077
    %v3652 = vmul.f32 %v2859, %v2078
    %v3653 = vmul.f32 %v3243, %v2079
    %v3654 = vadd.f32 %v3558, %v3561
    %v3655 = vadd.f32 %v3654, %v3564
    %v3656 = vadd.f32 %v3655, %v3567
    %v3657 = vrot.slane %v3656, 4
    %v3658 = vadd.f32 %v3656, %v3657
    %v3659 = vrot.slane %v3658, 2
    %v3660 = vadd.f32 %v3658, %v3659
    %v3661 = vrot.slane %v3660, 1
    %v3662 = vadd.f32 %v3660, %v3661
    %v3663 = vadd.f32 %v3559, %v3562
    %v3664 = vadd.f32 %v3663, %v3565
    %v3665 = vadd.f32 %v3664, %v3568
    %v3666 = vrot.slane %v3665, 4
    %v3667 = vadd.f32 %v3665, %v3666
    %v3668 = vrot.slane %v3667, 2
    %v3669 = vadd.f32 %v3667, %v3668
    %v3670 = vrot.slane %v3669, 1
    %v3671 = vadd.f32 %v3669, %v3670
    %v3672 = vadd.f32 %v3560, %v3563
    %v3673 = vadd.f32 %v3672, %v3566
    %v3674 = vadd.f32 %v3673, %v3569
    %v3675 = vrot.slane %v3674, 4
    %v3676 = vadd.f32 %v3674, %v3675
    %v3677 = vrot.slane %v3676, 2
    %v3678 = vadd.f32 %v3676, %v3677
    %v3679 = vrot.slane %v3678, 1
    %v3680 = vadd.f32 %v3678, %v3679
    %v3681 = vadd.f32 %v3570, %v3573
    %v3682 = vadd.f32 %v3681, %v3576
    %v3683 = vadd.f32 %v3682, %v3579
    %v3684 = vrot.slane %v3683, 4
    %v3685 = vadd.f32 %v3683, %v3684
    %v3686 = vrot.slane %v3685, 2
    %v3687 = vadd.f32 %v3685, %v3686
    %v3688 = vrot.slane %v3687, 1
    %v3689 = vadd.f32 %v3687, %v3688
    %v3690 = vadd.f32 %v3571, %v3574
    %v3691 = vadd.f32 %v3690, %v3577
    %v3692 = vadd.f32 %v3691, %v3580
    %v3693 = vrot.slane %v3692, 4
    %v3694 = vadd.f32 %v3692, %v3693
    %v3695 = vrot.slane %v3694, 2
    %v3696 = vadd.f32 %v3694, %v3695
    %v3697 = vrot.slane %v3696, 1
    %v3698 = vadd.f32 %v3696, %v3697
    %v3699 = vadd.f32 %v3572, %v3575
    %v3700 = vadd.f32 %v3699, %v3578
    %v3701 = vadd.f32 %v3700, %v3581
    %v3702 = vrot.slane %v3701, 4
    %v3703 = vadd.f32 %v3701, %v3702
    %v3704 = vrot.slane %v3703, 2
    %v3705 = vadd.f32 %v3703, %v3704
    %v3706 = vrot.slane %v3705, 1
    %v3707 = vadd.f32 %v3705, %v3706
    %v3708 = vadd.f32 %v3582, %v3585
    %v3709 = vadd.f32 %v3708, %v3588
    %v3710 = vadd.f32 %v3709, %v3591
    %v3711 = vrot.slane %v3710, 4
    %v3712 = vadd.f32 %v3710, %v3711
    %v3713 = vrot.slane %v3712, 2
    %v3714 = vadd.f32 %v3712, %v3713
    %v3715 = vrot.slane %v3714, 1
    %v3716 = vadd.f32 %v3714, %v3715
    %v3717 = vadd.f32 %v3583, %v3586
    %v3718 = vadd.f32 %v3717, %v3589
    %v3719 = vadd.f32 %v3718, %v3592
    %v3720 = vrot.slane %v3719, 4
    %v3721 = vadd.f32 %v3719, %v3720
    %v3722 = vrot.slane %v3721, 2
    %v3723 = vadd.f32 %v3721, %v3722
    %v3724 = vrot.slane %v3723, 1
    %v3725 = vadd.f32 %v3723, %v3724
    %v3726 = vadd.f32 %v3584, %v3587
    %v3727 = vadd.f32 %v3726, %v3590
    %v3728 = vadd.f32 %v3727, %v3593
    %v3729 = vrot.slane %v3728, 4
    %v3730 = vadd.f32 %v3728, %v3729
    %v3731 = vrot.slane %v3730, 2
    %v3732 = vadd.f32 %v3730, %v3731
    %v3733 = vrot.slane %v3732, 1
    %v3734 = vadd.f32 %v3732, %v3733
    %v3735 = vadd.f32 %v3594, %v3597
    %v3736 = vadd.f32 %v3735, %v3600
    %v3737 = vadd.f32 %v3736, %v3603
    %v3738 = vrot.slane %v3737, 4
    %v3739 = vadd.f32 %v3737, %v3738
    %v3740 = vrot.slane %v3739, 2
    %v3741 = vadd.f32 %v3739, %v3740
    %v3742 = vrot.slane %v3741, 1
    %v3743 = vadd.f32 %v3741, %v3742
    %v3744 = vadd.f32 %v3595, %v3598
    %v3745 = vadd.f32 %v3744, %v3601
    %v3746 = vadd.f32 %v3745, %v3604
    %v3747 = vrot.slane %v3746, 4
    %v3748 = vadd.f32 %v3746, %v3747
    %v3749 = vrot.slane %v3748, 2
    %v3750 = vadd.f32 %v3748, %v3749
    %v3751 = vrot.slane %v3750, 1
    %v3752 = vadd.f32 %v3750, %v3751
    %v3753 = vadd.f32 %v3596, %v3599
    %v3754 = vadd.f32 %v3753, %v3602
    %v3755 = vadd.f32 %v3754, %v3605
    %v3756 = vrot.slane %v3755, 4
    %v3757 = vadd.f32 %v3755, %v3756
    %v3758 = vrot.slane %v3757, 2
    %v3759 = vadd.f32 %v3757, %v3758
    %v3760 = vrot.slane %v3759, 1
    %v3761 = vadd.f32 %v3759, %v3760
    %v3762 = vadd.f32 %v3606, %v3609
    %v3763 = vadd.f32 %v3762, %v3612
    %v3764 = vadd.f32 %v3763, %v3615
    %v3765 = vrot.slane %v3764, 4
    %v3766 = vadd.f32 %v3764, %v3765
    %v3767 = vrot.slane %v3766, 2
    %v3768 = vadd.f32 %v3766, %v3767
    %v3769 = vrot.slane %v3768, 1
    %v3770 = vadd.f32 %v3768, %v3769
    %v3771 = vadd.f32 %v3607, %v3610
    %v3772 = vadd.f32 %v3771, %v3613
    %v3773 = vadd.f32 %v3772, %v3616
    %v3774 = vrot.slane %v3773, 4
    %v3775 = vadd.f32 %v3773, %v3774
    %v3776 = vrot.slane %v3775, 2
    %v3777 = vadd.f32 %v3775, %v3776
    %v3778 = vrot.slane %v3777, 1
    %v3779 = vadd.f32 %v3777, %v3778
    %v3780 = vadd.f32 %v3608, %v3611
    %v3781 = vadd.f32 %v3780, %v3614
    %v3782 = vadd.f32 %v3781, %v3617
    %v3783 = vrot.slane %v3782, 4
    %v3784 = vadd.f32 %v3782, %v3783
    %v3785 = vrot.slane %v3784, 2
    %v3786 = vadd.f32 %v3784, %v3785
    %v3787 = vrot.slane %v3786, 1
    %v3788 = vadd.f32 %v3786, %v3787
    %v3789 = vadd.f32 %v3618, %v3621
    %v3790 = vadd.f32 %v3789, %v3624
    %v3791 = vadd.f32 %v3790, %v3627
    %v3792 = vrot.slane %v3791, 4
    %v3793 = vadd.f32 %v3791, %v3792
    %v3794 = vrot.slane %v3793, 2
    %v3795 = vadd.f32 %v3793, %v3794
    %v3796 = vrot.slane %v3795, 1
    %v3797 = vadd.f32 %v3795, %v3796
    %v3798 = vadd.f32 %v3619, %v3622
    %v3799 = vadd.f32 %v3798, %v3625
    %v3800 = vadd.f32 %v3799, %v3628
    %v3801 = vrot.slane %v3800, 4
    %v3802 = vadd.f32 %v3800, %v3801
    %v3803 = vrot.slane %v3802, 2
    %v3804 = vadd.f32 %v3802, %v3803
    %v3805 = vrot.slane %v3804, 1
    %v3806 = vadd.f32 %v3804, %v3805
    %v3807 = vadd.f32 %v3620, %v3623
    %v3808 = vadd.f32 %v3807, %v3626
    %v3809 = vadd.f32 %v3808, %v3629
    %v3810 = vrot.slane %v3809, 4
    %v3811 = vadd.f32 %v3809, %v3810
    %v3812 = vrot.slane %v3811, 2
    %v3813 = vadd.f32 %v3811, %v3812
    %v3814 = vrot.slane %v3813, 1
    %v3815 = vadd.f32 %v3813, %v3814
    %v3816 = vadd.f32 %v3630, %v3633
    %v3817 = vadd.f32 %v3816, %v3636
    %v3818 = vadd.f32 %v3817, %v3639
    %v3819 = vrot.slane %v3818, 4
    %v3820 = vadd.f32 %v3818, %v3819
    %v3821 = vrot.slane %v3820, 2
    %v3822 = vadd.f32 %v3820, %v3821
    %v3823 = vrot.slane %v3822, 1
    %v3824 = vadd.f32 %v3822, %v3823
    %v3825 = vadd.f32 %v3631, %v3634
    %v3826 = vadd.f32 %v3825, %v3637
    %v3827 = vadd.f32 %v3826, %v3640
    %v3828 = vrot.slane %v3827, 4
    %v3829 = vadd.f32 %v3827, %v3828
    %v3830 = vrot.slane %v3829, 2
    %v3831 = vadd.f32 %v3829, %v3830
    %v3832 = vrot.slane %v3831, 1
    %v3833 = vadd.f32 %v3831, %v3832
    %v3834 = vadd.f32 %v3632, %v3635
    %v3835 = vadd.f32 %v3834, %v3638
    %v3836 = vadd.f32 %v3835, %v3641
    %v3837 = vrot.slane %v3836, 4
    %v3838 = vadd.f32 %v3836, %v3837
    %v3839 = vrot.slane %v3838, 2
    %v3840 = vadd.f32 %v3838, %v3839
    %v3841 = vrot.slane %v3840, 1
    %v3842 = vadd.f32 %v3840, %v3841
    %v3843 = vadd.f32 %v3642, %v3645
    %v3844 = vadd.f32 %v3843, %v3648
    %v3845 = vadd.f32 %v3844, %v3651
    %v3846 = vrot.slane %v3845, 4
    %v3847 = vadd.f32 %v3845, %v3846
    %v3848 = vrot.slane %v3847, 2
    %v3849 = vadd.f32 %v3847, %v3848
    %v3850 = vrot.slane %v3849, 1
    %v3851 = vadd.f32 %v3849, %v3850
    %v3852 = vadd.f32 %v3643, %v3646
    %v3853 = vadd.f32 %v3852, %v3649
    %v3854 = vadd.f32 %v3853, %v3652
    %v3855 = vrot.slane %v3854, 4
    %v3856 = vadd.f32 %v3854, %v3855
    %v3857 = vrot.slane %v3856, 2
    %v3858 = vadd.f32 %v3856, %v3857
    %v3859 = vrot.slane %v3858, 1
    %v3860 = vadd.f32 %v3858, %v3859
    %v3861 = vadd.f32 %v3644, %v3647
    %v3862 = vadd.f32 %v3861, %v3650
    %v3863 = vadd.f32 %v3862, %v3653
    %v3864 = vrot.slane %v3863, 4
    %v3865 = vadd.f32 %v3863, %v3864
    %v3866 = vrot.slane %v3865, 2
    %v3867 = vadd.f32 %v3865, %v3866
    %v3868 = vrot.slane %v3867, 1
    %v3869 = vadd.f32 %v3867, %v3868
    %v3870 = vld [vmem:[%s2 + $0x200] sm:$0xff]
    %v3871 = vld [vmem:[%s2 + $0x208] sm:$0xff]
    %v3872 = vld [vmem:[%s2 + $0x210] sm:$0xff]
    %v3873 = vld [vmem:[%s2 + $0x218] sm:$0xff]
    %v3874 = vld [vmem:[%s2 + $0x220] sm:$0xff]
    %v3875 = vld [vmem:[%s2 + $0x228] sm:$0xff]
    %v3876 = vld [vmem:[%s2 + $0x230] sm:$0xff]
    %v3877 = vld [vmem:[%s2 + $0x238] sm:$0xff]
    %v3878 = vld [vmem:[%s2 + $0x240] sm:$0xff]
    %v3879 = vld [vmem:[%s2 + $0x248] sm:$0xff]
    %v3880 = vld [vmem:[%s2 + $0x250] sm:$0xff]
    %v3881 = vld [vmem:[%s2 + $0x258] sm:$0xff]
    %v3882 = vld [vmem:[%s2 + $0x260] sm:$0xff]
    %v3883 = vld [vmem:[%s2 + $0x268] sm:$0xff]
    %v3884 = vld [vmem:[%s2 + $0x270] sm:$0xff]
    %v3885 = vld [vmem:[%s2 + $0x278] sm:$0xff]
    %v3886 = vld [vmem:[%s2 + $0x280] sm:$0xff]
    %v3887 = vld [vmem:[%s2 + $0x288] sm:$0xff]
    %v3888 = vld [vmem:[%s2 + $0x290] sm:$0xff]
    %v3889 = vld [vmem:[%s2 + $0x298] sm:$0xff]
    %v3890 = vld [vmem:[%s2 + $0x2a0] sm:$0xff]
    %v3891 = vld [vmem:[%s2 + $0x2a8] sm:$0xff]
    %v3892 = vld [vmem:[%s2 + $0x2b0] sm:$0xff]
    %v3893 = vld [vmem:[%s2 + $0x2b8] sm:$0xff]
    %v3894 = vld [vmem:[%s2 + $0x2c0] sm:$0xff]
    %v3895 = vld [vmem:[%s2 + $0x2c8] sm:$0xff]
    %v3896 = vld [vmem:[%s2 + $0x2d0] sm:$0xff]
    %v3897 = vld [vmem:[%s2 + $0x2d8] sm:$0xff]
    %v3898 = vld [vmem:[%s2 + $0x2e0] sm:$0xff]
    %v3899 = vld [vmem:[%s2 + $0x2e8] sm:$0xff]
    %v3900 = vld [vmem:[%s2 + $0x2f0] sm:$0xff]
    %v3901 = vld [vmem:[%s2 + $0x2f8] sm:$0xff]
    %v3903 = vsel %vm2219, %v3870, 0
    %v3906 = vsel %vm2219, %v3871, 0
    %v3909 = vsel %vm2219, %v3872, 0
    %v3912 = vsel %vm2219, %v3873, 0
    %v3915 = vsel %vm2219, %v3874, 0
    %v3918 = vsel %vm2219, %v3875, 0
    %v3921 = vsel %vm2219, %v3876, 0
    %v3924 = vsel %vm2219, %v3877, 0
    %v3927 = vsel %vm2219, %v3878, 0
    %v3930 = vsel %vm2219, %v3879, 0
    %v3933 = vsel %vm2219, %v3880, 0
    %v3936 = vsel %vm2219, %v3881, 0
    %v3939 = vsel %vm2219, %v3882, 0
    %v3942 = vsel %vm2219, %v3883, 0
    %v3945 = vsel %vm2219, %v3884, 0
    %v3948 = vsel %vm2219, %v3885, 0
    %v3951 = vsel %vm2219, %v3886, 0
    %v3954 = vsel %vm2219, %v3887, 0
    %v3957 = vsel %vm2219, %v3888, 0
    %v3960 = vsel %vm2219, %v3889, 0
    %v3963 = vsel %vm2219, %v3890, 0
    %v3966 = vsel %vm2219, %v3891, 0
    %v3969 = vsel %vm2219, %v3892, 0
    %v3972 = vsel %vm2219, %v3893, 0
    %v3975 = vsel %vm2219, %v3894, 0
    %v3978 = vsel %vm2219, %v3895, 0
    %v3981 = vsel %vm2219, %v3896, 0
    %v3984 = vsel %vm2219, %v3897, 0
    %v3987 = vsel %vm2219, %v3898, 0
    %v3990 = vsel %vm2219, %v3899, 0
    %v3993 = vsel %vm2219, %v3900, 0
    %v3996 = vsel %vm2219, %v3901, 0
    %3998 = vmatprep.subr.mxu0 %v2069
    %3999 = vmatpush1.msra.mxu0 %v2068
    %4000 = vmatprep.subr.mxu0 %v2072
    %4001 = vmatpush1.msra.mxu0 %v2071
    %4002 = vmatprep.subr.mxu0 %v2075
    %4003 = vmatpush1.msra.mxu0 %v2074
    %4004 = vmatprep.subr.mxu0 %v2078
    %4005 = vmatpush1.msra.mxu0 %v2077
    %4006 = vmatprep.subr.mxu0 0.0
    %4007 = vmatpush1.msra.mxu0 0.0
    %4008 = vmatprep.subr.mxu0 0.0
    %4009 = vmatpush1.msra.mxu0 0.0
    %4010 = vmatprep.subr.mxu0 0.0
    %4011 = vmatpush1.msra.mxu0 0.0
    %4012 = vmatprep.subr.mxu0 0.0
    %4013 = vmatpush1.msra.mxu0 0.0
    %4014 = vmatprep.subr.mxu0 0.0
    %4015 = vmatpush1.msra.mxu0 0.0
    %4016 = vmatprep.subr.mxu0 0.0
    %4017 = vmatpush1.msra.mxu0 0.0
    %4018 = vmatprep.subr.mxu0 0.0
    %4019 = vmatpush1.msra.mxu0 0.0
    %4020 = vmatprep.subr.mxu0 0.0
    %4021 = vmatpush1.msra.mxu0 0.0
    %4022 = vmatprep.subr.mxu0 0.0
    %4023 = vmatpush1.msra.mxu0 0.0
    %4024 = vmatprep.subr.mxu0 0.0
    %4025 = vmatpush1.msra.mxu0 0.0
    %4026 = vmatprep.subr.mxu0 0.0
    %4027 = vmatpush1.msra.mxu0 0.0
    %4028 = vmatprep.subr.mxu0 0.0
    %4029 = vmatpush1.msra.mxu0 0.0
    %4030 = vmatprep.subr.mxu0 0.0
    %4031 = vmatpush1.msra.mxu0 0.0
    %4032 = vmatprep.subr.mxu0 0.0
    %4033 = vmatpush1.msra.mxu0 0.0
    %4034 = vmatprep.subr.mxu0 0.0
    %4035 = vmatpush1.msra.mxu0 0.0
    %4036 = vmatprep.subr.mxu0 0.0
    %4037 = vmatpush1.msra.mxu0 0.0
    %4038 = vmatprep.subr.mxu0 0.0
    %4039 = vmatpush1.msra.mxu0 0.0
    %4040 = vmatprep.subr.mxu0 0.0
    %4041 = vmatpush1.msra.mxu0 0.0
    %4042 = vmatprep.subr.mxu0 0.0
    %4043 = vmatpush1.msra.mxu0 0.0
    %4044 = vmatprep.subr.mxu0 0.0
    %4045 = vmatpush1.msra.mxu0 0.0
    %4046 = vmatprep.subr.mxu0 0.0
    %4047 = vmatpush1.msra.mxu0 0.0
    %4048 = vmatprep.subr.mxu0 0.0
    %4049 = vmatpush1.msra.mxu0 0.0
    %4050 = vmatprep.subr.mxu0 0.0
    %4051 = vmatpush1.msra.mxu0 0.0
    %4052 = vmatprep.subr.mxu0 0.0
    %4053 = vmatpush1.msra.mxu0 0.0
    %4054 = vmatprep.subr.mxu0 0.0
    %4055 = vmatpush1.msra.mxu0 0.0
    %4056 = vmatprep.subr.mxu0 0.0
    %4057 = vmatpush1.msra.mxu0 0.0
    %4058 = vmatprep.subr.mxu0 0.0
    %4059 = vmatpush1.msra.mxu0 0.0
    %4060 = vmatprep.subr.mxu0 0.0
    %4061 = vmatpush1.msra.mxu0 0.0
    %4062 = vmatprep.mubr.f32.mxu0 0.0
    %4063 = vmatmul.mubr.f32.gmra.mrb[0].mxu0 %v3903
    %v4064 = vpop.f32.mrb[0].mxu0
    %v4065 = vadd.f32 0.0, %v4064
    %v4066 = vpop.f32.mrb[0].mxu0
    %v4067 = vadd.f32 0.0, %v4066
    %4068 = vmatprep.mubr.f32.mxu0 0.0
    %4069 = vmatmul.mubr.f32.gmra.mrb[0].mxu0 %v3906
    %v4070 = vpop.f32.mrb[0].mxu0
    %v4071 = vadd.f32 0.0, %v4070
    %v4072 = vpop.f32.mrb[0].mxu0
    %v4073 = vadd.f32 0.0, %v4072
    %4074 = vmatprep.mubr.f32.mxu0 0.0
    %4075 = vmatmul.mubr.f32.gmra.mrb[0].mxu0 %v3909
    %v4076 = vpop.f32.mrb[0].mxu0
    %v4077 = vadd.f32 0.0, %v4076
    %v4078 = vpop.f32.mrb[0].mxu0
    %v4079 = vadd.f32 0.0, %v4078
    %4080 = vmatprep.mubr.f32.mxu0 0.0
    %4081 = vmatmul.mubr.f32.gmra.mrb[0].mxu0 %v3912
    %v4082 = vpop.f32.mrb[0].mxu0
    %v4083 = vadd.f32 0.0, %v4082
    %v4084 = vpop.f32.mrb[0].mxu0
    %v4085 = vadd.f32 0.0, %v4084
    %4086 = vmatprep.mubr.f32.mxu0 0.0
    %4087 = vmatmul.mubr.f32.gmra.mrb[0].mxu0 %v3915
    %v4088 = vpop.f32.mrb[0].mxu0
    %v4089 = vadd.f32 0.0, %v4088
    %v4090 = vpop.f32.mrb[0].mxu0
    %v4091 = vadd.f32 0.0, %v4090
    %4092 = vmatprep.mubr.f32.mxu0 0.0
    %4093 = vmatmul.mubr.f32.gmra.mrb[0].mxu0 %v3918
    %v4094 = vpop.f32.mrb[0].mxu0
    %v4095 = vadd.f32 0.0, %v4094
    %v4096 = vpop.f32.mrb[0].mxu0
    %v4097 = vadd.f32 0.0, %v4096
    %4098 = vmatprep.mubr.f32.mxu0 0.0
    %4099 = vmatmul.mubr.f32.gmra.mrb[0].mxu0 %v3921
    %v4100 = vpop.f32.mrb[0].mxu0
    %v4101 = vadd.f32 0.0, %v4100
    %v4102 = vpop.f32.mrb[0].mxu0
    %v4103 = vadd.f32 0.0, %v4102
    %4104 = vmatprep.mubr.f32.mxu0 0.0
    %4105 = vmatmul.mubr.f32.gmra.mrb[0].mxu0 %v3924
    %v4106 = vpop.f32.mrb[0].mxu0
    %v4107 = vadd.f32 0.0, %v4106
    %v4108 = vpop.f32.mrb[0].mxu0
    %v4109 = vadd.f32 0.0, %v4108
    %4110 = vmatprep.mubr.f32.mxu0 0.0
    %4111 = vmatmul.mubr.f32.gmra.mrb[0].mxu0 %v3927
    %v4112 = vpop.f32.mrb[0].mxu0
    %v4113 = vadd.f32 0.0, %v4112
    %v4114 = vpop.f32.mrb[0].mxu0
    %v4115 = vadd.f32 0.0, %v4114
    %4116 = vmatprep.mubr.f32.mxu0 0.0
    %4117 = vmatmul.mubr.f32.gmra.mrb[0].mxu0 %v3930
    %v4118 = vpop.f32.mrb[0].mxu0
    %v4119 = vadd.f32 0.0, %v4118
    %v4120 = vpop.f32.mrb[0].mxu0
    %v4121 = vadd.f32 0.0, %v4120
    %4122 = vmatprep.mubr.f32.mxu0 0.0
    %4123 = vmatmul.mubr.f32.gmra.mrb[0].mxu0 %v3933
    %v4124 = vpop.f32.mrb[0].mxu0
    %v4125 = vadd.f32 0.0, %v4124
    %v4126 = vpop.f32.mrb[0].mxu0
    %v4127 = vadd.f32 0.0, %v4126
    %4128 = vmatprep.mubr.f32.mxu0 0.0
    %4129 = vmatmul.mubr.f32.gmra.mrb[0].mxu0 %v3936
    %v4130 = vpop.f32.mrb[0].mxu0
    %v4131 = vadd.f32 0.0, %v4130
    %v4132 = vpop.f32.mrb[0].mxu0
    %v4133 = vadd.f32 0.0, %v4132
    %4134 = vmatprep.mubr.f32.mxu0 0.0
    %4135 = vmatmul.mubr.f32.gmra.mrb[0].mxu0 %v3939
    %v4136 = vpop.f32.mrb[0].mxu0
    %v4137 = vadd.f32 0.0, %v4136
    %v4138 = vpop.f32.mrb[0].mxu0
    %v4139 = vadd.f32 0.0, %v4138
    %4140 = vmatprep.mubr.f32.mxu0 0.0
    %4141 = vmatmul.mubr.f32.gmra.mrb[0].mxu0 %v3942
    %v4142 = vpop.f32.mrb[0].mxu0
    %v4143 = vadd.f32 0.0, %v4142
    %v4144 = vpop.f32.mrb[0].mxu0
    %v4145 = vadd.f32 0.0, %v4144
    %4146 = vmatprep.mubr.f32.mxu0 0.0
    %4147 = vmatmul.mubr.f32.gmra.mrb[0].mxu0 %v3945
    %v4148 = vpop.f32.mrb[0].mxu0
    %v4149 = vadd.f32 0.0, %v4148
    %v4150 = vpop.f32.mrb[0].mxu0
    %v4151 = vadd.f32 0.0, %v4150
    %4152 = vmatprep.mubr.f32.mxu0 0.0
    %4153 = vmatmul.mubr.f32.gmra.mrb[0].mxu0 %v3948
    %v4154 = vpop.f32.mrb[0].mxu0
    %v4155 = vadd.f32 0.0, %v4154
    %v4156 = vpop.f32.mrb[0].mxu0
    %v4157 = vadd.f32 0.0, %v4156
    %4158 = vmatprep.mubr.f32.mxu0 0.0
    %4159 = vmatmul.mubr.f32.gmra.mrb[0].mxu0 %v3951
    %v4160 = vpop.f32.mrb[0].mxu0
    %v4161 = vadd.f32 0.0, %v4160
    %v4162 = vpop.f32.mrb[0].mxu0
    %v4163 = vadd.f32 0.0, %v4162
    %4164 = vmatprep.mubr.f32.mxu0 0.0
    %4165 = vmatmul.mubr.f32.gmra.mrb[0].mxu0 %v3954
    %v4166 = vpop.f32.mrb[0].mxu0
    %v4167 = vadd.f32 0.0, %v4166
    %v4168 = vpop.f32.mrb[0].mxu0
    %v4169 = vadd.f32 0.0, %v4168
    %4170 = vmatprep.mubr.f32.mxu0 0.0
    %4171 = vmatmul.mubr.f32.gmra.mrb[0].mxu0 %v3957
    %v4172 = vpop.f32.mrb[0].mxu0
    %v4173 = vadd.f32 0.0, %v4172
    %v4174 = vpop.f32.mrb[0].mxu0
    %v4175 = vadd.f32 0.0, %v4174
    %4176 = vmatprep.mubr.f32.mxu0 0.0
    %4177 = vmatmul.mubr.f32.gmra.mrb[0].mxu0 %v3960
    %v4178 = vpop.f32.mrb[0].mxu0
    %v4179 = vadd.f32 0.0, %v4178
    %v4180 = vpop.f32.mrb[0].mxu0
    %v4181 = vadd.f32 0.0, %v4180
    %4182 = vmatprep.mubr.f32.mxu0 0.0
    %4183 = vmatmul.mubr.f32.gmra.mrb[0].mxu0 %v3963
    %v4184 = vpop.f32.mrb[0].mxu0
    %v4185 = vadd.f32 0.0, %v4184
    %v4186 = vpop.f32.mrb[0].mxu0
    %v4187 = vadd.f32 0.0, %v4186
    %4188 = vmatprep.mubr.f32.mxu0 0.0
    %4189 = vmatmul.mubr.f32.gmra.mrb[0].mxu0 %v3966
    %v4190 = vpop.f32.mrb[0].mxu0
    %v4191 = vadd.f32 0.0, %v4190
    %v4192 = vpop.f32.mrb[0].mxu0
    %v4193 = vadd.f32 0.0, %v4192
    %4194 = vmatprep.mubr.f32.mxu0 0.0
    %4195 = vmatmul.mubr.f32.gmra.mrb[0].mxu0 %v3969
    %v4196 = vpop.f32.mrb[0].mxu0
    %v4197 = vadd.f32 0.0, %v4196
    %v4198 = vpop.f32.mrb[0].mxu0
    %v4199 = vadd.f32 0.0, %v4198
    %4200 = vmatprep.mubr.f32.mxu0 0.0
    %4201 = vmatmul.mubr.f32.gmra.mrb[0].mxu0 %v3972
    %v4202 = vpop.f32.mrb[0].mxu0
    %v4203 = vadd.f32 0.0, %v4202
    %v4204 = vpop.f32.mrb[0].mxu0
    %v4205 = vadd.f32 0.0, %v4204
    %4206 = vmatprep.mubr.f32.mxu0 0.0
    %4207 = vmatmul.mubr.f32.gmra.mrb[0].mxu0 %v3975
    %v4208 = vpop.f32.mrb[0].mxu0
    %v4209 = vadd.f32 0.0, %v4208
    %v4210 = vpop.f32.mrb[0].mxu0
    %v4211 = vadd.f32 0.0, %v4210
    %4212 = vmatprep.mubr.f32.mxu0 0.0
    %4213 = vmatmul.mubr.f32.gmra.mrb[0].mxu0 %v3978
    %v4214 = vpop.f32.mrb[0].mxu0
    %v4215 = vadd.f32 0.0, %v4214
    %v4216 = vpop.f32.mrb[0].mxu0
    %v4217 = vadd.f32 0.0, %v4216
    %4218 = vmatprep.mubr.f32.mxu0 0.0
    %4219 = vmatmul.mubr.f32.gmra.mrb[0].mxu0 %v3981
    %v4220 = vpop.f32.mrb[0].mxu0
    %v4221 = vadd.f32 0.0, %v4220
    %v4222 = vpop.f32.mrb[0].mxu0
    %v4223 = vadd.f32 0.0, %v4222
    %4224 = vmatprep.mubr.f32.mxu0 0.0
    %4225 = vmatmul.mubr.f32.gmra.mrb[0].mxu0 %v3984
    %v4226 = vpop.f32.mrb[0].mxu0
    %v4227 = vadd.f32 0.0, %v4226
    %v4228 = vpop.f32.mrb[0].mxu0
    %v4229 = vadd.f32 0.0, %v4228
    %4230 = vmatprep.mubr.f32.mxu0 0.0
    %4231 = vmatmul.mubr.f32.gmra.mrb[0].mxu0 %v3987
    %v4232 = vpop.f32.mrb[0].mxu0
    %v4233 = vadd.f32 0.0, %v4232
    %v4234 = vpop.f32.mrb[0].mxu0
    %v4235 = vadd.f32 0.0, %v4234
    %4236 = vmatprep.mubr.f32.mxu0 0.0
    %4237 = vmatmul.mubr.f32.gmra.mrb[0].mxu0 %v3990
    %v4238 = vpop.f32.mrb[0].mxu0
    %v4239 = vadd.f32 0.0, %v4238
    %v4240 = vpop.f32.mrb[0].mxu0
    %v4241 = vadd.f32 0.0, %v4240
    %4242 = vmatprep.mubr.f32.mxu0 0.0
    %4243 = vmatmul.mubr.f32.gmra.mrb[0].mxu0 %v3993
    %v4244 = vpop.f32.mrb[0].mxu0
    %v4245 = vadd.f32 0.0, %v4244
    %v4246 = vpop.f32.mrb[0].mxu0
    %v4247 = vadd.f32 0.0, %v4246
    %4248 = vmatprep.mubr.f32.mxu0 0.0
    %4249 = vmatmul.mubr.f32.gmra.mrb[0].mxu0 %v3996
    %v4250 = vpop.f32.mrb[0].mxu0
    %v4251 = vadd.f32 0.0, %v4250
    %v4252 = vpop.f32.mrb[0].mxu0
    %v4253 = vadd.f32 0.0, %v4252
    %4254 = vdwg.mxu0
    %4255 = vmatprep.subr.mxu0 0.0
    %4256 = vmatpush1.msra.mxu0 %v2070
    %4257 = vmatprep.subr.mxu0 0.0
    %4258 = vmatpush1.msra.mxu0 %v2073
    %4259 = vmatprep.subr.mxu0 0.0
    %4260 = vmatpush1.msra.mxu0 %v2076
    %4261 = vmatprep.subr.mxu0 0.0
    %4262 = vmatpush1.msra.mxu0 %v2079
    %4263 = vmatprep.subr.mxu0 0.0
    %4264 = vmatpush1.msra.mxu0 0.0
    %4265 = vmatprep.subr.mxu0 0.0
    %4266 = vmatpush1.msra.mxu0 0.0
    %4267 = vmatprep.subr.mxu0 0.0
    %4268 = vmatpush1.msra.mxu0 0.0
    %4269 = vmatprep.subr.mxu0 0.0
    %4270 = vmatpush1.msra.mxu0 0.0
    %4271 = vmatprep.subr.mxu0 0.0
    %4272 = vmatpush1.msra.mxu0 0.0
    %4273 = vmatprep.subr.mxu0 0.0
    %4274 = vmatpush1.msra.mxu0 0.0
    %4275 = vmatprep.subr.mxu0 0.0
    %4276 = vmatpush1.msra.mxu0 0.0
    %4277 = vmatprep.subr.mxu0 0.0
    %4278 = vmatpush1.msra.mxu0 0.0
    %4279 = vmatprep.subr.mxu0 0.0
    %4280 = vmatpush1.msra.mxu0 0.0
    %4281 = vmatprep.subr.mxu0 0.0
    %4282 = vmatpush1.msra.mxu0 0.0
    %4283 = vmatprep.subr.mxu0 0.0
    %4284 = vmatpush1.msra.mxu0 0.0
    %4285 = vmatprep.subr.mxu0 0.0
    %4286 = vmatpush1.msra.mxu0 0.0
    %4287 = vmatprep.subr.mxu0 0.0
    %4288 = vmatpush1.msra.mxu0 0.0
    %4289 = vmatprep.subr.mxu0 0.0
    %4290 = vmatpush1.msra.mxu0 0.0
    %4291 = vmatprep.subr.mxu0 0.0
    %4292 = vmatpush1.msra.mxu0 0.0
    %4293 = vmatprep.subr.mxu0 0.0
    %4294 = vmatpush1.msra.mxu0 0.0
    %4295 = vmatprep.subr.mxu0 0.0
    %4296 = vmatpush1.msra.mxu0 0.0
    %4297 = vmatprep.subr.mxu0 0.0
    %4298 = vmatpush1.msra.mxu0 0.0
    %4299 = vmatprep.subr.mxu0 0.0
    %4300 = vmatpush1.msra.mxu0 0.0
    %4301 = vmatprep.subr.mxu0 0.0
    %4302 = vmatpush1.msra.mxu0 0.0
    %4303 = vmatprep.subr.mxu0 0.0
    %4304 = vmatpush1.msra.mxu0 0.0
    %4305 = vmatprep.subr.mxu0 0.0
    %4306 = vmatpush1.msra.mxu0 0.0
    %4307 = vmatprep.subr.mxu0 0.0
    %4308 = vmatpush1.msra.mxu0 0.0
    %4309 = vmatprep.subr.mxu0 0.0
    %4310 = vmatpush1.msra.mxu0 0.0
    %4311 = vmatprep.subr.mxu0 0.0
    %4312 = vmatpush1.msra.mxu0 0.0
    %4313 = vmatprep.subr.mxu0 0.0
    %4314 = vmatpush1.msra.mxu0 0.0
    %4315 = vmatprep.subr.mxu0 0.0
    %4316 = vmatpush1.msra.mxu0 0.0
    %4317 = vmatprep.subr.mxu0 0.0
    %4318 = vmatpush1.msra.mxu0 0.0
    %4319 = vmatprep.mubr.f32.mxu0 0.0
    %4320 = vmatmul.mubr.f32.gmra.mrb[0].mxu0 %v3903
    %v4321 = vpop.f32.mrb[0].mxu0
    %v4322 = vadd.f32 0.0, %v4321
    %v4323 = vpop.f32.mrb[0].mxu0
    %4324 = vmatprep.mubr.f32.mxu0 0.0
    %4325 = vmatmul.mubr.f32.gmra.mrb[0].mxu0 %v3906
    %v4326 = vpop.f32.mrb[0].mxu0
    %v4327 = vadd.f32 0.0, %v4326
    %v4328 = vpop.f32.mrb[0].mxu0
    %4329 = vmatprep.mubr.f32.mxu0 0.0
    %4330 = vmatmul.mubr.f32.gmra.mrb[0].mxu0 %v3909
    %v4331 = vpop.f32.mrb[0].mxu0
    %v4332 = vadd.f32 0.0, %v4331
    %v4333 = vpop.f32.mrb[0].mxu0
    %4334 = vmatprep.mubr.f32.mxu0 0.0
    %4335 = vmatmul.mubr.f32.gmra.mrb[0].mxu0 %v3912
    %v4336 = vpop.f32.mrb[0].mxu0
    %v4337 = vadd.f32 0.0, %v4336
    %v4338 = vpop.f32.mrb[0].mxu0
    %4339 = vmatprep.mubr.f32.mxu0 0.0
    %4340 = vmatmul.mubr.f32.gmra.mrb[0].mxu0 %v3915
    %v4341 = vpop.f32.mrb[0].mxu0
    %v4342 = vadd.f32 0.0, %v4341
    %v4343 = vpop.f32.mrb[0].mxu0
    %4344 = vmatprep.mubr.f32.mxu0 0.0
    %4345 = vmatmul.mubr.f32.gmra.mrb[0].mxu0 %v3918
    %v4346 = vpop.f32.mrb[0].mxu0
    %v4347 = vadd.f32 0.0, %v4346
    %v4348 = vpop.f32.mrb[0].mxu0
    %4349 = vmatprep.mubr.f32.mxu0 0.0
    %4350 = vmatmul.mubr.f32.gmra.mrb[0].mxu0 %v3921
    %v4351 = vpop.f32.mrb[0].mxu0
    %v4352 = vadd.f32 0.0, %v4351
    %v4353 = vpop.f32.mrb[0].mxu0
    %4354 = vmatprep.mubr.f32.mxu0 0.0
    %4355 = vmatmul.mubr.f32.gmra.mrb[0].mxu0 %v3924
    %v4356 = vpop.f32.mrb[0].mxu0
    %v4357 = vadd.f32 0.0, %v4356
    %v4358 = vpop.f32.mrb[0].mxu0
    %4359 = vmatprep.mubr.f32.mxu0 0.0
    %4360 = vmatmul.mubr.f32.gmra.mrb[0].mxu0 %v3927
    %v4361 = vpop.f32.mrb[0].mxu0
    %v4362 = vadd.f32 0.0, %v4361
    %v4363 = vpop.f32.mrb[0].mxu0
    %4364 = vmatprep.mubr.f32.mxu0 0.0
    %4365 = vmatmul.mubr.f32.gmra.mrb[0].mxu0 %v3930
    %v4366 = vpop.f32.mrb[0].mxu0
    %v4367 = vadd.f32 0.0, %v4366
    %v4368 = vpop.f32.mrb[0].mxu0
    %4369 = vmatprep.mubr.f32.mxu0 0.0
    %4370 = vmatmul.mubr.f32.gmra.mrb[0].mxu0 %v3933
    %v4371 = vpop.f32.mrb[0].mxu0
    %v4372 = vadd.f32 0.0, %v4371
    %v4373 = vpop.f32.mrb[0].mxu0
    %4374 = vmatprep.mubr.f32.mxu0 0.0
    %4375 = vmatmul.mubr.f32.gmra.mrb[0].mxu0 %v3936
    %v4376 = vpop.f32.mrb[0].mxu0
    %v4377 = vadd.f32 0.0, %v4376
    %v4378 = vpop.f32.mrb[0].mxu0
    %4379 = vmatprep.mubr.f32.mxu0 0.0
    %4380 = vmatmul.mubr.f32.gmra.mrb[0].mxu0 %v3939
    %v4381 = vpop.f32.mrb[0].mxu0
    %v4382 = vadd.f32 0.0, %v4381
    %v4383 = vpop.f32.mrb[0].mxu0
    %4384 = vmatprep.mubr.f32.mxu0 0.0
    %4385 = vmatmul.mubr.f32.gmra.mrb[0].mxu0 %v3942
    %v4386 = vpop.f32.mrb[0].mxu0
    %v4387 = vadd.f32 0.0, %v4386
    %v4388 = vpop.f32.mrb[0].mxu0
    %4389 = vmatprep.mubr.f32.mxu0 0.0
    %4390 = vmatmul.mubr.f32.gmra.mrb[0].mxu0 %v3945
    %v4391 = vpop.f32.mrb[0].mxu0
    %v4392 = vadd.f32 0.0, %v4391
    %v4393 = vpop.f32.mrb[0].mxu0
    %4394 = vmatprep.mubr.f32.mxu0 0.0
    %4395 = vmatmul.mubr.f32.gmra.mrb[0].mxu0 %v3948
    %v4396 = vpop.f32.mrb[0].mxu0
    %v4397 = vadd.f32 0.0, %v4396
    %v4398 = vpop.f32.mrb[0].mxu0
    %4399 = vmatprep.mubr.f32.mxu0 0.0
    %4400 = vmatmul.mubr.f32.gmra.mrb[0].mxu0 %v3951
    %v4401 = vpop.f32.mrb[0].mxu0
    %v4402 = vadd.f32 0.0, %v4401
    %v4403 = vpop.f32.mrb[0].mxu0
    %4404 = vmatprep.mubr.f32.mxu0 0.0
    %4405 = vmatmul.mubr.f32.gmra.mrb[0].mxu0 %v3954
    %v4406 = vpop.f32.mrb[0].mxu0
    %v4407 = vadd.f32 0.0, %v4406
    %v4408 = vpop.f32.mrb[0].mxu0
    %4409 = vmatprep.mubr.f32.mxu0 0.0
    %4410 = vmatmul.mubr.f32.gmra.mrb[0].mxu0 %v3957
    %v4411 = vpop.f32.mrb[0].mxu0
    %v4412 = vadd.f32 0.0, %v4411
    %v4413 = vpop.f32.mrb[0].mxu0
    %4414 = vmatprep.mubr.f32.mxu0 0.0
    %4415 = vmatmul.mubr.f32.gmra.mrb[0].mxu0 %v3960
    %v4416 = vpop.f32.mrb[0].mxu0
    %v4417 = vadd.f32 0.0, %v4416
    %v4418 = vpop.f32.mrb[0].mxu0
    %4419 = vmatprep.mubr.f32.mxu0 0.0
    %4420 = vmatmul.mubr.f32.gmra.mrb[0].mxu0 %v3963
    %v4421 = vpop.f32.mrb[0].mxu0
    %v4422 = vadd.f32 0.0, %v4421
    %v4423 = vpop.f32.mrb[0].mxu0
    %4424 = vmatprep.mubr.f32.mxu0 0.0
    %4425 = vmatmul.mubr.f32.gmra.mrb[0].mxu0 %v3966
    %v4426 = vpop.f32.mrb[0].mxu0
    %v4427 = vadd.f32 0.0, %v4426
    %v4428 = vpop.f32.mrb[0].mxu0
    %4429 = vmatprep.mubr.f32.mxu0 0.0
    %4430 = vmatmul.mubr.f32.gmra.mrb[0].mxu0 %v3969
    %v4431 = vpop.f32.mrb[0].mxu0
    %v4432 = vadd.f32 0.0, %v4431
    %v4433 = vpop.f32.mrb[0].mxu0
    %4434 = vmatprep.mubr.f32.mxu0 0.0
    %4435 = vmatmul.mubr.f32.gmra.mrb[0].mxu0 %v3972
    %v4436 = vpop.f32.mrb[0].mxu0
    %v4437 = vadd.f32 0.0, %v4436
    %v4438 = vpop.f32.mrb[0].mxu0
    %4439 = vmatprep.mubr.f32.mxu0 0.0
    %4440 = vmatmul.mubr.f32.gmra.mrb[0].mxu0 %v3975
    %v4441 = vpop.f32.mrb[0].mxu0
    %v4442 = vadd.f32 0.0, %v4441
    %v4443 = vpop.f32.mrb[0].mxu0
    %4444 = vmatprep.mubr.f32.mxu0 0.0
    %4445 = vmatmul.mubr.f32.gmra.mrb[0].mxu0 %v3978
    %v4446 = vpop.f32.mrb[0].mxu0
    %v4447 = vadd.f32 0.0, %v4446
    %v4448 = vpop.f32.mrb[0].mxu0
    %4449 = vmatprep.mubr.f32.mxu0 0.0
    %4450 = vmatmul.mubr.f32.gmra.mrb[0].mxu0 %v3981
    %v4451 = vpop.f32.mrb[0].mxu0
    %v4452 = vadd.f32 0.0, %v4451
    %v4453 = vpop.f32.mrb[0].mxu0
    %4454 = vmatprep.mubr.f32.mxu0 0.0
    %4455 = vmatmul.mubr.f32.gmra.mrb[0].mxu0 %v3984
    %v4456 = vpop.f32.mrb[0].mxu0
    %v4457 = vadd.f32 0.0, %v4456
    %v4458 = vpop.f32.mrb[0].mxu0
    %4459 = vmatprep.mubr.f32.mxu0 0.0
    %4460 = vmatmul.mubr.f32.gmra.mrb[0].mxu0 %v3987
    %v4461 = vpop.f32.mrb[0].mxu0
    %v4462 = vadd.f32 0.0, %v4461
    %v4463 = vpop.f32.mrb[0].mxu0
    %4464 = vmatprep.mubr.f32.mxu0 0.0
    %4465 = vmatmul.mubr.f32.gmra.mrb[0].mxu0 %v3990
    %v4466 = vpop.f32.mrb[0].mxu0
    %v4467 = vadd.f32 0.0, %v4466
    %v4468 = vpop.f32.mrb[0].mxu0
    %4469 = vmatprep.mubr.f32.mxu0 0.0
    %4470 = vmatmul.mubr.f32.gmra.mrb[0].mxu0 %v3993
    %v4471 = vpop.f32.mrb[0].mxu0
    %v4472 = vadd.f32 0.0, %v4471
    %v4473 = vpop.f32.mrb[0].mxu0
    %4474 = vmatprep.mubr.f32.mxu0 0.0
    %4475 = vmatmul.mubr.f32.gmra.mrb[0].mxu0 %v3996
    %v4476 = vpop.f32.mrb[0].mxu0
    %v4477 = vadd.f32 0.0, %v4476
    %v4478 = vpop.f32.mrb[0].mxu0
    %4479 = vdwg.mxu0
    %v4480 = vmul.f32 %v4065, %v2143
    %v4481 = vmul.f32 %v4067, %v2144
    %v4482 = vmul.f32 %v4322, %v2145
    %v4483 = vmul.f32 %v4071, %v2146
    %v4484 = vmul.f32 %v4073, %v2147
    %v4485 = vmul.f32 %v4327, %v2148
    %v4486 = vmul.f32 %v4077, %v2149
    %v4487 = vmul.f32 %v4079, %v2150
    %v4488 = vmul.f32 %v4332, %v2151
    %v4489 = vmul.f32 %v4083, %v2152
    %v4490 = vmul.f32 %v4085, %v2153
    %v4491 = vmul.f32 %v4337, %v2154
    %v4492 = vmul.f32 %v4089, %v2143
    %v4493 = vmul.f32 %v4091, %v2144
    %v4494 = vmul.f32 %v4342, %v2145
    %v4495 = vmul.f32 %v4095, %v2146
    %v4496 = vmul.f32 %v4097, %v2147
    %v4497 = vmul.f32 %v4347, %v2148
    %v4498 = vmul.f32 %v4101, %v2149
    %v4499 = vmul.f32 %v4103, %v2150
    %v4500 = vmul.f32 %v4352, %v2151
    %v4501 = vmul.f32 %v4107, %v2152
    %v4502 = vmul.f32 %v4109, %v2153
    %v4503 = vmul.f32 %v4357, %v2154
    %v4504 = vmul.f32 %v4113, %v2143
    %v4505 = vmul.f32 %v4115, %v2144
    %v4506 = vmul.f32 %v4362, %v2145
    %v4507 = vmul.f32 %v4119, %v2146
    %v4508 = vmul.f32 %v4121, %v2147
    %v4509 = vmul.f32 %v4367, %v2148
    %v4510 = vmul.f32 %v4125, %v2149
    %v4511 = vmul.f32 %v4127, %v2150
    %v4512 = vmul.f32 %v4372, %v2151
    %v4513 = vmul.f32 %v4131, %v2152
    %v4514 = vmul.f32 %v4133, %v2153
    %v4515 = vmul.f32 %v4377, %v2154
    %v4516 = vmul.f32 %v4137, %v2143
    %v4517 = vmul.f32 %v4139, %v2144
    %v4518 = vmul.f32 %v4382, %v2145
    %v4519 = vmul.f32 %v4143, %v2146
    %v4520 = vmul.f32 %v4145, %v2147
    %v4521 = vmul.f32 %v4387, %v2148
    %v4522 = vmul.f32 %v4149, %v2149
    %v4523 = vmul.f32 %v4151, %v2150
    %v4524 = vmul.f32 %v4392, %v2151
    %v4525 = vmul.f32 %v4155, %v2152
    %v4526 = vmul.f32 %v4157, %v2153
    %v4527 = vmul.f32 %v4397, %v2154
    %v4528 = vmul.f32 %v4161, %v2143
    %v4529 = vmul.f32 %v4163, %v2144
    %v4530 = vmul.f32 %v4402, %v2145
    %v4531 = vmul.f32 %v4167, %v2146
    %v4532 = vmul.f32 %v4169, %v2147
    %v4533 = vmul.f32 %v4407, %v2148
    %v4534 = vmul.f32 %v4173, %v2149
    %v4535 = vmul.f32 %v4175, %v2150
    %v4536 = vmul.f32 %v4412, %v2151
    %v4537 = vmul.f32 %v4179, %v2152
    %v4538 = vmul.f32 %v4181, %v2153
    %v4539 = vmul.f32 %v4417, %v2154
    %v4540 = vmul.f32 %v4185, %v2143
    %v4541 = vmul.f32 %v4187, %v2144
    %v4542 = vmul.f32 %v4422, %v2145
    %v4543 = vmul.f32 %v4191, %v2146
    %v4544 = vmul.f32 %v4193, %v2147
    %v4545 = vmul.f32 %v4427, %v2148
    %v4546 = vmul.f32 %v4197, %v2149
    %v4547 = vmul.f32 %v4199, %v2150
    %v4548 = vmul.f32 %v4432, %v2151
    %v4549 = vmul.f32 %v4203, %v2152
    %v4550 = vmul.f32 %v4205, %v2153
    %v4551 = vmul.f32 %v4437, %v2154
    %v4552 = vmul.f32 %v4209, %v2143
    %v4553 = vmul.f32 %v4211, %v2144
    %v4554 = vmul.f32 %v4442, %v2145
    %v4555 = vmul.f32 %v4215, %v2146
    %v4556 = vmul.f32 %v4217, %v2147
    %v4557 = vmul.f32 %v4447, %v2148
    %v4558 = vmul.f32 %v4221, %v2149
    %v4559 = vmul.f32 %v4223, %v2150
    %v4560 = vmul.f32 %v4452, %v2151
    %v4561 = vmul.f32 %v4227, %v2152
    %v4562 = vmul.f32 %v4229, %v2153
    %v4563 = vmul.f32 %v4457, %v2154
    %v4564 = vmul.f32 %v4233, %v2143
    %v4565 = vmul.f32 %v4235, %v2144
    %v4566 = vmul.f32 %v4462, %v2145
    %v4567 = vmul.f32 %v4239, %v2146
    %v4568 = vmul.f32 %v4241, %v2147
    %v4569 = vmul.f32 %v4467, %v2148
    %v4570 = vmul.f32 %v4245, %v2149
    %v4571 = vmul.f32 %v4247, %v2150
    %v4572 = vmul.f32 %v4472, %v2151
    %v4573 = vmul.f32 %v4251, %v2152
    %v4574 = vmul.f32 %v4253, %v2153
    %v4575 = vmul.f32 %v4477, %v2154
    %v4576 = vadd.f32 %v4480, %v4483
    %v4577 = vadd.f32 %v4576, %v4486
    %v4578 = vadd.f32 %v4577, %v4489
    %v4579 = vrot.slane %v4578, 4
    %v4580 = vadd.f32 %v4578, %v4579
    %v4581 = vrot.slane %v4580, 2
    %v4582 = vadd.f32 %v4580, %v4581
    %v4583 = vrot.slane %v4582, 1
    %v4584 = vadd.f32 %v4582, %v4583
    %v4585 = vadd.f32 %v4481, %v4484
    %v4586 = vadd.f32 %v4585, %v4487
    %v4587 = vadd.f32 %v4586, %v4490
    %v4588 = vrot.slane %v4587, 4
    %v4589 = vadd.f32 %v4587, %v4588
    %v4590 = vrot.slane %v4589, 2
    %v4591 = vadd.f32 %v4589, %v4590
    %v4592 = vrot.slane %v4591, 1
    %v4593 = vadd.f32 %v4591, %v4592
    %v4594 = vadd.f32 %v4482, %v4485
    %v4595 = vadd.f32 %v4594, %v4488
    %v4596 = vadd.f32 %v4595, %v4491
    %v4597 = vrot.slane %v4596, 4
    %v4598 = vadd.f32 %v4596, %v4597
    %v4599 = vrot.slane %v4598, 2
    %v4600 = vadd.f32 %v4598, %v4599
    %v4601 = vrot.slane %v4600, 1
    %v4602 = vadd.f32 %v4600, %v4601
    %v4603 = vadd.f32 %v4492, %v4495
    %v4604 = vadd.f32 %v4603, %v4498
    %v4605 = vadd.f32 %v4604, %v4501
    %v4606 = vrot.slane %v4605, 4
    %v4607 = vadd.f32 %v4605, %v4606
    %v4608 = vrot.slane %v4607, 2
    %v4609 = vadd.f32 %v4607, %v4608
    %v4610 = vrot.slane %v4609, 1
    %v4611 = vadd.f32 %v4609, %v4610
    %v4612 = vadd.f32 %v4493, %v4496
    %v4613 = vadd.f32 %v4612, %v4499
    %v4614 = vadd.f32 %v4613, %v4502
    %v4615 = vrot.slane %v4614, 4
    %v4616 = vadd.f32 %v4614, %v4615
    %v4617 = vrot.slane %v4616, 2
    %v4618 = vadd.f32 %v4616, %v4617
    %v4619 = vrot.slane %v4618, 1
    %v4620 = vadd.f32 %v4618, %v4619
    %v4621 = vadd.f32 %v4494, %v4497
    %v4622 = vadd.f32 %v4621, %v4500
    %v4623 = vadd.f32 %v4622, %v4503
    %v4624 = vrot.slane %v4623, 4
    %v4625 = vadd.f32 %v4623, %v4624
    %v4626 = vrot.slane %v4625, 2
    %v4627 = vadd.f32 %v4625, %v4626
    %v4628 = vrot.slane %v4627, 1
    %v4629 = vadd.f32 %v4627, %v4628
    %v4630 = vadd.f32 %v4504, %v4507
    %v4631 = vadd.f32 %v4630, %v4510
    %v4632 = vadd.f32 %v4631, %v4513
    %v4633 = vrot.slane %v4632, 4
    %v4634 = vadd.f32 %v4632, %v4633
    %v4635 = vrot.slane %v4634, 2
    %v4636 = vadd.f32 %v4634, %v4635
    %v4637 = vrot.slane %v4636, 1
    %v4638 = vadd.f32 %v4636, %v4637
    %v4639 = vadd.f32 %v4505, %v4508
    %v4640 = vadd.f32 %v4639, %v4511
    %v4641 = vadd.f32 %v4640, %v4514
    %v4642 = vrot.slane %v4641, 4
    %v4643 = vadd.f32 %v4641, %v4642
    %v4644 = vrot.slane %v4643, 2
    %v4645 = vadd.f32 %v4643, %v4644
    %v4646 = vrot.slane %v4645, 1
    %v4647 = vadd.f32 %v4645, %v4646
    %v4648 = vadd.f32 %v4506, %v4509
    %v4649 = vadd.f32 %v4648, %v4512
    %v4650 = vadd.f32 %v4649, %v4515
    %v4651 = vrot.slane %v4650, 4
    %v4652 = vadd.f32 %v4650, %v4651
    %v4653 = vrot.slane %v4652, 2
    %v4654 = vadd.f32 %v4652, %v4653
    %v4655 = vrot.slane %v4654, 1
    %v4656 = vadd.f32 %v4654, %v4655
    %v4657 = vadd.f32 %v4516, %v4519
    %v4658 = vadd.f32 %v4657, %v4522
    %v4659 = vadd.f32 %v4658, %v4525
    %v4660 = vrot.slane %v4659, 4
    %v4661 = vadd.f32 %v4659, %v4660
    %v4662 = vrot.slane %v4661, 2
    %v4663 = vadd.f32 %v4661, %v4662
    %v4664 = vrot.slane %v4663, 1
    %v4665 = vadd.f32 %v4663, %v4664
    %v4666 = vadd.f32 %v4517, %v4520
    %v4667 = vadd.f32 %v4666, %v4523
    %v4668 = vadd.f32 %v4667, %v4526
    %v4669 = vrot.slane %v4668, 4
    %v4670 = vadd.f32 %v4668, %v4669
    %v4671 = vrot.slane %v4670, 2
    %v4672 = vadd.f32 %v4670, %v4671
    %v4673 = vrot.slane %v4672, 1
    %v4674 = vadd.f32 %v4672, %v4673
    %v4675 = vadd.f32 %v4518, %v4521
    %v4676 = vadd.f32 %v4675, %v4524
    %v4677 = vadd.f32 %v4676, %v4527
    %v4678 = vrot.slane %v4677, 4
    %v4679 = vadd.f32 %v4677, %v4678
    %v4680 = vrot.slane %v4679, 2
    %v4681 = vadd.f32 %v4679, %v4680
    %v4682 = vrot.slane %v4681, 1
    %v4683 = vadd.f32 %v4681, %v4682
    %v4684 = vadd.f32 %v4528, %v4531
    %v4685 = vadd.f32 %v4684, %v4534
    %v4686 = vadd.f32 %v4685, %v4537
    %v4687 = vrot.slane %v4686, 4
    %v4688 = vadd.f32 %v4686, %v4687
    %v4689 = vrot.slane %v4688, 2
    %v4690 = vadd.f32 %v4688, %v4689
    %v4691 = vrot.slane %v4690, 1
    %v4692 = vadd.f32 %v4690, %v4691
    %v4693 = vadd.f32 %v4529, %v4532
    %v4694 = vadd.f32 %v4693, %v4535
    %v4695 = vadd.f32 %v4694, %v4538
    %v4696 = vrot.slane %v4695, 4
    %v4697 = vadd.f32 %v4695, %v4696
    %v4698 = vrot.slane %v4697, 2
    %v4699 = vadd.f32 %v4697, %v4698
    %v4700 = vrot.slane %v4699, 1
    %v4701 = vadd.f32 %v4699, %v4700
    %v4702 = vadd.f32 %v4530, %v4533
    %v4703 = vadd.f32 %v4702, %v4536
    %v4704 = vadd.f32 %v4703, %v4539
    %v4705 = vrot.slane %v4704, 4
    %v4706 = vadd.f32 %v4704, %v4705
    %v4707 = vrot.slane %v4706, 2
    %v4708 = vadd.f32 %v4706, %v4707
    %v4709 = vrot.slane %v4708, 1
    %v4710 = vadd.f32 %v4708, %v4709
    %v4711 = vadd.f32 %v4540, %v4543
    %v4712 = vadd.f32 %v4711, %v4546
    %v4713 = vadd.f32 %v4712, %v4549
    %v4714 = vrot.slane %v4713, 4
    %v4715 = vadd.f32 %v4713, %v4714
    %v4716 = vrot.slane %v4715, 2
    %v4717 = vadd.f32 %v4715, %v4716
    %v4718 = vrot.slane %v4717, 1
    %v4719 = vadd.f32 %v4717, %v4718
    %v4720 = vadd.f32 %v4541, %v4544
    %v4721 = vadd.f32 %v4720, %v4547
    %v4722 = vadd.f32 %v4721, %v4550
    %v4723 = vrot.slane %v4722, 4
    %v4724 = vadd.f32 %v4722, %v4723
    %v4725 = vrot.slane %v4724, 2
    %v4726 = vadd.f32 %v4724, %v4725
    %v4727 = vrot.slane %v4726, 1
    %v4728 = vadd.f32 %v4726, %v4727
    %v4729 = vadd.f32 %v4542, %v4545
    %v4730 = vadd.f32 %v4729, %v4548
    %v4731 = vadd.f32 %v4730, %v4551
    %v4732 = vrot.slane %v4731, 4
    %v4733 = vadd.f32 %v4731, %v4732
    %v4734 = vrot.slane %v4733, 2
    %v4735 = vadd.f32 %v4733, %v4734
    %v4736 = vrot.slane %v4735, 1
    %v4737 = vadd.f32 %v4735, %v4736
    %v4738 = vadd.f32 %v4552, %v4555
    %v4739 = vadd.f32 %v4738, %v4558
    %v4740 = vadd.f32 %v4739, %v4561
    %v4741 = vrot.slane %v4740, 4
    %v4742 = vadd.f32 %v4740, %v4741
    %v4743 = vrot.slane %v4742, 2
    %v4744 = vadd.f32 %v4742, %v4743
    %v4745 = vrot.slane %v4744, 1
    %v4746 = vadd.f32 %v4744, %v4745
    %v4747 = vadd.f32 %v4553, %v4556
    %v4748 = vadd.f32 %v4747, %v4559
    %v4749 = vadd.f32 %v4748, %v4562
    %v4750 = vrot.slane %v4749, 4
    %v4751 = vadd.f32 %v4749, %v4750
    %v4752 = vrot.slane %v4751, 2
    %v4753 = vadd.f32 %v4751, %v4752
    %v4754 = vrot.slane %v4753, 1
    %v4755 = vadd.f32 %v4753, %v4754
    %v4756 = vadd.f32 %v4554, %v4557
    %v4757 = vadd.f32 %v4756, %v4560
    %v4758 = vadd.f32 %v4757, %v4563
    %v4759 = vrot.slane %v4758, 4
    %v4760 = vadd.f32 %v4758, %v4759
    %v4761 = vrot.slane %v4760, 2
    %v4762 = vadd.f32 %v4760, %v4761
    %v4763 = vrot.slane %v4762, 1
    %v4764 = vadd.f32 %v4762, %v4763
    %v4765 = vadd.f32 %v4564, %v4567
    %v4766 = vadd.f32 %v4765, %v4570
    %v4767 = vadd.f32 %v4766, %v4573
    %v4768 = vrot.slane %v4767, 4
    %v4769 = vadd.f32 %v4767, %v4768
    %v4770 = vrot.slane %v4769, 2
    %v4771 = vadd.f32 %v4769, %v4770
    %v4772 = vrot.slane %v4771, 1
    %v4773 = vadd.f32 %v4771, %v4772
    %v4774 = vadd.f32 %v4565, %v4568
    %v4775 = vadd.f32 %v4774, %v4571
    %v4776 = vadd.f32 %v4775, %v4574
    %v4777 = vrot.slane %v4776, 4
    %v4778 = vadd.f32 %v4776, %v4777
    %v4779 = vrot.slane %v4778, 2
    %v4780 = vadd.f32 %v4778, %v4779
    %v4781 = vrot.slane %v4780, 1
    %v4782 = vadd.f32 %v4780, %v4781
    %v4783 = vadd.f32 %v4566, %v4569
    %v4784 = vadd.f32 %v4783, %v4572
    %v4785 = vadd.f32 %v4784, %v4575
    %v4786 = vrot.slane %v4785, 4
    %v4787 = vadd.f32 %v4785, %v4786
    %v4788 = vrot.slane %v4787, 2
    %v4789 = vadd.f32 %v4787, %v4788
    %v4790 = vrot.slane %v4789, 1
    %v4791 = vadd.f32 %v4789, %v4790
    %v4792 = vmul.f32 %v3350, %v3662
    %v4793 = vmul.f32 %v3359, %v3671
    %v4794 = vmul.f32 %v3368, %v3680
    %v4795 = vmul.f32 %v3377, %v3689
    %v4796 = vmul.f32 %v3386, %v3698
    %v4797 = vmul.f32 %v3395, %v3707
    %v4798 = vmul.f32 %v3404, %v3716
    %v4799 = vmul.f32 %v3413, %v3725
    %v4800 = vmul.f32 %v3422, %v3734
    %v4801 = vmul.f32 %v3431, %v3743
    %v4802 = vmul.f32 %v3440, %v3752
    %v4803 = vmul.f32 %v3449, %v3761
    %v4804 = vmul.f32 %v3458, %v3770
    %v4805 = vmul.f32 %v3467, %v3779
    %v4806 = vmul.f32 %v3476, %v3788
    %v4807 = vmul.f32 %v3485, %v3797
    %v4808 = vmul.f32 %v3494, %v3806
    %v4809 = vmul.f32 %v3503, %v3815
    %v4810 = vmul.f32 %v3512, %v3824
    %v4811 = vmul.f32 %v3521, %v3833
    %v4812 = vmul.f32 %v3530, %v3842
    %v4813 = vmul.f32 %v3539, %v3851
    %v4814 = vmul.f32 %v3548, %v3860
    %v4815 = vmul.f32 %v3557, %v3869
    %v4816 = vmul.f32 %v4792, %v4584
    %v4817 = vmul.f32 %v4793, %v4593
    %v4818 = vmul.f32 %v4794, %v4602
    %v4819 = vmul.f32 %v4795, %v4611
    %v4820 = vmul.f32 %v4796, %v4620
    %v4821 = vmul.f32 %v4797, %v4629
    %v4822 = vmul.f32 %v4798, %v4638
    %v4823 = vmul.f32 %v4799, %v4647
    %v4824 = vmul.f32 %v4800, %v4656
    %v4825 = vmul.f32 %v4801, %v4665
    %v4826 = vmul.f32 %v4802, %v4674
    %v4827 = vmul.f32 %v4803, %v4683
    %v4828 = vmul.f32 %v4804, %v4692
    %v4829 = vmul.f32 %v4805, %v4701
    %v4830 = vmul.f32 %v4806, %v4710
    %v4831 = vmul.f32 %v4807, %v4719
    %v4832 = vmul.f32 %v4808, %v4728
    %v4833 = vmul.f32 %v4809, %v4737
    %v4834 = vmul.f32 %v4810, %v4746
    %v4835 = vmul.f32 %v4811, %v4755
    %v4836 = vmul.f32 %v4812, %v4764
    %v4837 = vmul.f32 %v4813, %v4773
    %v4838 = vmul.f32 %v4814, %v4782
    %v4839 = vmul.f32 %v4815, %v4791
    %v4864 = vsel %vm1884, %v4819, %v4816
    %v4865 = vsel %vm1886, %v4822, %v4864
    %v4866 = vsel %vm1888, %v4825, %v4865
    %v4867 = vsel %vm1890, %v4828, %v4866
    %v4868 = vsel %vm1892, %v4831, %v4867
    %v4869 = vsel %vm1894, %v4834, %v4868
    %v4870 = vsel %vm1896, %v4837, %v4869
    %v4871 = vsel %vm1884, %v4820, %v4817
    %v4872 = vsel %vm1886, %v4823, %v4871
    %v4873 = vsel %vm1888, %v4826, %v4872
    %v4874 = vsel %vm1890, %v4829, %v4873
    %v4875 = vsel %vm1892, %v4832, %v4874
    %v4876 = vsel %vm1894, %v4835, %v4875
    %v4877 = vsel %vm1896, %v4838, %v4876
    %v4878 = vsel %vm1884, %v4821, %v4818
    %v4879 = vsel %vm1886, %v4824, %v4878
    %v4880 = vsel %vm1888, %v4827, %v4879
    %v4881 = vsel %vm1890, %v4830, %v4880
    %v4882 = vsel %vm1892, %v4833, %v4881
    %v4883 = vsel %vm1894, %v4836, %v4882
    %v4884 = vsel %vm1896, %v4839, %v4883
    %4888 = vst [vmem:[#allocation2 + $0x18] sm:$0xff] %v4870
    %4889 = vst [vmem:[#allocation2 + $0x20] sm:$0xff] %v4877
    %4890 = vst [vmem:[#allocation2 + $0x28] sm:$0xff] %v4884
    // Predicated region
    $region14: #{tpu_custom_call.1} parent=1 // pred_check
      _
    $region15: #{tpu_custom_call.1} parent=1 // pred_check_branch
      %4892 = sbr.rel (0) target = $region17
    $region16: #{tpu_custom_call.1} parent=1 // pred_region
      %s4894 = ssub.s32 768, 768
      %4895 = vsyncadd [#allocation3], %s4894
      %s4896 = sshll.u32 [#allocation2], 4
      %s4897 = int_to_ptr.vmem [resolvable:$true] %s4896
      %4902 = dma.vmem_to_hbm [thread:$0]  %s4897, 768, %s3, [#allocation3], 384, 384, 24
    $region17: #{tpu_custom_call.1} parent=1 // pred_fallthru
      _
    // Predicated region
    $region18: #{tpu_custom_call.1} parent=1 // pred_check
      _
    $region19: #{tpu_custom_call.1} parent=1 // pred_check_branch
      %4904 = sbr.rel (0) target = $region21
    $region20: #{tpu_custom_call.1} parent=1 // pred_region
      %4905 = dma.done [#allocation3], 768
    $region21: #{tpu_custom_call.1} parent=1 // pred_fallthru
      _
    %4906 = vsyncpa [#allocation3], 1

</llo_original>
